<compile_context>
chip_gen: v6e
topology: v6e:2x2x1
jax: 0.10.0
libtpu: 0.0.40
codegen_flags: <defaults>
</compile_context>

<pallas_src>
import math

import jax
import jax.numpy as jnp
from jax import lax
from jax.experimental import pallas as pl
from jax.experimental.pallas import tpu as pltpu

# --- module constants (from gpt.py) -----------------------------------------
EMBED = 64               # embedding_size
N_HEAD = 8               # n_head
HEAD_DIM = EMBED // N_HEAD
NEG_INF = -1e30          # additive-mask value (finite => no NaN risk)
ROWS_PER_STEP = 256      # target MXU M rows per grid step


def _attention_kernel(x_ref, wqkv_ref, bqkv_ref, w2t_ref, b2_ref, o_ref):
    """One grid step = Bt batch elements.

    x_ref    : (Bt, T, E)  input slab (f32)
    wqkv_ref : (E, 3E)     fused QKV weight, bf16 (1/sqrt(D) folded into Q cols)
    bqkv_ref : (1, 3E)     fused QKV bias, f32
    w2t_ref  : (E, E)      output projection weight transposed, bf16
    b2_ref   : (1, E)      output projection bias, f32
    o_ref    : (Bt, T, E)  output slab
    """
    Bt, T, E = x_ref.shape
    M = Bt * T
    H, D = N_HEAD, HEAD_DIM

    # ---- fused QKV projection: one (M,E)@(E,3E) MXU call, bf16 ops / f32 acc
    x2 = x_ref[...].reshape(M, E).astype(jnp.bfloat16)
    qkv = jnp.dot(x2, wqkv_ref[...], preferred_element_type=jnp.float32)
    qkv = qkv + bqkv_ref[...]                                    # (M, 3E) f32

    # lane-dense Q/K/V slabs as bf16 MXU operands
    q_all = qkv[:, 0:E].astype(jnp.bfloat16).reshape(Bt, T, E)           # (Bt,T,E)
    v_all = qkv[:, 2 * E:3 * E].astype(jnp.bfloat16).reshape(Bt, T, E)   # (Bt,T,E)
    k_all = qkv[:, E:2 * E].reshape(Bt, T, E)                            # f32
    # transpose K ONCE for all heads (per-head reads become sublane slices)
    kT_all = jnp.transpose(k_all, (0, 2, 1)).astype(jnp.bfloat16)        # (Bt,E,T)

    # additive causal mask built in-kernel; broadcast hoisted out of the loop
    row = lax.broadcasted_iota(jnp.int32, (T, T), 0)
    col = lax.broadcasted_iota(jnp.int32, (T, T), 1)
    mask = jnp.where(col <= row, 0.0, NEG_INF).astype(jnp.float32)       # (T,T)
    mask_b = jnp.broadcast_to(mask[None, :, :], (Bt, T, T))              # (Bt,T,T)

    # ---- per-head attention with per-head output-projection accumulation ----
    y = None                                   # lane-dense f32 (M, E) accumulator
    for h in range(H):
        lo = h * D
        q_h = q_all[:, :, lo:lo + D]           # (Bt,T,D) bf16  (lane slice)
        kT_h = kT_all[:, lo:lo + D, :]         # (Bt,D,T) bf16  (sublane slice)
        v_h = v_all[:, :, lo:lo + D]           # (Bt,T,D) bf16

        # scores (scale already folded into Wq/bq) + additive causal mask
        s = jnp.einsum('bqd,bdk->bqk', q_h, kT_h,
                       preferred_element_type=jnp.float32) + mask_b

        # numerically-stable softmax; reciprocal goes to the (otherwise idle) EUP
        m = jnp.max(s, axis=-1, keepdims=True)
        e = jnp.exp(s - m)
        l = jnp.sum(e, axis=-1, keepdims=True)
        p = (e * pl.reciprocal(l, approx=True)).astype(jnp.bfloat16)     # MXU operand

        o_h = jnp.einsum('bqk,bkd->bqd', p, v_h,
                         preferred_element_type=jnp.float32)             # (Bt,T,D)

        # accumulate output projection:  y += o_h @ W2^T[h rows]
        contrib = jnp.dot(o_h.reshape(M, D).astype(jnp.bfloat16),
                          w2t_ref[lo:lo + D, :],
                          preferred_element_type=jnp.float32)            # (M, E)
        y = contrib if y is None else y + contrib

    y = y + b2_ref[...]
    o_ref[...] = y.reshape(Bt, T, E).astype(o_ref.dtype)


def _pick_block_batch(B, T):
    """Batch elems per grid step: ~256 MXU rows, >= 2 grid steps when possible."""
    bt = max(1, min(B, max(1, ROWS_PER_STEP // T)))
    if B > 1:
        bt = min(bt, -(-B // 2))       # keep >= 2 steps so v7x's 2 TCs both work
    return bt


@jax.jit
def attention_forward(x, w1, b1, w2, b2):
    """Pallas implementation of Attention.forward.

    x  : (B, T, E)
    w1 : (3E, E)  -- nn.Linear(E, 3E).weight   (PyTorch (out, in) layout)
    b1 : (3E,)    -- nn.Linear(E, 3E).bias
    w2 : (E, E)   -- nn.Linear(E, E).weight
    b2 : (E,)     -- nn.Linear(E, E).bias
    """
    B, T, E = x.shape
    assert E == EMBED
    assert T % 8 == 0, "sequence length must be a multiple of 8 (sublane tiling)"

    # --- glue: fuse, scale-fold and bf16-cast weights once (plain JAX) ------
    scale = 1.0 / math.sqrt(HEAD_DIM)
    scale_vec = jnp.concatenate([jnp.full((E,), scale, jnp.float32),
                                 jnp.ones((2 * E,), jnp.float32)])
    wqkv = (w1.astype(jnp.float32) * scale_vec[:, None]).T.astype(jnp.bfloat16)  # (E,3E)
    bqkv = (b1.astype(jnp.float32) * scale_vec).reshape(1, 3 * E)                # (1,3E) f32
    w2t = w2.T.astype(jnp.bfloat16)                                              # (E,E)
    b2r = b2.reshape(1, E).astype(jnp.float32)                                   # (1,E)

    Bt = _pick_block_batch(B, T)
    n_steps = -(-B // Bt)
    Bp = n_steps * Bt
    x_in = x if Bp == B else jnp.concatenate(
        [x, jnp.zeros((Bp - B, T, E), x.dtype)], axis=0)   # pad tail batch

    full2 = lambda shape: pl.BlockSpec(shape, lambda b: (0, 0))

    out = pl.pallas_call(
        _attention_kernel,
        out_shape=jax.ShapeDtypeStruct((Bp, T, E), x.dtype),
        grid_spec=pltpu.PrefetchScalarGridSpec(
            num_scalar_prefetch=0,
            grid=(n_steps,),
            in_specs=[
                pl.BlockSpec((Bt, T, E), lambda b: (b, 0, 0)),  # x
                full2((E, 3 * E)),                              # wqkv (bf16)
                full2((1, 3 * E)),                              # bqkv (f32)
                full2((E, E)),                                  # w2.T (bf16)
                full2((1, E)),                                  # b2   (f32)
            ],
            out_specs=pl.BlockSpec((Bt, T, E), lambda b: (b, 0, 0)),
        ),
        compiler_params=pltpu.CompilerParams(
            dimension_semantics=("parallel",)),
    )(x_in, wqkv, bqkv, w2t, b2r)

    return out if Bp == B else out[:B]


def _reference(x, w1, b1, w2, b2):
    """Pure-JAX reference mirroring the PyTorch forward."""
    B, T, E = x.shape
    qkv = x @ w1.T + b1
    q, k, v = jnp.split(qkv, 3, axis=2)
    reshape_heads = lambda t: t.reshape(B, T, N_HEAD, HEAD_DIM).transpose(0, 2, 1, 3)
    q, k, v = map(reshape_heads, (q, k, v))
    s = (q @ k.transpose(0, 1, 3, 2)) * (1.0 / math.sqrt(HEAD_DIM))
    mask = jnp.tril(jnp.ones((T, T), dtype=bool))
    s = jnp.where(mask[None, None], s, -jnp.inf)
    p = jax.nn.softmax(s, axis=-1)
    o = (p @ v).transpose(0, 2, 1, 3).reshape(B, T, E)
    return o @ w2.T + b2


if __name__ == "__main__":
    key = jax.random.PRNGKey(0)
    kx, k1, k2, k3, k4 = jax.random.split(key, 5)

    # module-native sizes: batch_size=16, block_size=64, embedding_size=64
    B, T, E = 16, 64, EMBED
    x = jax.random.normal(kx, (B, T, E), dtype=jnp.float32)

    # deterministic synthetic parameters (PyTorch nn.Linear shapes: (out, in))
    w1 = 0.05 * jax.random.normal(k1, (3 * E, E), dtype=jnp.float32)
    b1 = 0.05 * jax.random.normal(k2, (3 * E,), dtype=jnp.float32)
    w2 = 0.05 * jax.random.normal(k3, (E, E), dtype=jnp.float32)
    b2 = 0.05 * jax.random.normal(k4, (E,), dtype=jnp.float32)

    out = attention_forward(x, w1, b1, w2, b2)
    jax.block_until_ready(out)

    ref = _reference(x, w1, b1, w2, b2)
    assert out.shape == (B, T, E)
    max_err = float(jnp.max(jnp.abs(out - ref)))
    # bf16 MXU operands + EUP approx reciprocal => ~1e-2 class accuracy
    assert jnp.allclose(out, ref, atol=2e-2, rtol=2e-2), \
        f"mismatch vs reference (max abs err {max_err:.2e})"

    print("KERNEL_OK")
</pallas_src>

<mosaic_0001>
module attributes {stable_mosaic.version = 11 : i64} {
  func.func @_attention_kernel(%arg0: i32, %arg1: memref<4x64x64xf32, #tpu.memory_space<vmem>>, %arg2: memref<64x192xbf16, #tpu.memory_space<vmem>>, %arg3: memref<1x192xf32, #tpu.memory_space<vmem>>, %arg4: memref<64x64xbf16, #tpu.memory_space<vmem>>, %arg5: memref<1x64xf32, #tpu.memory_space<vmem>>, %arg6: memref<4x64x64xf32, #tpu.memory_space<vmem>>) attributes {dimension_semantics = [#tpu.dimension_semantics<parallel>], iteration_bounds = array<i64: 4>, scalar_prefetch = 0 : i64, scratch_operands = 0 : i64, tpu.core_type = #tpu.core_type<tc>, window_params = [{transform_indices = @transform_0, window_bounds = array<i64: 4, 64, 64>}, {pipeline_mode = #tpu.pipeline_mode<synchronous>, transform_indices = @transform_1, window_bounds = array<i64: 64, 192>}, {pipeline_mode = #tpu.pipeline_mode<synchronous>, transform_indices = @transform_2, window_bounds = array<i64: 1, 192>}, {pipeline_mode = #tpu.pipeline_mode<synchronous>, transform_indices = @transform_3, window_bounds = array<i64: 64, 64>}, {pipeline_mode = #tpu.pipeline_mode<synchronous>, transform_indices = @transform_4, window_bounds = array<i64: 1, 64>}, {transform_indices = @transform_5, window_bounds = array<i64: 4, 64, 64>}]} {
    %c0 = arith.constant 0 : index
    %c0_0 = arith.constant 0 : index
    %c0_1 = arith.constant 0 : index
    %0 = vector.load %arg1[%c0, %c0_0, %c0_1] : memref<4x64x64xf32, #tpu.memory_space<vmem>>, vector<4x64x64xf32>
    %1 = vector.shape_cast %0 : vector<4x64x64xf32> to vector<256x64xf32>
    %2 = arith.truncf %1 : vector<256x64xf32> to vector<256x64xbf16>
    %c0_2 = arith.constant 0 : index
    %c0_3 = arith.constant 0 : index
    %3 = vector.load %arg2[%c0_2, %c0_3] : memref<64x192xbf16, #tpu.memory_space<vmem>>, vector<64x192xbf16>
    %cst = arith.constant dense<0.000000e+00> : vector<256x192xf32>
    %4 = tpu.matmul %2, %3, %cst {dimension_numbers = #tpu.dot_dimension_numbers<[1], [0], [0], [1], [0, 0, 1, 1], [], []>} : vector<256x64xbf16>, vector<64x192xbf16>, vector<256x192xf32> -> vector<256x192xf32>
    %c0_4 = arith.constant 0 : index
    %c0_5 = arith.constant 0 : index
    %5 = vector.load %arg3[%c0_4, %c0_5] : memref<1x192xf32, #tpu.memory_space<vmem>>, vector<1x192xf32>
    %6 = vector.broadcast %5 : vector<1x192xf32> to vector<256x192xf32>
    %7 = arith.addf %4, %6 : vector<256x192xf32>
    %8 = vector.extract_strided_slice %7 {offsets = [0, 0], sizes = [256, 64], strides = [1, 1]} : vector<256x192xf32> to vector<256x64xf32>
    %9 = arith.truncf %8 : vector<256x64xf32> to vector<256x64xbf16>
    %10 = vector.shape_cast %9 : vector<256x64xbf16> to vector<4x64x64xbf16>
    %11 = vector.extract_strided_slice %7 {offsets = [0, 128], sizes = [256, 64], strides = [1, 1]} : vector<256x192xf32> to vector<256x64xf32>
    %12 = arith.truncf %11 : vector<256x64xf32> to vector<256x64xbf16>
    %13 = vector.shape_cast %12 : vector<256x64xbf16> to vector<4x64x64xbf16>
    %14 = vector.extract_strided_slice %7 {offsets = [0, 64], sizes = [256, 64], strides = [1, 1]} : vector<256x192xf32> to vector<256x64xf32>
    %15 = vector.shape_cast %14 : vector<256x64xf32> to vector<4x64x64xf32>
    %16 = tpu.transpose %15, [0, 2, 1] : vector<4x64x64xf32> -> vector<4x64x64xf32>
    %17 = arith.truncf %16 : vector<4x64x64xf32> to vector<4x64x64xbf16>
    %18 = tpu.iota {dimensions = array<i32: 0>} : vector<64x64xi32>
    %19 = tpu.iota {dimensions = array<i32: 1>} : vector<64x64xi32>
    %20 = arith.cmpi sle, %19, %18 : vector<64x64xi32>
    %cst_6 = arith.constant 0.000000e+00 : f32
    %cst_7 = arith.constant -1.000000e+30 : f32
    %21 = vector.broadcast %cst_6 : f32 to vector<64x64xf32>
    %22 = vector.broadcast %cst_7 : f32 to vector<64x64xf32>
    %23 = arith.select %20, %21, %22 : vector<64x64xi1>, vector<64x64xf32>
    %24 = vector.shape_cast %23 : vector<64x64xf32> to vector<1x64x64xf32>
    %25 = vector.shape_cast %24 : vector<1x64x64xf32> to vector<1x64x64xf32>
    %26 = vector.broadcast %25 : vector<1x64x64xf32> to vector<4x64x64xf32>
    %27 = vector.extract_strided_slice %10 {offsets = [0, 0, 0], sizes = [4, 64, 8], strides = [1, 1, 1]} : vector<4x64x64xbf16> to vector<4x64x8xbf16>
    %28 = vector.extract_strided_slice %17 {offsets = [0, 0, 0], sizes = [4, 8, 64], strides = [1, 1, 1]} : vector<4x64x64xbf16> to vector<4x8x64xbf16>
    %29 = vector.extract_strided_slice %13 {offsets = [0, 0, 0], sizes = [4, 64, 8], strides = [1, 1, 1]} : vector<4x64x64xbf16> to vector<4x64x8xbf16>
    "tpu.trace_start"() <{level = 10 : i32, message = "bqd,bdk->bqk"}> : () -> ()
    %cst_8 = arith.constant dense<0.000000e+00> : vector<4x64x64xf32>
    %30 = tpu.matmul %27, %28, %cst_8 {dimension_numbers = #tpu.dot_dimension_numbers<[2], [1], [1], [2], [0, 0, 0, 1, 1, 2], [0], [0]>} : vector<4x64x8xbf16>, vector<4x8x64xbf16>, vector<4x64x64xf32> -> vector<4x64x64xf32>
    "tpu.trace_stop"() : () -> ()
    %31 = arith.addf %30, %26 : vector<4x64x64xf32>
    %cst_9 = arith.constant dense<0xFF800000> : vector<4x64xf32>
    %32 = vector.multi_reduction <maximumf>, %31, %cst_9 [2] : vector<4x64x64xf32> to vector<4x64xf32>
    %33 = vector.shape_cast %32 : vector<4x64xf32> to vector<4x64x1xf32>
    %34 = vector.broadcast %33 : vector<4x64x1xf32> to vector<4x64x64xf32>
    %35 = arith.subf %31, %34 : vector<4x64x64xf32>
    %36 = math.exp %35 : vector<4x64x64xf32>
    %cst_10 = arith.constant dense<0.000000e+00> : vector<4x64xf32>
    %37 = vector.multi_reduction <add>, %36, %cst_10 [2] : vector<4x64x64xf32> to vector<4x64xf32>
    %38 = vector.shape_cast %37 : vector<4x64xf32> to vector<4x64x1xf32>
    %39 = tpu.reciprocal %38 {approx = true} : vector<4x64x1xf32> -> vector<4x64x1xf32>
    %40 = vector.broadcast %39 : vector<4x64x1xf32> to vector<4x64x64xf32>
    %41 = arith.mulf %36, %40 : vector<4x64x64xf32>
    %42 = arith.truncf %41 : vector<4x64x64xf32> to vector<4x64x64xbf16>
    "tpu.trace_start"() <{level = 10 : i32, message = "bqk,bkd->bqd"}> : () -> ()
    %cst_11 = arith.constant dense<0.000000e+00> : vector<4x64x8xf32>
    %43 = tpu.matmul %42, %29, %cst_11 {dimension_numbers = #tpu.dot_dimension_numbers<[2], [1], [1], [2], [0, 0, 0, 1, 1, 2], [0], [0]>} : vector<4x64x64xbf16>, vector<4x64x8xbf16>, vector<4x64x8xf32> -> vector<4x64x8xf32>
    "tpu.trace_stop"() : () -> ()
    %44 = vector.shape_cast %43 : vector<4x64x8xf32> to vector<256x8xf32>
    %45 = arith.truncf %44 : vector<256x8xf32> to vector<256x8xbf16>
    %c0_12 = arith.constant 0 : index
    %c0_13 = arith.constant 0 : index
    %46 = vector.load %arg4[%c0_12, %c0_13] : memref<64x64xbf16, #tpu.memory_space<vmem>>, vector<8x64xbf16>
    %cst_14 = arith.constant dense<0.000000e+00> : vector<256x64xf32>
    %47 = tpu.matmul %45, %46, %cst_14 {dimension_numbers = #tpu.dot_dimension_numbers<[1], [0], [0], [1], [0, 0, 1, 1], [], []>} : vector<256x8xbf16>, vector<8x64xbf16>, vector<256x64xf32> -> vector<256x64xf32>
    %48 = vector.extract_strided_slice %10 {offsets = [0, 0, 8], sizes = [4, 64, 8], strides = [1, 1, 1]} : vector<4x64x64xbf16> to vector<4x64x8xbf16>
    %49 = vector.extract_strided_slice %17 {offsets = [0, 8, 0], sizes = [4, 8, 64], strides = [1, 1, 1]} : vector<4x64x64xbf16> to vector<4x8x64xbf16>
    %50 = vector.extract_strided_slice %13 {offsets = [0, 0, 8], sizes = [4, 64, 8], strides = [1, 1, 1]} : vector<4x64x64xbf16> to vector<4x64x8xbf16>
    "tpu.trace_start"() <{level = 10 : i32, message = "bqd,bdk->bqk"}> : () -> ()
    %cst_15 = arith.constant dense<0.000000e+00> : vector<4x64x64xf32>
    %51 = tpu.matmul %48, %49, %cst_15 {dimension_numbers = #tpu.dot_dimension_numbers<[2], [1], [1], [2], [0, 0, 0, 1, 1, 2], [0], [0]>} : vector<4x64x8xbf16>, vector<4x8x64xbf16>, vector<4x64x64xf32> -> vector<4x64x64xf32>
    "tpu.trace_stop"() : () -> ()
    %52 = arith.addf %51, %26 : vector<4x64x64xf32>
    %cst_16 = arith.constant dense<0xFF800000> : vector<4x64xf32>
    %53 = vector.multi_reduction <maximumf>, %52, %cst_16 [2] : vector<4x64x64xf32> to vector<4x64xf32>
    %54 = vector.shape_cast %53 : vector<4x64xf32> to vector<4x64x1xf32>
    %55 = vector.broadcast %54 : vector<4x64x1xf32> to vector<4x64x64xf32>
    %56 = arith.subf %52, %55 : vector<4x64x64xf32>
    %57 = math.exp %56 : vector<4x64x64xf32>
    %cst_17 = arith.constant dense<0.000000e+00> : vector<4x64xf32>
    %58 = vector.multi_reduction <add>, %57, %cst_17 [2] : vector<4x64x64xf32> to vector<4x64xf32>
    %59 = vector.shape_cast %58 : vector<4x64xf32> to vector<4x64x1xf32>
    %60 = tpu.reciprocal %59 {approx = true} : vector<4x64x1xf32> -> vector<4x64x1xf32>
    %61 = vector.broadcast %60 : vector<4x64x1xf32> to vector<4x64x64xf32>
    %62 = arith.mulf %57, %61 : vector<4x64x64xf32>
    %63 = arith.truncf %62 : vector<4x64x64xf32> to vector<4x64x64xbf16>
    "tpu.trace_start"() <{level = 10 : i32, message = "bqk,bkd->bqd"}> : () -> ()
    %cst_18 = arith.constant dense<0.000000e+00> : vector<4x64x8xf32>
    %64 = tpu.matmul %63, %50, %cst_18 {dimension_numbers = #tpu.dot_dimension_numbers<[2], [1], [1], [2], [0, 0, 0, 1, 1, 2], [0], [0]>} : vector<4x64x64xbf16>, vector<4x64x8xbf16>, vector<4x64x8xf32> -> vector<4x64x8xf32>
    "tpu.trace_stop"() : () -> ()
    %65 = vector.shape_cast %64 : vector<4x64x8xf32> to vector<256x8xf32>
    %66 = arith.truncf %65 : vector<256x8xf32> to vector<256x8xbf16>
    %c8 = arith.constant 8 : index
    %c0_19 = arith.constant 0 : index
    %67 = vector.load %arg4[%c8, %c0_19] : memref<64x64xbf16, #tpu.memory_space<vmem>>, vector<8x64xbf16>
    %cst_20 = arith.constant dense<0.000000e+00> : vector<256x64xf32>
    %68 = tpu.matmul %66, %67, %cst_20 {dimension_numbers = #tpu.dot_dimension_numbers<[1], [0], [0], [1], [0, 0, 1, 1], [], []>} : vector<256x8xbf16>, vector<8x64xbf16>, vector<256x64xf32> -> vector<256x64xf32>
    %69 = arith.addf %47, %68 : vector<256x64xf32>
    %70 = vector.extract_strided_slice %10 {offsets = [0, 0, 16], sizes = [4, 64, 8], strides = [1, 1, 1]} : vector<4x64x64xbf16> to vector<4x64x8xbf16>
    %71 = vector.extract_strided_slice %17 {offsets = [0, 16, 0], sizes = [4, 8, 64], strides = [1, 1, 1]} : vector<4x64x64xbf16> to vector<4x8x64xbf16>
    %72 = vector.extract_strided_slice %13 {offsets = [0, 0, 16], sizes = [4, 64, 8], strides = [1, 1, 1]} : vector<4x64x64xbf16> to vector<4x64x8xbf16>
    "tpu.trace_start"() <{level = 10 : i32, message = "bqd,bdk->bqk"}> : () -> ()
    %cst_21 = arith.constant dense<0.000000e+00> : vector<4x64x64xf32>
    %73 = tpu.matmul %70, %71, %cst_21 {dimension_numbers = #tpu.dot_dimension_numbers<[2], [1], [1], [2], [0, 0, 0, 1, 1, 2], [0], [0]>} : vector<4x64x8xbf16>, vector<4x8x64xbf16>, vector<4x64x64xf32> -> vector<4x64x64xf32>
    "tpu.trace_stop"() : () -> ()
    %74 = arith.addf %73, %26 : vector<4x64x64xf32>
    %cst_22 = arith.constant dense<0xFF800000> : vector<4x64xf32>
    %75 = vector.multi_reduction <maximumf>, %74, %cst_22 [2] : vector<4x64x64xf32> to vector<4x64xf32>
    %76 = vector.shape_cast %75 : vector<4x64xf32> to vector<4x64x1xf32>
    %77 = vector.broadcast %76 : vector<4x64x1xf32> to vector<4x64x64xf32>
    %78 = arith.subf %74, %77 : vector<4x64x64xf32>
    %79 = math.exp %78 : vector<4x64x64xf32>
    %cst_23 = arith.constant dense<0.000000e+00> : vector<4x64xf32>
    %80 = vector.multi_reduction <add>, %79, %cst_23 [2] : vector<4x64x64xf32> to vector<4x64xf32>
    %81 = vector.shape_cast %80 : vector<4x64xf32> to vector<4x64x1xf32>
    %82 = tpu.reciprocal %81 {approx = true} : vector<4x64x1xf32> -> vector<4x64x1xf32>
    %83 = vector.broadcast %82 : vector<4x64x1xf32> to vector<4x64x64xf32>
    %84 = arith.mulf %79, %83 : vector<4x64x64xf32>
    %85 = arith.truncf %84 : vector<4x64x64xf32> to vector<4x64x64xbf16>
    "tpu.trace_start"() <{level = 10 : i32, message = "bqk,bkd->bqd"}> : () -> ()
    %cst_24 = arith.constant dense<0.000000e+00> : vector<4x64x8xf32>
    %86 = tpu.matmul %85, %72, %cst_24 {dimension_numbers = #tpu.dot_dimension_numbers<[2], [1], [1], [2], [0, 0, 0, 1, 1, 2], [0], [0]>} : vector<4x64x64xbf16>, vector<4x64x8xbf16>, vector<4x64x8xf32> -> vector<4x64x8xf32>
    "tpu.trace_stop"() : () -> ()
    %87 = vector.shape_cast %86 : vector<4x64x8xf32> to vector<256x8xf32>
    %88 = arith.truncf %87 : vector<256x8xf32> to vector<256x8xbf16>
    %c16 = arith.constant 16 : index
    %c0_25 = arith.constant 0 : index
    %89 = vector.load %arg4[%c16, %c0_25] : memref<64x64xbf16, #tpu.memory_space<vmem>>, vector<8x64xbf16>
    %cst_26 = arith.constant dense<0.000000e+00> : vector<256x64xf32>
    %90 = tpu.matmul %88, %89, %cst_26 {dimension_numbers = #tpu.dot_dimension_numbers<[1], [0], [0], [1], [0, 0, 1, 1], [], []>} : vector<256x8xbf16>, vector<8x64xbf16>, vector<256x64xf32> -> vector<256x64xf32>
    %91 = arith.addf %69, %90 : vector<256x64xf32>
    %92 = vector.extract_strided_slice %10 {offsets = [0, 0, 24], sizes = [4, 64, 8], strides = [1, 1, 1]} : vector<4x64x64xbf16> to vector<4x64x8xbf16>
    %93 = vector.extract_strided_slice %17 {offsets = [0, 24, 0], sizes = [4, 8, 64], strides = [1, 1, 1]} : vector<4x64x64xbf16> to vector<4x8x64xbf16>
    %94 = vector.extract_strided_slice %13 {offsets = [0, 0, 24], sizes = [4, 64, 8], strides = [1, 1, 1]} : vector<4x64x64xbf16> to vector<4x64x8xbf16>
    "tpu.trace_start"() <{level = 10 : i32, message = "bqd,bdk->bqk"}> : () -> ()
    %cst_27 = arith.constant dense<0.000000e+00> : vector<4x64x64xf32>
    %95 = tpu.matmul %92, %93, %cst_27 {dimension_numbers = #tpu.dot_dimension_numbers<[2], [1], [1], [2], [0, 0, 0, 1, 1, 2], [0], [0]>} : vector<4x64x8xbf16>, vector<4x8x64xbf16>, vector<4x64x64xf32> -> vector<4x64x64xf32>
    "tpu.trace_stop"() : () -> ()
    %96 = arith.addf %95, %26 : vector<4x64x64xf32>
    %cst_28 = arith.constant dense<0xFF800000> : vector<4x64xf32>
    %97 = vector.multi_reduction <maximumf>, %96, %cst_28 [2] : vector<4x64x64xf32> to vector<4x64xf32>
    %98 = vector.shape_cast %97 : vector<4x64xf32> to vector<4x64x1xf32>
    %99 = vector.broadcast %98 : vector<4x64x1xf32> to vector<4x64x64xf32>
    %100 = arith.subf %96, %99 : vector<4x64x64xf32>
    %101 = math.exp %100 : vector<4x64x64xf32>
    %cst_29 = arith.constant dense<0.000000e+00> : vector<4x64xf32>
    %102 = vector.multi_reduction <add>, %101, %cst_29 [2] : vector<4x64x64xf32> to vector<4x64xf32>
    %103 = vector.shape_cast %102 : vector<4x64xf32> to vector<4x64x1xf32>
    %104 = tpu.reciprocal %103 {approx = true} : vector<4x64x1xf32> -> vector<4x64x1xf32>
    %105 = vector.broadcast %104 : vector<4x64x1xf32> to vector<4x64x64xf32>
    %106 = arith.mulf %101, %105 : vector<4x64x64xf32>
    %107 = arith.truncf %106 : vector<4x64x64xf32> to vector<4x64x64xbf16>
    "tpu.trace_start"() <{level = 10 : i32, message = "bqk,bkd->bqd"}> : () -> ()
    %cst_30 = arith.constant dense<0.000000e+00> : vector<4x64x8xf32>
    %108 = tpu.matmul %107, %94, %cst_30 {dimension_numbers = #tpu.dot_dimension_numbers<[2], [1], [1], [2], [0, 0, 0, 1, 1, 2], [0], [0]>} : vector<4x64x64xbf16>, vector<4x64x8xbf16>, vector<4x64x8xf32> -> vector<4x64x8xf32>
    "tpu.trace_stop"() : () -> ()
    %109 = vector.shape_cast %108 : vector<4x64x8xf32> to vector<256x8xf32>
    %110 = arith.truncf %109 : vector<256x8xf32> to vector<256x8xbf16>
    %c24 = arith.constant 24 : index
    %c0_31 = arith.constant 0 : index
    %111 = vector.load %arg4[%c24, %c0_31] : memref<64x64xbf16, #tpu.memory_space<vmem>>, vector<8x64xbf16>
    %cst_32 = arith.constant dense<0.000000e+00> : vector<256x64xf32>
    %112 = tpu.matmul %110, %111, %cst_32 {dimension_numbers = #tpu.dot_dimension_numbers<[1], [0], [0], [1], [0, 0, 1, 1], [], []>} : vector<256x8xbf16>, vector<8x64xbf16>, vector<256x64xf32> -> vector<256x64xf32>
    %113 = arith.addf %91, %112 : vector<256x64xf32>
    %114 = vector.extract_strided_slice %10 {offsets = [0, 0, 32], sizes = [4, 64, 8], strides = [1, 1, 1]} : vector<4x64x64xbf16> to vector<4x64x8xbf16>
    %115 = vector.extract_strided_slice %17 {offsets = [0, 32, 0], sizes = [4, 8, 64], strides = [1, 1, 1]} : vector<4x64x64xbf16> to vector<4x8x64xbf16>
    %116 = vector.extract_strided_slice %13 {offsets = [0, 0, 32], sizes = [4, 64, 8], strides = [1, 1, 1]} : vector<4x64x64xbf16> to vector<4x64x8xbf16>
    "tpu.trace_start"() <{level = 10 : i32, message = "bqd,bdk->bqk"}> : () -> ()
    %cst_33 = arith.constant dense<0.000000e+00> : vector<4x64x64xf32>
    %117 = tpu.matmul %114, %115, %cst_33 {dimension_numbers = #tpu.dot_dimension_numbers<[2], [1], [1], [2], [0, 0, 0, 1, 1, 2], [0], [0]>} : vector<4x64x8xbf16>, vector<4x8x64xbf16>, vector<4x64x64xf32> -> vector<4x64x64xf32>
    "tpu.trace_stop"() : () -> ()
    %118 = arith.addf %117, %26 : vector<4x64x64xf32>
    %cst_34 = arith.constant dense<0xFF800000> : vector<4x64xf32>
    %119 = vector.multi_reduction <maximumf>, %118, %cst_34 [2] : vector<4x64x64xf32> to vector<4x64xf32>
    %120 = vector.shape_cast %119 : vector<4x64xf32> to vector<4x64x1xf32>
    %121 = vector.broadcast %120 : vector<4x64x1xf32> to vector<4x64x64xf32>
    %122 = arith.subf %118, %121 : vector<4x64x64xf32>
    %123 = math.exp %122 : vector<4x64x64xf32>
    %cst_35 = arith.constant dense<0.000000e+00> : vector<4x64xf32>
    %124 = vector.multi_reduction <add>, %123, %cst_35 [2] : vector<4x64x64xf32> to vector<4x64xf32>
    %125 = vector.shape_cast %124 : vector<4x64xf32> to vector<4x64x1xf32>
    %126 = tpu.reciprocal %125 {approx = true} : vector<4x64x1xf32> -> vector<4x64x1xf32>
    %127 = vector.broadcast %126 : vector<4x64x1xf32> to vector<4x64x64xf32>
    %128 = arith.mulf %123, %127 : vector<4x64x64xf32>
    %129 = arith.truncf %128 : vector<4x64x64xf32> to vector<4x64x64xbf16>
    "tpu.trace_start"() <{level = 10 : i32, message = "bqk,bkd->bqd"}> : () -> ()
    %cst_36 = arith.constant dense<0.000000e+00> : vector<4x64x8xf32>
    %130 = tpu.matmul %129, %116, %cst_36 {dimension_numbers = #tpu.dot_dimension_numbers<[2], [1], [1], [2], [0, 0, 0, 1, 1, 2], [0], [0]>} : vector<4x64x64xbf16>, vector<4x64x8xbf16>, vector<4x64x8xf32> -> vector<4x64x8xf32>
    "tpu.trace_stop"() : () -> ()
    %131 = vector.shape_cast %130 : vector<4x64x8xf32> to vector<256x8xf32>
    %132 = arith.truncf %131 : vector<256x8xf32> to vector<256x8xbf16>
    %c32 = arith.constant 32 : index
    %c0_37 = arith.constant 0 : index
    %133 = vector.load %arg4[%c32, %c0_37] : memref<64x64xbf16, #tpu.memory_space<vmem>>, vector<8x64xbf16>
    %cst_38 = arith.constant dense<0.000000e+00> : vector<256x64xf32>
    %134 = tpu.matmul %132, %133, %cst_38 {dimension_numbers = #tpu.dot_dimension_numbers<[1], [0], [0], [1], [0, 0, 1, 1], [], []>} : vector<256x8xbf16>, vector<8x64xbf16>, vector<256x64xf32> -> vector<256x64xf32>
    %135 = arith.addf %113, %134 : vector<256x64xf32>
    %136 = vector.extract_strided_slice %10 {offsets = [0, 0, 40], sizes = [4, 64, 8], strides = [1, 1, 1]} : vector<4x64x64xbf16> to vector<4x64x8xbf16>
    %137 = vector.extract_strided_slice %17 {offsets = [0, 40, 0], sizes = [4, 8, 64], strides = [1, 1, 1]} : vector<4x64x64xbf16> to vector<4x8x64xbf16>
    %138 = vector.extract_strided_slice %13 {offsets = [0, 0, 40], sizes = [4, 64, 8], strides = [1, 1, 1]} : vector<4x64x64xbf16> to vector<4x64x8xbf16>
    "tpu.trace_start"() <{level = 10 : i32, message = "bqd,bdk->bqk"}> : () -> ()
    %cst_39 = arith.constant dense<0.000000e+00> : vector<4x64x64xf32>
    %139 = tpu.matmul %136, %137, %cst_39 {dimension_numbers = #tpu.dot_dimension_numbers<[2], [1], [1], [2], [0, 0, 0, 1, 1, 2], [0], [0]>} : vector<4x64x8xbf16>, vector<4x8x64xbf16>, vector<4x64x64xf32> -> vector<4x64x64xf32>
    "tpu.trace_stop"() : () -> ()
    %140 = arith.addf %139, %26 : vector<4x64x64xf32>
    %cst_40 = arith.constant dense<0xFF800000> : vector<4x64xf32>
    %141 = vector.multi_reduction <maximumf>, %140, %cst_40 [2] : vector<4x64x64xf32> to vector<4x64xf32>
    %142 = vector.shape_cast %141 : vector<4x64xf32> to vector<4x64x1xf32>
    %143 = vector.broadcast %142 : vector<4x64x1xf32> to vector<4x64x64xf32>
    %144 = arith.subf %140, %143 : vector<4x64x64xf32>
    %145 = math.exp %144 : vector<4x64x64xf32>
    %cst_41 = arith.constant dense<0.000000e+00> : vector<4x64xf32>
    %146 = vector.multi_reduction <add>, %145, %cst_41 [2] : vector<4x64x64xf32> to vector<4x64xf32>
    %147 = vector.shape_cast %146 : vector<4x64xf32> to vector<4x64x1xf32>
    %148 = tpu.reciprocal %147 {approx = true} : vector<4x64x1xf32> -> vector<4x64x1xf32>
    %149 = vector.broadcast %148 : vector<4x64x1xf32> to vector<4x64x64xf32>
    %150 = arith.mulf %145, %149 : vector<4x64x64xf32>
    %151 = arith.truncf %150 : vector<4x64x64xf32> to vector<4x64x64xbf16>
    "tpu.trace_start"() <{level = 10 : i32, message = "bqk,bkd->bqd"}> : () -> ()
    %cst_42 = arith.constant dense<0.000000e+00> : vector<4x64x8xf32>
    %152 = tpu.matmul %151, %138, %cst_42 {dimension_numbers = #tpu.dot_dimension_numbers<[2], [1], [1], [2], [0, 0, 0, 1, 1, 2], [0], [0]>} : vector<4x64x64xbf16>, vector<4x64x8xbf16>, vector<4x64x8xf32> -> vector<4x64x8xf32>
    "tpu.trace_stop"() : () -> ()
    %153 = vector.shape_cast %152 : vector<4x64x8xf32> to vector<256x8xf32>
    %154 = arith.truncf %153 : vector<256x8xf32> to vector<256x8xbf16>
    %c40 = arith.constant 40 : index
    %c0_43 = arith.constant 0 : index
    %155 = vector.load %arg4[%c40, %c0_43] : memref<64x64xbf16, #tpu.memory_space<vmem>>, vector<8x64xbf16>
    %cst_44 = arith.constant dense<0.000000e+00> : vector<256x64xf32>
    %156 = tpu.matmul %154, %155, %cst_44 {dimension_numbers = #tpu.dot_dimension_numbers<[1], [0], [0], [1], [0, 0, 1, 1], [], []>} : vector<256x8xbf16>, vector<8x64xbf16>, vector<256x64xf32> -> vector<256x64xf32>
    %157 = arith.addf %135, %156 : vector<256x64xf32>
    %158 = vector.extract_strided_slice %10 {offsets = [0, 0, 48], sizes = [4, 64, 8], strides = [1, 1, 1]} : vector<4x64x64xbf16> to vector<4x64x8xbf16>
    %159 = vector.extract_strided_slice %17 {offsets = [0, 48, 0], sizes = [4, 8, 64], strides = [1, 1, 1]} : vector<4x64x64xbf16> to vector<4x8x64xbf16>
    %160 = vector.extract_strided_slice %13 {offsets = [0, 0, 48], sizes = [4, 64, 8], strides = [1, 1, 1]} : vector<4x64x64xbf16> to vector<4x64x8xbf16>
    "tpu.trace_start"() <{level = 10 : i32, message = "bqd,bdk->bqk"}> : () -> ()
    %cst_45 = arith.constant dense<0.000000e+00> : vector<4x64x64xf32>
    %161 = tpu.matmul %158, %159, %cst_45 {dimension_numbers = #tpu.dot_dimension_numbers<[2], [1], [1], [2], [0, 0, 0, 1, 1, 2], [0], [0]>} : vector<4x64x8xbf16>, vector<4x8x64xbf16>, vector<4x64x64xf32> -> vector<4x64x64xf32>
    "tpu.trace_stop"() : () -> ()
    %162 = arith.addf %161, %26 : vector<4x64x64xf32>
    %cst_46 = arith.constant dense<0xFF800000> : vector<4x64xf32>
    %163 = vector.multi_reduction <maximumf>, %162, %cst_46 [2] : vector<4x64x64xf32> to vector<4x64xf32>
    %164 = vector.shape_cast %163 : vector<4x64xf32> to vector<4x64x1xf32>
    %165 = vector.broadcast %164 : vector<4x64x1xf32> to vector<4x64x64xf32>
    %166 = arith.subf %162, %165 : vector<4x64x64xf32>
    %167 = math.exp %166 : vector<4x64x64xf32>
    %cst_47 = arith.constant dense<0.000000e+00> : vector<4x64xf32>
    %168 = vector.multi_reduction <add>, %167, %cst_47 [2] : vector<4x64x64xf32> to vector<4x64xf32>
    %169 = vector.shape_cast %168 : vector<4x64xf32> to vector<4x64x1xf32>
    %170 = tpu.reciprocal %169 {approx = true} : vector<4x64x1xf32> -> vector<4x64x1xf32>
    %171 = vector.broadcast %170 : vector<4x64x1xf32> to vector<4x64x64xf32>
    %172 = arith.mulf %167, %171 : vector<4x64x64xf32>
    %173 = arith.truncf %172 : vector<4x64x64xf32> to vector<4x64x64xbf16>
    "tpu.trace_start"() <{level = 10 : i32, message = "bqk,bkd->bqd"}> : () -> ()
    %cst_48 = arith.constant dense<0.000000e+00> : vector<4x64x8xf32>
    %174 = tpu.matmul %173, %160, %cst_48 {dimension_numbers = #tpu.dot_dimension_numbers<[2], [1], [1], [2], [0, 0, 0, 1, 1, 2], [0], [0]>} : vector<4x64x64xbf16>, vector<4x64x8xbf16>, vector<4x64x8xf32> -> vector<4x64x8xf32>
    "tpu.trace_stop"() : () -> ()
    %175 = vector.shape_cast %174 : vector<4x64x8xf32> to vector<256x8xf32>
    %176 = arith.truncf %175 : vector<256x8xf32> to vector<256x8xbf16>
    %c48 = arith.constant 48 : index
    %c0_49 = arith.constant 0 : index
    %177 = vector.load %arg4[%c48, %c0_49] : memref<64x64xbf16, #tpu.memory_space<vmem>>, vector<8x64xbf16>
    %cst_50 = arith.constant dense<0.000000e+00> : vector<256x64xf32>
    %178 = tpu.matmul %176, %177, %cst_50 {dimension_numbers = #tpu.dot_dimension_numbers<[1], [0], [0], [1], [0, 0, 1, 1], [], []>} : vector<256x8xbf16>, vector<8x64xbf16>, vector<256x64xf32> -> vector<256x64xf32>
    %179 = arith.addf %157, %178 : vector<256x64xf32>
    %180 = vector.extract_strided_slice %10 {offsets = [0, 0, 56], sizes = [4, 64, 8], strides = [1, 1, 1]} : vector<4x64x64xbf16> to vector<4x64x8xbf16>
    %181 = vector.extract_strided_slice %17 {offsets = [0, 56, 0], sizes = [4, 8, 64], strides = [1, 1, 1]} : vector<4x64x64xbf16> to vector<4x8x64xbf16>
    %182 = vector.extract_strided_slice %13 {offsets = [0, 0, 56], sizes = [4, 64, 8], strides = [1, 1, 1]} : vector<4x64x64xbf16> to vector<4x64x8xbf16>
    "tpu.trace_start"() <{level = 10 : i32, message = "bqd,bdk->bqk"}> : () -> ()
    %cst_51 = arith.constant dense<0.000000e+00> : vector<4x64x64xf32>
    %183 = tpu.matmul %180, %181, %cst_51 {dimension_numbers = #tpu.dot_dimension_numbers<[2], [1], [1], [2], [0, 0, 0, 1, 1, 2], [0], [0]>} : vector<4x64x8xbf16>, vector<4x8x64xbf16>, vector<4x64x64xf32> -> vector<4x64x64xf32>
    "tpu.trace_stop"() : () -> ()
    %184 = arith.addf %183, %26 : vector<4x64x64xf32>
    %cst_52 = arith.constant dense<0xFF800000> : vector<4x64xf32>
    %185 = vector.multi_reduction <maximumf>, %184, %cst_52 [2] : vector<4x64x64xf32> to vector<4x64xf32>
    %186 = vector.shape_cast %185 : vector<4x64xf32> to vector<4x64x1xf32>
    %187 = vector.broadcast %186 : vector<4x64x1xf32> to vector<4x64x64xf32>
    %188 = arith.subf %184, %187 : vector<4x64x64xf32>
    %189 = math.exp %188 : vector<4x64x64xf32>
    %cst_53 = arith.constant dense<0.000000e+00> : vector<4x64xf32>
    %190 = vector.multi_reduction <add>, %189, %cst_53 [2] : vector<4x64x64xf32> to vector<4x64xf32>
    %191 = vector.shape_cast %190 : vector<4x64xf32> to vector<4x64x1xf32>
    %192 = tpu.reciprocal %191 {approx = true} : vector<4x64x1xf32> -> vector<4x64x1xf32>
    %193 = vector.broadcast %192 : vector<4x64x1xf32> to vector<4x64x64xf32>
    %194 = arith.mulf %189, %193 : vector<4x64x64xf32>
    %195 = arith.truncf %194 : vector<4x64x64xf32> to vector<4x64x64xbf16>
    "tpu.trace_start"() <{level = 10 : i32, message = "bqk,bkd->bqd"}> : () -> ()
    %cst_54 = arith.constant dense<0.000000e+00> : vector<4x64x8xf32>
    %196 = tpu.matmul %195, %182, %cst_54 {dimension_numbers = #tpu.dot_dimension_numbers<[2], [1], [1], [2], [0, 0, 0, 1, 1, 2], [0], [0]>} : vector<4x64x64xbf16>, vector<4x64x8xbf16>, vector<4x64x8xf32> -> vector<4x64x8xf32>
    "tpu.trace_stop"() : () -> ()
    %197 = vector.shape_cast %196 : vector<4x64x8xf32> to vector<256x8xf32>
    %198 = arith.truncf %197 : vector<256x8xf32> to vector<256x8xbf16>
    %c56 = arith.constant 56 : index
    %c0_55 = arith.constant 0 : index
    %199 = vector.load %arg4[%c56, %c0_55] : memref<64x64xbf16, #tpu.memory_space<vmem>>, vector<8x64xbf16>
    %cst_56 = arith.constant dense<0.000000e+00> : vector<256x64xf32>
    %200 = tpu.matmul %198, %199, %cst_56 {dimension_numbers = #tpu.dot_dimension_numbers<[1], [0], [0], [1], [0, 0, 1, 1], [], []>} : vector<256x8xbf16>, vector<8x64xbf16>, vector<256x64xf32> -> vector<256x64xf32>
    %201 = arith.addf %179, %200 : vector<256x64xf32>
    %c0_57 = arith.constant 0 : index
    %c0_58 = arith.constant 0 : index
    %202 = vector.load %arg5[%c0_57, %c0_58] : memref<1x64xf32, #tpu.memory_space<vmem>>, vector<1x64xf32>
    %203 = vector.broadcast %202 : vector<1x64xf32> to vector<256x64xf32>
    %204 = arith.addf %201, %203 : vector<256x64xf32>
    %205 = vector.shape_cast %204 : vector<256x64xf32> to vector<4x64x64xf32>
    %c0_59 = arith.constant 0 : index
    %c0_60 = arith.constant 0 : index
    %c0_61 = arith.constant 0 : index
    %206 = vector.load %arg6[%c0_59, %c0_60, %c0_61] : memref<4x64x64xf32, #tpu.memory_space<vmem>>, vector<4x64x64xf32>
    tpu.vector_store %arg6[%c0_59, %c0_60, %c0_61], %205 {strides = array<i32>} : memref<4x64x64xf32, #tpu.memory_space<vmem>>, vector<4x64x64xf32>,
    return
  }
  func.func @transform_0(%arg0: i32) -> (i32, i32, i32) {
    %c0_i32 = arith.constant 0 : i32
    %c0_i32_0 = arith.constant 0 : i32
    %c0_i32_1 = arith.constant 0 : i32
    return %arg0, %c0_i32, %c0_i32_0 : i32, i32, i32
  }
  func.func @transform_1(%arg0: i32) -> (i32, i32) {
    %c0_i32 = arith.constant 0 : i32
    %c0_i32_0 = arith.constant 0 : i32
    %c0_i32_1 = arith.constant 0 : i32
    return %c0_i32, %c0_i32_0 : i32, i32
  }
  func.func @transform_2(%arg0: i32) -> (i32, i32) {
    %c0_i32 = arith.constant 0 : i32
    %c0_i32_0 = arith.constant 0 : i32
    %c0_i32_1 = arith.constant 0 : i32
    return %c0_i32, %c0_i32_0 : i32, i32
  }
  func.func @transform_3(%arg0: i32) -> (i32, i32) {
    %c0_i32 = arith.constant 0 : i32
    %c0_i32_0 = arith.constant 0 : i32
    %c0_i32_1 = arith.constant 0 : i32
    return %c0_i32, %c0_i32_0 : i32, i32
  }
  func.func @transform_4(%arg0: i32) -> (i32, i32) {
    %c0_i32 = arith.constant 0 : i32
    %c0_i32_0 = arith.constant 0 : i32
    %c0_i32_1 = arith.constant 0 : i32
    return %c0_i32, %c0_i32_0 : i32, i32
  }
  func.func @transform_5(%arg0: i32) -> (i32, i32, i32) {
    %c0_i32 = arith.constant 0 : i32
    %c0_i32_0 = arith.constant 0 : i32
    %c0_i32_1 = arith.constant 0 : i32
    return %arg0, %c0_i32, %c0_i32_0 : i32, i32, i32
  }
}

</mosaic_0001>

<llo_original>
// kernel: mul.9
$region0: #{mul.9}
  #allocation0 [shape = 's32[1]{0}', space=sflag, size = 0x4, scoped, tag = 'scoped memory for mul.9']
  %s0 = inlined_call_operand.vmem [shape: f32[192], index: 0, kind: input, shape index: {}]
  %s1 = inlined_call_operand.vmem [shape: f32[192], index: 1, kind: input, shape index: {}]
  %s2 = inlined_call_operand.vmem [shape: f32[192], index: 2, kind: output, shape index: {}]
  %v3 = vld [vmem:[%s0] sm:$0x3]
  %v4 = vld [vmem:[%s1] sm:$0x3]
  %5 = xla_tuple %v3, %v4
  %6 = xla_tuple %5
  %v7 = vmul.f32 %v3, %v4
  %8 = xla_tuple %v7
  %9 = vst [vmem:[%s2] sm:$0x3] %v7

// kernel: attention_forward.1
$region0: #{attention_forward.1}
  #allocation0 [shape = 'u32[]', space=smem, size = 0x4, offset = 0x4, fixed_abs, tag = 'smem constant byte address 0x4 - core index']
  #allocation1 [shape = 'u32[144,128]{1,0:T(1,128)}', space=vmem, size = 0x12000, scoped, tag = 'internal scratch']
  %s0 = inlined_call_operand.hbm [shape: f32[16,64,64], index: 0, kind: input, shape index: {}]
  %s1 = inlined_call_operand.vmem [shape: bf16[64,192], index: 1, kind: input, shape index: {}]
  %s2 = inlined_call_operand.vmem [shape: f32[1,192], index: 2, kind: input, shape index: {}]
  %s3 = inlined_call_operand.vmem [shape: bf16[64,64], index: 3, kind: input, shape index: {}]
  %s4 = inlined_call_operand.vmem [shape: f32[1,64], index: 4, kind: input, shape index: {}]
  %s5 = inlined_call_operand.hbm [shape: f32[16,64,64], index: 5, kind: output, shape index: {}]
  %s6 = sld [smem:[#allocation0]]
  $region57: #{attention_forward.1} parent=0
    _
  %s8 = ssub.s32 1, %s6
  %s9 = scalar_select 0, %s8, %s6
  $region1: #{attention_forward.1} parent=0
    #allocation2 [shape = 'u8[262144]{0}', space=vmem, size = 0x40000, scoped, tag = 'input window, operand 0']
    #allocation3 [shape = 's32[2]{0}', space=sflag, size = 0x8, scoped, tag = 'scoped memory for attention_forward.1']
    #allocation4 [shape = 's32[2]{0}', space=sflag, size = 0x8, scoped, tag = 'scoped memory for attention_forward.1']
    #allocation5 [shape = 'u8[262144]{0}', space=vmem, size = 0x40000, scoped, tag = 'output window, operand 0']
    %10 = vsyncpa [#allocation3], 0
    %s11 = scalar_lea.sflag [#allocation3], 1
    %12 = vsyncpa %s11, 0
    %13 = vsyncpa [#allocation4], 0
    %s14 = scalar_lea.sflag [#allocation4], 1
    %15 = vsyncpa %s14, 0
    loop: start=0, step=1, limit=6
    $region2: #{attention_forward.1} parent=1 // loop_pre_header
      _
    $region3: #{attention_forward.1} parent=1 // loop_header
      %s17 = sphi 0, %s21
      %p18 = scmp.ge.s32.totalorder %s17, 6
      %s27 = sphi 0, %s29
      %s30 = sphi 0, %s27
      %s31 = sphi 0, %s30
      %s47 = sphi 0, %s31
      %s51 = sphi 0, %s51
      %s53 = sphi 0, %s51
      %s54 = sphi 0, %s53
      %s68 = sphi 0, %s54
      %s72 = sphi 0, %s72
      %s74 = sphi 0, %s72
      %s75 = sphi 0, %s74
      %s89 = sphi 0, %s75
      %s93 = sphi 0, %s93
      %s95 = sphi 0, %s93
      %s96 = sphi 0, %s95
      %s110 = sphi 0, %s96
      %s114 = sphi 0, %s114
      %s116 = sphi 0, %s114
      %s117 = sphi 0, %s116
      %s131 = sphi 0, %s117
      %s137 = sphi 0, %s139
      %s140 = sphi 0, %s137
      %s141 = sphi 0, %s140
      %s157 = sphi 0, %s141
    $region4: #{attention_forward.1} parent=1 // loop_header_branch
      %20 = sbr.rel (%p18) target = $region8
    $region5: #{attention_forward.1} parent=1 // loop_body
      %s22 = ssub.s32 %s17, 1
      %s23 = ssub.s32 %s17, 2
      %s24 = sadd.s32 %s17, 1
      %s25 = ssub.s32 %s17, %s24
      %p26 = scmp.eq.s32.totalorder %s25, 0
      %s28 = sadd.s32 %s27, 1
      %s29 = scalar_select %p26, %s27, %s28
      %p32 = pneg %p26
      %p33 = scmp.eq.s32.totalorder %s17, 3
      %p34 = por %p32, %p33
      %p35 = scmp.ne.s32.totalorder %s27, %s30
      %p36 = scmp.eq.s32.totalorder %s17, 0
      %p37 = por %p35, %p36
      %p38 = scmp.ne.s32.totalorder %s27, %s30
      %p39 = scmp.eq.s32.totalorder %s22, 3
      %p40 = por %p38, %p39
      %p41 = scmp.ne.s32.totalorder %s30, %s31
      %p42 = scmp.eq.s32.totalorder %s22, 0
      %p43 = por %p41, %p42
      %p44 = scmp.ne.s32.totalorder %s30, %s31
      %p45 = scmp.eq.s32.totalorder %s23, 3
      %p46 = por %p44, %p45
      %p48 = scmp.ne.s32.totalorder %s31, %s47
      %p49 = scmp.eq.s32.totalorder %s23, 0
      %p50 = por %p48, %p49
      %s52 = sadd.s32 %s51, 1
      %p55 = scmp.eq.s32.totalorder %s17, 3
      %p56 = scmp.ne.s32.totalorder %s51, %s53
      %p57 = scmp.eq.s32.totalorder %s17, 0
      %p58 = por %p56, %p57
      %p59 = scmp.ne.s32.totalorder %s51, %s53
      %p60 = scmp.eq.s32.totalorder %s22, 3
      %p61 = por %p59, %p60
      %p62 = scmp.ne.s32.totalorder %s53, %s54
      %p63 = scmp.eq.s32.totalorder %s22, 0
      %p64 = por %p62, %p63
      %p65 = scmp.ne.s32.totalorder %s53, %s54
      %p66 = scmp.eq.s32.totalorder %s23, 3
      %p67 = por %p65, %p66
      %p69 = scmp.ne.s32.totalorder %s54, %s68
      %p70 = scmp.eq.s32.totalorder %s23, 0
      %p71 = por %p69, %p70
      %s73 = sadd.s32 %s72, 1
      %p76 = scmp.eq.s32.totalorder %s17, 3
      %p77 = scmp.ne.s32.totalorder %s72, %s74
      %p78 = scmp.eq.s32.totalorder %s17, 0
      %p79 = por %p77, %p78
      %p80 = scmp.ne.s32.totalorder %s72, %s74
      %p81 = scmp.eq.s32.totalorder %s22, 3
      %p82 = por %p80, %p81
      %p83 = scmp.ne.s32.totalorder %s74, %s75
      %p84 = scmp.eq.s32.totalorder %s22, 0
      %p85 = por %p83, %p84
      %p86 = scmp.ne.s32.totalorder %s74, %s75
      %p87 = scmp.eq.s32.totalorder %s23, 3
      %p88 = por %p86, %p87
      %p90 = scmp.ne.s32.totalorder %s75, %s89
      %p91 = scmp.eq.s32.totalorder %s23, 0
      %p92 = por %p90, %p91
      %s94 = sadd.s32 %s93, 1
      %p97 = scmp.eq.s32.totalorder %s17, 3
      %p98 = scmp.ne.s32.totalorder %s93, %s95
      %p99 = scmp.eq.s32.totalorder %s17, 0
      %p100 = por %p98, %p99
      %p101 = scmp.ne.s32.totalorder %s93, %s95
      %p102 = scmp.eq.s32.totalorder %s22, 3
      %p103 = por %p101, %p102
      %p104 = scmp.ne.s32.totalorder %s95, %s96
      %p105 = scmp.eq.s32.totalorder %s22, 0
      %p106 = por %p104, %p105
      %p107 = scmp.ne.s32.totalorder %s95, %s96
      %p108 = scmp.eq.s32.totalorder %s23, 3
      %p109 = por %p107, %p108
      %p111 = scmp.ne.s32.totalorder %s96, %s110
      %p112 = scmp.eq.s32.totalorder %s23, 0
      %p113 = por %p111, %p112
      %s115 = sadd.s32 %s114, 1
      %p118 = scmp.eq.s32.totalorder %s17, 3
      %p119 = scmp.ne.s32.totalorder %s114, %s116
      %p120 = scmp.eq.s32.totalorder %s17, 0
      %p121 = por %p119, %p120
      %p122 = scmp.ne.s32.totalorder %s114, %s116
      %p123 = scmp.eq.s32.totalorder %s22, 3
      %p124 = por %p122, %p123
      %p125 = scmp.ne.s32.totalorder %s116, %s117
      %p126 = scmp.eq.s32.totalorder %s22, 0
      %p127 = por %p125, %p126
      %p128 = scmp.ne.s32.totalorder %s116, %s117
      %p129 = scmp.eq.s32.totalorder %s23, 3
      %p130 = por %p128, %p129
      %p132 = scmp.ne.s32.totalorder %s117, %s131
      %p133 = scmp.eq.s32.totalorder %s23, 0
      %p134 = por %p132, %p133
      %s135 = ssub.s32 %s17, %s24
      %p136 = scmp.eq.s32.totalorder %s135, 0
      %s138 = sadd.s32 %s137, 1
      %s139 = scalar_select %p136, %s137, %s138
      %p142 = pneg %p136
      %p143 = scmp.eq.s32.totalorder %s17, 3
      %p144 = por %p142, %p143
      %p145 = scmp.ne.s32.totalorder %s137, %s140
      %p146 = scmp.eq.s32.totalorder %s17, 0
      %p147 = por %p145, %p146
      %p148 = scmp.ne.s32.totalorder %s137, %s140
      %p149 = scmp.eq.s32.totalorder %s22, 3
      %p150 = por %p148, %p149
      %p151 = scmp.ne.s32.totalorder %s140, %s141
      %p152 = scmp.eq.s32.totalorder %s22, 0
      %p153 = por %p151, %p152
      %p154 = scmp.ne.s32.totalorder %s140, %s141
      %p155 = scmp.eq.s32.totalorder %s23, 3
      %p156 = por %p154, %p155
      %p158 = scmp.ne.s32.totalorder %s141, %s157
      %p159 = scmp.eq.s32.totalorder %s23, 0
      %p160 = por %p158, %p159
      %p161 = scmp.le.s32.totalorder 1, %s17
      %p162 = scmp.lt.s32.totalorder %s17, 5
      %p163 = pnand %p161, %p162
      %p164 = pneg %p163
      // Predicated region
      $region9: #{attention_forward.1} parent=5 // pred_check
        _
      $region10: #{attention_forward.1} parent=5 // pred_check_branch
        %166 = sbr.rel (%p163) target = $region12
      $region11: #{attention_forward.1} parent=5 // pred_region
        %s167 = ssub.s32 %s17, 1
        // Predicated region
        $region13: #{attention_forward.1} parent=11 // pred_check
          %p168 = pneg %p64
        $region14: #{attention_forward.1} parent=11 // pred_check_branch
          %170 = sbr.rel (%p168) target = $region16
        $region15: #{attention_forward.1} parent=11 // pred_region
          _
        $region16: #{attention_forward.1} parent=11 // pred_fallthru
          _
        // Predicated region
        $region17: #{attention_forward.1} parent=11 // pred_check
          %p171 = pneg %p85
        $region18: #{attention_forward.1} parent=11 // pred_check_branch
          %173 = sbr.rel (%p171) target = $region20
        $region19: #{attention_forward.1} parent=11 // pred_region
          _
        $region20: #{attention_forward.1} parent=11 // pred_fallthru
          _
        // Predicated region
        $region21: #{attention_forward.1} parent=11 // pred_check
          %p174 = pneg %p106
        $region22: #{attention_forward.1} parent=11 // pred_check_branch
          %176 = sbr.rel (%p174) target = $region24
        $region23: #{attention_forward.1} parent=11 // pred_region
          _
        $region24: #{attention_forward.1} parent=11 // pred_fallthru
          _
        // Predicated region
        $region25: #{attention_forward.1} parent=11 // pred_check
          %p177 = pneg %p127
        $region26: #{attention_forward.1} parent=11 // pred_check_branch
          %179 = sbr.rel (%p177) target = $region28
        $region27: #{attention_forward.1} parent=11 // pred_region
          _
        $region28: #{attention_forward.1} parent=11 // pred_fallthru
          _
      $region12: #{attention_forward.1} parent=5 // pred_fallthru
        _
      %p180 = scmp.lt.s32.totalorder %s17, 4
      // Predicated region
      $region29: #{attention_forward.1} parent=5 // pred_check
        %p181 = pneg %p180
      $region30: #{attention_forward.1} parent=5 // pred_check_branch
        %183 = sbr.rel (%p181) target = $region32
      $region31: #{attention_forward.1} parent=5 // pred_region
        // Predicated region
        $region33: #{attention_forward.1} parent=31 // pred_check
          %p184 = pneg %p37
        $region34: #{attention_forward.1} parent=31 // pred_check_branch
          %186 = sbr.rel (%p184) target = $region36
        $region35: #{attention_forward.1} parent=31 // pred_region
          %s187 = sand.u32 %s27, 1
          %s188 = scalar_lea.sflag [#allocation3], %s187
          %s189 = sand.u32 %s27, 1
          %s190 = smul.addr %s189, 256
          %s191 = scalar_lea.vmem [#allocation2], %s190
          %s192 = smul.u32 4, %s17
          %s194 = ssub.s32 4096, 4096
          %195 = vsyncadd %s188, %s194
          %s196 = smul.addr %s192, 8
          %s197 = smul.addr %s196, 128
          %s198 = scalar_lea.hbm %s0, %s197
          %s199 = sshll.u32 %s191, 4
          %s200 = int_to_ptr.vmem [resolvable:$true] %s199
          %205 = dma.hbm_to_vmem [thread:$0]  %s198, 4096, %s200, %s188, 128, 128, 8
        $region36: #{attention_forward.1} parent=31 // pred_fallthru
          _
      $region32: #{attention_forward.1} parent=5 // pred_fallthru
        _
      %p206 = scmp.le.s32.totalorder 1, %s17
      %p207 = scmp.lt.s32.totalorder %s17, 5
      %p208 = pnand %p206, %p207
      %p209 = pneg %p208
      // Predicated region
      $region37: #{attention_forward.1} parent=5 // pred_check
        _
      $region38: #{attention_forward.1} parent=5 // pred_check_branch
        %211 = sbr.rel (%p208) target = $region40
      $region39: #{attention_forward.1} parent=5 // pred_region
        %s212 = ssub.s32 %s17, 1
        %s213 = sand.u32 %s30, 1
        %s214 = scalar_lea.sflag [#allocation3], %s213
        %s215 = sand.u32 %s30, 1
        %s216 = smul.addr %s215, 256
        %s217 = scalar_lea.vmem [#allocation2], %s216
        // Predicated region
        $region41: #{attention_forward.1} parent=39 // pred_check
          %p218 = pneg %p43
        $region42: #{attention_forward.1} parent=39 // pred_check_branch
          %220 = sbr.rel (%p218) target = $region44
        $region43: #{attention_forward.1} parent=39 // pred_region
          %221 = dma.done %s214, 4096
        $region44: #{attention_forward.1} parent=39 // pred_fallthru
          _
        %s222 = sand.u32 %s30, 1
        %s223 = scalar_lea.sflag [#allocation3], %s222
        %s224 = sand.u32 %s30, 1
        %s225 = smul.addr %s224, 256
        %s226 = scalar_lea.vmem [#allocation2], %s225
        %p227 = pneg %p43
        %p228 = pneg %p40
        %p229 = pneg %p64
        %p230 = pneg %p61
        %p231 = pneg %p85
        %p232 = pneg %p82
        %p233 = pneg %p106
        %p234 = pneg %p103
        %p235 = pneg %p127
        %p236 = pneg %p124
        %p237 = pneg %p153
        %p238 = pneg %p150
        %s239 = sand.u32 %s140, 1
        %s240 = scalar_lea.sflag [#allocation4], %s239
        %s241 = sand.u32 %s140, 1
        %s242 = smul.addr %s241, 256
        %s243 = scalar_lea.vmem [#allocation5], %s242
        %s244 = smul.u32 4, %s22
        %s245 = smul.u32 4, %s22
        %v247 = vld [vmem:[%s217] sm:$0xff]
        %v248 = vld [vmem:[%s217 + $0x8] sm:$0xff]
        %v249 = vld [vmem:[%s217 + $0x10] sm:$0xff]
        %v250 = vld [vmem:[%s217 + $0x18] sm:$0xff]
        %v251 = vld [vmem:[%s217 + $0x20] sm:$0xff]
        %v252 = vld [vmem:[%s217 + $0x28] sm:$0xff]
        %v253 = vld [vmem:[%s217 + $0x30] sm:$0xff]
        %v254 = vld [vmem:[%s217 + $0x38] sm:$0xff]
        %v255 = vld [vmem:[%s217 + $0x40] sm:$0xff]
        %v256 = vld [vmem:[%s217 + $0x48] sm:$0xff]
        %v257 = vld [vmem:[%s217 + $0x50] sm:$0xff]
        %v258 = vld [vmem:[%s217 + $0x58] sm:$0xff]
        %v259 = vld [vmem:[%s217 + $0x60] sm:$0xff]
        %v260 = vld [vmem:[%s217 + $0x68] sm:$0xff]
        %v261 = vld [vmem:[%s217 + $0x70] sm:$0xff]
        %v262 = vld [vmem:[%s217 + $0x78] sm:$0xff]
        %v263 = vld [vmem:[%s217 + $0x80] sm:$0xff]
        %v264 = vld [vmem:[%s217 + $0x88] sm:$0xff]
        %v265 = vld [vmem:[%s217 + $0x90] sm:$0xff]
        %v266 = vld [vmem:[%s217 + $0x98] sm:$0xff]
        %v267 = vld [vmem:[%s217 + $0xa0] sm:$0xff]
        %v268 = vld [vmem:[%s217 + $0xa8] sm:$0xff]
        %v269 = vld [vmem:[%s217 + $0xb0] sm:$0xff]
        %v270 = vld [vmem:[%s217 + $0xb8] sm:$0xff]
        %v271 = vld [vmem:[%s217 + $0xc0] sm:$0xff]
        %v272 = vld [vmem:[%s217 + $0xc8] sm:$0xff]
        %v273 = vld [vmem:[%s217 + $0xd0] sm:$0xff]
        %v274 = vld [vmem:[%s217 + $0xd8] sm:$0xff]
        %v275 = vld [vmem:[%s217 + $0xe0] sm:$0xff]
        %v276 = vld [vmem:[%s217 + $0xe8] sm:$0xff]
        %v277 = vld [vmem:[%s217 + $0xf0] sm:$0xff]
        %v278 = vld [vmem:[%s217 + $0xf8] sm:$0xff]
        %v279 = vpack.c.bf16 %v248, %v247
        %v280 = vpack.c.bf16 %v250, %v249
        %v281 = vpack.c.bf16 %v252, %v251
        %v282 = vpack.c.bf16 %v254, %v253
        %v283 = vpack.c.bf16 %v256, %v255
        %v284 = vpack.c.bf16 %v258, %v257
        %v285 = vpack.c.bf16 %v260, %v259
        %v286 = vpack.c.bf16 %v262, %v261
        %v287 = vpack.c.bf16 %v264, %v263
        %v288 = vpack.c.bf16 %v266, %v265
        %v289 = vpack.c.bf16 %v268, %v267
        %v290 = vpack.c.bf16 %v270, %v269
        %v291 = vpack.c.bf16 %v272, %v271
        %v292 = vpack.c.bf16 %v274, %v273
        %v293 = vpack.c.bf16 %v276, %v275
        %v294 = vpack.c.bf16 %v278, %v277
        %v295 = vld [vmem:[%s1] sm:$0xff]
        %v296 = vld [vmem:[%s1 + $0x8] sm:$0xff]
        %v297 = vld [vmem:[%s1 + $0x10] sm:$0xff]
        %v298 = vld [vmem:[%s1 + $0x18] sm:$0xff]
        %v299 = vld [vmem:[%s1 + $0x20] sm:$0xff]
        %v300 = vld [vmem:[%s1 + $0x28] sm:$0xff]
        %v301 = vld [vmem:[%s1 + $0x30] sm:$0xff]
        %v302 = vld [vmem:[%s1 + $0x38] sm:$0xff]
        %v303 = vld [vmem:[%s2] sm:$0x3]
        %v305 = vlaneseq
        %v306 = vshrl.u32 %v305, 7
        %v307 = vsub.s32 0, %v306
        %v308 = vrot.slane %v303, %v307
        %v309 = vlaneseq
        %v310 = vshrl.u32 %v309, 7
        %v311 = vsub.s32 1, %v310
        %v312 = vrot.slane %v303, %v311
        %v323 = vunpack.c.l.b16 %v295
        %v324 = vunpack.c.h.b16 %v295
        %v325 = vunpack.c.l.b16 %v296
        %v326 = vunpack.c.h.b16 %v296
        %v327 = vunpack.c.l.b16 %v297
        %v328 = vunpack.c.h.b16 %v297
        %v329 = vunpack.c.l.b16 %v298
        %v330 = vunpack.c.h.b16 %v298
        %v331 = vunpack.c.l.b16 %v299
        %v332 = vunpack.c.h.b16 %v299
        %v333 = vunpack.c.l.b16 %v300
        %v334 = vunpack.c.h.b16 %v300
        %v335 = vunpack.c.l.b16 %v301
        %v336 = vunpack.c.h.b16 %v301
        %v337 = vunpack.c.l.b16 %v302
        %v338 = vunpack.c.h.b16 %v302
        %v339 = vpack.c.b16 %v325, %v323
        %v340 = vpack.c.b16 %v326, %v324
        %v341 = vpack.c.b16 %v329, %v327
        %v342 = vpack.c.b16 %v330, %v328
        %v343 = vpack.c.b16 %v333, %v331
        %v344 = vpack.c.b16 %v334, %v332
        %v345 = vpack.c.b16 %v337, %v335
        %v346 = vpack.c.b16 %v338, %v336
        %vm355 = vcmask 523264
        %v357 = vsel %vm355, %v279, 0
        %v360 = vsel %vm355, %v280, 0
        %v363 = vsel %vm355, %v281, 0
        %v366 = vsel %vm355, %v282, 0
        %v369 = vsel %vm355, %v283, 0
        %v372 = vsel %vm355, %v284, 0
        %v375 = vsel %vm355, %v285, 0
        %v378 = vsel %vm355, %v286, 0
        %v381 = vsel %vm355, %v287, 0
        %v384 = vsel %vm355, %v288, 0
        %v387 = vsel %vm355, %v289, 0
        %v390 = vsel %vm355, %v290, 0
        %v393 = vsel %vm355, %v291, 0
        %v396 = vsel %vm355, %v292, 0
        %v399 = vsel %vm355, %v293, 0
        %v402 = vsel %vm355, %v294, 0
        %404 = vmatprep.subr.bf16.mxu0 0
        %405 = vmatpush1.bf16.msra.mxu0 0
        %406 = vmatprep.subr.bf16.mxu0 0
        %407 = vmatpush1.bf16.msra.mxu0 0
        %408 = vmatprep.subr.bf16.mxu0 0
        %409 = vmatpush1.bf16.msra.mxu0 0
        %410 = vmatprep.subr.bf16.mxu0 0
        %411 = vmatpush1.bf16.msra.mxu0 0
        %412 = vmatprep.subr.bf16.mxu0 %v346
        %413 = vmatpush1.bf16.msra.mxu0 %v345
        %414 = vmatprep.subr.bf16.mxu0 %v344
        %415 = vmatpush1.bf16.msra.mxu0 %v343
        %416 = vmatprep.subr.bf16.mxu0 %v342
        %417 = vmatpush1.bf16.msra.mxu0 %v341
        %418 = vmatprep.subr.bf16.mxu0 %v340
        %419 = vmatpush1.bf16.msra.mxu0 %v339
        %420 = vmatprep.subr.bf16.mxu0 0
        %421 = vmatpush2.bf16.msra.mxu0 0
        %422 = vmatprep.subr.bf16.mxu0 0
        %423 = vmatpush2.bf16.msra.mxu0 0
        %424 = vmatprep.subr.bf16.mxu0 0
        %425 = vmatpush2.bf16.msra.mxu0 0
        %426 = vmatprep.subr.bf16.mxu0 0
        %427 = vmatpush2.bf16.msra.mxu0 0
        %428 = vmatprep.subr.bf16.mxu0 0
        %429 = vmatpush2.bf16.msra.mxu0 0
        %430 = vmatprep.subr.bf16.mxu0 0
        %431 = vmatpush2.bf16.msra.mxu0 0
        %432 = vmatprep.subr.bf16.mxu0 0
        %433 = vmatpush2.bf16.msra.mxu0 0
        %434 = vmatprep.subr.bf16.mxu0 0
        %435 = vmatpush2.bf16.msra.mxu0 0
        %436 = vmatprep.mubr.bf16.mxu0 0
        %437 = vmatmul.mubr.bf16.gmra.mxu0 %v357
        %v438 = vpop.f32.mrf.mxu0
        %v439 = vadd.f32 %v308, %v438
        %v440 = vpop.f32.mrf.mxu0
        %v441 = vadd.f32 %v312, %v440
        %v442 = vpop.f32.mrf.mxu0
        %v443 = vadd.f32 %v308, %v442
        %v444 = vpop.f32.mrf.mxu0
        %v445 = vadd.f32 %v312, %v444
        %446 = vmatprep.mubr.bf16.mxu0 0
        %447 = vmatmul.mubr.bf16.gmra.mxu0 %v360
        %v448 = vpop.f32.mrf.mxu0
        %v449 = vadd.f32 %v308, %v448
        %v450 = vpop.f32.mrf.mxu0
        %v451 = vadd.f32 %v312, %v450
        %v452 = vpop.f32.mrf.mxu0
        %v453 = vadd.f32 %v308, %v452
        %v454 = vpop.f32.mrf.mxu0
        %v455 = vadd.f32 %v312, %v454
        %456 = vmatprep.mubr.bf16.mxu0 0
        %457 = vmatmul.mubr.bf16.gmra.mxu0 %v363
        %v458 = vpop.f32.mrf.mxu0
        %v459 = vadd.f32 %v308, %v458
        %v460 = vpop.f32.mrf.mxu0
        %v461 = vadd.f32 %v312, %v460
        %v462 = vpop.f32.mrf.mxu0
        %v463 = vadd.f32 %v308, %v462
        %v464 = vpop.f32.mrf.mxu0
        %v465 = vadd.f32 %v312, %v464
        %466 = vmatprep.mubr.bf16.mxu0 0
        %467 = vmatmul.mubr.bf16.gmra.mxu0 %v366
        %v468 = vpop.f32.mrf.mxu0
        %v469 = vadd.f32 %v308, %v468
        %v470 = vpop.f32.mrf.mxu0
        %v471 = vadd.f32 %v312, %v470
        %v472 = vpop.f32.mrf.mxu0
        %v473 = vadd.f32 %v308, %v472
        %v474 = vpop.f32.mrf.mxu0
        %v475 = vadd.f32 %v312, %v474
        %476 = vmatprep.mubr.bf16.mxu0 0
        %477 = vmatmul.mubr.bf16.gmra.mxu0 %v369
        %v478 = vpop.f32.mrf.mxu0
        %v479 = vadd.f32 %v308, %v478
        %v480 = vpop.f32.mrf.mxu0
        %v481 = vadd.f32 %v312, %v480
        %v482 = vpop.f32.mrf.mxu0
        %v483 = vadd.f32 %v308, %v482
        %v484 = vpop.f32.mrf.mxu0
        %v485 = vadd.f32 %v312, %v484
        %486 = vmatprep.mubr.bf16.mxu0 0
        %487 = vmatmul.mubr.bf16.gmra.mxu0 %v372
        %v488 = vpop.f32.mrf.mxu0
        %v489 = vadd.f32 %v308, %v488
        %v490 = vpop.f32.mrf.mxu0
        %v491 = vadd.f32 %v312, %v490
        %v492 = vpop.f32.mrf.mxu0
        %v493 = vadd.f32 %v308, %v492
        %v494 = vpop.f32.mrf.mxu0
        %v495 = vadd.f32 %v312, %v494
        %496 = vmatprep.mubr.bf16.mxu0 0
        %497 = vmatmul.mubr.bf16.gmra.mxu0 %v375
        %v498 = vpop.f32.mrf.mxu0
        %v499 = vadd.f32 %v308, %v498
        %v500 = vpop.f32.mrf.mxu0
        %v501 = vadd.f32 %v312, %v500
        %v502 = vpop.f32.mrf.mxu0
        %v503 = vadd.f32 %v308, %v502
        %v504 = vpop.f32.mrf.mxu0
        %v505 = vadd.f32 %v312, %v504
        %506 = vmatprep.mubr.bf16.mxu0 0
        %507 = vmatmul.mubr.bf16.gmra.mxu0 %v378
        %v508 = vpop.f32.mrf.mxu0
        %v509 = vadd.f32 %v308, %v508
        %v510 = vpop.f32.mrf.mxu0
        %v511 = vadd.f32 %v312, %v510
        %v512 = vpop.f32.mrf.mxu0
        %v513 = vadd.f32 %v308, %v512
        %v514 = vpop.f32.mrf.mxu0
        %v515 = vadd.f32 %v312, %v514
        %516 = vmatprep.mubr.bf16.mxu0 0
        %517 = vmatmul.mubr.bf16.gmra.mxu0 %v381
        %v518 = vpop.f32.mrf.mxu0
        %v519 = vadd.f32 %v308, %v518
        %v520 = vpop.f32.mrf.mxu0
        %v521 = vadd.f32 %v312, %v520
        %v522 = vpop.f32.mrf.mxu0
        %v523 = vadd.f32 %v308, %v522
        %v524 = vpop.f32.mrf.mxu0
        %v525 = vadd.f32 %v312, %v524
        %526 = vmatprep.mubr.bf16.mxu0 0
        %527 = vmatmul.mubr.bf16.gmra.mxu0 %v384
        %v528 = vpop.f32.mrf.mxu0
        %v529 = vadd.f32 %v308, %v528
        %v530 = vpop.f32.mrf.mxu0
        %v531 = vadd.f32 %v312, %v530
        %v532 = vpop.f32.mrf.mxu0
        %v533 = vadd.f32 %v308, %v532
        %v534 = vpop.f32.mrf.mxu0
        %v535 = vadd.f32 %v312, %v534
        %536 = vmatprep.mubr.bf16.mxu0 0
        %537 = vmatmul.mubr.bf16.gmra.mxu0 %v387
        %v538 = vpop.f32.mrf.mxu0
        %v539 = vadd.f32 %v308, %v538
        %v540 = vpop.f32.mrf.mxu0
        %v541 = vadd.f32 %v312, %v540
        %v542 = vpop.f32.mrf.mxu0
        %v543 = vadd.f32 %v308, %v542
        %v544 = vpop.f32.mrf.mxu0
        %v545 = vadd.f32 %v312, %v544
        %546 = vmatprep.mubr.bf16.mxu0 0
        %547 = vmatmul.mubr.bf16.gmra.mxu0 %v390
        %v548 = vpop.f32.mrf.mxu0
        %v549 = vadd.f32 %v308, %v548
        %v550 = vpop.f32.mrf.mxu0
        %v551 = vadd.f32 %v312, %v550
        %v552 = vpop.f32.mrf.mxu0
        %v553 = vadd.f32 %v308, %v552
        %v554 = vpop.f32.mrf.mxu0
        %v555 = vadd.f32 %v312, %v554
        %556 = vmatprep.mubr.bf16.mxu0 0
        %557 = vmatmul.mubr.bf16.gmra.mxu0 %v393
        %v558 = vpop.f32.mrf.mxu0
        %v559 = vadd.f32 %v308, %v558
        %v560 = vpop.f32.mrf.mxu0
        %v561 = vadd.f32 %v312, %v560
        %v562 = vpop.f32.mrf.mxu0
        %v563 = vadd.f32 %v308, %v562
        %v564 = vpop.f32.mrf.mxu0
        %v565 = vadd.f32 %v312, %v564
        %566 = vmatprep.mubr.bf16.mxu0 0
        %567 = vmatmul.mubr.bf16.gmra.mxu0 %v396
        %v568 = vpop.f32.mrf.mxu0
        %v569 = vadd.f32 %v308, %v568
        %v570 = vpop.f32.mrf.mxu0
        %v571 = vadd.f32 %v312, %v570
        %v572 = vpop.f32.mrf.mxu0
        %v573 = vadd.f32 %v308, %v572
        %v574 = vpop.f32.mrf.mxu0
        %v575 = vadd.f32 %v312, %v574
        %576 = vmatprep.mubr.bf16.mxu0 0
        %577 = vmatmul.mubr.bf16.gmra.mxu0 %v399
        %v578 = vpop.f32.mrf.mxu0
        %v579 = vadd.f32 %v308, %v578
        %v580 = vpop.f32.mrf.mxu0
        %v581 = vadd.f32 %v312, %v580
        %v582 = vpop.f32.mrf.mxu0
        %v583 = vadd.f32 %v308, %v582
        %v584 = vpop.f32.mrf.mxu0
        %v585 = vadd.f32 %v312, %v584
        %586 = vmatprep.mubr.bf16.mxu0 0
        %587 = vmatmul.mubr.bf16.gmra.mxu0 %v402
        %v588 = vpop.f32.mrf.mxu0
        %v589 = vadd.f32 %v308, %v588
        %v590 = vpop.f32.mrf.mxu0
        %v591 = vadd.f32 %v312, %v590
        %v592 = vpop.f32.mrf.mxu0
        %v593 = vadd.f32 %v308, %v592
        %v594 = vpop.f32.mrf.mxu0
        %v595 = vadd.f32 %v312, %v594
        %596 = vdwg.mxu0
        %v597 = vpack.c.bf16 %v443, %v439
        %v598 = vpack.c.bf16 %v453, %v449
        %v599 = vpack.c.bf16 %v463, %v459
        %v600 = vpack.c.bf16 %v473, %v469
        %v601 = vpack.c.bf16 %v483, %v479
        %v602 = vpack.c.bf16 %v493, %v489
        %v603 = vpack.c.bf16 %v503, %v499
        %v604 = vpack.c.bf16 %v513, %v509
        %v605 = vpack.c.bf16 %v523, %v519
        %v606 = vpack.c.bf16 %v533, %v529
        %v607 = vpack.c.bf16 %v543, %v539
        %v608 = vpack.c.bf16 %v553, %v549
        %v609 = vpack.c.bf16 %v563, %v559
        %v610 = vpack.c.bf16 %v573, %v569
        %v611 = vpack.c.bf16 %v583, %v579
        %v612 = vpack.c.bf16 %v593, %v589
        %v613 = vpack.c.bf16 %v445, %v441
        %v614 = vpack.c.bf16 %v455, %v451
        %v615 = vpack.c.bf16 %v465, %v461
        %v616 = vpack.c.bf16 %v475, %v471
        %v617 = vpack.c.bf16 %v485, %v481
        %v618 = vpack.c.bf16 %v495, %v491
        %v619 = vpack.c.bf16 %v505, %v501
        %v620 = vpack.c.bf16 %v515, %v511
        %v621 = vpack.c.bf16 %v525, %v521
        %v622 = vpack.c.bf16 %v535, %v531
        %v623 = vpack.c.bf16 %v545, %v541
        %v624 = vpack.c.bf16 %v555, %v551
        %v625 = vpack.c.bf16 %v565, %v561
        %v626 = vpack.c.bf16 %v575, %v571
        %v627 = vpack.c.bf16 %v585, %v581
        %v628 = vpack.c.bf16 %v595, %v591
        %661 = vrot.lane.b32.xlu0 %v439, 64
        %v662 = vpop.permute.xlu0 %661
        %663 = vrot.lane.b32.xlu0 %v443, 64
        %v664 = vpop.permute.xlu0 %663
        %665 = vrot.lane.b32.xlu0 %v449, 64
        %v666 = vpop.permute.xlu0 %665
        %667 = vrot.lane.b32.xlu0 %v453, 64
        %v668 = vpop.permute.xlu0 %667
        %669 = vrot.lane.b32.xlu0 %v459, 64
        %v670 = vpop.permute.xlu0 %669
        %671 = vrot.lane.b32.xlu0 %v463, 64
        %v672 = vpop.permute.xlu0 %671
        %673 = vrot.lane.b32.xlu0 %v469, 64
        %v674 = vpop.permute.xlu0 %673
        %675 = vrot.lane.b32.xlu0 %v473, 64
        %v676 = vpop.permute.xlu0 %675
        %677 = vrot.lane.b32.xlu0 %v479, 64
        %v678 = vpop.permute.xlu0 %677
        %679 = vrot.lane.b32.xlu0 %v483, 64
        %v680 = vpop.permute.xlu0 %679
        %681 = vrot.lane.b32.xlu0 %v489, 64
        %v682 = vpop.permute.xlu0 %681
        %683 = vrot.lane.b32.xlu0 %v493, 64
        %v684 = vpop.permute.xlu0 %683
        %685 = vrot.lane.b32.xlu0 %v499, 64
        %v686 = vpop.permute.xlu0 %685
        %687 = vrot.lane.b32.xlu0 %v503, 64
        %v688 = vpop.permute.xlu0 %687
        %689 = vrot.lane.b32.xlu0 %v509, 64
        %v690 = vpop.permute.xlu0 %689
        %691 = vrot.lane.b32.xlu0 %v513, 64
        %v692 = vpop.permute.xlu0 %691
        %693 = vrot.lane.b32.xlu0 %v519, 64
        %v694 = vpop.permute.xlu0 %693
        %695 = vrot.lane.b32.xlu0 %v523, 64
        %v696 = vpop.permute.xlu0 %695
        %697 = vrot.lane.b32.xlu0 %v529, 64
        %v698 = vpop.permute.xlu0 %697
        %699 = vrot.lane.b32.xlu0 %v533, 64
        %v700 = vpop.permute.xlu0 %699
        %701 = vrot.lane.b32.xlu0 %v539, 64
        %v702 = vpop.permute.xlu0 %701
        %703 = vrot.lane.b32.xlu0 %v543, 64
        %v704 = vpop.permute.xlu0 %703
        %705 = vrot.lane.b32.xlu0 %v549, 64
        %v706 = vpop.permute.xlu0 %705
        %707 = vrot.lane.b32.xlu0 %v553, 64
        %v708 = vpop.permute.xlu0 %707
        %709 = vrot.lane.b32.xlu0 %v559, 64
        %v710 = vpop.permute.xlu0 %709
        %711 = vrot.lane.b32.xlu0 %v563, 64
        %v712 = vpop.permute.xlu0 %711
        %713 = vrot.lane.b32.xlu0 %v569, 64
        %v714 = vpop.permute.xlu0 %713
        %715 = vrot.lane.b32.xlu0 %v573, 64
        %v716 = vpop.permute.xlu0 %715
        %717 = vrot.lane.b32.xlu0 %v579, 64
        %v718 = vpop.permute.xlu0 %717
        %719 = vrot.lane.b32.xlu0 %v583, 64
        %v720 = vpop.permute.xlu0 %719
        %721 = vrot.lane.b32.xlu0 %v589, 64
        %v722 = vpop.permute.xlu0 %721
        %723 = vrot.lane.b32.xlu0 %v593, 64
        %v724 = vpop.permute.xlu0 %723
        %757 = vxpose.xlu0.b32.start [1/16] %v662, 128
        %758 = vxpose.xlu0.b32.cont [2/16] %v664, 128
        %759 = vxpose.xlu0.b32.cont [3/16] %v666, 128
        %760 = vxpose.xlu0.b32.cont [4/16] %v668, 128
        %761 = vxpose.xlu0.b32.cont [5/16] %v670, 128
        %762 = vxpose.xlu0.b32.cont [6/16] %v672, 128
        %763 = vxpose.xlu0.b32.cont [7/16] %v674, 128
        %764 = vxpose.xlu0.b32.cont [8/16] %v676, 128
        %765 = vxpose.xlu0.b32.cont [9/16] 0.0, 128
        %766 = vxpose.xlu0.b32.cont [10/16] 0.0, 128
        %767 = vxpose.xlu0.b32.cont [11/16] 0.0, 128
        %768 = vxpose.xlu0.b32.cont [12/16] 0.0, 128
        %769 = vxpose.xlu0.b32.cont [13/16] 0.0, 128
        %770 = vxpose.xlu0.b32.cont [14/16] 0.0, 128
        %771 = vxpose.xlu0.b32.cont [15/16] 0.0, 128
        %772 = vxpose.xlu0.b32.end [16/16] 0.0, 128
        %v773 = vpop.trf.xlu0
        %v774 = vpop.trf.xlu0
        %v775 = vpop.trf.xlu0
        %v776 = vpop.trf.xlu0
        %v777 = vpop.trf.xlu0
        %v778 = vpop.trf.xlu0
        %v779 = vpop.trf.xlu0
        %v780 = vpop.trf.xlu0
        %v781 = vpop.trf.xlu0
        %v782 = vpop.trf.xlu0
        %v783 = vpop.trf.xlu0
        %v784 = vpop.trf.xlu0
        %v785 = vpop.trf.xlu0
        %v786 = vpop.trf.xlu0
        %v787 = vpop.trf.xlu0
        %v788 = vpop.trf.xlu0
        %789 = vxpose.xlu0.b32.start [1/16] %v678, 128
        %790 = vxpose.xlu0.b32.cont [2/16] %v680, 128
        %791 = vxpose.xlu0.b32.cont [3/16] %v682, 128
        %792 = vxpose.xlu0.b32.cont [4/16] %v684, 128
        %793 = vxpose.xlu0.b32.cont [5/16] %v686, 128
        %794 = vxpose.xlu0.b32.cont [6/16] %v688, 128
        %795 = vxpose.xlu0.b32.cont [7/16] %v690, 128
        %796 = vxpose.xlu0.b32.cont [8/16] %v692, 128
        %797 = vxpose.xlu0.b32.cont [9/16] 0.0, 128
        %798 = vxpose.xlu0.b32.cont [10/16] 0.0, 128
        %799 = vxpose.xlu0.b32.cont [11/16] 0.0, 128
        %800 = vxpose.xlu0.b32.cont [12/16] 0.0, 128
        %801 = vxpose.xlu0.b32.cont [13/16] 0.0, 128
        %802 = vxpose.xlu0.b32.cont [14/16] 0.0, 128
        %803 = vxpose.xlu0.b32.cont [15/16] 0.0, 128
        %804 = vxpose.xlu0.b32.end [16/16] 0.0, 128
        %v805 = vpop.trf.xlu0
        %v806 = vpop.trf.xlu0
        %v807 = vpop.trf.xlu0
        %v808 = vpop.trf.xlu0
        %v809 = vpop.trf.xlu0
        %v810 = vpop.trf.xlu0
        %v811 = vpop.trf.xlu0
        %v812 = vpop.trf.xlu0
        %v813 = vpop.trf.xlu0
        %v814 = vpop.trf.xlu0
        %v815 = vpop.trf.xlu0
        %v816 = vpop.trf.xlu0
        %v817 = vpop.trf.xlu0
        %v818 = vpop.trf.xlu0
        %v819 = vpop.trf.xlu0
        %v820 = vpop.trf.xlu0
        %821 = vxpose.xlu0.b32.start [1/16] %v694, 128
        %822 = vxpose.xlu0.b32.cont [2/16] %v696, 128
        %823 = vxpose.xlu0.b32.cont [3/16] %v698, 128
        %824 = vxpose.xlu0.b32.cont [4/16] %v700, 128
        %825 = vxpose.xlu0.b32.cont [5/16] %v702, 128
        %826 = vxpose.xlu0.b32.cont [6/16] %v704, 128
        %827 = vxpose.xlu0.b32.cont [7/16] %v706, 128
        %828 = vxpose.xlu0.b32.cont [8/16] %v708, 128
        %829 = vxpose.xlu0.b32.cont [9/16] 0.0, 128
        %830 = vxpose.xlu0.b32.cont [10/16] 0.0, 128
        %831 = vxpose.xlu0.b32.cont [11/16] 0.0, 128
        %832 = vxpose.xlu0.b32.cont [12/16] 0.0, 128
        %833 = vxpose.xlu0.b32.cont [13/16] 0.0, 128
        %834 = vxpose.xlu0.b32.cont [14/16] 0.0, 128
        %835 = vxpose.xlu0.b32.cont [15/16] 0.0, 128
        %836 = vxpose.xlu0.b32.end [16/16] 0.0, 128
        %v837 = vpop.trf.xlu0
        %v838 = vpop.trf.xlu0
        %v839 = vpop.trf.xlu0
        %v840 = vpop.trf.xlu0
        %v841 = vpop.trf.xlu0
        %v842 = vpop.trf.xlu0
        %v843 = vpop.trf.xlu0
        %v844 = vpop.trf.xlu0
        %v845 = vpop.trf.xlu0
        %v846 = vpop.trf.xlu0
        %v847 = vpop.trf.xlu0
        %v848 = vpop.trf.xlu0
        %v849 = vpop.trf.xlu0
        %v850 = vpop.trf.xlu0
        %v851 = vpop.trf.xlu0
        %v852 = vpop.trf.xlu0
        %853 = vxpose.xlu0.b32.start [1/16] %v710, 128
        %854 = vxpose.xlu0.b32.cont [2/16] %v712, 128
        %855 = vxpose.xlu0.b32.cont [3/16] %v714, 128
        %856 = vxpose.xlu0.b32.cont [4/16] %v716, 128
        %857 = vxpose.xlu0.b32.cont [5/16] %v718, 128
        %858 = vxpose.xlu0.b32.cont [6/16] %v720, 128
        %859 = vxpose.xlu0.b32.cont [7/16] %v722, 128
        %860 = vxpose.xlu0.b32.cont [8/16] %v724, 128
        %861 = vxpose.xlu0.b32.cont [9/16] 0.0, 128
        %862 = vxpose.xlu0.b32.cont [10/16] 0.0, 128
        %863 = vxpose.xlu0.b32.cont [11/16] 0.0, 128
        %864 = vxpose.xlu0.b32.cont [12/16] 0.0, 128
        %865 = vxpose.xlu0.b32.cont [13/16] 0.0, 128
        %866 = vxpose.xlu0.b32.cont [14/16] 0.0, 128
        %867 = vxpose.xlu0.b32.cont [15/16] 0.0, 128
        %868 = vxpose.xlu0.b32.end [16/16] 0.0, 128
        %v869 = vpop.trf.xlu0
        %v870 = vpop.trf.xlu0
        %v871 = vpop.trf.xlu0
        %v872 = vpop.trf.xlu0
        %v873 = vpop.trf.xlu0
        %v874 = vpop.trf.xlu0
        %v875 = vpop.trf.xlu0
        %v876 = vpop.trf.xlu0
        %v877 = vpop.trf.xlu0
        %v878 = vpop.trf.xlu0
        %v879 = vpop.trf.xlu0
        %v880 = vpop.trf.xlu0
        %v881 = vpop.trf.xlu0
        %v882 = vpop.trf.xlu0
        %v883 = vpop.trf.xlu0
        %v884 = vpop.trf.xlu0
        %v885 = vpack.c.bf16 %v774, %v773
        %v886 = vpack.c.bf16 %v776, %v775
        %v887 = vpack.c.bf16 %v778, %v777
        %v888 = vpack.c.bf16 %v780, %v779
        %v889 = vpack.c.bf16 %v806, %v805
        %v890 = vpack.c.bf16 %v808, %v807
        %v891 = vpack.c.bf16 %v810, %v809
        %v892 = vpack.c.bf16 %v812, %v811
        %v893 = vpack.c.bf16 %v838, %v837
        %v894 = vpack.c.bf16 %v840, %v839
        %v895 = vpack.c.bf16 %v842, %v841
        %v896 = vpack.c.bf16 %v844, %v843
        %v897 = vpack.c.bf16 %v870, %v869
        %v898 = vpack.c.bf16 %v872, %v871
        %v899 = vpack.c.bf16 %v874, %v873
        %v900 = vpack.c.bf16 %v876, %v875
        %v901 = vlaneseq
        %v902 = vshrl.u32 %v901, 7
        %v903 = vadd.s32 %v902, 8
        %v904 = vadd.s32 %v902, 16
        %v905 = vadd.s32 %v902, 24
        %v906 = vadd.s32 %v902, 32
        %v907 = vadd.s32 %v902, 40
        %v908 = vadd.s32 %v902, 48
        %v909 = vadd.s32 %v902, 56
        %v910 = vlaneseq
        %v911 = vand.u32 %v910, 127
        %vm912 = vcmp.le.s32.totalorder %v911, %v902
        %vm913 = vcmp.le.s32.totalorder %v911, %v903
        %vm914 = vcmp.le.s32.totalorder %v911, %v904
        %vm915 = vcmp.le.s32.totalorder %v911, %v905
        %vm916 = vcmp.le.s32.totalorder %v911, %v906
        %vm917 = vcmp.le.s32.totalorder %v911, %v907
        %vm918 = vcmp.le.s32.totalorder %v911, %v908
        %vm919 = vcmp.le.s32.totalorder %v911, %v909
        %v920 = vsel %vm912, 0.0, -1e+30
        %v921 = vsel %vm913, 0.0, -1e+30
        %v922 = vsel %vm914, 0.0, -1e+30
        %v923 = vsel %vm915, 0.0, -1e+30
        %v924 = vsel %vm916, 0.0, -1e+30
        %v925 = vsel %vm917, 0.0, -1e+30
        %v926 = vsel %vm918, 0.0, -1e+30
        %v927 = vsel %vm919, 0.0, -1e+30
        %vm928 = vcmask 64512
        %v930 = vsel %vm928, %v597, 0
        %v933 = vsel %vm928, %v598, 0
        %v936 = vsel %vm928, %v599, 0
        %v939 = vsel %vm928, %v600, 0
        %vm941 = vcmask 1043456
        %v943 = vsel %vm941, %v885, 0
        %945 = vmatprep.subr.bf16.mxu0 0
        %946 = vmatpush1.bf16.msra.mxu0 0
        %947 = vmatprep.subr.bf16.mxu0 0
        %948 = vmatpush1.bf16.msra.mxu0 0
        %949 = vmatprep.subr.bf16.mxu0 0
        %950 = vmatpush1.bf16.msra.mxu0 0
        %951 = vmatprep.subr.bf16.mxu0 0
        %952 = vmatpush1.bf16.msra.mxu0 0
        %953 = vmatprep.subr.bf16.mxu0 0
        %954 = vmatpush1.bf16.msra.mxu0 0
        %955 = vmatprep.subr.bf16.mxu0 0
        %956 = vmatpush1.bf16.msra.mxu0 0
        %957 = vmatprep.subr.bf16.mxu0 0
        %958 = vmatpush1.bf16.msra.mxu0 0
        %959 = vmatprep.subr.bf16.mxu0 0
        %960 = vmatpush1.bf16.msra.mxu0 %v943
        %961 = vmatprep.subr.bf16.mxu0 0
        %962 = vmatpush2.bf16.msra.mxu0 0
        %963 = vmatprep.subr.bf16.mxu0 0
        %964 = vmatpush2.bf16.msra.mxu0 0
        %965 = vmatprep.subr.bf16.mxu0 0
        %966 = vmatpush2.bf16.msra.mxu0 0
        %967 = vmatprep.subr.bf16.mxu0 0
        %968 = vmatpush2.bf16.msra.mxu0 0
        %969 = vmatprep.subr.bf16.mxu0 0
        %970 = vmatpush2.bf16.msra.mxu0 0
        %971 = vmatprep.subr.bf16.mxu0 0
        %972 = vmatpush2.bf16.msra.mxu0 0
        %973 = vmatprep.subr.bf16.mxu0 0
        %974 = vmatpush2.bf16.msra.mxu0 0
        %975 = vmatprep.subr.bf16.mxu0 0
        %976 = vmatpush2.bf16.msra.mxu0 0
        %977 = vmatprep.mubr.bf16.mxu0 0
        %978 = vmatmul.mubr.bf16.gmra.mxu0 %v930
        %v979 = vpop.f32.mrf.mxu0
        %v980 = vadd.f32 %v920, %v979
        %v981 = vpop.f32.mrf.mxu0
        %v982 = vpop.f32.mrf.mxu0
        %v983 = vadd.f32 %v921, %v982
        %v984 = vpop.f32.mrf.mxu0
        %985 = vmatprep.mubr.bf16.mxu0 0
        %986 = vmatmul.mubr.bf16.gmra.mxu0 %v933
        %v987 = vpop.f32.mrf.mxu0
        %v988 = vadd.f32 %v922, %v987
        %v989 = vpop.f32.mrf.mxu0
        %v990 = vpop.f32.mrf.mxu0
        %v991 = vadd.f32 %v923, %v990
        %v992 = vpop.f32.mrf.mxu0
        %993 = vmatprep.mubr.bf16.mxu0 0
        %994 = vmatmul.mubr.bf16.gmra.mxu0 %v936
        %v995 = vpop.f32.mrf.mxu0
        %v996 = vadd.f32 %v924, %v995
        %v997 = vpop.f32.mrf.mxu0
        %v998 = vpop.f32.mrf.mxu0
        %v999 = vadd.f32 %v925, %v998
        %v1000 = vpop.f32.mrf.mxu0
        %1001 = vmatprep.mubr.bf16.mxu0 0
        %1002 = vmatmul.mubr.bf16.gmra.mxu0 %v939
        %v1003 = vpop.f32.mrf.mxu0
        %v1004 = vadd.f32 %v926, %v1003
        %v1005 = vpop.f32.mrf.mxu0
        %v1006 = vpop.f32.mrf.mxu0
        %v1007 = vadd.f32 %v927, %v1006
        %v1008 = vpop.f32.mrf.mxu0
        %1009 = vdwg.mxu0
        %v1011 = vsel %vm928, %v601, 0
        %v1014 = vsel %vm928, %v602, 0
        %v1017 = vsel %vm928, %v603, 0
        %v1020 = vsel %vm928, %v604, 0
        %v1023 = vsel %vm941, %v889, 0
        %1025 = vmatprep.subr.bf16.mxu0 0
        %1026 = vmatpush1.bf16.msra.mxu0 0
        %1027 = vmatprep.subr.bf16.mxu0 0
        %1028 = vmatpush1.bf16.msra.mxu0 0
        %1029 = vmatprep.subr.bf16.mxu0 0
        %1030 = vmatpush1.bf16.msra.mxu0 0
        %1031 = vmatprep.subr.bf16.mxu0 0
        %1032 = vmatpush1.bf16.msra.mxu0 0
        %1033 = vmatprep.subr.bf16.mxu0 0
        %1034 = vmatpush1.bf16.msra.mxu0 0
        %1035 = vmatprep.subr.bf16.mxu0 0
        %1036 = vmatpush1.bf16.msra.mxu0 0
        %1037 = vmatprep.subr.bf16.mxu0 0
        %1038 = vmatpush1.bf16.msra.mxu0 0
        %1039 = vmatprep.subr.bf16.mxu0 0
        %1040 = vmatpush1.bf16.msra.mxu0 %v1023
        %1041 = vmatprep.subr.bf16.mxu0 0
        %1042 = vmatpush2.bf16.msra.mxu0 0
        %1043 = vmatprep.subr.bf16.mxu0 0
        %1044 = vmatpush2.bf16.msra.mxu0 0
        %1045 = vmatprep.subr.bf16.mxu0 0
        %1046 = vmatpush2.bf16.msra.mxu0 0
        %1047 = vmatprep.subr.bf16.mxu0 0
        %1048 = vmatpush2.bf16.msra.mxu0 0
        %1049 = vmatprep.subr.bf16.mxu0 0
        %1050 = vmatpush2.bf16.msra.mxu0 0
        %1051 = vmatprep.subr.bf16.mxu0 0
        %1052 = vmatpush2.bf16.msra.mxu0 0
        %1053 = vmatprep.subr.bf16.mxu0 0
        %1054 = vmatpush2.bf16.msra.mxu0 0
        %1055 = vmatprep.subr.bf16.mxu0 0
        %1056 = vmatpush2.bf16.msra.mxu0 0
        %1057 = vmatprep.mubr.bf16.mxu0 0
        %1058 = vmatmul.mubr.bf16.gmra.mxu0 %v1011
        %v1059 = vpop.f32.mrf.mxu0
        %v1060 = vadd.f32 %v920, %v1059
        %v1061 = vpop.f32.mrf.mxu0
        %v1062 = vpop.f32.mrf.mxu0
        %v1063 = vadd.f32 %v921, %v1062
        %v1064 = vpop.f32.mrf.mxu0
        %1065 = vmatprep.mubr.bf16.mxu0 0
        %1066 = vmatmul.mubr.bf16.gmra.mxu0 %v1014
        %v1067 = vpop.f32.mrf.mxu0
        %v1068 = vadd.f32 %v922, %v1067
        %v1069 = vpop.f32.mrf.mxu0
        %v1070 = vpop.f32.mrf.mxu0
        %v1071 = vadd.f32 %v923, %v1070
        %v1072 = vpop.f32.mrf.mxu0
        %1073 = vmatprep.mubr.bf16.mxu0 0
        %1074 = vmatmul.mubr.bf16.gmra.mxu0 %v1017
        %v1075 = vpop.f32.mrf.mxu0
        %v1076 = vadd.f32 %v924, %v1075
        %v1077 = vpop.f32.mrf.mxu0
        %v1078 = vpop.f32.mrf.mxu0
        %v1079 = vadd.f32 %v925, %v1078
        %v1080 = vpop.f32.mrf.mxu0
        %1081 = vmatprep.mubr.bf16.mxu0 0
        %1082 = vmatmul.mubr.bf16.gmra.mxu0 %v1020
        %v1083 = vpop.f32.mrf.mxu0
        %v1084 = vadd.f32 %v926, %v1083
        %v1085 = vpop.f32.mrf.mxu0
        %v1086 = vpop.f32.mrf.mxu0
        %v1087 = vadd.f32 %v927, %v1086
        %v1088 = vpop.f32.mrf.mxu0
        %1089 = vdwg.mxu0
        %v1091 = vsel %vm928, %v605, 0
        %v1094 = vsel %vm928, %v606, 0
        %v1097 = vsel %vm928, %v607, 0
        %v1100 = vsel %vm928, %v608, 0
        %v1103 = vsel %vm941, %v893, 0
        %1105 = vmatprep.subr.bf16.mxu0 0
        %1106 = vmatpush1.bf16.msra.mxu0 0
        %1107 = vmatprep.subr.bf16.mxu0 0
        %1108 = vmatpush1.bf16.msra.mxu0 0
        %1109 = vmatprep.subr.bf16.mxu0 0
        %1110 = vmatpush1.bf16.msra.mxu0 0
        %1111 = vmatprep.subr.bf16.mxu0 0
        %1112 = vmatpush1.bf16.msra.mxu0 0
        %1113 = vmatprep.subr.bf16.mxu0 0
        %1114 = vmatpush1.bf16.msra.mxu0 0
        %1115 = vmatprep.subr.bf16.mxu0 0
        %1116 = vmatpush1.bf16.msra.mxu0 0
        %1117 = vmatprep.subr.bf16.mxu0 0
        %1118 = vmatpush1.bf16.msra.mxu0 0
        %1119 = vmatprep.subr.bf16.mxu0 0
        %1120 = vmatpush1.bf16.msra.mxu0 %v1103
        %1121 = vmatprep.subr.bf16.mxu0 0
        %1122 = vmatpush2.bf16.msra.mxu0 0
        %1123 = vmatprep.subr.bf16.mxu0 0
        %1124 = vmatpush2.bf16.msra.mxu0 0
        %1125 = vmatprep.subr.bf16.mxu0 0
        %1126 = vmatpush2.bf16.msra.mxu0 0
        %1127 = vmatprep.subr.bf16.mxu0 0
        %1128 = vmatpush2.bf16.msra.mxu0 0
        %1129 = vmatprep.subr.bf16.mxu0 0
        %1130 = vmatpush2.bf16.msra.mxu0 0
        %1131 = vmatprep.subr.bf16.mxu0 0
        %1132 = vmatpush2.bf16.msra.mxu0 0
        %1133 = vmatprep.subr.bf16.mxu0 0
        %1134 = vmatpush2.bf16.msra.mxu0 0
        %1135 = vmatprep.subr.bf16.mxu0 0
        %1136 = vmatpush2.bf16.msra.mxu0 0
        %1137 = vmatprep.mubr.bf16.mxu0 0
        %1138 = vmatmul.mubr.bf16.gmra.mxu0 %v1091
        %v1139 = vpop.f32.mrf.mxu0
        %v1140 = vadd.f32 %v920, %v1139
        %v1141 = vpop.f32.mrf.mxu0
        %v1142 = vpop.f32.mrf.mxu0
        %v1143 = vadd.f32 %v921, %v1142
        %v1144 = vpop.f32.mrf.mxu0
        %1145 = vmatprep.mubr.bf16.mxu0 0
        %1146 = vmatmul.mubr.bf16.gmra.mxu0 %v1094
        %v1147 = vpop.f32.mrf.mxu0
        %v1148 = vadd.f32 %v922, %v1147
        %v1149 = vpop.f32.mrf.mxu0
        %v1150 = vpop.f32.mrf.mxu0
        %v1151 = vadd.f32 %v923, %v1150
        %v1152 = vpop.f32.mrf.mxu0
        %1153 = vmatprep.mubr.bf16.mxu0 0
        %1154 = vmatmul.mubr.bf16.gmra.mxu0 %v1097
        %v1155 = vpop.f32.mrf.mxu0
        %v1156 = vadd.f32 %v924, %v1155
        %v1157 = vpop.f32.mrf.mxu0
        %v1158 = vpop.f32.mrf.mxu0
        %v1159 = vadd.f32 %v925, %v1158
        %v1160 = vpop.f32.mrf.mxu0
        %1161 = vmatprep.mubr.bf16.mxu0 0
        %1162 = vmatmul.mubr.bf16.gmra.mxu0 %v1100
        %v1163 = vpop.f32.mrf.mxu0
        %v1164 = vadd.f32 %v926, %v1163
        %v1165 = vpop.f32.mrf.mxu0
        %v1166 = vpop.f32.mrf.mxu0
        %v1167 = vadd.f32 %v927, %v1166
        %v1168 = vpop.f32.mrf.mxu0
        %1169 = vdwg.mxu0
        %v1171 = vsel %vm928, %v609, 0
        %v1174 = vsel %vm928, %v610, 0
        %v1177 = vsel %vm928, %v611, 0
        %v1180 = vsel %vm928, %v612, 0
        %v1183 = vsel %vm941, %v897, 0
        %1185 = vmatprep.subr.bf16.mxu0 0
        %1186 = vmatpush1.bf16.msra.mxu0 0
        %1187 = vmatprep.subr.bf16.mxu0 0
        %1188 = vmatpush1.bf16.msra.mxu0 0
        %1189 = vmatprep.subr.bf16.mxu0 0
        %1190 = vmatpush1.bf16.msra.mxu0 0
        %1191 = vmatprep.subr.bf16.mxu0 0
        %1192 = vmatpush1.bf16.msra.mxu0 0
        %1193 = vmatprep.subr.bf16.mxu0 0
        %1194 = vmatpush1.bf16.msra.mxu0 0
        %1195 = vmatprep.subr.bf16.mxu0 0
        %1196 = vmatpush1.bf16.msra.mxu0 0
        %1197 = vmatprep.subr.bf16.mxu0 0
        %1198 = vmatpush1.bf16.msra.mxu0 0
        %1199 = vmatprep.subr.bf16.mxu0 0
        %1200 = vmatpush1.bf16.msra.mxu0 %v1183
        %1201 = vmatprep.subr.bf16.mxu0 0
        %1202 = vmatpush2.bf16.msra.mxu0 0
        %1203 = vmatprep.subr.bf16.mxu0 0
        %1204 = vmatpush2.bf16.msra.mxu0 0
        %1205 = vmatprep.subr.bf16.mxu0 0
        %1206 = vmatpush2.bf16.msra.mxu0 0
        %1207 = vmatprep.subr.bf16.mxu0 0
        %1208 = vmatpush2.bf16.msra.mxu0 0
        %1209 = vmatprep.subr.bf16.mxu0 0
        %1210 = vmatpush2.bf16.msra.mxu0 0
        %1211 = vmatprep.subr.bf16.mxu0 0
        %1212 = vmatpush2.bf16.msra.mxu0 0
        %1213 = vmatprep.subr.bf16.mxu0 0
        %1214 = vmatpush2.bf16.msra.mxu0 0
        %1215 = vmatprep.subr.bf16.mxu0 0
        %1216 = vmatpush2.bf16.msra.mxu0 0
        %1217 = vmatprep.mubr.bf16.mxu0 0
        %1218 = vmatmul.mubr.bf16.gmra.mxu0 %v1171
        %v1219 = vpop.f32.mrf.mxu0
        %v1220 = vadd.f32 %v920, %v1219
        %v1221 = vpop.f32.mrf.mxu0
        %v1222 = vpop.f32.mrf.mxu0
        %v1223 = vadd.f32 %v921, %v1222
        %v1224 = vpop.f32.mrf.mxu0
        %1225 = vmatprep.mubr.bf16.mxu0 0
        %1226 = vmatmul.mubr.bf16.gmra.mxu0 %v1174
        %v1227 = vpop.f32.mrf.mxu0
        %v1228 = vadd.f32 %v922, %v1227
        %v1229 = vpop.f32.mrf.mxu0
        %v1230 = vpop.f32.mrf.mxu0
        %v1231 = vadd.f32 %v923, %v1230
        %v1232 = vpop.f32.mrf.mxu0
        %1233 = vmatprep.mubr.bf16.mxu0 0
        %1234 = vmatmul.mubr.bf16.gmra.mxu0 %v1177
        %v1235 = vpop.f32.mrf.mxu0
        %v1236 = vadd.f32 %v924, %v1235
        %v1237 = vpop.f32.mrf.mxu0
        %v1238 = vpop.f32.mrf.mxu0
        %v1239 = vadd.f32 %v925, %v1238
        %v1240 = vpop.f32.mrf.mxu0
        %1241 = vmatprep.mubr.bf16.mxu0 0
        %1242 = vmatmul.mubr.bf16.gmra.mxu0 %v1180
        %v1243 = vpop.f32.mrf.mxu0
        %v1244 = vadd.f32 %v926, %v1243
        %v1245 = vpop.f32.mrf.mxu0
        %v1246 = vpop.f32.mrf.mxu0
        %v1247 = vadd.f32 %v927, %v1246
        %v1248 = vpop.f32.mrf.mxu0
        %1249 = vdwg.mxu0
        %v1250 = vsel %vm355, %v980, -inf
        %1251 = vmax.xlane.f32.xlu0 %v1250
        %v1252 = vpop.xlane.xlu0 %1251
        %v1253 = vsel %vm355, %v983, -inf
        %1254 = vmax.xlane.f32.xlu0 %v1253
        %v1255 = vpop.xlane.xlu0 %1254
        %v1256 = vsel %vm355, %v988, -inf
        %1257 = vmax.xlane.f32.xlu0 %v1256
        %v1258 = vpop.xlane.xlu0 %1257
        %v1259 = vsel %vm355, %v991, -inf
        %1260 = vmax.xlane.f32.xlu0 %v1259
        %v1261 = vpop.xlane.xlu0 %1260
        %v1262 = vsel %vm355, %v996, -inf
        %1263 = vmax.xlane.f32.xlu0 %v1262
        %v1264 = vpop.xlane.xlu0 %1263
        %v1265 = vsel %vm355, %v999, -inf
        %1266 = vmax.xlane.f32.xlu0 %v1265
        %v1267 = vpop.xlane.xlu0 %1266
        %v1268 = vsel %vm355, %v1004, -inf
        %1269 = vmax.xlane.f32.xlu0 %v1268
        %v1270 = vpop.xlane.xlu0 %1269
        %v1271 = vsel %vm355, %v1007, -inf
        %1272 = vmax.xlane.f32.xlu0 %v1271
        %v1273 = vpop.xlane.xlu0 %1272
        %v1274 = vsel %vm355, %v1060, -inf
        %1275 = vmax.xlane.f32.xlu0 %v1274
        %v1276 = vpop.xlane.xlu0 %1275
        %v1277 = vsel %vm355, %v1063, -inf
        %1278 = vmax.xlane.f32.xlu0 %v1277
        %v1279 = vpop.xlane.xlu0 %1278
        %v1280 = vsel %vm355, %v1068, -inf
        %1281 = vmax.xlane.f32.xlu0 %v1280
        %v1282 = vpop.xlane.xlu0 %1281
        %v1283 = vsel %vm355, %v1071, -inf
        %1284 = vmax.xlane.f32.xlu0 %v1283
        %v1285 = vpop.xlane.xlu0 %1284
        %v1286 = vsel %vm355, %v1076, -inf
        %1287 = vmax.xlane.f32.xlu0 %v1286
        %v1288 = vpop.xlane.xlu0 %1287
        %v1289 = vsel %vm355, %v1079, -inf
        %1290 = vmax.xlane.f32.xlu0 %v1289
        %v1291 = vpop.xlane.xlu0 %1290
        %v1292 = vsel %vm355, %v1084, -inf
        %1293 = vmax.xlane.f32.xlu0 %v1292
        %v1294 = vpop.xlane.xlu0 %1293
        %v1295 = vsel %vm355, %v1087, -inf
        %1296 = vmax.xlane.f32.xlu0 %v1295
        %v1297 = vpop.xlane.xlu0 %1296
        %v1298 = vsel %vm355, %v1140, -inf
        %1299 = vmax.xlane.f32.xlu0 %v1298
        %v1300 = vpop.xlane.xlu0 %1299
        %v1301 = vsel %vm355, %v1143, -inf
        %1302 = vmax.xlane.f32.xlu0 %v1301
        %v1303 = vpop.xlane.xlu0 %1302
        %v1304 = vsel %vm355, %v1148, -inf
        %1305 = vmax.xlane.f32.xlu0 %v1304
        %v1306 = vpop.xlane.xlu0 %1305
        %v1307 = vsel %vm355, %v1151, -inf
        %1308 = vmax.xlane.f32.xlu0 %v1307
        %v1309 = vpop.xlane.xlu0 %1308
        %v1310 = vsel %vm355, %v1156, -inf
        %1311 = vmax.xlane.f32.xlu0 %v1310
        %v1312 = vpop.xlane.xlu0 %1311
        %v1313 = vsel %vm355, %v1159, -inf
        %1314 = vmax.xlane.f32.xlu0 %v1313
        %v1315 = vpop.xlane.xlu0 %1314
        %v1316 = vsel %vm355, %v1164, -inf
        %1317 = vmax.xlane.f32.xlu0 %v1316
        %v1318 = vpop.xlane.xlu0 %1317
        %v1319 = vsel %vm355, %v1167, -inf
        %1320 = vmax.xlane.f32.xlu0 %v1319
        %v1321 = vpop.xlane.xlu0 %1320
        %v1322 = vsel %vm355, %v1220, -inf
        %1323 = vmax.xlane.f32.xlu0 %v1322
        %v1324 = vpop.xlane.xlu0 %1323
        %v1325 = vsel %vm355, %v1223, -inf
        %1326 = vmax.xlane.f32.xlu0 %v1325
        %v1327 = vpop.xlane.xlu0 %1326
        %v1328 = vsel %vm355, %v1228, -inf
        %1329 = vmax.xlane.f32.xlu0 %v1328
        %v1330 = vpop.xlane.xlu0 %1329
        %v1331 = vsel %vm355, %v1231, -inf
        %1332 = vmax.xlane.f32.xlu0 %v1331
        %v1333 = vpop.xlane.xlu0 %1332
        %v1334 = vsel %vm355, %v1236, -inf
        %1335 = vmax.xlane.f32.xlu0 %v1334
        %v1336 = vpop.xlane.xlu0 %1335
        %v1337 = vsel %vm355, %v1239, -inf
        %1338 = vmax.xlane.f32.xlu0 %v1337
        %v1339 = vpop.xlane.xlu0 %1338
        %v1340 = vsel %vm355, %v1244, -inf
        %1341 = vmax.xlane.f32.xlu0 %v1340
        %v1342 = vpop.xlane.xlu0 %1341
        %v1343 = vsel %vm355, %v1247, -inf
        %1344 = vmax.xlane.f32.xlu0 %v1343
        %v1345 = vpop.xlane.xlu0 %1344
        %v1346 = vsub.f32 %v980, %v1252
        %v1347 = vsub.f32 %v983, %v1255
        %v1348 = vsub.f32 %v988, %v1258
        %v1349 = vsub.f32 %v991, %v1261
        %v1350 = vsub.f32 %v996, %v1264
        %v1351 = vsub.f32 %v999, %v1267
        %v1352 = vsub.f32 %v1004, %v1270
        %v1353 = vsub.f32 %v1007, %v1273
        %v1354 = vsub.f32 %v1060, %v1276
        %v1355 = vsub.f32 %v1063, %v1279
        %v1356 = vsub.f32 %v1068, %v1282
        %v1357 = vsub.f32 %v1071, %v1285
        %v1358 = vsub.f32 %v1076, %v1288
        %v1359 = vsub.f32 %v1079, %v1291
        %v1360 = vsub.f32 %v1084, %v1294
        %v1361 = vsub.f32 %v1087, %v1297
        %v1362 = vsub.f32 %v1140, %v1300
        %v1363 = vsub.f32 %v1143, %v1303
        %v1364 = vsub.f32 %v1148, %v1306
        %v1365 = vsub.f32 %v1151, %v1309
        %v1366 = vsub.f32 %v1156, %v1312
        %v1367 = vsub.f32 %v1159, %v1315
        %v1368 = vsub.f32 %v1164, %v1318
        %v1369 = vsub.f32 %v1167, %v1321
        %v1370 = vsub.f32 %v1220, %v1324
        %v1371 = vsub.f32 %v1223, %v1327
        %v1372 = vsub.f32 %v1228, %v1330
        %v1373 = vsub.f32 %v1231, %v1333
        %v1374 = vsub.f32 %v1236, %v1336
        %v1375 = vsub.f32 %v1239, %v1339
        %v1376 = vsub.f32 %v1244, %v1342
        %v1377 = vsub.f32 %v1247, %v1345
        %v1378 = vmul.f32 %v1346, 1.442695
        %v1379 = vpow.pop %v1378
        %v1380 = vmul.f32 %v1347, 1.442695
        %v1381 = vpow.pop %v1380
        %v1382 = vmul.f32 %v1348, 1.442695
        %v1383 = vpow.pop %v1382
        %v1384 = vmul.f32 %v1349, 1.442695
        %v1385 = vpow.pop %v1384
        %v1386 = vmul.f32 %v1350, 1.442695
        %v1387 = vpow.pop %v1386
        %v1388 = vmul.f32 %v1351, 1.442695
        %v1389 = vpow.pop %v1388
        %v1390 = vmul.f32 %v1352, 1.442695
        %v1391 = vpow.pop %v1390
        %v1392 = vmul.f32 %v1353, 1.442695
        %v1393 = vpow.pop %v1392
        %v1394 = vmul.f32 %v1354, 1.442695
        %v1395 = vpow.pop %v1394
        %v1396 = vmul.f32 %v1355, 1.442695
        %v1397 = vpow.pop %v1396
        %v1398 = vmul.f32 %v1356, 1.442695
        %v1399 = vpow.pop %v1398
        %v1400 = vmul.f32 %v1357, 1.442695
        %v1401 = vpow.pop %v1400
        %v1402 = vmul.f32 %v1358, 1.442695
        %v1403 = vpow.pop %v1402
        %v1404 = vmul.f32 %v1359, 1.442695
        %v1405 = vpow.pop %v1404
        %v1406 = vmul.f32 %v1360, 1.442695
        %v1407 = vpow.pop %v1406
        %v1408 = vmul.f32 %v1361, 1.442695
        %v1409 = vpow.pop %v1408
        %v1410 = vmul.f32 %v1362, 1.442695
        %v1411 = vpow.pop %v1410
        %v1412 = vmul.f32 %v1363, 1.442695
        %v1413 = vpow.pop %v1412
        %v1414 = vmul.f32 %v1364, 1.442695
        %v1415 = vpow.pop %v1414
        %v1416 = vmul.f32 %v1365, 1.442695
        %v1417 = vpow.pop %v1416
        %v1418 = vmul.f32 %v1366, 1.442695
        %v1419 = vpow.pop %v1418
        %v1420 = vmul.f32 %v1367, 1.442695
        %v1421 = vpow.pop %v1420
        %v1422 = vmul.f32 %v1368, 1.442695
        %v1423 = vpow.pop %v1422
        %v1424 = vmul.f32 %v1369, 1.442695
        %v1425 = vpow.pop %v1424
        %v1426 = vmul.f32 %v1370, 1.442695
        %v1427 = vpow.pop %v1426
        %v1428 = vmul.f32 %v1371, 1.442695
        %v1429 = vpow.pop %v1428
        %v1430 = vmul.f32 %v1372, 1.442695
        %v1431 = vpow.pop %v1430
        %v1432 = vmul.f32 %v1373, 1.442695
        %v1433 = vpow.pop %v1432
        %v1434 = vmul.f32 %v1374, 1.442695
        %v1435 = vpow.pop %v1434
        %v1436 = vmul.f32 %v1375, 1.442695
        %v1437 = vpow.pop %v1436
        %v1438 = vmul.f32 %v1376, 1.442695
        %v1439 = vpow.pop %v1438
        %v1440 = vmul.f32 %v1377, 1.442695
        %v1441 = vpow.pop %v1440
        %v1442 = vsel %vm355, %v1379, 0.0
        %1443 = vadd.xlane.f32.xlu0 %v1442
        %v1444 = vpop.xlane.xlu0 %1443
        %v1445 = vsel %vm355, %v1381, 0.0
        %1446 = vadd.xlane.f32.xlu0 %v1445
        %v1447 = vpop.xlane.xlu0 %1446
        %v1448 = vsel %vm355, %v1383, 0.0
        %1449 = vadd.xlane.f32.xlu0 %v1448
        %v1450 = vpop.xlane.xlu0 %1449
        %v1451 = vsel %vm355, %v1385, 0.0
        %1452 = vadd.xlane.f32.xlu0 %v1451
        %v1453 = vpop.xlane.xlu0 %1452
        %v1454 = vsel %vm355, %v1387, 0.0
        %1455 = vadd.xlane.f32.xlu0 %v1454
        %v1456 = vpop.xlane.xlu0 %1455
        %v1457 = vsel %vm355, %v1389, 0.0
        %1458 = vadd.xlane.f32.xlu0 %v1457
        %v1459 = vpop.xlane.xlu0 %1458
        %v1460 = vsel %vm355, %v1391, 0.0
        %1461 = vadd.xlane.f32.xlu0 %v1460
        %v1462 = vpop.xlane.xlu0 %1461
        %v1463 = vsel %vm355, %v1393, 0.0
        %1464 = vadd.xlane.f32.xlu0 %v1463
        %v1465 = vpop.xlane.xlu0 %1464
        %v1466 = vsel %vm355, %v1395, 0.0
        %1467 = vadd.xlane.f32.xlu0 %v1466
        %v1468 = vpop.xlane.xlu0 %1467
        %v1469 = vsel %vm355, %v1397, 0.0
        %1470 = vadd.xlane.f32.xlu0 %v1469
        %v1471 = vpop.xlane.xlu0 %1470
        %v1472 = vsel %vm355, %v1399, 0.0
        %1473 = vadd.xlane.f32.xlu0 %v1472
        %v1474 = vpop.xlane.xlu0 %1473
        %v1475 = vsel %vm355, %v1401, 0.0
        %1476 = vadd.xlane.f32.xlu0 %v1475
        %v1477 = vpop.xlane.xlu0 %1476
        %v1478 = vsel %vm355, %v1403, 0.0
        %1479 = vadd.xlane.f32.xlu0 %v1478
        %v1480 = vpop.xlane.xlu0 %1479
        %v1481 = vsel %vm355, %v1405, 0.0
        %1482 = vadd.xlane.f32.xlu0 %v1481
        %v1483 = vpop.xlane.xlu0 %1482
        %v1484 = vsel %vm355, %v1407, 0.0
        %1485 = vadd.xlane.f32.xlu0 %v1484
        %v1486 = vpop.xlane.xlu0 %1485
        %v1487 = vsel %vm355, %v1409, 0.0
        %1488 = vadd.xlane.f32.xlu0 %v1487
        %v1489 = vpop.xlane.xlu0 %1488
        %v1490 = vsel %vm355, %v1411, 0.0
        %1491 = vadd.xlane.f32.xlu0 %v1490
        %v1492 = vpop.xlane.xlu0 %1491
        %v1493 = vsel %vm355, %v1413, 0.0
        %1494 = vadd.xlane.f32.xlu0 %v1493
        %v1495 = vpop.xlane.xlu0 %1494
        %v1496 = vsel %vm355, %v1415, 0.0
        %1497 = vadd.xlane.f32.xlu0 %v1496
        %v1498 = vpop.xlane.xlu0 %1497
        %v1499 = vsel %vm355, %v1417, 0.0
        %1500 = vadd.xlane.f32.xlu0 %v1499
        %v1501 = vpop.xlane.xlu0 %1500
        %v1502 = vsel %vm355, %v1419, 0.0
        %1503 = vadd.xlane.f32.xlu0 %v1502
        %v1504 = vpop.xlane.xlu0 %1503
        %v1505 = vsel %vm355, %v1421, 0.0
        %1506 = vadd.xlane.f32.xlu0 %v1505
        %v1507 = vpop.xlane.xlu0 %1506
        %v1508 = vsel %vm355, %v1423, 0.0
        %1509 = vadd.xlane.f32.xlu0 %v1508
        %v1510 = vpop.xlane.xlu0 %1509
        %v1511 = vsel %vm355, %v1425, 0.0
        %1512 = vadd.xlane.f32.xlu0 %v1511
        %v1513 = vpop.xlane.xlu0 %1512
        %v1514 = vsel %vm355, %v1427, 0.0
        %1515 = vadd.xlane.f32.xlu0 %v1514
        %v1516 = vpop.xlane.xlu0 %1515
        %v1517 = vsel %vm355, %v1429, 0.0
        %1518 = vadd.xlane.f32.xlu0 %v1517
        %v1519 = vpop.xlane.xlu0 %1518
        %v1520 = vsel %vm355, %v1431, 0.0
        %1521 = vadd.xlane.f32.xlu0 %v1520
        %v1522 = vpop.xlane.xlu0 %1521
        %v1523 = vsel %vm355, %v1433, 0.0
        %1524 = vadd.xlane.f32.xlu0 %v1523
        %v1525 = vpop.xlane.xlu0 %1524
        %v1526 = vsel %vm355, %v1435, 0.0
        %1527 = vadd.xlane.f32.xlu0 %v1526
        %v1528 = vpop.xlane.xlu0 %1527
        %v1529 = vsel %vm355, %v1437, 0.0
        %1530 = vadd.xlane.f32.xlu0 %v1529
        %v1531 = vpop.xlane.xlu0 %1530
        %v1532 = vsel %vm355, %v1439, 0.0
        %1533 = vadd.xlane.f32.xlu0 %v1532
        %v1534 = vpop.xlane.xlu0 %1533
        %v1535 = vsel %vm355, %v1441, 0.0
        %1536 = vadd.xlane.f32.xlu0 %v1535
        %v1537 = vpop.xlane.xlu0 %1536
        %v1538 = vrcp.pop %v1444
        %v1539 = vrcp.pop %v1447
        %v1540 = vrcp.pop %v1450
        %v1541 = vrcp.pop %v1453
        %v1542 = vrcp.pop %v1456
        %v1543 = vrcp.pop %v1459
        %v1544 = vrcp.pop %v1462
        %v1545 = vrcp.pop %v1465
        %v1546 = vrcp.pop %v1468
        %v1547 = vrcp.pop %v1471
        %v1548 = vrcp.pop %v1474
        %v1549 = vrcp.pop %v1477
        %v1550 = vrcp.pop %v1480
        %v1551 = vrcp.pop %v1483
        %v1552 = vrcp.pop %v1486
        %v1553 = vrcp.pop %v1489
        %v1554 = vrcp.pop %v1492
        %v1555 = vrcp.pop %v1495
        %v1556 = vrcp.pop %v1498
        %v1557 = vrcp.pop %v1501
        %v1558 = vrcp.pop %v1504
        %v1559 = vrcp.pop %v1507
        %v1560 = vrcp.pop %v1510
        %v1561 = vrcp.pop %v1513
        %v1562 = vrcp.pop %v1516
        %v1563 = vrcp.pop %v1519
        %v1564 = vrcp.pop %v1522
        %v1565 = vrcp.pop %v1525
        %v1566 = vrcp.pop %v1528
        %v1567 = vrcp.pop %v1531
        %v1568 = vrcp.pop %v1534
        %v1569 = vrcp.pop %v1537
        %v1570 = vmul.f32 %v1379, %v1538
        %v1571 = vmul.f32 %v1381, %v1539
        %v1572 = vmul.f32 %v1383, %v1540
        %v1573 = vmul.f32 %v1385, %v1541
        %v1574 = vmul.f32 %v1387, %v1542
        %v1575 = vmul.f32 %v1389, %v1543
        %v1576 = vmul.f32 %v1391, %v1544
        %v1577 = vmul.f32 %v1393, %v1545
        %v1578 = vmul.f32 %v1395, %v1546
        %v1579 = vmul.f32 %v1397, %v1547
        %v1580 = vmul.f32 %v1399, %v1548
        %v1581 = vmul.f32 %v1401, %v1549
        %v1582 = vmul.f32 %v1403, %v1550
        %v1583 = vmul.f32 %v1405, %v1551
        %v1584 = vmul.f32 %v1407, %v1552
        %v1585 = vmul.f32 %v1409, %v1553
        %v1586 = vmul.f32 %v1411, %v1554
        %v1587 = vmul.f32 %v1413, %v1555
        %v1588 = vmul.f32 %v1415, %v1556
        %v1589 = vmul.f32 %v1417, %v1557
        %v1590 = vmul.f32 %v1419, %v1558
        %v1591 = vmul.f32 %v1421, %v1559
        %v1592 = vmul.f32 %v1423, %v1560
        %v1593 = vmul.f32 %v1425, %v1561
        %v1594 = vmul.f32 %v1427, %v1562
        %v1595 = vmul.f32 %v1429, %v1563
        %v1596 = vmul.f32 %v1431, %v1564
        %v1597 = vmul.f32 %v1433, %v1565
        %v1598 = vmul.f32 %v1435, %v1566
        %v1599 = vmul.f32 %v1437, %v1567
        %v1600 = vmul.f32 %v1439, %v1568
        %v1601 = vmul.f32 %v1441, %v1569
        %v1602 = vpack.c.bf16 %v1571, %v1570
        %v1603 = vpack.c.bf16 %v1573, %v1572
        %v1604 = vpack.c.bf16 %v1575, %v1574
        %v1605 = vpack.c.bf16 %v1577, %v1576
        %v1606 = vpack.c.bf16 %v1579, %v1578
        %v1607 = vpack.c.bf16 %v1581, %v1580
        %v1608 = vpack.c.bf16 %v1583, %v1582
        %v1609 = vpack.c.bf16 %v1585, %v1584
        %v1610 = vpack.c.bf16 %v1587, %v1586
        %v1611 = vpack.c.bf16 %v1589, %v1588
        %v1612 = vpack.c.bf16 %v1591, %v1590
        %v1613 = vpack.c.bf16 %v1593, %v1592
        %v1614 = vpack.c.bf16 %v1595, %v1594
        %v1615 = vpack.c.bf16 %v1597, %v1596
        %v1616 = vpack.c.bf16 %v1599, %v1598
        %v1617 = vpack.c.bf16 %v1601, %v1600
        %v1619 = vsel %vm355, %v1602, 0
        %v1622 = vsel %vm355, %v1603, 0
        %v1625 = vsel %vm355, %v1604, 0
        %v1628 = vsel %vm355, %v1605, 0
        %1630 = vmatprep.subr.bf16.mxu0 0
        %1631 = vmatpush1.bf16.msra.mxu0 0
        %1632 = vmatprep.subr.bf16.mxu0 0
        %1633 = vmatpush1.bf16.msra.mxu0 0
        %1634 = vmatprep.subr.bf16.mxu0 0
        %1635 = vmatpush1.bf16.msra.mxu0 0
        %1636 = vmatprep.subr.bf16.mxu0 0
        %1637 = vmatpush1.bf16.msra.mxu0 0
        %1638 = vmatprep.subr.bf16.mxu0 0
        %1639 = vmatpush1.bf16.msra.mxu0 %v616
        %1640 = vmatprep.subr.bf16.mxu0 0
        %1641 = vmatpush1.bf16.msra.mxu0 %v615
        %1642 = vmatprep.subr.bf16.mxu0 0
        %1643 = vmatpush1.bf16.msra.mxu0 %v614
        %1644 = vmatprep.subr.bf16.mxu0 0
        %1645 = vmatpush1.bf16.msra.mxu0 %v613
        %1646 = vmatprep.subr.bf16.mxu0 0
        %1647 = vmatpush2.bf16.msra.mxu0 0
        %1648 = vmatprep.subr.bf16.mxu0 0
        %1649 = vmatpush2.bf16.msra.mxu0 0
        %1650 = vmatprep.subr.bf16.mxu0 0
        %1651 = vmatpush2.bf16.msra.mxu0 0
        %1652 = vmatprep.subr.bf16.mxu0 0
        %1653 = vmatpush2.bf16.msra.mxu0 0
        %1654 = vmatprep.subr.bf16.mxu0 0
        %1655 = vmatpush2.bf16.msra.mxu0 0
        %1656 = vmatprep.subr.bf16.mxu0 0
        %1657 = vmatpush2.bf16.msra.mxu0 0
        %1658 = vmatprep.subr.bf16.mxu0 0
        %1659 = vmatpush2.bf16.msra.mxu0 0
        %1660 = vmatprep.subr.bf16.mxu0 0
        %1661 = vmatpush2.bf16.msra.mxu0 0
        %1662 = vmatprep.mubr.bf16.mxu0 0
        %1663 = vmatmul.mubr.bf16.gmra.mxu0 %v1619
        %v1664 = vpop.f32.mrf.mxu0
        %v1665 = vadd.f32 0.0, %v1664
        %v1666 = vpop.f32.mrf.mxu0
        %v1667 = vpop.f32.mrf.mxu0
        %v1668 = vadd.f32 0.0, %v1667
        %v1669 = vpop.f32.mrf.mxu0
        %1670 = vmatprep.mubr.bf16.mxu0 0
        %1671 = vmatmul.mubr.bf16.gmra.mxu0 %v1622
        %v1672 = vpop.f32.mrf.mxu0
        %v1673 = vadd.f32 0.0, %v1672
        %v1674 = vpop.f32.mrf.mxu0
        %v1675 = vpop.f32.mrf.mxu0
        %v1676 = vadd.f32 0.0, %v1675
        %v1677 = vpop.f32.mrf.mxu0
        %1678 = vmatprep.mubr.bf16.mxu0 0
        %1679 = vmatmul.mubr.bf16.gmra.mxu0 %v1625
        %v1680 = vpop.f32.mrf.mxu0
        %v1681 = vadd.f32 0.0, %v1680
        %v1682 = vpop.f32.mrf.mxu0
        %v1683 = vpop.f32.mrf.mxu0
        %v1684 = vadd.f32 0.0, %v1683
        %v1685 = vpop.f32.mrf.mxu0
        %1686 = vmatprep.mubr.bf16.mxu0 0
        %1687 = vmatmul.mubr.bf16.gmra.mxu0 %v1628
        %v1688 = vpop.f32.mrf.mxu0
        %v1689 = vadd.f32 0.0, %v1688
        %v1690 = vpop.f32.mrf.mxu0
        %v1691 = vpop.f32.mrf.mxu0
        %v1692 = vadd.f32 0.0, %v1691
        %v1693 = vpop.f32.mrf.mxu0
        %1694 = vdwg.mxu0
        %v1696 = vsel %vm355, %v1606, 0
        %v1699 = vsel %vm355, %v1607, 0
        %v1702 = vsel %vm355, %v1608, 0
        %v1705 = vsel %vm355, %v1609, 0
        %1707 = vmatprep.subr.bf16.mxu0 0
        %1708 = vmatpush1.bf16.msra.mxu0 0
        %1709 = vmatprep.subr.bf16.mxu0 0
        %1710 = vmatpush1.bf16.msra.mxu0 0
        %1711 = vmatprep.subr.bf16.mxu0 0
        %1712 = vmatpush1.bf16.msra.mxu0 0
        %1713 = vmatprep.subr.bf16.mxu0 0
        %1714 = vmatpush1.bf16.msra.mxu0 0
        %1715 = vmatprep.subr.bf16.mxu0 0
        %1716 = vmatpush1.bf16.msra.mxu0 %v620
        %1717 = vmatprep.subr.bf16.mxu0 0
        %1718 = vmatpush1.bf16.msra.mxu0 %v619
        %1719 = vmatprep.subr.bf16.mxu0 0
        %1720 = vmatpush1.bf16.msra.mxu0 %v618
        %1721 = vmatprep.subr.bf16.mxu0 0
        %1722 = vmatpush1.bf16.msra.mxu0 %v617
        %1723 = vmatprep.subr.bf16.mxu0 0
        %1724 = vmatpush2.bf16.msra.mxu0 0
        %1725 = vmatprep.subr.bf16.mxu0 0
        %1726 = vmatpush2.bf16.msra.mxu0 0
        %1727 = vmatprep.subr.bf16.mxu0 0
        %1728 = vmatpush2.bf16.msra.mxu0 0
        %1729 = vmatprep.subr.bf16.mxu0 0
        %1730 = vmatpush2.bf16.msra.mxu0 0
        %1731 = vmatprep.subr.bf16.mxu0 0
        %1732 = vmatpush2.bf16.msra.mxu0 0
        %1733 = vmatprep.subr.bf16.mxu0 0
        %1734 = vmatpush2.bf16.msra.mxu0 0
        %1735 = vmatprep.subr.bf16.mxu0 0
        %1736 = vmatpush2.bf16.msra.mxu0 0
        %1737 = vmatprep.subr.bf16.mxu0 0
        %1738 = vmatpush2.bf16.msra.mxu0 0
        %1739 = vmatprep.mubr.bf16.mxu0 0
        %1740 = vmatmul.mubr.bf16.gmra.mxu0 %v1696
        %v1741 = vpop.f32.mrf.mxu0
        %v1742 = vadd.f32 0.0, %v1741
        %v1743 = vpop.f32.mrf.mxu0
        %v1744 = vpop.f32.mrf.mxu0
        %v1745 = vadd.f32 0.0, %v1744
        %v1746 = vpop.f32.mrf.mxu0
        %1747 = vmatprep.mubr.bf16.mxu0 0
        %1748 = vmatmul.mubr.bf16.gmra.mxu0 %v1699
        %v1749 = vpop.f32.mrf.mxu0
        %v1750 = vadd.f32 0.0, %v1749
        %v1751 = vpop.f32.mrf.mxu0
        %v1752 = vpop.f32.mrf.mxu0
        %v1753 = vadd.f32 0.0, %v1752
        %v1754 = vpop.f32.mrf.mxu0
        %1755 = vmatprep.mubr.bf16.mxu0 0
        %1756 = vmatmul.mubr.bf16.gmra.mxu0 %v1702
        %v1757 = vpop.f32.mrf.mxu0
        %v1758 = vadd.f32 0.0, %v1757
        %v1759 = vpop.f32.mrf.mxu0
        %v1760 = vpop.f32.mrf.mxu0
        %v1761 = vadd.f32 0.0, %v1760
        %v1762 = vpop.f32.mrf.mxu0
        %1763 = vmatprep.mubr.bf16.mxu0 0
        %1764 = vmatmul.mubr.bf16.gmra.mxu0 %v1705
        %v1765 = vpop.f32.mrf.mxu0
        %v1766 = vadd.f32 0.0, %v1765
        %v1767 = vpop.f32.mrf.mxu0
        %v1768 = vpop.f32.mrf.mxu0
        %v1769 = vadd.f32 0.0, %v1768
        %v1770 = vpop.f32.mrf.mxu0
        %1771 = vdwg.mxu0
        %v1773 = vsel %vm355, %v1610, 0
        %v1776 = vsel %vm355, %v1611, 0
        %v1779 = vsel %vm355, %v1612, 0
        %v1782 = vsel %vm355, %v1613, 0
        %1784 = vmatprep.subr.bf16.mxu0 0
        %1785 = vmatpush1.bf16.msra.mxu0 0
        %1786 = vmatprep.subr.bf16.mxu0 0
        %1787 = vmatpush1.bf16.msra.mxu0 0
        %1788 = vmatprep.subr.bf16.mxu0 0
        %1789 = vmatpush1.bf16.msra.mxu0 0
        %1790 = vmatprep.subr.bf16.mxu0 0
        %1791 = vmatpush1.bf16.msra.mxu0 0
        %1792 = vmatprep.subr.bf16.mxu0 0
        %1793 = vmatpush1.bf16.msra.mxu0 %v624
        %1794 = vmatprep.subr.bf16.mxu0 0
        %1795 = vmatpush1.bf16.msra.mxu0 %v623
        %1796 = vmatprep.subr.bf16.mxu0 0
        %1797 = vmatpush1.bf16.msra.mxu0 %v622
        %1798 = vmatprep.subr.bf16.mxu0 0
        %1799 = vmatpush1.bf16.msra.mxu0 %v621
        %1800 = vmatprep.subr.bf16.mxu0 0
        %1801 = vmatpush2.bf16.msra.mxu0 0
        %1802 = vmatprep.subr.bf16.mxu0 0
        %1803 = vmatpush2.bf16.msra.mxu0 0
        %1804 = vmatprep.subr.bf16.mxu0 0
        %1805 = vmatpush2.bf16.msra.mxu0 0
        %1806 = vmatprep.subr.bf16.mxu0 0
        %1807 = vmatpush2.bf16.msra.mxu0 0
        %1808 = vmatprep.subr.bf16.mxu0 0
        %1809 = vmatpush2.bf16.msra.mxu0 0
        %1810 = vmatprep.subr.bf16.mxu0 0
        %1811 = vmatpush2.bf16.msra.mxu0 0
        %1812 = vmatprep.subr.bf16.mxu0 0
        %1813 = vmatpush2.bf16.msra.mxu0 0
        %1814 = vmatprep.subr.bf16.mxu0 0
        %1815 = vmatpush2.bf16.msra.mxu0 0
        %1816 = vmatprep.mubr.bf16.mxu0 0
        %1817 = vmatmul.mubr.bf16.gmra.mxu0 %v1773
        %v1818 = vpop.f32.mrf.mxu0
        %v1819 = vadd.f32 0.0, %v1818
        %v1820 = vpop.f32.mrf.mxu0
        %v1821 = vpop.f32.mrf.mxu0
        %v1822 = vadd.f32 0.0, %v1821
        %v1823 = vpop.f32.mrf.mxu0
        %1824 = vmatprep.mubr.bf16.mxu0 0
        %1825 = vmatmul.mubr.bf16.gmra.mxu0 %v1776
        %v1826 = vpop.f32.mrf.mxu0
        %v1827 = vadd.f32 0.0, %v1826
        %v1828 = vpop.f32.mrf.mxu0
        %v1829 = vpop.f32.mrf.mxu0
        %v1830 = vadd.f32 0.0, %v1829
        %v1831 = vpop.f32.mrf.mxu0
        %1832 = vmatprep.mubr.bf16.mxu0 0
        %1833 = vmatmul.mubr.bf16.gmra.mxu0 %v1779
        %v1834 = vpop.f32.mrf.mxu0
        %v1835 = vadd.f32 0.0, %v1834
        %v1836 = vpop.f32.mrf.mxu0
        %v1837 = vpop.f32.mrf.mxu0
        %v1838 = vadd.f32 0.0, %v1837
        %v1839 = vpop.f32.mrf.mxu0
        %1840 = vmatprep.mubr.bf16.mxu0 0
        %1841 = vmatmul.mubr.bf16.gmra.mxu0 %v1782
        %v1842 = vpop.f32.mrf.mxu0
        %v1843 = vadd.f32 0.0, %v1842
        %v1844 = vpop.f32.mrf.mxu0
        %v1845 = vpop.f32.mrf.mxu0
        %v1846 = vadd.f32 0.0, %v1845
        %v1847 = vpop.f32.mrf.mxu0
        %1848 = vdwg.mxu0
        %v1850 = vsel %vm355, %v1614, 0
        %v1853 = vsel %vm355, %v1615, 0
        %v1856 = vsel %vm355, %v1616, 0
        %v1859 = vsel %vm355, %v1617, 0
        %1861 = vmatprep.subr.bf16.mxu0 0
        %1862 = vmatpush1.bf16.msra.mxu0 0
        %1863 = vmatprep.subr.bf16.mxu0 0
        %1864 = vmatpush1.bf16.msra.mxu0 0
        %1865 = vmatprep.subr.bf16.mxu0 0
        %1866 = vmatpush1.bf16.msra.mxu0 0
        %1867 = vmatprep.subr.bf16.mxu0 0
        %1868 = vmatpush1.bf16.msra.mxu0 0
        %1869 = vmatprep.subr.bf16.mxu0 0
        %1870 = vmatpush1.bf16.msra.mxu0 %v628
        %1871 = vmatprep.subr.bf16.mxu0 0
        %1872 = vmatpush1.bf16.msra.mxu0 %v627
        %1873 = vmatprep.subr.bf16.mxu0 0
        %1874 = vmatpush1.bf16.msra.mxu0 %v626
        %1875 = vmatprep.subr.bf16.mxu0 0
        %1876 = vmatpush1.bf16.msra.mxu0 %v625
        %1877 = vmatprep.subr.bf16.mxu0 0
        %1878 = vmatpush2.bf16.msra.mxu0 0
        %1879 = vmatprep.subr.bf16.mxu0 0
        %1880 = vmatpush2.bf16.msra.mxu0 0
        %1881 = vmatprep.subr.bf16.mxu0 0
        %1882 = vmatpush2.bf16.msra.mxu0 0
        %1883 = vmatprep.subr.bf16.mxu0 0
        %1884 = vmatpush2.bf16.msra.mxu0 0
        %1885 = vmatprep.subr.bf16.mxu0 0
        %1886 = vmatpush2.bf16.msra.mxu0 0
        %1887 = vmatprep.subr.bf16.mxu0 0
        %1888 = vmatpush2.bf16.msra.mxu0 0
        %1889 = vmatprep.subr.bf16.mxu0 0
        %1890 = vmatpush2.bf16.msra.mxu0 0
        %1891 = vmatprep.subr.bf16.mxu0 0
        %1892 = vmatpush2.bf16.msra.mxu0 0
        %1893 = vmatprep.mubr.bf16.mxu0 0
        %1894 = vmatmul.mubr.bf16.gmra.mxu0 %v1850
        %v1895 = vpop.f32.mrf.mxu0
        %v1896 = vadd.f32 0.0, %v1895
        %v1897 = vpop.f32.mrf.mxu0
        %v1898 = vpop.f32.mrf.mxu0
        %v1899 = vadd.f32 0.0, %v1898
        %v1900 = vpop.f32.mrf.mxu0
        %1901 = vmatprep.mubr.bf16.mxu0 0
        %1902 = vmatmul.mubr.bf16.gmra.mxu0 %v1853
        %v1903 = vpop.f32.mrf.mxu0
        %v1904 = vadd.f32 0.0, %v1903
        %v1905 = vpop.f32.mrf.mxu0
        %v1906 = vpop.f32.mrf.mxu0
        %v1907 = vadd.f32 0.0, %v1906
        %v1908 = vpop.f32.mrf.mxu0
        %1909 = vmatprep.mubr.bf16.mxu0 0
        %1910 = vmatmul.mubr.bf16.gmra.mxu0 %v1856
        %v1911 = vpop.f32.mrf.mxu0
        %v1912 = vadd.f32 0.0, %v1911
        %v1913 = vpop.f32.mrf.mxu0
        %v1914 = vpop.f32.mrf.mxu0
        %v1915 = vadd.f32 0.0, %v1914
        %v1916 = vpop.f32.mrf.mxu0
        %1917 = vmatprep.mubr.bf16.mxu0 0
        %1918 = vmatmul.mubr.bf16.gmra.mxu0 %v1859
        %v1919 = vpop.f32.mrf.mxu0
        %v1920 = vadd.f32 0.0, %v1919
        %v1921 = vpop.f32.mrf.mxu0
        %v1922 = vpop.f32.mrf.mxu0
        %v1923 = vadd.f32 0.0, %v1922
        %v1924 = vpop.f32.mrf.mxu0
        %1925 = vdwg.mxu0
        %v1926 = vpack.c.bf16 %v1668, %v1665
        %v1927 = vpack.c.bf16 %v1676, %v1673
        %v1928 = vpack.c.bf16 %v1684, %v1681
        %v1929 = vpack.c.bf16 %v1692, %v1689
        %v1930 = vpack.c.bf16 %v1745, %v1742
        %v1931 = vpack.c.bf16 %v1753, %v1750
        %v1932 = vpack.c.bf16 %v1761, %v1758
        %v1933 = vpack.c.bf16 %v1769, %v1766
        %v1934 = vpack.c.bf16 %v1822, %v1819
        %v1935 = vpack.c.bf16 %v1830, %v1827
        %v1936 = vpack.c.bf16 %v1838, %v1835
        %v1937 = vpack.c.bf16 %v1846, %v1843
        %v1938 = vpack.c.bf16 %v1899, %v1896
        %v1939 = vpack.c.bf16 %v1907, %v1904
        %v1940 = vpack.c.bf16 %v1915, %v1912
        %v1941 = vpack.c.bf16 %v1923, %v1920
        %v1942 = vld [vmem:[%s3] sm:$0xf]
        %1947 = vrot.lane.b32.xlu0 %v597, 120
        %v1948 = vpop.permute.xlu0 %1947
        %1949 = vrot.lane.b32.xlu0 %v598, 120
        %v1950 = vpop.permute.xlu0 %1949
        %1951 = vrot.lane.b32.xlu0 %v599, 120
        %v1952 = vpop.permute.xlu0 %1951
        %1953 = vrot.lane.b32.xlu0 %v600, 120
        %v1954 = vpop.permute.xlu0 %1953
        %v1956 = vrot.slane %v885, 4
        %v1958 = vsel %vm928, %v1948, 0
        %v1961 = vsel %vm928, %v1950, 0
        %v1964 = vsel %vm928, %v1952, 0
        %v1967 = vsel %vm928, %v1954, 0
        %v1970 = vsel %vm941, %v1956, 0
        %1972 = vmatprep.subr.bf16.mxu0 0
        %1973 = vmatpush1.bf16.msra.mxu0 0
        %1974 = vmatprep.subr.bf16.mxu0 0
        %1975 = vmatpush1.bf16.msra.mxu0 0
        %1976 = vmatprep.subr.bf16.mxu0 0
        %1977 = vmatpush1.bf16.msra.mxu0 0
        %1978 = vmatprep.subr.bf16.mxu0 0
        %1979 = vmatpush1.bf16.msra.mxu0 0
        %1980 = vmatprep.subr.bf16.mxu0 0
        %1981 = vmatpush1.bf16.msra.mxu0 0
        %1982 = vmatprep.subr.bf16.mxu0 0
        %1983 = vmatpush1.bf16.msra.mxu0 0
        %1984 = vmatprep.subr.bf16.mxu0 0
        %1985 = vmatpush1.bf16.msra.mxu0 0
        %1986 = vmatprep.subr.bf16.mxu0 0
        %1987 = vmatpush1.bf16.msra.mxu0 %v1970
        %1988 = vmatprep.subr.bf16.mxu0 0
        %1989 = vmatpush2.bf16.msra.mxu0 0
        %1990 = vmatprep.subr.bf16.mxu0 0
        %1991 = vmatpush2.bf16.msra.mxu0 0
        %1992 = vmatprep.subr.bf16.mxu0 0
        %1993 = vmatpush2.bf16.msra.mxu0 0
        %1994 = vmatprep.subr.bf16.mxu0 0
        %1995 = vmatpush2.bf16.msra.mxu0 0
        %1996 = vmatprep.subr.bf16.mxu0 0
        %1997 = vmatpush2.bf16.msra.mxu0 0
        %1998 = vmatprep.subr.bf16.mxu0 0
        %1999 = vmatpush2.bf16.msra.mxu0 0
        %2000 = vmatprep.subr.bf16.mxu0 0
        %2001 = vmatpush2.bf16.msra.mxu0 0
        %2002 = vmatprep.subr.bf16.mxu0 0
        %2003 = vmatpush2.bf16.msra.mxu0 0
        %2004 = vmatprep.mubr.bf16.mxu0 0
        %2005 = vmatmul.mubr.bf16.gmra.mxu0 %v1958
        %v2006 = vpop.f32.mrf.mxu0
        %v2007 = vadd.f32 %v920, %v2006
        %v2008 = vpop.f32.mrf.mxu0
        %v2009 = vpop.f32.mrf.mxu0
        %v2010 = vadd.f32 %v921, %v2009
        %v2011 = vpop.f32.mrf.mxu0
        %2012 = vmatprep.mubr.bf16.mxu0 0
        %2013 = vmatmul.mubr.bf16.gmra.mxu0 %v1961
        %v2014 = vpop.f32.mrf.mxu0
        %v2015 = vadd.f32 %v922, %v2014
        %v2016 = vpop.f32.mrf.mxu0
        %v2017 = vpop.f32.mrf.mxu0
        %v2018 = vadd.f32 %v923, %v2017
        %v2019 = vpop.f32.mrf.mxu0
        %2020 = vmatprep.mubr.bf16.mxu0 0
        %2021 = vmatmul.mubr.bf16.gmra.mxu0 %v1964
        %v2022 = vpop.f32.mrf.mxu0
        %v2023 = vadd.f32 %v924, %v2022
        %v2024 = vpop.f32.mrf.mxu0
        %v2025 = vpop.f32.mrf.mxu0
        %v2026 = vadd.f32 %v925, %v2025
        %v2027 = vpop.f32.mrf.mxu0
        %2028 = vmatprep.mubr.bf16.mxu0 0
        %2029 = vmatmul.mubr.bf16.gmra.mxu0 %v1967
        %v2030 = vpop.f32.mrf.mxu0
        %v2031 = vadd.f32 %v926, %v2030
        %v2032 = vpop.f32.mrf.mxu0
        %v2033 = vpop.f32.mrf.mxu0
        %v2034 = vadd.f32 %v927, %v2033
        %v2035 = vpop.f32.mrf.mxu0
        %2036 = vdwg.mxu0
        %2041 = vrot.lane.b32.xlu0 %v601, 120
        %v2042 = vpop.permute.xlu0 %2041
        %2043 = vrot.lane.b32.xlu0 %v602, 120
        %v2044 = vpop.permute.xlu0 %2043
        %2045 = vrot.lane.b32.xlu0 %v603, 120
        %v2046 = vpop.permute.xlu0 %2045
        %2047 = vrot.lane.b32.xlu0 %v604, 120
        %v2048 = vpop.permute.xlu0 %2047
        %v2050 = vrot.slane %v889, 4
        %v2052 = vsel %vm928, %v2042, 0
        %v2055 = vsel %vm928, %v2044, 0
        %v2058 = vsel %vm928, %v2046, 0
        %v2061 = vsel %vm928, %v2048, 0
        %v2064 = vsel %vm941, %v2050, 0
        %2066 = vmatprep.subr.bf16.mxu0 0
        %2067 = vmatpush1.bf16.msra.mxu0 0
        %2068 = vmatprep.subr.bf16.mxu0 0
        %2069 = vmatpush1.bf16.msra.mxu0 0
        %2070 = vmatprep.subr.bf16.mxu0 0
        %2071 = vmatpush1.bf16.msra.mxu0 0
        %2072 = vmatprep.subr.bf16.mxu0 0
        %2073 = vmatpush1.bf16.msra.mxu0 0
        %2074 = vmatprep.subr.bf16.mxu0 0
        %2075 = vmatpush1.bf16.msra.mxu0 0
        %2076 = vmatprep.subr.bf16.mxu0 0
        %2077 = vmatpush1.bf16.msra.mxu0 0
        %2078 = vmatprep.subr.bf16.mxu0 0
        %2079 = vmatpush1.bf16.msra.mxu0 0
        %2080 = vmatprep.subr.bf16.mxu0 0
        %2081 = vmatpush1.bf16.msra.mxu0 %v2064
        %2082 = vmatprep.subr.bf16.mxu0 0
        %2083 = vmatpush2.bf16.msra.mxu0 0
        %2084 = vmatprep.subr.bf16.mxu0 0
        %2085 = vmatpush2.bf16.msra.mxu0 0
        %2086 = vmatprep.subr.bf16.mxu0 0
        %2087 = vmatpush2.bf16.msra.mxu0 0
        %2088 = vmatprep.subr.bf16.mxu0 0
        %2089 = vmatpush2.bf16.msra.mxu0 0
        %2090 = vmatprep.subr.bf16.mxu0 0
        %2091 = vmatpush2.bf16.msra.mxu0 0
        %2092 = vmatprep.subr.bf16.mxu0 0
        %2093 = vmatpush2.bf16.msra.mxu0 0
        %2094 = vmatprep.subr.bf16.mxu0 0
        %2095 = vmatpush2.bf16.msra.mxu0 0
        %2096 = vmatprep.subr.bf16.mxu0 0
        %2097 = vmatpush2.bf16.msra.mxu0 0
        %2098 = vmatprep.mubr.bf16.mxu0 0
        %2099 = vmatmul.mubr.bf16.gmra.mxu0 %v2052
        %v2100 = vpop.f32.mrf.mxu0
        %v2101 = vadd.f32 %v920, %v2100
        %v2102 = vpop.f32.mrf.mxu0
        %v2103 = vpop.f32.mrf.mxu0
        %v2104 = vadd.f32 %v921, %v2103
        %v2105 = vpop.f32.mrf.mxu0
        %2106 = vmatprep.mubr.bf16.mxu0 0
        %2107 = vmatmul.mubr.bf16.gmra.mxu0 %v2055
        %v2108 = vpop.f32.mrf.mxu0
        %v2109 = vadd.f32 %v922, %v2108
        %v2110 = vpop.f32.mrf.mxu0
        %v2111 = vpop.f32.mrf.mxu0
        %v2112 = vadd.f32 %v923, %v2111
        %v2113 = vpop.f32.mrf.mxu0
        %2114 = vmatprep.mubr.bf16.mxu0 0
        %2115 = vmatmul.mubr.bf16.gmra.mxu0 %v2058
        %v2116 = vpop.f32.mrf.mxu0
        %v2117 = vadd.f32 %v924, %v2116
        %v2118 = vpop.f32.mrf.mxu0
        %v2119 = vpop.f32.mrf.mxu0
        %v2120 = vadd.f32 %v925, %v2119
        %v2121 = vpop.f32.mrf.mxu0
        %2122 = vmatprep.mubr.bf16.mxu0 0
        %2123 = vmatmul.mubr.bf16.gmra.mxu0 %v2061
        %v2124 = vpop.f32.mrf.mxu0
        %v2125 = vadd.f32 %v926, %v2124
        %v2126 = vpop.f32.mrf.mxu0
        %v2127 = vpop.f32.mrf.mxu0
        %v2128 = vadd.f32 %v927, %v2127
        %v2129 = vpop.f32.mrf.mxu0
        %2130 = vdwg.mxu0
        %2135 = vrot.lane.b32.xlu0 %v605, 120
        %v2136 = vpop.permute.xlu0 %2135
        %2137 = vrot.lane.b32.xlu0 %v606, 120
        %v2138 = vpop.permute.xlu0 %2137
        %2139 = vrot.lane.b32.xlu0 %v607, 120
        %v2140 = vpop.permute.xlu0 %2139
        %2141 = vrot.lane.b32.xlu0 %v608, 120
        %v2142 = vpop.permute.xlu0 %2141
        %v2144 = vrot.slane %v893, 4
        %v2146 = vsel %vm928, %v2136, 0
        %v2149 = vsel %vm928, %v2138, 0
        %v2152 = vsel %vm928, %v2140, 0
        %v2155 = vsel %vm928, %v2142, 0
        %v2158 = vsel %vm941, %v2144, 0
        %2160 = vmatprep.subr.bf16.mxu0 0
        %2161 = vmatpush1.bf16.msra.mxu0 0
        %2162 = vmatprep.subr.bf16.mxu0 0
        %2163 = vmatpush1.bf16.msra.mxu0 0
        %2164 = vmatprep.subr.bf16.mxu0 0
        %2165 = vmatpush1.bf16.msra.mxu0 0
        %2166 = vmatprep.subr.bf16.mxu0 0
        %2167 = vmatpush1.bf16.msra.mxu0 0
        %2168 = vmatprep.subr.bf16.mxu0 0
        %2169 = vmatpush1.bf16.msra.mxu0 0
        %2170 = vmatprep.subr.bf16.mxu0 0
        %2171 = vmatpush1.bf16.msra.mxu0 0
        %2172 = vmatprep.subr.bf16.mxu0 0
        %2173 = vmatpush1.bf16.msra.mxu0 0
        %2174 = vmatprep.subr.bf16.mxu0 0
        %2175 = vmatpush1.bf16.msra.mxu0 %v2158
        %2176 = vmatprep.subr.bf16.mxu0 0
        %2177 = vmatpush2.bf16.msra.mxu0 0
        %2178 = vmatprep.subr.bf16.mxu0 0
        %2179 = vmatpush2.bf16.msra.mxu0 0
        %2180 = vmatprep.subr.bf16.mxu0 0
        %2181 = vmatpush2.bf16.msra.mxu0 0
        %2182 = vmatprep.subr.bf16.mxu0 0
        %2183 = vmatpush2.bf16.msra.mxu0 0
        %2184 = vmatprep.subr.bf16.mxu0 0
        %2185 = vmatpush2.bf16.msra.mxu0 0
        %2186 = vmatprep.subr.bf16.mxu0 0
        %2187 = vmatpush2.bf16.msra.mxu0 0
        %2188 = vmatprep.subr.bf16.mxu0 0
        %2189 = vmatpush2.bf16.msra.mxu0 0
        %2190 = vmatprep.subr.bf16.mxu0 0
        %2191 = vmatpush2.bf16.msra.mxu0 0
        %2192 = vmatprep.mubr.bf16.mxu0 0
        %2193 = vmatmul.mubr.bf16.gmra.mxu0 %v2146
        %v2194 = vpop.f32.mrf.mxu0
        %v2195 = vadd.f32 %v920, %v2194
        %v2196 = vpop.f32.mrf.mxu0
        %v2197 = vpop.f32.mrf.mxu0
        %v2198 = vadd.f32 %v921, %v2197
        %v2199 = vpop.f32.mrf.mxu0
        %2200 = vmatprep.mubr.bf16.mxu0 0
        %2201 = vmatmul.mubr.bf16.gmra.mxu0 %v2149
        %v2202 = vpop.f32.mrf.mxu0
        %v2203 = vadd.f32 %v922, %v2202
        %v2204 = vpop.f32.mrf.mxu0
        %v2205 = vpop.f32.mrf.mxu0
        %v2206 = vadd.f32 %v923, %v2205
        %v2207 = vpop.f32.mrf.mxu0
        %2208 = vmatprep.mubr.bf16.mxu0 0
        %2209 = vmatmul.mubr.bf16.gmra.mxu0 %v2152
        %v2210 = vpop.f32.mrf.mxu0
        %v2211 = vadd.f32 %v924, %v2210
        %v2212 = vpop.f32.mrf.mxu0
        %v2213 = vpop.f32.mrf.mxu0
        %v2214 = vadd.f32 %v925, %v2213
        %v2215 = vpop.f32.mrf.mxu0
        %2216 = vmatprep.mubr.bf16.mxu0 0
        %2217 = vmatmul.mubr.bf16.gmra.mxu0 %v2155
        %v2218 = vpop.f32.mrf.mxu0
        %v2219 = vadd.f32 %v926, %v2218
        %v2220 = vpop.f32.mrf.mxu0
        %v2221 = vpop.f32.mrf.mxu0
        %v2222 = vadd.f32 %v927, %v2221
        %v2223 = vpop.f32.mrf.mxu0
        %2224 = vdwg.mxu0
        %2229 = vrot.lane.b32.xlu0 %v609, 120
        %v2230 = vpop.permute.xlu0 %2229
        %2231 = vrot.lane.b32.xlu0 %v610, 120
        %v2232 = vpop.permute.xlu0 %2231
        %2233 = vrot.lane.b32.xlu0 %v611, 120
        %v2234 = vpop.permute.xlu0 %2233
        %2235 = vrot.lane.b32.xlu0 %v612, 120
        %v2236 = vpop.permute.xlu0 %2235
        %v2238 = vrot.slane %v897, 4
        %v2240 = vsel %vm928, %v2230, 0
        %v2243 = vsel %vm928, %v2232, 0
        %v2246 = vsel %vm928, %v2234, 0
        %v2249 = vsel %vm928, %v2236, 0
        %v2252 = vsel %vm941, %v2238, 0
        %2254 = vmatprep.subr.bf16.mxu0 0
        %2255 = vmatpush1.bf16.msra.mxu0 0
        %2256 = vmatprep.subr.bf16.mxu0 0
        %2257 = vmatpush1.bf16.msra.mxu0 0
        %2258 = vmatprep.subr.bf16.mxu0 0
        %2259 = vmatpush1.bf16.msra.mxu0 0
        %2260 = vmatprep.subr.bf16.mxu0 0
        %2261 = vmatpush1.bf16.msra.mxu0 0
        %2262 = vmatprep.subr.bf16.mxu0 0
        %2263 = vmatpush1.bf16.msra.mxu0 0
        %2264 = vmatprep.subr.bf16.mxu0 0
        %2265 = vmatpush1.bf16.msra.mxu0 0
        %2266 = vmatprep.subr.bf16.mxu0 0
        %2267 = vmatpush1.bf16.msra.mxu0 0
        %2268 = vmatprep.subr.bf16.mxu0 0
        %2269 = vmatpush1.bf16.msra.mxu0 %v2252
        %2270 = vmatprep.subr.bf16.mxu0 0
        %2271 = vmatpush2.bf16.msra.mxu0 0
        %2272 = vmatprep.subr.bf16.mxu0 0
        %2273 = vmatpush2.bf16.msra.mxu0 0
        %2274 = vmatprep.subr.bf16.mxu0 0
        %2275 = vmatpush2.bf16.msra.mxu0 0
        %2276 = vmatprep.subr.bf16.mxu0 0
        %2277 = vmatpush2.bf16.msra.mxu0 0
        %2278 = vmatprep.subr.bf16.mxu0 0
        %2279 = vmatpush2.bf16.msra.mxu0 0
        %2280 = vmatprep.subr.bf16.mxu0 0
        %2281 = vmatpush2.bf16.msra.mxu0 0
        %2282 = vmatprep.subr.bf16.mxu0 0
        %2283 = vmatpush2.bf16.msra.mxu0 0
        %2284 = vmatprep.subr.bf16.mxu0 0
        %2285 = vmatpush2.bf16.msra.mxu0 0
        %2286 = vmatprep.mubr.bf16.mxu0 0
        %2287 = vmatmul.mubr.bf16.gmra.mxu0 %v2240
        %v2288 = vpop.f32.mrf.mxu0
        %v2289 = vadd.f32 %v920, %v2288
        %v2290 = vpop.f32.mrf.mxu0
        %v2291 = vpop.f32.mrf.mxu0
        %v2292 = vadd.f32 %v921, %v2291
        %v2293 = vpop.f32.mrf.mxu0
        %2294 = vmatprep.mubr.bf16.mxu0 0
        %2295 = vmatmul.mubr.bf16.gmra.mxu0 %v2243
        %v2296 = vpop.f32.mrf.mxu0
        %v2297 = vadd.f32 %v922, %v2296
        %v2298 = vpop.f32.mrf.mxu0
        %v2299 = vpop.f32.mrf.mxu0
        %v2300 = vadd.f32 %v923, %v2299
        %v2301 = vpop.f32.mrf.mxu0
        %2302 = vmatprep.mubr.bf16.mxu0 0
        %2303 = vmatmul.mubr.bf16.gmra.mxu0 %v2246
        %v2304 = vpop.f32.mrf.mxu0
        %v2305 = vadd.f32 %v924, %v2304
        %v2306 = vpop.f32.mrf.mxu0
        %v2307 = vpop.f32.mrf.mxu0
        %v2308 = vadd.f32 %v925, %v2307
        %v2309 = vpop.f32.mrf.mxu0
        %2310 = vmatprep.mubr.bf16.mxu0 0
        %2311 = vmatmul.mubr.bf16.gmra.mxu0 %v2249
        %v2312 = vpop.f32.mrf.mxu0
        %v2313 = vadd.f32 %v926, %v2312
        %v2314 = vpop.f32.mrf.mxu0
        %v2315 = vpop.f32.mrf.mxu0
        %v2316 = vadd.f32 %v927, %v2315
        %v2317 = vpop.f32.mrf.mxu0
        %2318 = vdwg.mxu0
        %v2319 = vsel %vm355, %v2007, -inf
        %2320 = vmax.xlane.f32.xlu0 %v2319
        %v2321 = vpop.xlane.xlu0 %2320
        %v2322 = vsel %vm355, %v2010, -inf
        %2323 = vmax.xlane.f32.xlu0 %v2322
        %v2324 = vpop.xlane.xlu0 %2323
        %v2325 = vsel %vm355, %v2015, -inf
        %2326 = vmax.xlane.f32.xlu0 %v2325
        %v2327 = vpop.xlane.xlu0 %2326
        %v2328 = vsel %vm355, %v2018, -inf
        %2329 = vmax.xlane.f32.xlu0 %v2328
        %v2330 = vpop.xlane.xlu0 %2329
        %v2331 = vsel %vm355, %v2023, -inf
        %2332 = vmax.xlane.f32.xlu0 %v2331
        %v2333 = vpop.xlane.xlu0 %2332
        %v2334 = vsel %vm355, %v2026, -inf
        %2335 = vmax.xlane.f32.xlu0 %v2334
        %v2336 = vpop.xlane.xlu0 %2335
        %v2337 = vsel %vm355, %v2031, -inf
        %2338 = vmax.xlane.f32.xlu0 %v2337
        %v2339 = vpop.xlane.xlu0 %2338
        %v2340 = vsel %vm355, %v2034, -inf
        %2341 = vmax.xlane.f32.xlu0 %v2340
        %v2342 = vpop.xlane.xlu0 %2341
        %v2343 = vsel %vm355, %v2101, -inf
        %2344 = vmax.xlane.f32.xlu0 %v2343
        %v2345 = vpop.xlane.xlu0 %2344
        %v2346 = vsel %vm355, %v2104, -inf
        %2347 = vmax.xlane.f32.xlu0 %v2346
        %v2348 = vpop.xlane.xlu0 %2347
        %v2349 = vsel %vm355, %v2109, -inf
        %2350 = vmax.xlane.f32.xlu0 %v2349
        %v2351 = vpop.xlane.xlu0 %2350
        %v2352 = vsel %vm355, %v2112, -inf
        %2353 = vmax.xlane.f32.xlu0 %v2352
        %v2354 = vpop.xlane.xlu0 %2353
        %v2355 = vsel %vm355, %v2117, -inf
        %2356 = vmax.xlane.f32.xlu0 %v2355
        %v2357 = vpop.xlane.xlu0 %2356
        %v2358 = vsel %vm355, %v2120, -inf
        %2359 = vmax.xlane.f32.xlu0 %v2358
        %v2360 = vpop.xlane.xlu0 %2359
        %v2361 = vsel %vm355, %v2125, -inf
        %2362 = vmax.xlane.f32.xlu0 %v2361
        %v2363 = vpop.xlane.xlu0 %2362
        %v2364 = vsel %vm355, %v2128, -inf
        %2365 = vmax.xlane.f32.xlu0 %v2364
        %v2366 = vpop.xlane.xlu0 %2365
        %v2367 = vsel %vm355, %v2195, -inf
        %2368 = vmax.xlane.f32.xlu0 %v2367
        %v2369 = vpop.xlane.xlu0 %2368
        %v2370 = vsel %vm355, %v2198, -inf
        %2371 = vmax.xlane.f32.xlu0 %v2370
        %v2372 = vpop.xlane.xlu0 %2371
        %v2373 = vsel %vm355, %v2203, -inf
        %2374 = vmax.xlane.f32.xlu0 %v2373
        %v2375 = vpop.xlane.xlu0 %2374
        %v2376 = vsel %vm355, %v2206, -inf
        %2377 = vmax.xlane.f32.xlu0 %v2376
        %v2378 = vpop.xlane.xlu0 %2377
        %v2379 = vsel %vm355, %v2211, -inf
        %2380 = vmax.xlane.f32.xlu0 %v2379
        %v2381 = vpop.xlane.xlu0 %2380
        %v2382 = vsel %vm355, %v2214, -inf
        %2383 = vmax.xlane.f32.xlu0 %v2382
        %v2384 = vpop.xlane.xlu0 %2383
        %v2385 = vsel %vm355, %v2219, -inf
        %2386 = vmax.xlane.f32.xlu0 %v2385
        %v2387 = vpop.xlane.xlu0 %2386
        %v2388 = vsel %vm355, %v2222, -inf
        %2389 = vmax.xlane.f32.xlu0 %v2388
        %v2390 = vpop.xlane.xlu0 %2389
        %v2391 = vsel %vm355, %v2289, -inf
        %2392 = vmax.xlane.f32.xlu0 %v2391
        %v2393 = vpop.xlane.xlu0 %2392
        %v2394 = vsel %vm355, %v2292, -inf
        %2395 = vmax.xlane.f32.xlu0 %v2394
        %v2396 = vpop.xlane.xlu0 %2395
        %v2397 = vsel %vm355, %v2297, -inf
        %2398 = vmax.xlane.f32.xlu0 %v2397
        %v2399 = vpop.xlane.xlu0 %2398
        %v2400 = vsel %vm355, %v2300, -inf
        %2401 = vmax.xlane.f32.xlu0 %v2400
        %v2402 = vpop.xlane.xlu0 %2401
        %v2403 = vsel %vm355, %v2305, -inf
        %2404 = vmax.xlane.f32.xlu0 %v2403
        %v2405 = vpop.xlane.xlu0 %2404
        %v2406 = vsel %vm355, %v2308, -inf
        %2407 = vmax.xlane.f32.xlu0 %v2406
        %v2408 = vpop.xlane.xlu0 %2407
        %v2409 = vsel %vm355, %v2313, -inf
        %2410 = vmax.xlane.f32.xlu0 %v2409
        %v2411 = vpop.xlane.xlu0 %2410
        %v2412 = vsel %vm355, %v2316, -inf
        %2413 = vmax.xlane.f32.xlu0 %v2412
        %v2414 = vpop.xlane.xlu0 %2413
        %v2415 = vsub.f32 %v2007, %v2321
        %v2416 = vsub.f32 %v2010, %v2324
        %v2417 = vsub.f32 %v2015, %v2327
        %v2418 = vsub.f32 %v2018, %v2330
        %v2419 = vsub.f32 %v2023, %v2333
        %v2420 = vsub.f32 %v2026, %v2336
        %v2421 = vsub.f32 %v2031, %v2339
        %v2422 = vsub.f32 %v2034, %v2342
        %v2423 = vsub.f32 %v2101, %v2345
        %v2424 = vsub.f32 %v2104, %v2348
        %v2425 = vsub.f32 %v2109, %v2351
        %v2426 = vsub.f32 %v2112, %v2354
        %v2427 = vsub.f32 %v2117, %v2357
        %v2428 = vsub.f32 %v2120, %v2360
        %v2429 = vsub.f32 %v2125, %v2363
        %v2430 = vsub.f32 %v2128, %v2366
        %v2431 = vsub.f32 %v2195, %v2369
        %v2432 = vsub.f32 %v2198, %v2372
        %v2433 = vsub.f32 %v2203, %v2375
        %v2434 = vsub.f32 %v2206, %v2378
        %v2435 = vsub.f32 %v2211, %v2381
        %v2436 = vsub.f32 %v2214, %v2384
        %v2437 = vsub.f32 %v2219, %v2387
        %v2438 = vsub.f32 %v2222, %v2390
        %v2439 = vsub.f32 %v2289, %v2393
        %v2440 = vsub.f32 %v2292, %v2396
        %v2441 = vsub.f32 %v2297, %v2399
        %v2442 = vsub.f32 %v2300, %v2402
        %v2443 = vsub.f32 %v2305, %v2405
        %v2444 = vsub.f32 %v2308, %v2408
        %v2445 = vsub.f32 %v2313, %v2411
        %v2446 = vsub.f32 %v2316, %v2414
        %v2447 = vmul.f32 %v2415, 1.442695
        %v2448 = vpow.pop %v2447
        %v2449 = vmul.f32 %v2416, 1.442695
        %v2450 = vpow.pop %v2449
        %v2451 = vmul.f32 %v2417, 1.442695
        %v2452 = vpow.pop %v2451
        %v2453 = vmul.f32 %v2418, 1.442695
        %v2454 = vpow.pop %v2453
        %v2455 = vmul.f32 %v2419, 1.442695
        %v2456 = vpow.pop %v2455
        %v2457 = vmul.f32 %v2420, 1.442695
        %v2458 = vpow.pop %v2457
        %v2459 = vmul.f32 %v2421, 1.442695
        %v2460 = vpow.pop %v2459
        %v2461 = vmul.f32 %v2422, 1.442695
        %v2462 = vpow.pop %v2461
        %v2463 = vmul.f32 %v2423, 1.442695
        %v2464 = vpow.pop %v2463
        %v2465 = vmul.f32 %v2424, 1.442695
        %v2466 = vpow.pop %v2465
        %v2467 = vmul.f32 %v2425, 1.442695
        %v2468 = vpow.pop %v2467
        %v2469 = vmul.f32 %v2426, 1.442695
        %v2470 = vpow.pop %v2469
        %v2471 = vmul.f32 %v2427, 1.442695
        %v2472 = vpow.pop %v2471
        %v2473 = vmul.f32 %v2428, 1.442695
        %v2474 = vpow.pop %v2473
        %v2475 = vmul.f32 %v2429, 1.442695
        %v2476 = vpow.pop %v2475
        %v2477 = vmul.f32 %v2430, 1.442695
        %v2478 = vpow.pop %v2477
        %v2479 = vmul.f32 %v2431, 1.442695
        %v2480 = vpow.pop %v2479
        %v2481 = vmul.f32 %v2432, 1.442695
        %v2482 = vpow.pop %v2481
        %v2483 = vmul.f32 %v2433, 1.442695
        %v2484 = vpow.pop %v2483
        %v2485 = vmul.f32 %v2434, 1.442695
        %v2486 = vpow.pop %v2485
        %v2487 = vmul.f32 %v2435, 1.442695
        %v2488 = vpow.pop %v2487
        %v2489 = vmul.f32 %v2436, 1.442695
        %v2490 = vpow.pop %v2489
        %v2491 = vmul.f32 %v2437, 1.442695
        %v2492 = vpow.pop %v2491
        %v2493 = vmul.f32 %v2438, 1.442695
        %v2494 = vpow.pop %v2493
        %v2495 = vmul.f32 %v2439, 1.442695
        %v2496 = vpow.pop %v2495
        %v2497 = vmul.f32 %v2440, 1.442695
        %v2498 = vpow.pop %v2497
        %v2499 = vmul.f32 %v2441, 1.442695
        %v2500 = vpow.pop %v2499
        %v2501 = vmul.f32 %v2442, 1.442695
        %v2502 = vpow.pop %v2501
        %v2503 = vmul.f32 %v2443, 1.442695
        %v2504 = vpow.pop %v2503
        %v2505 = vmul.f32 %v2444, 1.442695
        %v2506 = vpow.pop %v2505
        %v2507 = vmul.f32 %v2445, 1.442695
        %v2508 = vpow.pop %v2507
        %v2509 = vmul.f32 %v2446, 1.442695
        %v2510 = vpow.pop %v2509
        %v2511 = vsel %vm355, %v2448, 0.0
        %2512 = vadd.xlane.f32.xlu0 %v2511
        %v2513 = vpop.xlane.xlu0 %2512
        %v2514 = vsel %vm355, %v2450, 0.0
        %2515 = vadd.xlane.f32.xlu0 %v2514
        %v2516 = vpop.xlane.xlu0 %2515
        %v2517 = vsel %vm355, %v2452, 0.0
        %2518 = vadd.xlane.f32.xlu0 %v2517
        %v2519 = vpop.xlane.xlu0 %2518
        %v2520 = vsel %vm355, %v2454, 0.0
        %2521 = vadd.xlane.f32.xlu0 %v2520
        %v2522 = vpop.xlane.xlu0 %2521
        %v2523 = vsel %vm355, %v2456, 0.0
        %2524 = vadd.xlane.f32.xlu0 %v2523
        %v2525 = vpop.xlane.xlu0 %2524
        %v2526 = vsel %vm355, %v2458, 0.0
        %2527 = vadd.xlane.f32.xlu0 %v2526
        %v2528 = vpop.xlane.xlu0 %2527
        %v2529 = vsel %vm355, %v2460, 0.0
        %2530 = vadd.xlane.f32.xlu0 %v2529
        %v2531 = vpop.xlane.xlu0 %2530
        %v2532 = vsel %vm355, %v2462, 0.0
        %2533 = vadd.xlane.f32.xlu0 %v2532
        %v2534 = vpop.xlane.xlu0 %2533
        %v2535 = vsel %vm355, %v2464, 0.0
        %2536 = vadd.xlane.f32.xlu0 %v2535
        %v2537 = vpop.xlane.xlu0 %2536
        %v2538 = vsel %vm355, %v2466, 0.0
        %2539 = vadd.xlane.f32.xlu0 %v2538
        %v2540 = vpop.xlane.xlu0 %2539
        %v2541 = vsel %vm355, %v2468, 0.0
        %2542 = vadd.xlane.f32.xlu0 %v2541
        %v2543 = vpop.xlane.xlu0 %2542
        %v2544 = vsel %vm355, %v2470, 0.0
        %2545 = vadd.xlane.f32.xlu0 %v2544
        %v2546 = vpop.xlane.xlu0 %2545
        %v2547 = vsel %vm355, %v2472, 0.0
        %2548 = vadd.xlane.f32.xlu0 %v2547
        %v2549 = vpop.xlane.xlu0 %2548
        %v2550 = vsel %vm355, %v2474, 0.0
        %2551 = vadd.xlane.f32.xlu0 %v2550
        %v2552 = vpop.xlane.xlu0 %2551
        %v2553 = vsel %vm355, %v2476, 0.0
        %2554 = vadd.xlane.f32.xlu0 %v2553
        %v2555 = vpop.xlane.xlu0 %2554
        %v2556 = vsel %vm355, %v2478, 0.0
        %2557 = vadd.xlane.f32.xlu0 %v2556
        %v2558 = vpop.xlane.xlu0 %2557
        %v2559 = vsel %vm355, %v2480, 0.0
        %2560 = vadd.xlane.f32.xlu0 %v2559
        %v2561 = vpop.xlane.xlu0 %2560
        %v2562 = vsel %vm355, %v2482, 0.0
        %2563 = vadd.xlane.f32.xlu0 %v2562
        %v2564 = vpop.xlane.xlu0 %2563
        %v2565 = vsel %vm355, %v2484, 0.0
        %2566 = vadd.xlane.f32.xlu0 %v2565
        %v2567 = vpop.xlane.xlu0 %2566
        %v2568 = vsel %vm355, %v2486, 0.0
        %2569 = vadd.xlane.f32.xlu0 %v2568
        %v2570 = vpop.xlane.xlu0 %2569
        %v2571 = vsel %vm355, %v2488, 0.0
        %2572 = vadd.xlane.f32.xlu0 %v2571
        %v2573 = vpop.xlane.xlu0 %2572
        %v2574 = vsel %vm355, %v2490, 0.0
        %2575 = vadd.xlane.f32.xlu0 %v2574
        %v2576 = vpop.xlane.xlu0 %2575
        %v2577 = vsel %vm355, %v2492, 0.0
        %2578 = vadd.xlane.f32.xlu0 %v2577
        %v2579 = vpop.xlane.xlu0 %2578
        %v2580 = vsel %vm355, %v2494, 0.0
        %2581 = vadd.xlane.f32.xlu0 %v2580
        %v2582 = vpop.xlane.xlu0 %2581
        %v2583 = vsel %vm355, %v2496, 0.0
        %2584 = vadd.xlane.f32.xlu0 %v2583
        %v2585 = vpop.xlane.xlu0 %2584
        %v2586 = vsel %vm355, %v2498, 0.0
        %2587 = vadd.xlane.f32.xlu0 %v2586
        %v2588 = vpop.xlane.xlu0 %2587
        %v2589 = vsel %vm355, %v2500, 0.0
        %2590 = vadd.xlane.f32.xlu0 %v2589
        %v2591 = vpop.xlane.xlu0 %2590
        %v2592 = vsel %vm355, %v2502, 0.0
        %2593 = vadd.xlane.f32.xlu0 %v2592
        %v2594 = vpop.xlane.xlu0 %2593
        %v2595 = vsel %vm355, %v2504, 0.0
        %2596 = vadd.xlane.f32.xlu0 %v2595
        %v2597 = vpop.xlane.xlu0 %2596
        %v2598 = vsel %vm355, %v2506, 0.0
        %2599 = vadd.xlane.f32.xlu0 %v2598
        %v2600 = vpop.xlane.xlu0 %2599
        %v2601 = vsel %vm355, %v2508, 0.0
        %2602 = vadd.xlane.f32.xlu0 %v2601
        %v2603 = vpop.xlane.xlu0 %2602
        %v2604 = vsel %vm355, %v2510, 0.0
        %2605 = vadd.xlane.f32.xlu0 %v2604
        %v2606 = vpop.xlane.xlu0 %2605
        %v2607 = vrcp.pop %v2513
        %v2608 = vrcp.pop %v2516
        %v2609 = vrcp.pop %v2519
        %v2610 = vrcp.pop %v2522
        %v2611 = vrcp.pop %v2525
        %v2612 = vrcp.pop %v2528
        %v2613 = vrcp.pop %v2531
        %v2614 = vrcp.pop %v2534
        %v2615 = vrcp.pop %v2537
        %v2616 = vrcp.pop %v2540
        %v2617 = vrcp.pop %v2543
        %v2618 = vrcp.pop %v2546
        %v2619 = vrcp.pop %v2549
        %v2620 = vrcp.pop %v2552
        %v2621 = vrcp.pop %v2555
        %v2622 = vrcp.pop %v2558
        %v2623 = vrcp.pop %v2561
        %v2624 = vrcp.pop %v2564
        %v2625 = vrcp.pop %v2567
        %v2626 = vrcp.pop %v2570
        %v2627 = vrcp.pop %v2573
        %v2628 = vrcp.pop %v2576
        %v2629 = vrcp.pop %v2579
        %v2630 = vrcp.pop %v2582
        %v2631 = vrcp.pop %v2585
        %v2632 = vrcp.pop %v2588
        %v2633 = vrcp.pop %v2591
        %v2634 = vrcp.pop %v2594
        %v2635 = vrcp.pop %v2597
        %v2636 = vrcp.pop %v2600
        %v2637 = vrcp.pop %v2603
        %v2638 = vrcp.pop %v2606
        %v2639 = vmul.f32 %v2448, %v2607
        %v2640 = vmul.f32 %v2450, %v2608
        %v2641 = vmul.f32 %v2452, %v2609
        %v2642 = vmul.f32 %v2454, %v2610
        %v2643 = vmul.f32 %v2456, %v2611
        %v2644 = vmul.f32 %v2458, %v2612
        %v2645 = vmul.f32 %v2460, %v2613
        %v2646 = vmul.f32 %v2462, %v2614
        %v2647 = vmul.f32 %v2464, %v2615
        %v2648 = vmul.f32 %v2466, %v2616
        %v2649 = vmul.f32 %v2468, %v2617
        %v2650 = vmul.f32 %v2470, %v2618
        %v2651 = vmul.f32 %v2472, %v2619
        %v2652 = vmul.f32 %v2474, %v2620
        %v2653 = vmul.f32 %v2476, %v2621
        %v2654 = vmul.f32 %v2478, %v2622
        %v2655 = vmul.f32 %v2480, %v2623
        %v2656 = vmul.f32 %v2482, %v2624
        %v2657 = vmul.f32 %v2484, %v2625
        %v2658 = vmul.f32 %v2486, %v2626
        %v2659 = vmul.f32 %v2488, %v2627
        %v2660 = vmul.f32 %v2490, %v2628
        %v2661 = vmul.f32 %v2492, %v2629
        %v2662 = vmul.f32 %v2494, %v2630
        %v2663 = vmul.f32 %v2496, %v2631
        %v2664 = vmul.f32 %v2498, %v2632
        %v2665 = vmul.f32 %v2500, %v2633
        %v2666 = vmul.f32 %v2502, %v2634
        %v2667 = vmul.f32 %v2504, %v2635
        %v2668 = vmul.f32 %v2506, %v2636
        %v2669 = vmul.f32 %v2508, %v2637
        %v2670 = vmul.f32 %v2510, %v2638
        %v2671 = vpack.c.bf16 %v2640, %v2639
        %v2672 = vpack.c.bf16 %v2642, %v2641
        %v2673 = vpack.c.bf16 %v2644, %v2643
        %v2674 = vpack.c.bf16 %v2646, %v2645
        %v2675 = vpack.c.bf16 %v2648, %v2647
        %v2676 = vpack.c.bf16 %v2650, %v2649
        %v2677 = vpack.c.bf16 %v2652, %v2651
        %v2678 = vpack.c.bf16 %v2654, %v2653
        %v2679 = vpack.c.bf16 %v2656, %v2655
        %v2680 = vpack.c.bf16 %v2658, %v2657
        %v2681 = vpack.c.bf16 %v2660, %v2659
        %v2682 = vpack.c.bf16 %v2662, %v2661
        %v2683 = vpack.c.bf16 %v2664, %v2663
        %v2684 = vpack.c.bf16 %v2666, %v2665
        %v2685 = vpack.c.bf16 %v2668, %v2667
        %v2686 = vpack.c.bf16 %v2670, %v2669
        %2691 = vrot.lane.b32.xlu0 %v613, 120
        %v2692 = vpop.permute.xlu0 %2691
        %2693 = vrot.lane.b32.xlu0 %v614, 120
        %v2694 = vpop.permute.xlu0 %2693
        %2695 = vrot.lane.b32.xlu0 %v615, 120
        %v2696 = vpop.permute.xlu0 %2695
        %2697 = vrot.lane.b32.xlu0 %v616, 120
        %v2698 = vpop.permute.xlu0 %2697
        %v2704 = vsel %vm355, %v2671, 0
        %v2707 = vsel %vm355, %v2672, 0
        %v2710 = vsel %vm355, %v2673, 0
        %v2713 = vsel %vm355, %v2674, 0
        %2715 = vmatprep.subr.bf16.mxu0 0
        %2716 = vmatpush1.bf16.msra.mxu0 0
        %2717 = vmatprep.subr.bf16.mxu0 0
        %2718 = vmatpush1.bf16.msra.mxu0 0
        %2719 = vmatprep.subr.bf16.mxu0 0
        %2720 = vmatpush1.bf16.msra.mxu0 0
        %2721 = vmatprep.subr.bf16.mxu0 0
        %2722 = vmatpush1.bf16.msra.mxu0 0
        %2723 = vmatprep.subr.bf16.mxu0 0
        %2724 = vmatpush1.bf16.msra.mxu0 %v2698
        %2725 = vmatprep.subr.bf16.mxu0 0
        %2726 = vmatpush1.bf16.msra.mxu0 %v2696
        %2727 = vmatprep.subr.bf16.mxu0 0
        %2728 = vmatpush1.bf16.msra.mxu0 %v2694
        %2729 = vmatprep.subr.bf16.mxu0 0
        %2730 = vmatpush1.bf16.msra.mxu0 %v2692
        %2731 = vmatprep.subr.bf16.mxu0 0
        %2732 = vmatpush2.bf16.msra.mxu0 0
        %2733 = vmatprep.subr.bf16.mxu0 0
        %2734 = vmatpush2.bf16.msra.mxu0 0
        %2735 = vmatprep.subr.bf16.mxu0 0
        %2736 = vmatpush2.bf16.msra.mxu0 0
        %2737 = vmatprep.subr.bf16.mxu0 0
        %2738 = vmatpush2.bf16.msra.mxu0 0
        %2739 = vmatprep.subr.bf16.mxu0 0
        %2740 = vmatpush2.bf16.msra.mxu0 0
        %2741 = vmatprep.subr.bf16.mxu0 0
        %2742 = vmatpush2.bf16.msra.mxu0 0
        %2743 = vmatprep.subr.bf16.mxu0 0
        %2744 = vmatpush2.bf16.msra.mxu0 0
        %2745 = vmatprep.subr.bf16.mxu0 0
        %2746 = vmatpush2.bf16.msra.mxu0 0
        %2747 = vmatprep.mubr.bf16.mxu0 0
        %2748 = vmatmul.mubr.bf16.gmra.mxu0 %v2704
        %v2749 = vpop.f32.mrf.mxu0
        %v2750 = vadd.f32 0.0, %v2749
        %v2751 = vpop.f32.mrf.mxu0
        %v2752 = vpop.f32.mrf.mxu0
        %v2753 = vadd.f32 0.0, %v2752
        %v2754 = vpop.f32.mrf.mxu0
        %2755 = vmatprep.mubr.bf16.mxu0 0
        %2756 = vmatmul.mubr.bf16.gmra.mxu0 %v2707
        %v2757 = vpop.f32.mrf.mxu0
        %v2758 = vadd.f32 0.0, %v2757
        %v2759 = vpop.f32.mrf.mxu0
        %v2760 = vpop.f32.mrf.mxu0
        %v2761 = vadd.f32 0.0, %v2760
        %v2762 = vpop.f32.mrf.mxu0
        %2763 = vmatprep.mubr.bf16.mxu0 0
        %2764 = vmatmul.mubr.bf16.gmra.mxu0 %v2710
        %v2765 = vpop.f32.mrf.mxu0
        %v2766 = vadd.f32 0.0, %v2765
        %v2767 = vpop.f32.mrf.mxu0
        %v2768 = vpop.f32.mrf.mxu0
        %v2769 = vadd.f32 0.0, %v2768
        %v2770 = vpop.f32.mrf.mxu0
        %2771 = vmatprep.mubr.bf16.mxu0 0
        %2772 = vmatmul.mubr.bf16.gmra.mxu0 %v2713
        %v2773 = vpop.f32.mrf.mxu0
        %v2774 = vadd.f32 0.0, %v2773
        %v2775 = vpop.f32.mrf.mxu0
        %v2776 = vpop.f32.mrf.mxu0
        %v2777 = vadd.f32 0.0, %v2776
        %v2778 = vpop.f32.mrf.mxu0
        %2779 = vdwg.mxu0
        %2784 = vrot.lane.b32.xlu0 %v617, 120
        %v2785 = vpop.permute.xlu0 %2784
        %2786 = vrot.lane.b32.xlu0 %v618, 120
        %v2787 = vpop.permute.xlu0 %2786
        %2788 = vrot.lane.b32.xlu0 %v619, 120
        %v2789 = vpop.permute.xlu0 %2788
        %2790 = vrot.lane.b32.xlu0 %v620, 120
        %v2791 = vpop.permute.xlu0 %2790
        %v2797 = vsel %vm355, %v2675, 0
        %v2800 = vsel %vm355, %v2676, 0
        %v2803 = vsel %vm355, %v2677, 0
        %v2806 = vsel %vm355, %v2678, 0
        %2808 = vmatprep.subr.bf16.mxu0 0
        %2809 = vmatpush1.bf16.msra.mxu0 0
        %2810 = vmatprep.subr.bf16.mxu0 0
        %2811 = vmatpush1.bf16.msra.mxu0 0
        %2812 = vmatprep.subr.bf16.mxu0 0
        %2813 = vmatpush1.bf16.msra.mxu0 0
        %2814 = vmatprep.subr.bf16.mxu0 0
        %2815 = vmatpush1.bf16.msra.mxu0 0
        %2816 = vmatprep.subr.bf16.mxu0 0
        %2817 = vmatpush1.bf16.msra.mxu0 %v2791
        %2818 = vmatprep.subr.bf16.mxu0 0
        %2819 = vmatpush1.bf16.msra.mxu0 %v2789
        %2820 = vmatprep.subr.bf16.mxu0 0
        %2821 = vmatpush1.bf16.msra.mxu0 %v2787
        %2822 = vmatprep.subr.bf16.mxu0 0
        %2823 = vmatpush1.bf16.msra.mxu0 %v2785
        %2824 = vmatprep.subr.bf16.mxu0 0
        %2825 = vmatpush2.bf16.msra.mxu0 0
        %2826 = vmatprep.subr.bf16.mxu0 0
        %2827 = vmatpush2.bf16.msra.mxu0 0
        %2828 = vmatprep.subr.bf16.mxu0 0
        %2829 = vmatpush2.bf16.msra.mxu0 0
        %2830 = vmatprep.subr.bf16.mxu0 0
        %2831 = vmatpush2.bf16.msra.mxu0 0
        %2832 = vmatprep.subr.bf16.mxu0 0
        %2833 = vmatpush2.bf16.msra.mxu0 0
        %2834 = vmatprep.subr.bf16.mxu0 0
        %2835 = vmatpush2.bf16.msra.mxu0 0
        %2836 = vmatprep.subr.bf16.mxu0 0
        %2837 = vmatpush2.bf16.msra.mxu0 0
        %2838 = vmatprep.subr.bf16.mxu0 0
        %2839 = vmatpush2.bf16.msra.mxu0 0
        %2840 = vmatprep.mubr.bf16.mxu0 0
        %2841 = vmatmul.mubr.bf16.gmra.mxu0 %v2797
        %v2842 = vpop.f32.mrf.mxu0
        %v2843 = vadd.f32 0.0, %v2842
        %v2844 = vpop.f32.mrf.mxu0
        %v2845 = vpop.f32.mrf.mxu0
        %v2846 = vadd.f32 0.0, %v2845
        %v2847 = vpop.f32.mrf.mxu0
        %2848 = vmatprep.mubr.bf16.mxu0 0
        %2849 = vmatmul.mubr.bf16.gmra.mxu0 %v2800
        %v2850 = vpop.f32.mrf.mxu0
        %v2851 = vadd.f32 0.0, %v2850
        %v2852 = vpop.f32.mrf.mxu0
        %v2853 = vpop.f32.mrf.mxu0
        %v2854 = vadd.f32 0.0, %v2853
        %v2855 = vpop.f32.mrf.mxu0
        %2856 = vmatprep.mubr.bf16.mxu0 0
        %2857 = vmatmul.mubr.bf16.gmra.mxu0 %v2803
        %v2858 = vpop.f32.mrf.mxu0
        %v2859 = vadd.f32 0.0, %v2858
        %v2860 = vpop.f32.mrf.mxu0
        %v2861 = vpop.f32.mrf.mxu0
        %v2862 = vadd.f32 0.0, %v2861
        %v2863 = vpop.f32.mrf.mxu0
        %2864 = vmatprep.mubr.bf16.mxu0 0
        %2865 = vmatmul.mubr.bf16.gmra.mxu0 %v2806
        %v2866 = vpop.f32.mrf.mxu0
        %v2867 = vadd.f32 0.0, %v2866
        %v2868 = vpop.f32.mrf.mxu0
        %v2869 = vpop.f32.mrf.mxu0
        %v2870 = vadd.f32 0.0, %v2869
        %v2871 = vpop.f32.mrf.mxu0
        %2872 = vdwg.mxu0
        %2877 = vrot.lane.b32.xlu0 %v621, 120
        %v2878 = vpop.permute.xlu0 %2877
        %2879 = vrot.lane.b32.xlu0 %v622, 120
        %v2880 = vpop.permute.xlu0 %2879
        %2881 = vrot.lane.b32.xlu0 %v623, 120
        %v2882 = vpop.permute.xlu0 %2881
        %2883 = vrot.lane.b32.xlu0 %v624, 120
        %v2884 = vpop.permute.xlu0 %2883
        %v2890 = vsel %vm355, %v2679, 0
        %v2893 = vsel %vm355, %v2680, 0
        %v2896 = vsel %vm355, %v2681, 0
        %v2899 = vsel %vm355, %v2682, 0
        %2901 = vmatprep.subr.bf16.mxu0 0
        %2902 = vmatpush1.bf16.msra.mxu0 0
        %2903 = vmatprep.subr.bf16.mxu0 0
        %2904 = vmatpush1.bf16.msra.mxu0 0
        %2905 = vmatprep.subr.bf16.mxu0 0
        %2906 = vmatpush1.bf16.msra.mxu0 0
        %2907 = vmatprep.subr.bf16.mxu0 0
        %2908 = vmatpush1.bf16.msra.mxu0 0
        %2909 = vmatprep.subr.bf16.mxu0 0
        %2910 = vmatpush1.bf16.msra.mxu0 %v2884
        %2911 = vmatprep.subr.bf16.mxu0 0
        %2912 = vmatpush1.bf16.msra.mxu0 %v2882
        %2913 = vmatprep.subr.bf16.mxu0 0
        %2914 = vmatpush1.bf16.msra.mxu0 %v2880
        %2915 = vmatprep.subr.bf16.mxu0 0
        %2916 = vmatpush1.bf16.msra.mxu0 %v2878
        %2917 = vmatprep.subr.bf16.mxu0 0
        %2918 = vmatpush2.bf16.msra.mxu0 0
        %2919 = vmatprep.subr.bf16.mxu0 0
        %2920 = vmatpush2.bf16.msra.mxu0 0
        %2921 = vmatprep.subr.bf16.mxu0 0
        %2922 = vmatpush2.bf16.msra.mxu0 0
        %2923 = vmatprep.subr.bf16.mxu0 0
        %2924 = vmatpush2.bf16.msra.mxu0 0
        %2925 = vmatprep.subr.bf16.mxu0 0
        %2926 = vmatpush2.bf16.msra.mxu0 0
        %2927 = vmatprep.subr.bf16.mxu0 0
        %2928 = vmatpush2.bf16.msra.mxu0 0
        %2929 = vmatprep.subr.bf16.mxu0 0
        %2930 = vmatpush2.bf16.msra.mxu0 0
        %2931 = vmatprep.subr.bf16.mxu0 0
        %2932 = vmatpush2.bf16.msra.mxu0 0
        %2933 = vmatprep.mubr.bf16.mxu0 0
        %2934 = vmatmul.mubr.bf16.gmra.mxu0 %v2890
        %v2935 = vpop.f32.mrf.mxu0
        %v2936 = vadd.f32 0.0, %v2935
        %v2937 = vpop.f32.mrf.mxu0
        %v2938 = vpop.f32.mrf.mxu0
        %v2939 = vadd.f32 0.0, %v2938
        %v2940 = vpop.f32.mrf.mxu0
        %2941 = vmatprep.mubr.bf16.mxu0 0
        %2942 = vmatmul.mubr.bf16.gmra.mxu0 %v2893
        %v2943 = vpop.f32.mrf.mxu0
        %v2944 = vadd.f32 0.0, %v2943
        %v2945 = vpop.f32.mrf.mxu0
        %v2946 = vpop.f32.mrf.mxu0
        %v2947 = vadd.f32 0.0, %v2946
        %v2948 = vpop.f32.mrf.mxu0
        %2949 = vmatprep.mubr.bf16.mxu0 0
        %2950 = vmatmul.mubr.bf16.gmra.mxu0 %v2896
        %v2951 = vpop.f32.mrf.mxu0
        %v2952 = vadd.f32 0.0, %v2951
        %v2953 = vpop.f32.mrf.mxu0
        %v2954 = vpop.f32.mrf.mxu0
        %v2955 = vadd.f32 0.0, %v2954
        %v2956 = vpop.f32.mrf.mxu0
        %2957 = vmatprep.mubr.bf16.mxu0 0
        %2958 = vmatmul.mubr.bf16.gmra.mxu0 %v2899
        %v2959 = vpop.f32.mrf.mxu0
        %v2960 = vadd.f32 0.0, %v2959
        %v2961 = vpop.f32.mrf.mxu0
        %v2962 = vpop.f32.mrf.mxu0
        %v2963 = vadd.f32 0.0, %v2962
        %v2964 = vpop.f32.mrf.mxu0
        %2965 = vdwg.mxu0
        %2970 = vrot.lane.b32.xlu0 %v625, 120
        %v2971 = vpop.permute.xlu0 %2970
        %2972 = vrot.lane.b32.xlu0 %v626, 120
        %v2973 = vpop.permute.xlu0 %2972
        %2974 = vrot.lane.b32.xlu0 %v627, 120
        %v2975 = vpop.permute.xlu0 %2974
        %2976 = vrot.lane.b32.xlu0 %v628, 120
        %v2977 = vpop.permute.xlu0 %2976
        %v2983 = vsel %vm355, %v2683, 0
        %v2986 = vsel %vm355, %v2684, 0
        %v2989 = vsel %vm355, %v2685, 0
        %v2992 = vsel %vm355, %v2686, 0
        %2994 = vmatprep.subr.bf16.mxu0 0
        %2995 = vmatpush1.bf16.msra.mxu0 0
        %2996 = vmatprep.subr.bf16.mxu0 0
        %2997 = vmatpush1.bf16.msra.mxu0 0
        %2998 = vmatprep.subr.bf16.mxu0 0
        %2999 = vmatpush1.bf16.msra.mxu0 0
        %3000 = vmatprep.subr.bf16.mxu0 0
        %3001 = vmatpush1.bf16.msra.mxu0 0
        %3002 = vmatprep.subr.bf16.mxu0 0
        %3003 = vmatpush1.bf16.msra.mxu0 %v2977
        %3004 = vmatprep.subr.bf16.mxu0 0
        %3005 = vmatpush1.bf16.msra.mxu0 %v2975
        %3006 = vmatprep.subr.bf16.mxu0 0
        %3007 = vmatpush1.bf16.msra.mxu0 %v2973
        %3008 = vmatprep.subr.bf16.mxu0 0
        %3009 = vmatpush1.bf16.msra.mxu0 %v2971
        %3010 = vmatprep.subr.bf16.mxu0 0
        %3011 = vmatpush2.bf16.msra.mxu0 0
        %3012 = vmatprep.subr.bf16.mxu0 0
        %3013 = vmatpush2.bf16.msra.mxu0 0
        %3014 = vmatprep.subr.bf16.mxu0 0
        %3015 = vmatpush2.bf16.msra.mxu0 0
        %3016 = vmatprep.subr.bf16.mxu0 0
        %3017 = vmatpush2.bf16.msra.mxu0 0
        %3018 = vmatprep.subr.bf16.mxu0 0
        %3019 = vmatpush2.bf16.msra.mxu0 0
        %3020 = vmatprep.subr.bf16.mxu0 0
        %3021 = vmatpush2.bf16.msra.mxu0 0
        %3022 = vmatprep.subr.bf16.mxu0 0
        %3023 = vmatpush2.bf16.msra.mxu0 0
        %3024 = vmatprep.subr.bf16.mxu0 0
        %3025 = vmatpush2.bf16.msra.mxu0 0
        %3026 = vmatprep.mubr.bf16.mxu0 0
        %3027 = vmatmul.mubr.bf16.gmra.mxu0 %v2983
        %v3028 = vpop.f32.mrf.mxu0
        %v3029 = vadd.f32 0.0, %v3028
        %v3030 = vpop.f32.mrf.mxu0
        %v3031 = vpop.f32.mrf.mxu0
        %v3032 = vadd.f32 0.0, %v3031
        %v3033 = vpop.f32.mrf.mxu0
        %3034 = vmatprep.mubr.bf16.mxu0 0
        %3035 = vmatmul.mubr.bf16.gmra.mxu0 %v2986
        %v3036 = vpop.f32.mrf.mxu0
        %v3037 = vadd.f32 0.0, %v3036
        %v3038 = vpop.f32.mrf.mxu0
        %v3039 = vpop.f32.mrf.mxu0
        %v3040 = vadd.f32 0.0, %v3039
        %v3041 = vpop.f32.mrf.mxu0
        %3042 = vmatprep.mubr.bf16.mxu0 0
        %3043 = vmatmul.mubr.bf16.gmra.mxu0 %v2989
        %v3044 = vpop.f32.mrf.mxu0
        %v3045 = vadd.f32 0.0, %v3044
        %v3046 = vpop.f32.mrf.mxu0
        %v3047 = vpop.f32.mrf.mxu0
        %v3048 = vadd.f32 0.0, %v3047
        %v3049 = vpop.f32.mrf.mxu0
        %3050 = vmatprep.mubr.bf16.mxu0 0
        %3051 = vmatmul.mubr.bf16.gmra.mxu0 %v2992
        %v3052 = vpop.f32.mrf.mxu0
        %v3053 = vadd.f32 0.0, %v3052
        %v3054 = vpop.f32.mrf.mxu0
        %v3055 = vpop.f32.mrf.mxu0
        %v3056 = vadd.f32 0.0, %v3055
        %v3057 = vpop.f32.mrf.mxu0
        %3058 = vdwg.mxu0
        %v3059 = vpack.c.bf16 %v2753, %v2750
        %v3060 = vpack.c.bf16 %v2761, %v2758
        %v3061 = vpack.c.bf16 %v2769, %v2766
        %v3062 = vpack.c.bf16 %v2777, %v2774
        %v3063 = vpack.c.bf16 %v2846, %v2843
        %v3064 = vpack.c.bf16 %v2854, %v2851
        %v3065 = vpack.c.bf16 %v2862, %v2859
        %v3066 = vpack.c.bf16 %v2870, %v2867
        %v3067 = vpack.c.bf16 %v2939, %v2936
        %v3068 = vpack.c.bf16 %v2947, %v2944
        %v3069 = vpack.c.bf16 %v2955, %v2952
        %v3070 = vpack.c.bf16 %v2963, %v2960
        %v3071 = vpack.c.bf16 %v3032, %v3029
        %v3072 = vpack.c.bf16 %v3040, %v3037
        %v3073 = vpack.c.bf16 %v3048, %v3045
        %v3074 = vpack.c.bf16 %v3056, %v3053
        %v3075 = vld [vmem:[%s3 + $0x4] sm:$0xf]
        %v3077 = vsel %vm928, %v3059, 0
        %v3080 = vsel %vm928, %v3060, 0
        %v3083 = vsel %vm928, %v3061, 0
        %v3086 = vsel %vm928, %v3062, 0
        %v3089 = vsel %vm928, %v3063, 0
        %v3092 = vsel %vm928, %v3064, 0
        %v3095 = vsel %vm928, %v3065, 0
        %v3098 = vsel %vm928, %v3066, 0
        %v3101 = vsel %vm928, %v3067, 0
        %v3104 = vsel %vm928, %v3068, 0
        %v3107 = vsel %vm928, %v3069, 0
        %v3110 = vsel %vm928, %v3070, 0
        %v3113 = vsel %vm928, %v3071, 0
        %v3116 = vsel %vm928, %v3072, 0
        %v3119 = vsel %vm928, %v3073, 0
        %v3122 = vsel %vm928, %v3074, 0
        %v3125 = vsel %vm941, %v3075, 0
        %3127 = vmatprep.subr.bf16.mxu0 0
        %3128 = vmatpush1.bf16.msra.mxu0 0
        %3129 = vmatprep.subr.bf16.mxu0 0
        %3130 = vmatpush1.bf16.msra.mxu0 0
        %3131 = vmatprep.subr.bf16.mxu0 0
        %3132 = vmatpush1.bf16.msra.mxu0 0
        %3133 = vmatprep.subr.bf16.mxu0 0
        %3134 = vmatpush1.bf16.msra.mxu0 0
        %3135 = vmatprep.subr.bf16.mxu0 0
        %3136 = vmatpush1.bf16.msra.mxu0 0
        %3137 = vmatprep.subr.bf16.mxu0 0
        %3138 = vmatpush1.bf16.msra.mxu0 0
        %3139 = vmatprep.subr.bf16.mxu0 0
        %3140 = vmatpush1.bf16.msra.mxu0 0
        %3141 = vmatprep.subr.bf16.mxu0 0
        %3142 = vmatpush1.bf16.msra.mxu0 %v3125
        %3143 = vmatprep.subr.bf16.mxu0 0
        %3144 = vmatpush2.bf16.msra.mxu0 0
        %3145 = vmatprep.subr.bf16.mxu0 0
        %3146 = vmatpush2.bf16.msra.mxu0 0
        %3147 = vmatprep.subr.bf16.mxu0 0
        %3148 = vmatpush2.bf16.msra.mxu0 0
        %3149 = vmatprep.subr.bf16.mxu0 0
        %3150 = vmatpush2.bf16.msra.mxu0 0
        %3151 = vmatprep.subr.bf16.mxu0 0
        %3152 = vmatpush2.bf16.msra.mxu0 0
        %3153 = vmatprep.subr.bf16.mxu0 0
        %3154 = vmatpush2.bf16.msra.mxu0 0
        %3155 = vmatprep.subr.bf16.mxu0 0
        %3156 = vmatpush2.bf16.msra.mxu0 0
        %3157 = vmatprep.subr.bf16.mxu0 0
        %3158 = vmatpush2.bf16.msra.mxu0 0
        %3159 = vmatprep.mubr.bf16.mxu0 0
        %3160 = vmatmul.mubr.bf16.gmra.mxu0 %v3077
        %v3161 = vpop.f32.mrf.mxu0
        %v3162 = vadd.f32 0.0, %v3161
        %v3163 = vpop.f32.mrf.mxu0
        %v3164 = vpop.f32.mrf.mxu0
        %v3165 = vadd.f32 0.0, %v3164
        %v3166 = vpop.f32.mrf.mxu0
        %3167 = vmatprep.mubr.bf16.mxu0 0
        %3168 = vmatmul.mubr.bf16.gmra.mxu0 %v3080
        %v3169 = vpop.f32.mrf.mxu0
        %v3170 = vadd.f32 0.0, %v3169
        %v3171 = vpop.f32.mrf.mxu0
        %v3172 = vpop.f32.mrf.mxu0
        %v3173 = vadd.f32 0.0, %v3172
        %v3174 = vpop.f32.mrf.mxu0
        %3175 = vmatprep.mubr.bf16.mxu0 0
        %3176 = vmatmul.mubr.bf16.gmra.mxu0 %v3083
        %v3177 = vpop.f32.mrf.mxu0
        %v3178 = vadd.f32 0.0, %v3177
        %v3179 = vpop.f32.mrf.mxu0
        %v3180 = vpop.f32.mrf.mxu0
        %v3181 = vadd.f32 0.0, %v3180
        %v3182 = vpop.f32.mrf.mxu0
        %3183 = vmatprep.mubr.bf16.mxu0 0
        %3184 = vmatmul.mubr.bf16.gmra.mxu0 %v3086
        %v3185 = vpop.f32.mrf.mxu0
        %v3186 = vadd.f32 0.0, %v3185
        %v3187 = vpop.f32.mrf.mxu0
        %v3188 = vpop.f32.mrf.mxu0
        %v3189 = vadd.f32 0.0, %v3188
        %v3190 = vpop.f32.mrf.mxu0
        %3191 = vmatprep.mubr.bf16.mxu0 0
        %3192 = vmatmul.mubr.bf16.gmra.mxu0 %v3089
        %v3193 = vpop.f32.mrf.mxu0
        %v3194 = vadd.f32 0.0, %v3193
        %v3195 = vpop.f32.mrf.mxu0
        %v3196 = vpop.f32.mrf.mxu0
        %v3197 = vadd.f32 0.0, %v3196
        %v3198 = vpop.f32.mrf.mxu0
        %3199 = vmatprep.mubr.bf16.mxu0 0
        %3200 = vmatmul.mubr.bf16.gmra.mxu0 %v3092
        %v3201 = vpop.f32.mrf.mxu0
        %v3202 = vadd.f32 0.0, %v3201
        %v3203 = vpop.f32.mrf.mxu0
        %v3204 = vpop.f32.mrf.mxu0
        %v3205 = vadd.f32 0.0, %v3204
        %v3206 = vpop.f32.mrf.mxu0
        %3207 = vmatprep.mubr.bf16.mxu0 0
        %3208 = vmatmul.mubr.bf16.gmra.mxu0 %v3095
        %v3209 = vpop.f32.mrf.mxu0
        %v3210 = vadd.f32 0.0, %v3209
        %v3211 = vpop.f32.mrf.mxu0
        %v3212 = vpop.f32.mrf.mxu0
        %v3213 = vadd.f32 0.0, %v3212
        %v3214 = vpop.f32.mrf.mxu0
        %3215 = vmatprep.mubr.bf16.mxu0 0
        %3216 = vmatmul.mubr.bf16.gmra.mxu0 %v3098
        %v3217 = vpop.f32.mrf.mxu0
        %v3218 = vadd.f32 0.0, %v3217
        %v3219 = vpop.f32.mrf.mxu0
        %v3220 = vpop.f32.mrf.mxu0
        %v3221 = vadd.f32 0.0, %v3220
        %v3222 = vpop.f32.mrf.mxu0
        %3223 = vmatprep.mubr.bf16.mxu0 0
        %3224 = vmatmul.mubr.bf16.gmra.mxu0 %v3101
        %v3225 = vpop.f32.mrf.mxu0
        %v3226 = vadd.f32 0.0, %v3225
        %v3227 = vpop.f32.mrf.mxu0
        %v3228 = vpop.f32.mrf.mxu0
        %v3229 = vadd.f32 0.0, %v3228
        %v3230 = vpop.f32.mrf.mxu0
        %3231 = vmatprep.mubr.bf16.mxu0 0
        %3232 = vmatmul.mubr.bf16.gmra.mxu0 %v3104
        %v3233 = vpop.f32.mrf.mxu0
        %v3234 = vadd.f32 0.0, %v3233
        %v3235 = vpop.f32.mrf.mxu0
        %v3236 = vpop.f32.mrf.mxu0
        %v3237 = vadd.f32 0.0, %v3236
        %v3238 = vpop.f32.mrf.mxu0
        %3239 = vmatprep.mubr.bf16.mxu0 0
        %3240 = vmatmul.mubr.bf16.gmra.mxu0 %v3107
        %v3241 = vpop.f32.mrf.mxu0
        %v3242 = vadd.f32 0.0, %v3241
        %v3243 = vpop.f32.mrf.mxu0
        %v3244 = vpop.f32.mrf.mxu0
        %v3245 = vadd.f32 0.0, %v3244
        %v3246 = vpop.f32.mrf.mxu0
        %3247 = vmatprep.mubr.bf16.mxu0 0
        %3248 = vmatmul.mubr.bf16.gmra.mxu0 %v3110
        %v3249 = vpop.f32.mrf.mxu0
        %v3250 = vadd.f32 0.0, %v3249
        %v3251 = vpop.f32.mrf.mxu0
        %v3252 = vpop.f32.mrf.mxu0
        %v3253 = vadd.f32 0.0, %v3252
        %v3254 = vpop.f32.mrf.mxu0
        %3255 = vmatprep.mubr.bf16.mxu0 0
        %3256 = vmatmul.mubr.bf16.gmra.mxu0 %v3113
        %v3257 = vpop.f32.mrf.mxu0
        %v3258 = vadd.f32 0.0, %v3257
        %v3259 = vpop.f32.mrf.mxu0
        %v3260 = vpop.f32.mrf.mxu0
        %v3261 = vadd.f32 0.0, %v3260
        %v3262 = vpop.f32.mrf.mxu0
        %3263 = vmatprep.mubr.bf16.mxu0 0
        %3264 = vmatmul.mubr.bf16.gmra.mxu0 %v3116
        %v3265 = vpop.f32.mrf.mxu0
        %v3266 = vadd.f32 0.0, %v3265
        %v3267 = vpop.f32.mrf.mxu0
        %v3268 = vpop.f32.mrf.mxu0
        %v3269 = vadd.f32 0.0, %v3268
        %v3270 = vpop.f32.mrf.mxu0
        %3271 = vmatprep.mubr.bf16.mxu0 0
        %3272 = vmatmul.mubr.bf16.gmra.mxu0 %v3119
        %v3273 = vpop.f32.mrf.mxu0
        %v3274 = vadd.f32 0.0, %v3273
        %v3275 = vpop.f32.mrf.mxu0
        %v3276 = vpop.f32.mrf.mxu0
        %v3277 = vadd.f32 0.0, %v3276
        %v3278 = vpop.f32.mrf.mxu0
        %3279 = vmatprep.mubr.bf16.mxu0 0
        %3280 = vmatmul.mubr.bf16.gmra.mxu0 %v3122
        %v3281 = vpop.f32.mrf.mxu0
        %v3282 = vadd.f32 0.0, %v3281
        %v3283 = vpop.f32.mrf.mxu0
        %v3284 = vpop.f32.mrf.mxu0
        %v3285 = vadd.f32 0.0, %v3284
        %v3286 = vpop.f32.mrf.mxu0
        %3287 = vdwg.mxu0
        %v3289 = vsel %vm928, %v1926, 0
        %v3292 = vsel %vm928, %v1927, 0
        %v3295 = vsel %vm928, %v1928, 0
        %v3298 = vsel %vm928, %v1929, 0
        %v3301 = vsel %vm928, %v1930, 0
        %v3304 = vsel %vm928, %v1931, 0
        %v3307 = vsel %vm928, %v1932, 0
        %v3310 = vsel %vm928, %v1933, 0
        %v3313 = vsel %vm928, %v1934, 0
        %v3316 = vsel %vm928, %v1935, 0
        %v3319 = vsel %vm928, %v1936, 0
        %v3322 = vsel %vm928, %v1937, 0
        %v3325 = vsel %vm928, %v1938, 0
        %v3328 = vsel %vm928, %v1939, 0
        %v3331 = vsel %vm928, %v1940, 0
        %v3334 = vsel %vm928, %v1941, 0
        %v3337 = vsel %vm941, %v1942, 0
        %3339 = vmatprep.subr.bf16.mxu0 0
        %3340 = vmatpush1.bf16.msra.mxu0 0
        %3341 = vmatprep.subr.bf16.mxu0 0
        %3342 = vmatpush1.bf16.msra.mxu0 0
        %3343 = vmatprep.subr.bf16.mxu0 0
        %3344 = vmatpush1.bf16.msra.mxu0 0
        %3345 = vmatprep.subr.bf16.mxu0 0
        %3346 = vmatpush1.bf16.msra.mxu0 0
        %3347 = vmatprep.subr.bf16.mxu0 0
        %3348 = vmatpush1.bf16.msra.mxu0 0
        %3349 = vmatprep.subr.bf16.mxu0 0
        %3350 = vmatpush1.bf16.msra.mxu0 0
        %3351 = vmatprep.subr.bf16.mxu0 0
        %3352 = vmatpush1.bf16.msra.mxu0 0
        %3353 = vmatprep.subr.bf16.mxu0 0
        %3354 = vmatpush1.bf16.msra.mxu0 %v3337
        %3355 = vmatprep.subr.bf16.mxu0 0
        %3356 = vmatpush2.bf16.msra.mxu0 0
        %3357 = vmatprep.subr.bf16.mxu0 0
        %3358 = vmatpush2.bf16.msra.mxu0 0
        %3359 = vmatprep.subr.bf16.mxu0 0
        %3360 = vmatpush2.bf16.msra.mxu0 0
        %3361 = vmatprep.subr.bf16.mxu0 0
        %3362 = vmatpush2.bf16.msra.mxu0 0
        %3363 = vmatprep.subr.bf16.mxu0 0
        %3364 = vmatpush2.bf16.msra.mxu0 0
        %3365 = vmatprep.subr.bf16.mxu0 0
        %3366 = vmatpush2.bf16.msra.mxu0 0
        %3367 = vmatprep.subr.bf16.mxu0 0
        %3368 = vmatpush2.bf16.msra.mxu0 0
        %3369 = vmatprep.subr.bf16.mxu0 0
        %3370 = vmatpush2.bf16.msra.mxu0 0
        %3371 = vmatprep.mubr.bf16.mxu0 0
        %3372 = vmatmul.mubr.bf16.gmra.mxu0 %v3289
        %v3373 = vpop.f32.mrf.mxu0
        %v3374 = vadd.f32 %v3162, %v3373
        %v3375 = vpop.f32.mrf.mxu0
        %v3376 = vpop.f32.mrf.mxu0
        %v3377 = vadd.f32 %v3165, %v3376
        %v3378 = vpop.f32.mrf.mxu0
        %3379 = vmatprep.mubr.bf16.mxu0 0
        %3380 = vmatmul.mubr.bf16.gmra.mxu0 %v3292
        %v3381 = vpop.f32.mrf.mxu0
        %v3382 = vadd.f32 %v3170, %v3381
        %v3383 = vpop.f32.mrf.mxu0
        %v3384 = vpop.f32.mrf.mxu0
        %v3385 = vadd.f32 %v3173, %v3384
        %v3386 = vpop.f32.mrf.mxu0
        %3387 = vmatprep.mubr.bf16.mxu0 0
        %3388 = vmatmul.mubr.bf16.gmra.mxu0 %v3295
        %v3389 = vpop.f32.mrf.mxu0
        %v3390 = vadd.f32 %v3178, %v3389
        %v3391 = vpop.f32.mrf.mxu0
        %v3392 = vpop.f32.mrf.mxu0
        %v3393 = vadd.f32 %v3181, %v3392
        %v3394 = vpop.f32.mrf.mxu0
        %3395 = vmatprep.mubr.bf16.mxu0 0
        %3396 = vmatmul.mubr.bf16.gmra.mxu0 %v3298
        %v3397 = vpop.f32.mrf.mxu0
        %v3398 = vadd.f32 %v3186, %v3397
        %v3399 = vpop.f32.mrf.mxu0
        %v3400 = vpop.f32.mrf.mxu0
        %v3401 = vadd.f32 %v3189, %v3400
        %v3402 = vpop.f32.mrf.mxu0
        %3403 = vmatprep.mubr.bf16.mxu0 0
        %3404 = vmatmul.mubr.bf16.gmra.mxu0 %v3301
        %v3405 = vpop.f32.mrf.mxu0
        %v3406 = vadd.f32 %v3194, %v3405
        %v3407 = vpop.f32.mrf.mxu0
        %v3408 = vpop.f32.mrf.mxu0
        %v3409 = vadd.f32 %v3197, %v3408
        %v3410 = vpop.f32.mrf.mxu0
        %3411 = vmatprep.mubr.bf16.mxu0 0
        %3412 = vmatmul.mubr.bf16.gmra.mxu0 %v3304
        %v3413 = vpop.f32.mrf.mxu0
        %v3414 = vadd.f32 %v3202, %v3413
        %v3415 = vpop.f32.mrf.mxu0
        %v3416 = vpop.f32.mrf.mxu0
        %v3417 = vadd.f32 %v3205, %v3416
        %v3418 = vpop.f32.mrf.mxu0
        %3419 = vmatprep.mubr.bf16.mxu0 0
        %3420 = vmatmul.mubr.bf16.gmra.mxu0 %v3307
        %v3421 = vpop.f32.mrf.mxu0
        %v3422 = vadd.f32 %v3210, %v3421
        %v3423 = vpop.f32.mrf.mxu0
        %v3424 = vpop.f32.mrf.mxu0
        %v3425 = vadd.f32 %v3213, %v3424
        %v3426 = vpop.f32.mrf.mxu0
        %3427 = vmatprep.mubr.bf16.mxu0 0
        %3428 = vmatmul.mubr.bf16.gmra.mxu0 %v3310
        %v3429 = vpop.f32.mrf.mxu0
        %v3430 = vadd.f32 %v3218, %v3429
        %v3431 = vpop.f32.mrf.mxu0
        %v3432 = vpop.f32.mrf.mxu0
        %v3433 = vadd.f32 %v3221, %v3432
        %v3434 = vpop.f32.mrf.mxu0
        %3435 = vmatprep.mubr.bf16.mxu0 0
        %3436 = vmatmul.mubr.bf16.gmra.mxu0 %v3313
        %v3437 = vpop.f32.mrf.mxu0
        %v3438 = vadd.f32 %v3226, %v3437
        %v3439 = vpop.f32.mrf.mxu0
        %v3440 = vpop.f32.mrf.mxu0
        %v3441 = vadd.f32 %v3229, %v3440
        %v3442 = vpop.f32.mrf.mxu0
        %3443 = vmatprep.mubr.bf16.mxu0 0
        %3444 = vmatmul.mubr.bf16.gmra.mxu0 %v3316
        %v3445 = vpop.f32.mrf.mxu0
        %v3446 = vadd.f32 %v3234, %v3445
        %v3447 = vpop.f32.mrf.mxu0
        %v3448 = vpop.f32.mrf.mxu0
        %v3449 = vadd.f32 %v3237, %v3448
        %v3450 = vpop.f32.mrf.mxu0
        %3451 = vmatprep.mubr.bf16.mxu0 0
        %3452 = vmatmul.mubr.bf16.gmra.mxu0 %v3319
        %v3453 = vpop.f32.mrf.mxu0
        %v3454 = vadd.f32 %v3242, %v3453
        %v3455 = vpop.f32.mrf.mxu0
        %v3456 = vpop.f32.mrf.mxu0
        %v3457 = vadd.f32 %v3245, %v3456
        %v3458 = vpop.f32.mrf.mxu0
        %3459 = vmatprep.mubr.bf16.mxu0 0
        %3460 = vmatmul.mubr.bf16.gmra.mxu0 %v3322
        %v3461 = vpop.f32.mrf.mxu0
        %v3462 = vadd.f32 %v3250, %v3461
        %v3463 = vpop.f32.mrf.mxu0
        %v3464 = vpop.f32.mrf.mxu0
        %v3465 = vadd.f32 %v3253, %v3464
        %v3466 = vpop.f32.mrf.mxu0
        %3467 = vmatprep.mubr.bf16.mxu0 0
        %3468 = vmatmul.mubr.bf16.gmra.mxu0 %v3325
        %v3469 = vpop.f32.mrf.mxu0
        %v3470 = vadd.f32 %v3258, %v3469
        %v3471 = vpop.f32.mrf.mxu0
        %v3472 = vpop.f32.mrf.mxu0
        %v3473 = vadd.f32 %v3261, %v3472
        %v3474 = vpop.f32.mrf.mxu0
        %3475 = vmatprep.mubr.bf16.mxu0 0
        %3476 = vmatmul.mubr.bf16.gmra.mxu0 %v3328
        %v3477 = vpop.f32.mrf.mxu0
        %v3478 = vadd.f32 %v3266, %v3477
        %v3479 = vpop.f32.mrf.mxu0
        %v3480 = vpop.f32.mrf.mxu0
        %v3481 = vadd.f32 %v3269, %v3480
        %v3482 = vpop.f32.mrf.mxu0
        %3483 = vmatprep.mubr.bf16.mxu0 0
        %3484 = vmatmul.mubr.bf16.gmra.mxu0 %v3331
        %v3485 = vpop.f32.mrf.mxu0
        %v3486 = vadd.f32 %v3274, %v3485
        %v3487 = vpop.f32.mrf.mxu0
        %v3488 = vpop.f32.mrf.mxu0
        %v3489 = vadd.f32 %v3277, %v3488
        %v3490 = vpop.f32.mrf.mxu0
        %3491 = vmatprep.mubr.bf16.mxu0 0
        %3492 = vmatmul.mubr.bf16.gmra.mxu0 %v3334
        %v3493 = vpop.f32.mrf.mxu0
        %v3494 = vadd.f32 %v3282, %v3493
        %v3495 = vpop.f32.mrf.mxu0
        %v3496 = vpop.f32.mrf.mxu0
        %v3497 = vadd.f32 %v3285, %v3496
        %v3498 = vpop.f32.mrf.mxu0
        %3499 = vdwg.mxu0
        %3500 = vrot.lane.b32.xlu0 %v597, 112
        %v3501 = vpop.permute.xlu0 %3500
        %3502 = vrot.lane.b32.xlu0 %v598, 112
        %v3503 = vpop.permute.xlu0 %3502
        %3504 = vrot.lane.b32.xlu0 %v599, 112
        %v3505 = vpop.permute.xlu0 %3504
        %3506 = vrot.lane.b32.xlu0 %v600, 112
        %v3507 = vpop.permute.xlu0 %3506
        %v3509 = vsel %vm928, %v3501, 0
        %v3512 = vsel %vm928, %v3503, 0
        %v3515 = vsel %vm928, %v3505, 0
        %v3518 = vsel %vm928, %v3507, 0
        %v3521 = vsel %vm941, %v886, 0
        %3523 = vmatprep.subr.bf16.mxu0 0
        %3524 = vmatpush1.bf16.msra.mxu0 0
        %3525 = vmatprep.subr.bf16.mxu0 0
        %3526 = vmatpush1.bf16.msra.mxu0 0
        %3527 = vmatprep.subr.bf16.mxu0 0
        %3528 = vmatpush1.bf16.msra.mxu0 0
        %3529 = vmatprep.subr.bf16.mxu0 0
        %3530 = vmatpush1.bf16.msra.mxu0 0
        %3531 = vmatprep.subr.bf16.mxu0 0
        %3532 = vmatpush1.bf16.msra.mxu0 0
        %3533 = vmatprep.subr.bf16.mxu0 0
        %3534 = vmatpush1.bf16.msra.mxu0 0
        %3535 = vmatprep.subr.bf16.mxu0 0
        %3536 = vmatpush1.bf16.msra.mxu0 0
        %3537 = vmatprep.subr.bf16.mxu0 0
        %3538 = vmatpush1.bf16.msra.mxu0 %v3521
        %3539 = vmatprep.subr.bf16.mxu0 0
        %3540 = vmatpush2.bf16.msra.mxu0 0
        %3541 = vmatprep.subr.bf16.mxu0 0
        %3542 = vmatpush2.bf16.msra.mxu0 0
        %3543 = vmatprep.subr.bf16.mxu0 0
        %3544 = vmatpush2.bf16.msra.mxu0 0
        %3545 = vmatprep.subr.bf16.mxu0 0
        %3546 = vmatpush2.bf16.msra.mxu0 0
        %3547 = vmatprep.subr.bf16.mxu0 0
        %3548 = vmatpush2.bf16.msra.mxu0 0
        %3549 = vmatprep.subr.bf16.mxu0 0
        %3550 = vmatpush2.bf16.msra.mxu0 0
        %3551 = vmatprep.subr.bf16.mxu0 0
        %3552 = vmatpush2.bf16.msra.mxu0 0
        %3553 = vmatprep.subr.bf16.mxu0 0
        %3554 = vmatpush2.bf16.msra.mxu0 0
        %3555 = vmatprep.mubr.bf16.mxu0 0
        %3556 = vmatmul.mubr.bf16.gmra.mxu0 %v3509
        %v3557 = vpop.f32.mrf.mxu0
        %v3558 = vadd.f32 %v920, %v3557
        %v3559 = vpop.f32.mrf.mxu0
        %v3560 = vpop.f32.mrf.mxu0
        %v3561 = vadd.f32 %v921, %v3560
        %v3562 = vpop.f32.mrf.mxu0
        %3563 = vmatprep.mubr.bf16.mxu0 0
        %3564 = vmatmul.mubr.bf16.gmra.mxu0 %v3512
        %v3565 = vpop.f32.mrf.mxu0
        %v3566 = vadd.f32 %v922, %v3565
        %v3567 = vpop.f32.mrf.mxu0
        %v3568 = vpop.f32.mrf.mxu0
        %v3569 = vadd.f32 %v923, %v3568
        %v3570 = vpop.f32.mrf.mxu0
        %3571 = vmatprep.mubr.bf16.mxu0 0
        %3572 = vmatmul.mubr.bf16.gmra.mxu0 %v3515
        %v3573 = vpop.f32.mrf.mxu0
        %v3574 = vadd.f32 %v924, %v3573
        %v3575 = vpop.f32.mrf.mxu0
        %v3576 = vpop.f32.mrf.mxu0
        %v3577 = vadd.f32 %v925, %v3576
        %v3578 = vpop.f32.mrf.mxu0
        %3579 = vmatprep.mubr.bf16.mxu0 0
        %3580 = vmatmul.mubr.bf16.gmra.mxu0 %v3518
        %v3581 = vpop.f32.mrf.mxu0
        %v3582 = vadd.f32 %v926, %v3581
        %v3583 = vpop.f32.mrf.mxu0
        %v3584 = vpop.f32.mrf.mxu0
        %v3585 = vadd.f32 %v927, %v3584
        %v3586 = vpop.f32.mrf.mxu0
        %3587 = vdwg.mxu0
        %3588 = vrot.lane.b32.xlu0 %v601, 112
        %v3589 = vpop.permute.xlu0 %3588
        %3590 = vrot.lane.b32.xlu0 %v602, 112
        %v3591 = vpop.permute.xlu0 %3590
        %3592 = vrot.lane.b32.xlu0 %v603, 112
        %v3593 = vpop.permute.xlu0 %3592
        %3594 = vrot.lane.b32.xlu0 %v604, 112
        %v3595 = vpop.permute.xlu0 %3594
        %v3597 = vsel %vm928, %v3589, 0
        %v3600 = vsel %vm928, %v3591, 0
        %v3603 = vsel %vm928, %v3593, 0
        %v3606 = vsel %vm928, %v3595, 0
        %v3609 = vsel %vm941, %v890, 0
        %3611 = vmatprep.subr.bf16.mxu0 0
        %3612 = vmatpush1.bf16.msra.mxu0 0
        %3613 = vmatprep.subr.bf16.mxu0 0
        %3614 = vmatpush1.bf16.msra.mxu0 0
        %3615 = vmatprep.subr.bf16.mxu0 0
        %3616 = vmatpush1.bf16.msra.mxu0 0
        %3617 = vmatprep.subr.bf16.mxu0 0
        %3618 = vmatpush1.bf16.msra.mxu0 0
        %3619 = vmatprep.subr.bf16.mxu0 0
        %3620 = vmatpush1.bf16.msra.mxu0 0
        %3621 = vmatprep.subr.bf16.mxu0 0
        %3622 = vmatpush1.bf16.msra.mxu0 0
        %3623 = vmatprep.subr.bf16.mxu0 0
        %3624 = vmatpush1.bf16.msra.mxu0 0
        %3625 = vmatprep.subr.bf16.mxu0 0
        %3626 = vmatpush1.bf16.msra.mxu0 %v3609
        %3627 = vmatprep.subr.bf16.mxu0 0
        %3628 = vmatpush2.bf16.msra.mxu0 0
        %3629 = vmatprep.subr.bf16.mxu0 0
        %3630 = vmatpush2.bf16.msra.mxu0 0
        %3631 = vmatprep.subr.bf16.mxu0 0
        %3632 = vmatpush2.bf16.msra.mxu0 0
        %3633 = vmatprep.subr.bf16.mxu0 0
        %3634 = vmatpush2.bf16.msra.mxu0 0
        %3635 = vmatprep.subr.bf16.mxu0 0
        %3636 = vmatpush2.bf16.msra.mxu0 0
        %3637 = vmatprep.subr.bf16.mxu0 0
        %3638 = vmatpush2.bf16.msra.mxu0 0
        %3639 = vmatprep.subr.bf16.mxu0 0
        %3640 = vmatpush2.bf16.msra.mxu0 0
        %3641 = vmatprep.subr.bf16.mxu0 0
        %3642 = vmatpush2.bf16.msra.mxu0 0
        %3643 = vmatprep.mubr.bf16.mxu0 0
        %3644 = vmatmul.mubr.bf16.gmra.mxu0 %v3597
        %v3645 = vpop.f32.mrf.mxu0
        %v3646 = vadd.f32 %v920, %v3645
        %v3647 = vpop.f32.mrf.mxu0
        %v3648 = vpop.f32.mrf.mxu0
        %v3649 = vadd.f32 %v921, %v3648
        %v3650 = vpop.f32.mrf.mxu0
        %3651 = vmatprep.mubr.bf16.mxu0 0
        %3652 = vmatmul.mubr.bf16.gmra.mxu0 %v3600
        %v3653 = vpop.f32.mrf.mxu0
        %v3654 = vadd.f32 %v922, %v3653
        %v3655 = vpop.f32.mrf.mxu0
        %v3656 = vpop.f32.mrf.mxu0
        %v3657 = vadd.f32 %v923, %v3656
        %v3658 = vpop.f32.mrf.mxu0
        %3659 = vmatprep.mubr.bf16.mxu0 0
        %3660 = vmatmul.mubr.bf16.gmra.mxu0 %v3603
        %v3661 = vpop.f32.mrf.mxu0
        %v3662 = vadd.f32 %v924, %v3661
        %v3663 = vpop.f32.mrf.mxu0
        %v3664 = vpop.f32.mrf.mxu0
        %v3665 = vadd.f32 %v925, %v3664
        %v3666 = vpop.f32.mrf.mxu0
        %3667 = vmatprep.mubr.bf16.mxu0 0
        %3668 = vmatmul.mubr.bf16.gmra.mxu0 %v3606
        %v3669 = vpop.f32.mrf.mxu0
        %v3670 = vadd.f32 %v926, %v3669
        %v3671 = vpop.f32.mrf.mxu0
        %v3672 = vpop.f32.mrf.mxu0
        %v3673 = vadd.f32 %v927, %v3672
        %v3674 = vpop.f32.mrf.mxu0
        %3675 = vdwg.mxu0
        %3676 = vrot.lane.b32.xlu0 %v605, 112
        %v3677 = vpop.permute.xlu0 %3676
        %3678 = vrot.lane.b32.xlu0 %v606, 112
        %v3679 = vpop.permute.xlu0 %3678
        %3680 = vrot.lane.b32.xlu0 %v607, 112
        %v3681 = vpop.permute.xlu0 %3680
        %3682 = vrot.lane.b32.xlu0 %v608, 112
        %v3683 = vpop.permute.xlu0 %3682
        %v3685 = vsel %vm928, %v3677, 0
        %v3688 = vsel %vm928, %v3679, 0
        %v3691 = vsel %vm928, %v3681, 0
        %v3694 = vsel %vm928, %v3683, 0
        %v3697 = vsel %vm941, %v894, 0
        %3699 = vmatprep.subr.bf16.mxu0 0
        %3700 = vmatpush1.bf16.msra.mxu0 0
        %3701 = vmatprep.subr.bf16.mxu0 0
        %3702 = vmatpush1.bf16.msra.mxu0 0
        %3703 = vmatprep.subr.bf16.mxu0 0
        %3704 = vmatpush1.bf16.msra.mxu0 0
        %3705 = vmatprep.subr.bf16.mxu0 0
        %3706 = vmatpush1.bf16.msra.mxu0 0
        %3707 = vmatprep.subr.bf16.mxu0 0
        %3708 = vmatpush1.bf16.msra.mxu0 0
        %3709 = vmatprep.subr.bf16.mxu0 0
        %3710 = vmatpush1.bf16.msra.mxu0 0
        %3711 = vmatprep.subr.bf16.mxu0 0
        %3712 = vmatpush1.bf16.msra.mxu0 0
        %3713 = vmatprep.subr.bf16.mxu0 0
        %3714 = vmatpush1.bf16.msra.mxu0 %v3697
        %3715 = vmatprep.subr.bf16.mxu0 0
        %3716 = vmatpush2.bf16.msra.mxu0 0
        %3717 = vmatprep.subr.bf16.mxu0 0
        %3718 = vmatpush2.bf16.msra.mxu0 0
        %3719 = vmatprep.subr.bf16.mxu0 0
        %3720 = vmatpush2.bf16.msra.mxu0 0
        %3721 = vmatprep.subr.bf16.mxu0 0
        %3722 = vmatpush2.bf16.msra.mxu0 0
        %3723 = vmatprep.subr.bf16.mxu0 0
        %3724 = vmatpush2.bf16.msra.mxu0 0
        %3725 = vmatprep.subr.bf16.mxu0 0
        %3726 = vmatpush2.bf16.msra.mxu0 0
        %3727 = vmatprep.subr.bf16.mxu0 0
        %3728 = vmatpush2.bf16.msra.mxu0 0
        %3729 = vmatprep.subr.bf16.mxu0 0
        %3730 = vmatpush2.bf16.msra.mxu0 0
        %3731 = vmatprep.mubr.bf16.mxu0 0
        %3732 = vmatmul.mubr.bf16.gmra.mxu0 %v3685
        %v3733 = vpop.f32.mrf.mxu0
        %v3734 = vadd.f32 %v920, %v3733
        %v3735 = vpop.f32.mrf.mxu0
        %v3736 = vpop.f32.mrf.mxu0
        %v3737 = vadd.f32 %v921, %v3736
        %v3738 = vpop.f32.mrf.mxu0
        %3739 = vmatprep.mubr.bf16.mxu0 0
        %3740 = vmatmul.mubr.bf16.gmra.mxu0 %v3688
        %v3741 = vpop.f32.mrf.mxu0
        %v3742 = vadd.f32 %v922, %v3741
        %v3743 = vpop.f32.mrf.mxu0
        %v3744 = vpop.f32.mrf.mxu0
        %v3745 = vadd.f32 %v923, %v3744
        %v3746 = vpop.f32.mrf.mxu0
        %3747 = vmatprep.mubr.bf16.mxu0 0
        %3748 = vmatmul.mubr.bf16.gmra.mxu0 %v3691
        %v3749 = vpop.f32.mrf.mxu0
        %v3750 = vadd.f32 %v924, %v3749
        %v3751 = vpop.f32.mrf.mxu0
        %v3752 = vpop.f32.mrf.mxu0
        %v3753 = vadd.f32 %v925, %v3752
        %v3754 = vpop.f32.mrf.mxu0
        %3755 = vmatprep.mubr.bf16.mxu0 0
        %3756 = vmatmul.mubr.bf16.gmra.mxu0 %v3694
        %v3757 = vpop.f32.mrf.mxu0
        %v3758 = vadd.f32 %v926, %v3757
        %v3759 = vpop.f32.mrf.mxu0
        %v3760 = vpop.f32.mrf.mxu0
        %v3761 = vadd.f32 %v927, %v3760
        %v3762 = vpop.f32.mrf.mxu0
        %3763 = vdwg.mxu0
        %3764 = vrot.lane.b32.xlu0 %v609, 112
        %v3765 = vpop.permute.xlu0 %3764
        %3766 = vrot.lane.b32.xlu0 %v610, 112
        %v3767 = vpop.permute.xlu0 %3766
        %3768 = vrot.lane.b32.xlu0 %v611, 112
        %v3769 = vpop.permute.xlu0 %3768
        %3770 = vrot.lane.b32.xlu0 %v612, 112
        %v3771 = vpop.permute.xlu0 %3770
        %v3773 = vsel %vm928, %v3765, 0
        %v3776 = vsel %vm928, %v3767, 0
        %v3779 = vsel %vm928, %v3769, 0
        %v3782 = vsel %vm928, %v3771, 0
        %v3785 = vsel %vm941, %v898, 0
        %3787 = vmatprep.subr.bf16.mxu0 0
        %3788 = vmatpush1.bf16.msra.mxu0 0
        %3789 = vmatprep.subr.bf16.mxu0 0
        %3790 = vmatpush1.bf16.msra.mxu0 0
        %3791 = vmatprep.subr.bf16.mxu0 0
        %3792 = vmatpush1.bf16.msra.mxu0 0
        %3793 = vmatprep.subr.bf16.mxu0 0
        %3794 = vmatpush1.bf16.msra.mxu0 0
        %3795 = vmatprep.subr.bf16.mxu0 0
        %3796 = vmatpush1.bf16.msra.mxu0 0
        %3797 = vmatprep.subr.bf16.mxu0 0
        %3798 = vmatpush1.bf16.msra.mxu0 0
        %3799 = vmatprep.subr.bf16.mxu0 0
        %3800 = vmatpush1.bf16.msra.mxu0 0
        %3801 = vmatprep.subr.bf16.mxu0 0
        %3802 = vmatpush1.bf16.msra.mxu0 %v3785
        %3803 = vmatprep.subr.bf16.mxu0 0
        %3804 = vmatpush2.bf16.msra.mxu0 0
        %3805 = vmatprep.subr.bf16.mxu0 0
        %3806 = vmatpush2.bf16.msra.mxu0 0
        %3807 = vmatprep.subr.bf16.mxu0 0
        %3808 = vmatpush2.bf16.msra.mxu0 0
        %3809 = vmatprep.subr.bf16.mxu0 0
        %3810 = vmatpush2.bf16.msra.mxu0 0
        %3811 = vmatprep.subr.bf16.mxu0 0
        %3812 = vmatpush2.bf16.msra.mxu0 0
        %3813 = vmatprep.subr.bf16.mxu0 0
        %3814 = vmatpush2.bf16.msra.mxu0 0
        %3815 = vmatprep.subr.bf16.mxu0 0
        %3816 = vmatpush2.bf16.msra.mxu0 0
        %3817 = vmatprep.subr.bf16.mxu0 0
        %3818 = vmatpush2.bf16.msra.mxu0 0
        %3819 = vmatprep.mubr.bf16.mxu0 0
        %3820 = vmatmul.mubr.bf16.gmra.mxu0 %v3773
        %v3821 = vpop.f32.mrf.mxu0
        %v3822 = vadd.f32 %v920, %v3821
        %v3823 = vpop.f32.mrf.mxu0
        %v3824 = vpop.f32.mrf.mxu0
        %v3825 = vadd.f32 %v921, %v3824
        %v3826 = vpop.f32.mrf.mxu0
        %3827 = vmatprep.mubr.bf16.mxu0 0
        %3828 = vmatmul.mubr.bf16.gmra.mxu0 %v3776
        %v3829 = vpop.f32.mrf.mxu0
        %v3830 = vadd.f32 %v922, %v3829
        %v3831 = vpop.f32.mrf.mxu0
        %v3832 = vpop.f32.mrf.mxu0
        %v3833 = vadd.f32 %v923, %v3832
        %v3834 = vpop.f32.mrf.mxu0
        %3835 = vmatprep.mubr.bf16.mxu0 0
        %3836 = vmatmul.mubr.bf16.gmra.mxu0 %v3779
        %v3837 = vpop.f32.mrf.mxu0
        %v3838 = vadd.f32 %v924, %v3837
        %v3839 = vpop.f32.mrf.mxu0
        %v3840 = vpop.f32.mrf.mxu0
        %v3841 = vadd.f32 %v925, %v3840
        %v3842 = vpop.f32.mrf.mxu0
        %3843 = vmatprep.mubr.bf16.mxu0 0
        %3844 = vmatmul.mubr.bf16.gmra.mxu0 %v3782
        %v3845 = vpop.f32.mrf.mxu0
        %v3846 = vadd.f32 %v926, %v3845
        %v3847 = vpop.f32.mrf.mxu0
        %v3848 = vpop.f32.mrf.mxu0
        %v3849 = vadd.f32 %v927, %v3848
        %v3850 = vpop.f32.mrf.mxu0
        %3851 = vdwg.mxu0
        %v3852 = vsel %vm355, %v3558, -inf
        %3853 = vmax.xlane.f32.xlu0 %v3852
        %v3854 = vpop.xlane.xlu0 %3853
        %v3855 = vsel %vm355, %v3561, -inf
        %3856 = vmax.xlane.f32.xlu0 %v3855
        %v3857 = vpop.xlane.xlu0 %3856
        %v3858 = vsel %vm355, %v3566, -inf
        %3859 = vmax.xlane.f32.xlu0 %v3858
        %v3860 = vpop.xlane.xlu0 %3859
        %v3861 = vsel %vm355, %v3569, -inf
        %3862 = vmax.xlane.f32.xlu0 %v3861
        %v3863 = vpop.xlane.xlu0 %3862
        %v3864 = vsel %vm355, %v3574, -inf
        %3865 = vmax.xlane.f32.xlu0 %v3864
        %v3866 = vpop.xlane.xlu0 %3865
        %v3867 = vsel %vm355, %v3577, -inf
        %3868 = vmax.xlane.f32.xlu0 %v3867
        %v3869 = vpop.xlane.xlu0 %3868
        %v3870 = vsel %vm355, %v3582, -inf
        %3871 = vmax.xlane.f32.xlu0 %v3870
        %v3872 = vpop.xlane.xlu0 %3871
        %v3873 = vsel %vm355, %v3585, -inf
        %3874 = vmax.xlane.f32.xlu0 %v3873
        %v3875 = vpop.xlane.xlu0 %3874
        %v3876 = vsel %vm355, %v3646, -inf
        %3877 = vmax.xlane.f32.xlu0 %v3876
        %v3878 = vpop.xlane.xlu0 %3877
        %v3879 = vsel %vm355, %v3649, -inf
        %3880 = vmax.xlane.f32.xlu0 %v3879
        %v3881 = vpop.xlane.xlu0 %3880
        %v3882 = vsel %vm355, %v3654, -inf
        %3883 = vmax.xlane.f32.xlu0 %v3882
        %v3884 = vpop.xlane.xlu0 %3883
        %v3885 = vsel %vm355, %v3657, -inf
        %3886 = vmax.xlane.f32.xlu0 %v3885
        %v3887 = vpop.xlane.xlu0 %3886
        %v3888 = vsel %vm355, %v3662, -inf
        %3889 = vmax.xlane.f32.xlu0 %v3888
        %v3890 = vpop.xlane.xlu0 %3889
        %v3891 = vsel %vm355, %v3665, -inf
        %3892 = vmax.xlane.f32.xlu0 %v3891
        %v3893 = vpop.xlane.xlu0 %3892
        %v3894 = vsel %vm355, %v3670, -inf
        %3895 = vmax.xlane.f32.xlu0 %v3894
        %v3896 = vpop.xlane.xlu0 %3895
        %v3897 = vsel %vm355, %v3673, -inf
        %3898 = vmax.xlane.f32.xlu0 %v3897
        %v3899 = vpop.xlane.xlu0 %3898
        %v3900 = vsel %vm355, %v3734, -inf
        %3901 = vmax.xlane.f32.xlu0 %v3900
        %v3902 = vpop.xlane.xlu0 %3901
        %v3903 = vsel %vm355, %v3737, -inf
        %3904 = vmax.xlane.f32.xlu0 %v3903
        %v3905 = vpop.xlane.xlu0 %3904
        %v3906 = vsel %vm355, %v3742, -inf
        %3907 = vmax.xlane.f32.xlu0 %v3906
        %v3908 = vpop.xlane.xlu0 %3907
        %v3909 = vsel %vm355, %v3745, -inf
        %3910 = vmax.xlane.f32.xlu0 %v3909
        %v3911 = vpop.xlane.xlu0 %3910
        %v3912 = vsel %vm355, %v3750, -inf
        %3913 = vmax.xlane.f32.xlu0 %v3912
        %v3914 = vpop.xlane.xlu0 %3913
        %v3915 = vsel %vm355, %v3753, -inf
        %3916 = vmax.xlane.f32.xlu0 %v3915
        %v3917 = vpop.xlane.xlu0 %3916
        %v3918 = vsel %vm355, %v3758, -inf
        %3919 = vmax.xlane.f32.xlu0 %v3918
        %v3920 = vpop.xlane.xlu0 %3919
        %v3921 = vsel %vm355, %v3761, -inf
        %3922 = vmax.xlane.f32.xlu0 %v3921
        %v3923 = vpop.xlane.xlu0 %3922
        %v3924 = vsel %vm355, %v3822, -inf
        %3925 = vmax.xlane.f32.xlu0 %v3924
        %v3926 = vpop.xlane.xlu0 %3925
        %v3927 = vsel %vm355, %v3825, -inf
        %3928 = vmax.xlane.f32.xlu0 %v3927
        %v3929 = vpop.xlane.xlu0 %3928
        %v3930 = vsel %vm355, %v3830, -inf
        %3931 = vmax.xlane.f32.xlu0 %v3930
        %v3932 = vpop.xlane.xlu0 %3931
        %v3933 = vsel %vm355, %v3833, -inf
        %3934 = vmax.xlane.f32.xlu0 %v3933
        %v3935 = vpop.xlane.xlu0 %3934
        %v3936 = vsel %vm355, %v3838, -inf
        %3937 = vmax.xlane.f32.xlu0 %v3936
        %v3938 = vpop.xlane.xlu0 %3937
        %v3939 = vsel %vm355, %v3841, -inf
        %3940 = vmax.xlane.f32.xlu0 %v3939
        %v3941 = vpop.xlane.xlu0 %3940
        %v3942 = vsel %vm355, %v3846, -inf
        %3943 = vmax.xlane.f32.xlu0 %v3942
        %v3944 = vpop.xlane.xlu0 %3943
        %v3945 = vsel %vm355, %v3849, -inf
        %3946 = vmax.xlane.f32.xlu0 %v3945
        %v3947 = vpop.xlane.xlu0 %3946
        %v3948 = vsub.f32 %v3558, %v3854
        %v3949 = vsub.f32 %v3561, %v3857
        %v3950 = vsub.f32 %v3566, %v3860
        %v3951 = vsub.f32 %v3569, %v3863
        %v3952 = vsub.f32 %v3574, %v3866
        %v3953 = vsub.f32 %v3577, %v3869
        %v3954 = vsub.f32 %v3582, %v3872
        %v3955 = vsub.f32 %v3585, %v3875
        %v3956 = vsub.f32 %v3646, %v3878
        %v3957 = vsub.f32 %v3649, %v3881
        %v3958 = vsub.f32 %v3654, %v3884
        %v3959 = vsub.f32 %v3657, %v3887
        %v3960 = vsub.f32 %v3662, %v3890
        %v3961 = vsub.f32 %v3665, %v3893
        %v3962 = vsub.f32 %v3670, %v3896
        %v3963 = vsub.f32 %v3673, %v3899
        %v3964 = vsub.f32 %v3734, %v3902
        %v3965 = vsub.f32 %v3737, %v3905
        %v3966 = vsub.f32 %v3742, %v3908
        %v3967 = vsub.f32 %v3745, %v3911
        %v3968 = vsub.f32 %v3750, %v3914
        %v3969 = vsub.f32 %v3753, %v3917
        %v3970 = vsub.f32 %v3758, %v3920
        %v3971 = vsub.f32 %v3761, %v3923
        %v3972 = vsub.f32 %v3822, %v3926
        %v3973 = vsub.f32 %v3825, %v3929
        %v3974 = vsub.f32 %v3830, %v3932
        %v3975 = vsub.f32 %v3833, %v3935
        %v3976 = vsub.f32 %v3838, %v3938
        %v3977 = vsub.f32 %v3841, %v3941
        %v3978 = vsub.f32 %v3846, %v3944
        %v3979 = vsub.f32 %v3849, %v3947
        %v3980 = vmul.f32 %v3948, 1.442695
        %v3981 = vpow.pop %v3980
        %v3982 = vmul.f32 %v3949, 1.442695
        %v3983 = vpow.pop %v3982
        %v3984 = vmul.f32 %v3950, 1.442695
        %v3985 = vpow.pop %v3984
        %v3986 = vmul.f32 %v3951, 1.442695
        %v3987 = vpow.pop %v3986
        %v3988 = vmul.f32 %v3952, 1.442695
        %v3989 = vpow.pop %v3988
        %v3990 = vmul.f32 %v3953, 1.442695
        %v3991 = vpow.pop %v3990
        %v3992 = vmul.f32 %v3954, 1.442695
        %v3993 = vpow.pop %v3992
        %v3994 = vmul.f32 %v3955, 1.442695
        %v3995 = vpow.pop %v3994
        %v3996 = vmul.f32 %v3956, 1.442695
        %v3997 = vpow.pop %v3996
        %v3998 = vmul.f32 %v3957, 1.442695
        %v3999 = vpow.pop %v3998
        %v4000 = vmul.f32 %v3958, 1.442695
        %v4001 = vpow.pop %v4000
        %v4002 = vmul.f32 %v3959, 1.442695
        %v4003 = vpow.pop %v4002
        %v4004 = vmul.f32 %v3960, 1.442695
        %v4005 = vpow.pop %v4004
        %v4006 = vmul.f32 %v3961, 1.442695
        %v4007 = vpow.pop %v4006
        %v4008 = vmul.f32 %v3962, 1.442695
        %v4009 = vpow.pop %v4008
        %v4010 = vmul.f32 %v3963, 1.442695
        %v4011 = vpow.pop %v4010
        %v4012 = vmul.f32 %v3964, 1.442695
        %v4013 = vpow.pop %v4012
        %v4014 = vmul.f32 %v3965, 1.442695
        %v4015 = vpow.pop %v4014
        %v4016 = vmul.f32 %v3966, 1.442695
        %v4017 = vpow.pop %v4016
        %v4018 = vmul.f32 %v3967, 1.442695
        %v4019 = vpow.pop %v4018
        %v4020 = vmul.f32 %v3968, 1.442695
        %v4021 = vpow.pop %v4020
        %v4022 = vmul.f32 %v3969, 1.442695
        %v4023 = vpow.pop %v4022
        %v4024 = vmul.f32 %v3970, 1.442695
        %v4025 = vpow.pop %v4024
        %v4026 = vmul.f32 %v3971, 1.442695
        %v4027 = vpow.pop %v4026
        %v4028 = vmul.f32 %v3972, 1.442695
        %v4029 = vpow.pop %v4028
        %v4030 = vmul.f32 %v3973, 1.442695
        %v4031 = vpow.pop %v4030
        %v4032 = vmul.f32 %v3974, 1.442695
        %v4033 = vpow.pop %v4032
        %v4034 = vmul.f32 %v3975, 1.442695
        %v4035 = vpow.pop %v4034
        %v4036 = vmul.f32 %v3976, 1.442695
        %v4037 = vpow.pop %v4036
        %v4038 = vmul.f32 %v3977, 1.442695
        %v4039 = vpow.pop %v4038
        %v4040 = vmul.f32 %v3978, 1.442695
        %v4041 = vpow.pop %v4040
        %v4042 = vmul.f32 %v3979, 1.442695
        %v4043 = vpow.pop %v4042
        %v4044 = vsel %vm355, %v3981, 0.0
        %4045 = vadd.xlane.f32.xlu0 %v4044
        %v4046 = vpop.xlane.xlu0 %4045
        %v4047 = vsel %vm355, %v3983, 0.0
        %4048 = vadd.xlane.f32.xlu0 %v4047
        %v4049 = vpop.xlane.xlu0 %4048
        %v4050 = vsel %vm355, %v3985, 0.0
        %4051 = vadd.xlane.f32.xlu0 %v4050
        %v4052 = vpop.xlane.xlu0 %4051
        %v4053 = vsel %vm355, %v3987, 0.0
        %4054 = vadd.xlane.f32.xlu0 %v4053
        %v4055 = vpop.xlane.xlu0 %4054
        %v4056 = vsel %vm355, %v3989, 0.0
        %4057 = vadd.xlane.f32.xlu0 %v4056
        %v4058 = vpop.xlane.xlu0 %4057
        %v4059 = vsel %vm355, %v3991, 0.0
        %4060 = vadd.xlane.f32.xlu0 %v4059
        %v4061 = vpop.xlane.xlu0 %4060
        %v4062 = vsel %vm355, %v3993, 0.0
        %4063 = vadd.xlane.f32.xlu0 %v4062
        %v4064 = vpop.xlane.xlu0 %4063
        %v4065 = vsel %vm355, %v3995, 0.0
        %4066 = vadd.xlane.f32.xlu0 %v4065
        %v4067 = vpop.xlane.xlu0 %4066
        %v4068 = vsel %vm355, %v3997, 0.0
        %4069 = vadd.xlane.f32.xlu0 %v4068
        %v4070 = vpop.xlane.xlu0 %4069
        %v4071 = vsel %vm355, %v3999, 0.0
        %4072 = vadd.xlane.f32.xlu0 %v4071
        %v4073 = vpop.xlane.xlu0 %4072
        %v4074 = vsel %vm355, %v4001, 0.0
        %4075 = vadd.xlane.f32.xlu0 %v4074
        %v4076 = vpop.xlane.xlu0 %4075
        %v4077 = vsel %vm355, %v4003, 0.0
        %4078 = vadd.xlane.f32.xlu0 %v4077
        %v4079 = vpop.xlane.xlu0 %4078
        %v4080 = vsel %vm355, %v4005, 0.0
        %4081 = vadd.xlane.f32.xlu0 %v4080
        %v4082 = vpop.xlane.xlu0 %4081
        %v4083 = vsel %vm355, %v4007, 0.0
        %4084 = vadd.xlane.f32.xlu0 %v4083
        %v4085 = vpop.xlane.xlu0 %4084
        %v4086 = vsel %vm355, %v4009, 0.0
        %4087 = vadd.xlane.f32.xlu0 %v4086
        %v4088 = vpop.xlane.xlu0 %4087
        %v4089 = vsel %vm355, %v4011, 0.0
        %4090 = vadd.xlane.f32.xlu0 %v4089
        %v4091 = vpop.xlane.xlu0 %4090
        %v4092 = vsel %vm355, %v4013, 0.0
        %4093 = vadd.xlane.f32.xlu0 %v4092
        %v4094 = vpop.xlane.xlu0 %4093
        %v4095 = vsel %vm355, %v4015, 0.0
        %4096 = vadd.xlane.f32.xlu0 %v4095
        %v4097 = vpop.xlane.xlu0 %4096
        %v4098 = vsel %vm355, %v4017, 0.0
        %4099 = vadd.xlane.f32.xlu0 %v4098
        %v4100 = vpop.xlane.xlu0 %4099
        %v4101 = vsel %vm355, %v4019, 0.0
        %4102 = vadd.xlane.f32.xlu0 %v4101
        %v4103 = vpop.xlane.xlu0 %4102
        %v4104 = vsel %vm355, %v4021, 0.0
        %4105 = vadd.xlane.f32.xlu0 %v4104
        %v4106 = vpop.xlane.xlu0 %4105
        %v4107 = vsel %vm355, %v4023, 0.0
        %4108 = vadd.xlane.f32.xlu0 %v4107
        %v4109 = vpop.xlane.xlu0 %4108
        %v4110 = vsel %vm355, %v4025, 0.0
        %4111 = vadd.xlane.f32.xlu0 %v4110
        %v4112 = vpop.xlane.xlu0 %4111
        %v4113 = vsel %vm355, %v4027, 0.0
        %4114 = vadd.xlane.f32.xlu0 %v4113
        %v4115 = vpop.xlane.xlu0 %4114
        %v4116 = vsel %vm355, %v4029, 0.0
        %4117 = vadd.xlane.f32.xlu0 %v4116
        %v4118 = vpop.xlane.xlu0 %4117
        %v4119 = vsel %vm355, %v4031, 0.0
        %4120 = vadd.xlane.f32.xlu0 %v4119
        %v4121 = vpop.xlane.xlu0 %4120
        %v4122 = vsel %vm355, %v4033, 0.0
        %4123 = vadd.xlane.f32.xlu0 %v4122
        %v4124 = vpop.xlane.xlu0 %4123
        %v4125 = vsel %vm355, %v4035, 0.0
        %4126 = vadd.xlane.f32.xlu0 %v4125
        %v4127 = vpop.xlane.xlu0 %4126
        %v4128 = vsel %vm355, %v4037, 0.0
        %4129 = vadd.xlane.f32.xlu0 %v4128
        %v4130 = vpop.xlane.xlu0 %4129
        %v4131 = vsel %vm355, %v4039, 0.0
        %4132 = vadd.xlane.f32.xlu0 %v4131
        %v4133 = vpop.xlane.xlu0 %4132
        %v4134 = vsel %vm355, %v4041, 0.0
        %4135 = vadd.xlane.f32.xlu0 %v4134
        %v4136 = vpop.xlane.xlu0 %4135
        %v4137 = vsel %vm355, %v4043, 0.0
        %4138 = vadd.xlane.f32.xlu0 %v4137
        %v4139 = vpop.xlane.xlu0 %4138
        %v4140 = vrcp.pop %v4046
        %v4141 = vrcp.pop %v4049
        %v4142 = vrcp.pop %v4052
        %v4143 = vrcp.pop %v4055
        %v4144 = vrcp.pop %v4058
        %v4145 = vrcp.pop %v4061
        %v4146 = vrcp.pop %v4064
        %v4147 = vrcp.pop %v4067
        %v4148 = vrcp.pop %v4070
        %v4149 = vrcp.pop %v4073
        %v4150 = vrcp.pop %v4076
        %v4151 = vrcp.pop %v4079
        %v4152 = vrcp.pop %v4082
        %v4153 = vrcp.pop %v4085
        %v4154 = vrcp.pop %v4088
        %v4155 = vrcp.pop %v4091
        %v4156 = vrcp.pop %v4094
        %v4157 = vrcp.pop %v4097
        %v4158 = vrcp.pop %v4100
        %v4159 = vrcp.pop %v4103
        %v4160 = vrcp.pop %v4106
        %v4161 = vrcp.pop %v4109
        %v4162 = vrcp.pop %v4112
        %v4163 = vrcp.pop %v4115
        %v4164 = vrcp.pop %v4118
        %v4165 = vrcp.pop %v4121
        %v4166 = vrcp.pop %v4124
        %v4167 = vrcp.pop %v4127
        %v4168 = vrcp.pop %v4130
        %v4169 = vrcp.pop %v4133
        %v4170 = vrcp.pop %v4136
        %v4171 = vrcp.pop %v4139
        %v4172 = vmul.f32 %v3981, %v4140
        %v4173 = vmul.f32 %v3983, %v4141
        %v4174 = vmul.f32 %v3985, %v4142
        %v4175 = vmul.f32 %v3987, %v4143
        %v4176 = vmul.f32 %v3989, %v4144
        %v4177 = vmul.f32 %v3991, %v4145
        %v4178 = vmul.f32 %v3993, %v4146
        %v4179 = vmul.f32 %v3995, %v4147
        %v4180 = vmul.f32 %v3997, %v4148
        %v4181 = vmul.f32 %v3999, %v4149
        %v4182 = vmul.f32 %v4001, %v4150
        %v4183 = vmul.f32 %v4003, %v4151
        %v4184 = vmul.f32 %v4005, %v4152
        %v4185 = vmul.f32 %v4007, %v4153
        %v4186 = vmul.f32 %v4009, %v4154
        %v4187 = vmul.f32 %v4011, %v4155
        %v4188 = vmul.f32 %v4013, %v4156
        %v4189 = vmul.f32 %v4015, %v4157
        %v4190 = vmul.f32 %v4017, %v4158
        %v4191 = vmul.f32 %v4019, %v4159
        %v4192 = vmul.f32 %v4021, %v4160
        %v4193 = vmul.f32 %v4023, %v4161
        %v4194 = vmul.f32 %v4025, %v4162
        %v4195 = vmul.f32 %v4027, %v4163
        %v4196 = vmul.f32 %v4029, %v4164
        %v4197 = vmul.f32 %v4031, %v4165
        %v4198 = vmul.f32 %v4033, %v4166
        %v4199 = vmul.f32 %v4035, %v4167
        %v4200 = vmul.f32 %v4037, %v4168
        %v4201 = vmul.f32 %v4039, %v4169
        %v4202 = vmul.f32 %v4041, %v4170
        %v4203 = vmul.f32 %v4043, %v4171
        %v4204 = vpack.c.bf16 %v4173, %v4172
        %v4205 = vpack.c.bf16 %v4175, %v4174
        %v4206 = vpack.c.bf16 %v4177, %v4176
        %v4207 = vpack.c.bf16 %v4179, %v4178
        %v4208 = vpack.c.bf16 %v4181, %v4180
        %v4209 = vpack.c.bf16 %v4183, %v4182
        %v4210 = vpack.c.bf16 %v4185, %v4184
        %v4211 = vpack.c.bf16 %v4187, %v4186
        %v4212 = vpack.c.bf16 %v4189, %v4188
        %v4213 = vpack.c.bf16 %v4191, %v4190
        %v4214 = vpack.c.bf16 %v4193, %v4192
        %v4215 = vpack.c.bf16 %v4195, %v4194
        %v4216 = vpack.c.bf16 %v4197, %v4196
        %v4217 = vpack.c.bf16 %v4199, %v4198
        %v4218 = vpack.c.bf16 %v4201, %v4200
        %v4219 = vpack.c.bf16 %v4203, %v4202
        %4220 = vrot.lane.b32.xlu0 %v613, 112
        %v4221 = vpop.permute.xlu0 %4220
        %4222 = vrot.lane.b32.xlu0 %v614, 112
        %v4223 = vpop.permute.xlu0 %4222
        %4224 = vrot.lane.b32.xlu0 %v615, 112
        %v4225 = vpop.permute.xlu0 %4224
        %4226 = vrot.lane.b32.xlu0 %v616, 112
        %v4227 = vpop.permute.xlu0 %4226
        %v4233 = vsel %vm355, %v4204, 0
        %v4236 = vsel %vm355, %v4205, 0
        %v4239 = vsel %vm355, %v4206, 0
        %v4242 = vsel %vm355, %v4207, 0
        %4244 = vmatprep.subr.bf16.mxu0 0
        %4245 = vmatpush1.bf16.msra.mxu0 0
        %4246 = vmatprep.subr.bf16.mxu0 0
        %4247 = vmatpush1.bf16.msra.mxu0 0
        %4248 = vmatprep.subr.bf16.mxu0 0
        %4249 = vmatpush1.bf16.msra.mxu0 0
        %4250 = vmatprep.subr.bf16.mxu0 0
        %4251 = vmatpush1.bf16.msra.mxu0 0
        %4252 = vmatprep.subr.bf16.mxu0 0
        %4253 = vmatpush1.bf16.msra.mxu0 %v4227
        %4254 = vmatprep.subr.bf16.mxu0 0
        %4255 = vmatpush1.bf16.msra.mxu0 %v4225
        %4256 = vmatprep.subr.bf16.mxu0 0
        %4257 = vmatpush1.bf16.msra.mxu0 %v4223
        %4258 = vmatprep.subr.bf16.mxu0 0
        %4259 = vmatpush1.bf16.msra.mxu0 %v4221
        %4260 = vmatprep.subr.bf16.mxu0 0
        %4261 = vmatpush2.bf16.msra.mxu0 0
        %4262 = vmatprep.subr.bf16.mxu0 0
        %4263 = vmatpush2.bf16.msra.mxu0 0
        %4264 = vmatprep.subr.bf16.mxu0 0
        %4265 = vmatpush2.bf16.msra.mxu0 0
        %4266 = vmatprep.subr.bf16.mxu0 0
        %4267 = vmatpush2.bf16.msra.mxu0 0
        %4268 = vmatprep.subr.bf16.mxu0 0
        %4269 = vmatpush2.bf16.msra.mxu0 0
        %4270 = vmatprep.subr.bf16.mxu0 0
        %4271 = vmatpush2.bf16.msra.mxu0 0
        %4272 = vmatprep.subr.bf16.mxu0 0
        %4273 = vmatpush2.bf16.msra.mxu0 0
        %4274 = vmatprep.subr.bf16.mxu0 0
        %4275 = vmatpush2.bf16.msra.mxu0 0
        %4276 = vmatprep.mubr.bf16.mxu0 0
        %4277 = vmatmul.mubr.bf16.gmra.mxu0 %v4233
        %v4278 = vpop.f32.mrf.mxu0
        %v4279 = vadd.f32 0.0, %v4278
        %v4280 = vpop.f32.mrf.mxu0
        %v4281 = vpop.f32.mrf.mxu0
        %v4282 = vadd.f32 0.0, %v4281
        %v4283 = vpop.f32.mrf.mxu0
        %4284 = vmatprep.mubr.bf16.mxu0 0
        %4285 = vmatmul.mubr.bf16.gmra.mxu0 %v4236
        %v4286 = vpop.f32.mrf.mxu0
        %v4287 = vadd.f32 0.0, %v4286
        %v4288 = vpop.f32.mrf.mxu0
        %v4289 = vpop.f32.mrf.mxu0
        %v4290 = vadd.f32 0.0, %v4289
        %v4291 = vpop.f32.mrf.mxu0
        %4292 = vmatprep.mubr.bf16.mxu0 0
        %4293 = vmatmul.mubr.bf16.gmra.mxu0 %v4239
        %v4294 = vpop.f32.mrf.mxu0
        %v4295 = vadd.f32 0.0, %v4294
        %v4296 = vpop.f32.mrf.mxu0
        %v4297 = vpop.f32.mrf.mxu0
        %v4298 = vadd.f32 0.0, %v4297
        %v4299 = vpop.f32.mrf.mxu0
        %4300 = vmatprep.mubr.bf16.mxu0 0
        %4301 = vmatmul.mubr.bf16.gmra.mxu0 %v4242
        %v4302 = vpop.f32.mrf.mxu0
        %v4303 = vadd.f32 0.0, %v4302
        %v4304 = vpop.f32.mrf.mxu0
        %v4305 = vpop.f32.mrf.mxu0
        %v4306 = vadd.f32 0.0, %v4305
        %v4307 = vpop.f32.mrf.mxu0
        %4308 = vdwg.mxu0
        %4309 = vrot.lane.b32.xlu0 %v617, 112
        %v4310 = vpop.permute.xlu0 %4309
        %4311 = vrot.lane.b32.xlu0 %v618, 112
        %v4312 = vpop.permute.xlu0 %4311
        %4313 = vrot.lane.b32.xlu0 %v619, 112
        %v4314 = vpop.permute.xlu0 %4313
        %4315 = vrot.lane.b32.xlu0 %v620, 112
        %v4316 = vpop.permute.xlu0 %4315
        %v4322 = vsel %vm355, %v4208, 0
        %v4325 = vsel %vm355, %v4209, 0
        %v4328 = vsel %vm355, %v4210, 0
        %v4331 = vsel %vm355, %v4211, 0
        %4333 = vmatprep.subr.bf16.mxu0 0
        %4334 = vmatpush1.bf16.msra.mxu0 0
        %4335 = vmatprep.subr.bf16.mxu0 0
        %4336 = vmatpush1.bf16.msra.mxu0 0
        %4337 = vmatprep.subr.bf16.mxu0 0
        %4338 = vmatpush1.bf16.msra.mxu0 0
        %4339 = vmatprep.subr.bf16.mxu0 0
        %4340 = vmatpush1.bf16.msra.mxu0 0
        %4341 = vmatprep.subr.bf16.mxu0 0
        %4342 = vmatpush1.bf16.msra.mxu0 %v4316
        %4343 = vmatprep.subr.bf16.mxu0 0
        %4344 = vmatpush1.bf16.msra.mxu0 %v4314
        %4345 = vmatprep.subr.bf16.mxu0 0
        %4346 = vmatpush1.bf16.msra.mxu0 %v4312
        %4347 = vmatprep.subr.bf16.mxu0 0
        %4348 = vmatpush1.bf16.msra.mxu0 %v4310
        %4349 = vmatprep.subr.bf16.mxu0 0
        %4350 = vmatpush2.bf16.msra.mxu0 0
        %4351 = vmatprep.subr.bf16.mxu0 0
        %4352 = vmatpush2.bf16.msra.mxu0 0
        %4353 = vmatprep.subr.bf16.mxu0 0
        %4354 = vmatpush2.bf16.msra.mxu0 0
        %4355 = vmatprep.subr.bf16.mxu0 0
        %4356 = vmatpush2.bf16.msra.mxu0 0
        %4357 = vmatprep.subr.bf16.mxu0 0
        %4358 = vmatpush2.bf16.msra.mxu0 0
        %4359 = vmatprep.subr.bf16.mxu0 0
        %4360 = vmatpush2.bf16.msra.mxu0 0
        %4361 = vmatprep.subr.bf16.mxu0 0
        %4362 = vmatpush2.bf16.msra.mxu0 0
        %4363 = vmatprep.subr.bf16.mxu0 0
        %4364 = vmatpush2.bf16.msra.mxu0 0
        %4365 = vmatprep.mubr.bf16.mxu0 0
        %4366 = vmatmul.mubr.bf16.gmra.mxu0 %v4322
        %v4367 = vpop.f32.mrf.mxu0
        %v4368 = vadd.f32 0.0, %v4367
        %v4369 = vpop.f32.mrf.mxu0
        %v4370 = vpop.f32.mrf.mxu0
        %v4371 = vadd.f32 0.0, %v4370
        %v4372 = vpop.f32.mrf.mxu0
        %4373 = vmatprep.mubr.bf16.mxu0 0
        %4374 = vmatmul.mubr.bf16.gmra.mxu0 %v4325
        %v4375 = vpop.f32.mrf.mxu0
        %v4376 = vadd.f32 0.0, %v4375
        %v4377 = vpop.f32.mrf.mxu0
        %v4378 = vpop.f32.mrf.mxu0
        %v4379 = vadd.f32 0.0, %v4378
        %v4380 = vpop.f32.mrf.mxu0
        %4381 = vmatprep.mubr.bf16.mxu0 0
        %4382 = vmatmul.mubr.bf16.gmra.mxu0 %v4328
        %v4383 = vpop.f32.mrf.mxu0
        %v4384 = vadd.f32 0.0, %v4383
        %v4385 = vpop.f32.mrf.mxu0
        %v4386 = vpop.f32.mrf.mxu0
        %v4387 = vadd.f32 0.0, %v4386
        %v4388 = vpop.f32.mrf.mxu0
        %4389 = vmatprep.mubr.bf16.mxu0 0
        %4390 = vmatmul.mubr.bf16.gmra.mxu0 %v4331
        %v4391 = vpop.f32.mrf.mxu0
        %v4392 = vadd.f32 0.0, %v4391
        %v4393 = vpop.f32.mrf.mxu0
        %v4394 = vpop.f32.mrf.mxu0
        %v4395 = vadd.f32 0.0, %v4394
        %v4396 = vpop.f32.mrf.mxu0
        %4397 = vdwg.mxu0
        %4398 = vrot.lane.b32.xlu0 %v621, 112
        %v4399 = vpop.permute.xlu0 %4398
        %4400 = vrot.lane.b32.xlu0 %v622, 112
        %v4401 = vpop.permute.xlu0 %4400
        %4402 = vrot.lane.b32.xlu0 %v623, 112
        %v4403 = vpop.permute.xlu0 %4402
        %4404 = vrot.lane.b32.xlu0 %v624, 112
        %v4405 = vpop.permute.xlu0 %4404
        %v4411 = vsel %vm355, %v4212, 0
        %v4414 = vsel %vm355, %v4213, 0
        %v4417 = vsel %vm355, %v4214, 0
        %v4420 = vsel %vm355, %v4215, 0
        %4422 = vmatprep.subr.bf16.mxu0 0
        %4423 = vmatpush1.bf16.msra.mxu0 0
        %4424 = vmatprep.subr.bf16.mxu0 0
        %4425 = vmatpush1.bf16.msra.mxu0 0
        %4426 = vmatprep.subr.bf16.mxu0 0
        %4427 = vmatpush1.bf16.msra.mxu0 0
        %4428 = vmatprep.subr.bf16.mxu0 0
        %4429 = vmatpush1.bf16.msra.mxu0 0
        %4430 = vmatprep.subr.bf16.mxu0 0
        %4431 = vmatpush1.bf16.msra.mxu0 %v4405
        %4432 = vmatprep.subr.bf16.mxu0 0
        %4433 = vmatpush1.bf16.msra.mxu0 %v4403
        %4434 = vmatprep.subr.bf16.mxu0 0
        %4435 = vmatpush1.bf16.msra.mxu0 %v4401
        %4436 = vmatprep.subr.bf16.mxu0 0
        %4437 = vmatpush1.bf16.msra.mxu0 %v4399
        %4438 = vmatprep.subr.bf16.mxu0 0
        %4439 = vmatpush2.bf16.msra.mxu0 0
        %4440 = vmatprep.subr.bf16.mxu0 0
        %4441 = vmatpush2.bf16.msra.mxu0 0
        %4442 = vmatprep.subr.bf16.mxu0 0
        %4443 = vmatpush2.bf16.msra.mxu0 0
        %4444 = vmatprep.subr.bf16.mxu0 0
        %4445 = vmatpush2.bf16.msra.mxu0 0
        %4446 = vmatprep.subr.bf16.mxu0 0
        %4447 = vmatpush2.bf16.msra.mxu0 0
        %4448 = vmatprep.subr.bf16.mxu0 0
        %4449 = vmatpush2.bf16.msra.mxu0 0
        %4450 = vmatprep.subr.bf16.mxu0 0
        %4451 = vmatpush2.bf16.msra.mxu0 0
        %4452 = vmatprep.subr.bf16.mxu0 0
        %4453 = vmatpush2.bf16.msra.mxu0 0
        %4454 = vmatprep.mubr.bf16.mxu0 0
        %4455 = vmatmul.mubr.bf16.gmra.mxu0 %v4411
        %v4456 = vpop.f32.mrf.mxu0
        %v4457 = vadd.f32 0.0, %v4456
        %v4458 = vpop.f32.mrf.mxu0
        %v4459 = vpop.f32.mrf.mxu0
        %v4460 = vadd.f32 0.0, %v4459
        %v4461 = vpop.f32.mrf.mxu0
        %4462 = vmatprep.mubr.bf16.mxu0 0
        %4463 = vmatmul.mubr.bf16.gmra.mxu0 %v4414
        %v4464 = vpop.f32.mrf.mxu0
        %v4465 = vadd.f32 0.0, %v4464
        %v4466 = vpop.f32.mrf.mxu0
        %v4467 = vpop.f32.mrf.mxu0
        %v4468 = vadd.f32 0.0, %v4467
        %v4469 = vpop.f32.mrf.mxu0
        %4470 = vmatprep.mubr.bf16.mxu0 0
        %4471 = vmatmul.mubr.bf16.gmra.mxu0 %v4417
        %v4472 = vpop.f32.mrf.mxu0
        %v4473 = vadd.f32 0.0, %v4472
        %v4474 = vpop.f32.mrf.mxu0
        %v4475 = vpop.f32.mrf.mxu0
        %v4476 = vadd.f32 0.0, %v4475
        %v4477 = vpop.f32.mrf.mxu0
        %4478 = vmatprep.mubr.bf16.mxu0 0
        %4479 = vmatmul.mubr.bf16.gmra.mxu0 %v4420
        %v4480 = vpop.f32.mrf.mxu0
        %v4481 = vadd.f32 0.0, %v4480
        %v4482 = vpop.f32.mrf.mxu0
        %v4483 = vpop.f32.mrf.mxu0
        %v4484 = vadd.f32 0.0, %v4483
        %v4485 = vpop.f32.mrf.mxu0
        %4486 = vdwg.mxu0
        %4487 = vrot.lane.b32.xlu0 %v625, 112
        %v4488 = vpop.permute.xlu0 %4487
        %4489 = vrot.lane.b32.xlu0 %v626, 112
        %v4490 = vpop.permute.xlu0 %4489
        %4491 = vrot.lane.b32.xlu0 %v627, 112
        %v4492 = vpop.permute.xlu0 %4491
        %4493 = vrot.lane.b32.xlu0 %v628, 112
        %v4494 = vpop.permute.xlu0 %4493
        %v4500 = vsel %vm355, %v4216, 0
        %v4503 = vsel %vm355, %v4217, 0
        %v4506 = vsel %vm355, %v4218, 0
        %v4509 = vsel %vm355, %v4219, 0
        %4511 = vmatprep.subr.bf16.mxu0 0
        %4512 = vmatpush1.bf16.msra.mxu0 0
        %4513 = vmatprep.subr.bf16.mxu0 0
        %4514 = vmatpush1.bf16.msra.mxu0 0
        %4515 = vmatprep.subr.bf16.mxu0 0
        %4516 = vmatpush1.bf16.msra.mxu0 0
        %4517 = vmatprep.subr.bf16.mxu0 0
        %4518 = vmatpush1.bf16.msra.mxu0 0
        %4519 = vmatprep.subr.bf16.mxu0 0
        %4520 = vmatpush1.bf16.msra.mxu0 %v4494
        %4521 = vmatprep.subr.bf16.mxu0 0
        %4522 = vmatpush1.bf16.msra.mxu0 %v4492
        %4523 = vmatprep.subr.bf16.mxu0 0
        %4524 = vmatpush1.bf16.msra.mxu0 %v4490
        %4525 = vmatprep.subr.bf16.mxu0 0
        %4526 = vmatpush1.bf16.msra.mxu0 %v4488
        %4527 = vmatprep.subr.bf16.mxu0 0
        %4528 = vmatpush2.bf16.msra.mxu0 0
        %4529 = vmatprep.subr.bf16.mxu0 0
        %4530 = vmatpush2.bf16.msra.mxu0 0
        %4531 = vmatprep.subr.bf16.mxu0 0
        %4532 = vmatpush2.bf16.msra.mxu0 0
        %4533 = vmatprep.subr.bf16.mxu0 0
        %4534 = vmatpush2.bf16.msra.mxu0 0
        %4535 = vmatprep.subr.bf16.mxu0 0
        %4536 = vmatpush2.bf16.msra.mxu0 0
        %4537 = vmatprep.subr.bf16.mxu0 0
        %4538 = vmatpush2.bf16.msra.mxu0 0
        %4539 = vmatprep.subr.bf16.mxu0 0
        %4540 = vmatpush2.bf16.msra.mxu0 0
        %4541 = vmatprep.subr.bf16.mxu0 0
        %4542 = vmatpush2.bf16.msra.mxu0 0
        %4543 = vmatprep.mubr.bf16.mxu0 0
        %4544 = vmatmul.mubr.bf16.gmra.mxu0 %v4500
        %v4545 = vpop.f32.mrf.mxu0
        %v4546 = vadd.f32 0.0, %v4545
        %v4547 = vpop.f32.mrf.mxu0
        %v4548 = vpop.f32.mrf.mxu0
        %v4549 = vadd.f32 0.0, %v4548
        %v4550 = vpop.f32.mrf.mxu0
        %4551 = vmatprep.mubr.bf16.mxu0 0
        %4552 = vmatmul.mubr.bf16.gmra.mxu0 %v4503
        %v4553 = vpop.f32.mrf.mxu0
        %v4554 = vadd.f32 0.0, %v4553
        %v4555 = vpop.f32.mrf.mxu0
        %v4556 = vpop.f32.mrf.mxu0
        %v4557 = vadd.f32 0.0, %v4556
        %v4558 = vpop.f32.mrf.mxu0
        %4559 = vmatprep.mubr.bf16.mxu0 0
        %4560 = vmatmul.mubr.bf16.gmra.mxu0 %v4506
        %v4561 = vpop.f32.mrf.mxu0
        %v4562 = vadd.f32 0.0, %v4561
        %v4563 = vpop.f32.mrf.mxu0
        %v4564 = vpop.f32.mrf.mxu0
        %v4565 = vadd.f32 0.0, %v4564
        %v4566 = vpop.f32.mrf.mxu0
        %4567 = vmatprep.mubr.bf16.mxu0 0
        %4568 = vmatmul.mubr.bf16.gmra.mxu0 %v4509
        %v4569 = vpop.f32.mrf.mxu0
        %v4570 = vadd.f32 0.0, %v4569
        %v4571 = vpop.f32.mrf.mxu0
        %v4572 = vpop.f32.mrf.mxu0
        %v4573 = vadd.f32 0.0, %v4572
        %v4574 = vpop.f32.mrf.mxu0
        %4575 = vdwg.mxu0
        %v4576 = vpack.c.bf16 %v4282, %v4279
        %v4577 = vpack.c.bf16 %v4290, %v4287
        %v4578 = vpack.c.bf16 %v4298, %v4295
        %v4579 = vpack.c.bf16 %v4306, %v4303
        %v4580 = vpack.c.bf16 %v4371, %v4368
        %v4581 = vpack.c.bf16 %v4379, %v4376
        %v4582 = vpack.c.bf16 %v4387, %v4384
        %v4583 = vpack.c.bf16 %v4395, %v4392
        %v4584 = vpack.c.bf16 %v4460, %v4457
        %v4585 = vpack.c.bf16 %v4468, %v4465
        %v4586 = vpack.c.bf16 %v4476, %v4473
        %v4587 = vpack.c.bf16 %v4484, %v4481
        %v4588 = vpack.c.bf16 %v4549, %v4546
        %v4589 = vpack.c.bf16 %v4557, %v4554
        %v4590 = vpack.c.bf16 %v4565, %v4562
        %v4591 = vpack.c.bf16 %v4573, %v4570
        %v4592 = vld [vmem:[%s3 + $0x8] sm:$0xf]
        %v4594 = vsel %vm928, %v4576, 0
        %v4597 = vsel %vm928, %v4577, 0
        %v4600 = vsel %vm928, %v4578, 0
        %v4603 = vsel %vm928, %v4579, 0
        %v4606 = vsel %vm928, %v4580, 0
        %v4609 = vsel %vm928, %v4581, 0
        %v4612 = vsel %vm928, %v4582, 0
        %v4615 = vsel %vm928, %v4583, 0
        %v4618 = vsel %vm928, %v4584, 0
        %v4621 = vsel %vm928, %v4585, 0
        %v4624 = vsel %vm928, %v4586, 0
        %v4627 = vsel %vm928, %v4587, 0
        %v4630 = vsel %vm928, %v4588, 0
        %v4633 = vsel %vm928, %v4589, 0
        %v4636 = vsel %vm928, %v4590, 0
        %v4639 = vsel %vm928, %v4591, 0
        %v4642 = vsel %vm941, %v4592, 0
        %4644 = vmatprep.subr.bf16.mxu0 0
        %4645 = vmatpush1.bf16.msra.mxu0 0
        %4646 = vmatprep.subr.bf16.mxu0 0
        %4647 = vmatpush1.bf16.msra.mxu0 0
        %4648 = vmatprep.subr.bf16.mxu0 0
        %4649 = vmatpush1.bf16.msra.mxu0 0
        %4650 = vmatprep.subr.bf16.mxu0 0
        %4651 = vmatpush1.bf16.msra.mxu0 0
        %4652 = vmatprep.subr.bf16.mxu0 0
        %4653 = vmatpush1.bf16.msra.mxu0 0
        %4654 = vmatprep.subr.bf16.mxu0 0
        %4655 = vmatpush1.bf16.msra.mxu0 0
        %4656 = vmatprep.subr.bf16.mxu0 0
        %4657 = vmatpush1.bf16.msra.mxu0 0
        %4658 = vmatprep.subr.bf16.mxu0 0
        %4659 = vmatpush1.bf16.msra.mxu0 %v4642
        %4660 = vmatprep.subr.bf16.mxu0 0
        %4661 = vmatpush2.bf16.msra.mxu0 0
        %4662 = vmatprep.subr.bf16.mxu0 0
        %4663 = vmatpush2.bf16.msra.mxu0 0
        %4664 = vmatprep.subr.bf16.mxu0 0
        %4665 = vmatpush2.bf16.msra.mxu0 0
        %4666 = vmatprep.subr.bf16.mxu0 0
        %4667 = vmatpush2.bf16.msra.mxu0 0
        %4668 = vmatprep.subr.bf16.mxu0 0
        %4669 = vmatpush2.bf16.msra.mxu0 0
        %4670 = vmatprep.subr.bf16.mxu0 0
        %4671 = vmatpush2.bf16.msra.mxu0 0
        %4672 = vmatprep.subr.bf16.mxu0 0
        %4673 = vmatpush2.bf16.msra.mxu0 0
        %4674 = vmatprep.subr.bf16.mxu0 0
        %4675 = vmatpush2.bf16.msra.mxu0 0
        %4676 = vmatprep.mubr.bf16.mxu0 0
        %4677 = vmatmul.mubr.bf16.gmra.mxu0 %v4594
        %v4678 = vpop.f32.mrf.mxu0
        %v4679 = vadd.f32 0.0, %v4678
        %v4680 = vpop.f32.mrf.mxu0
        %v4681 = vpop.f32.mrf.mxu0
        %v4682 = vadd.f32 0.0, %v4681
        %v4683 = vpop.f32.mrf.mxu0
        %4684 = vmatprep.mubr.bf16.mxu0 0
        %4685 = vmatmul.mubr.bf16.gmra.mxu0 %v4597
        %v4686 = vpop.f32.mrf.mxu0
        %v4687 = vadd.f32 0.0, %v4686
        %v4688 = vpop.f32.mrf.mxu0
        %v4689 = vpop.f32.mrf.mxu0
        %v4690 = vadd.f32 0.0, %v4689
        %v4691 = vpop.f32.mrf.mxu0
        %4692 = vmatprep.mubr.bf16.mxu0 0
        %4693 = vmatmul.mubr.bf16.gmra.mxu0 %v4600
        %v4694 = vpop.f32.mrf.mxu0
        %v4695 = vadd.f32 0.0, %v4694
        %v4696 = vpop.f32.mrf.mxu0
        %v4697 = vpop.f32.mrf.mxu0
        %v4698 = vadd.f32 0.0, %v4697
        %v4699 = vpop.f32.mrf.mxu0
        %4700 = vmatprep.mubr.bf16.mxu0 0
        %4701 = vmatmul.mubr.bf16.gmra.mxu0 %v4603
        %v4702 = vpop.f32.mrf.mxu0
        %v4703 = vadd.f32 0.0, %v4702
        %v4704 = vpop.f32.mrf.mxu0
        %v4705 = vpop.f32.mrf.mxu0
        %v4706 = vadd.f32 0.0, %v4705
        %v4707 = vpop.f32.mrf.mxu0
        %4708 = vmatprep.mubr.bf16.mxu0 0
        %4709 = vmatmul.mubr.bf16.gmra.mxu0 %v4606
        %v4710 = vpop.f32.mrf.mxu0
        %v4711 = vadd.f32 0.0, %v4710
        %v4712 = vpop.f32.mrf.mxu0
        %v4713 = vpop.f32.mrf.mxu0
        %v4714 = vadd.f32 0.0, %v4713
        %v4715 = vpop.f32.mrf.mxu0
        %4716 = vmatprep.mubr.bf16.mxu0 0
        %4717 = vmatmul.mubr.bf16.gmra.mxu0 %v4609
        %v4718 = vpop.f32.mrf.mxu0
        %v4719 = vadd.f32 0.0, %v4718
        %v4720 = vpop.f32.mrf.mxu0
        %v4721 = vpop.f32.mrf.mxu0
        %v4722 = vadd.f32 0.0, %v4721
        %v4723 = vpop.f32.mrf.mxu0
        %4724 = vmatprep.mubr.bf16.mxu0 0
        %4725 = vmatmul.mubr.bf16.gmra.mxu0 %v4612
        %v4726 = vpop.f32.mrf.mxu0
        %v4727 = vadd.f32 0.0, %v4726
        %v4728 = vpop.f32.mrf.mxu0
        %v4729 = vpop.f32.mrf.mxu0
        %v4730 = vadd.f32 0.0, %v4729
        %v4731 = vpop.f32.mrf.mxu0
        %4732 = vmatprep.mubr.bf16.mxu0 0
        %4733 = vmatmul.mubr.bf16.gmra.mxu0 %v4615
        %v4734 = vpop.f32.mrf.mxu0
        %v4735 = vadd.f32 0.0, %v4734
        %v4736 = vpop.f32.mrf.mxu0
        %v4737 = vpop.f32.mrf.mxu0
        %v4738 = vadd.f32 0.0, %v4737
        %v4739 = vpop.f32.mrf.mxu0
        %4740 = vmatprep.mubr.bf16.mxu0 0
        %4741 = vmatmul.mubr.bf16.gmra.mxu0 %v4618
        %v4742 = vpop.f32.mrf.mxu0
        %v4743 = vadd.f32 0.0, %v4742
        %v4744 = vpop.f32.mrf.mxu0
        %v4745 = vpop.f32.mrf.mxu0
        %v4746 = vadd.f32 0.0, %v4745
        %v4747 = vpop.f32.mrf.mxu0
        %4748 = vmatprep.mubr.bf16.mxu0 0
        %4749 = vmatmul.mubr.bf16.gmra.mxu0 %v4621
        %v4750 = vpop.f32.mrf.mxu0
        %v4751 = vadd.f32 0.0, %v4750
        %v4752 = vpop.f32.mrf.mxu0
        %v4753 = vpop.f32.mrf.mxu0
        %v4754 = vadd.f32 0.0, %v4753
        %v4755 = vpop.f32.mrf.mxu0
        %4756 = vmatprep.mubr.bf16.mxu0 0
        %4757 = vmatmul.mubr.bf16.gmra.mxu0 %v4624
        %v4758 = vpop.f32.mrf.mxu0
        %v4759 = vadd.f32 0.0, %v4758
        %v4760 = vpop.f32.mrf.mxu0
        %v4761 = vpop.f32.mrf.mxu0
        %v4762 = vadd.f32 0.0, %v4761
        %v4763 = vpop.f32.mrf.mxu0
        %4764 = vmatprep.mubr.bf16.mxu0 0
        %4765 = vmatmul.mubr.bf16.gmra.mxu0 %v4627
        %v4766 = vpop.f32.mrf.mxu0
        %v4767 = vadd.f32 0.0, %v4766
        %v4768 = vpop.f32.mrf.mxu0
        %v4769 = vpop.f32.mrf.mxu0
        %v4770 = vadd.f32 0.0, %v4769
        %v4771 = vpop.f32.mrf.mxu0
        %4772 = vmatprep.mubr.bf16.mxu0 0
        %4773 = vmatmul.mubr.bf16.gmra.mxu0 %v4630
        %v4774 = vpop.f32.mrf.mxu0
        %v4775 = vadd.f32 0.0, %v4774
        %v4776 = vpop.f32.mrf.mxu0
        %v4777 = vpop.f32.mrf.mxu0
        %v4778 = vadd.f32 0.0, %v4777
        %v4779 = vpop.f32.mrf.mxu0
        %4780 = vmatprep.mubr.bf16.mxu0 0
        %4781 = vmatmul.mubr.bf16.gmra.mxu0 %v4633
        %v4782 = vpop.f32.mrf.mxu0
        %v4783 = vadd.f32 0.0, %v4782
        %v4784 = vpop.f32.mrf.mxu0
        %v4785 = vpop.f32.mrf.mxu0
        %v4786 = vadd.f32 0.0, %v4785
        %v4787 = vpop.f32.mrf.mxu0
        %4788 = vmatprep.mubr.bf16.mxu0 0
        %4789 = vmatmul.mubr.bf16.gmra.mxu0 %v4636
        %v4790 = vpop.f32.mrf.mxu0
        %v4791 = vadd.f32 0.0, %v4790
        %v4792 = vpop.f32.mrf.mxu0
        %v4793 = vpop.f32.mrf.mxu0
        %v4794 = vadd.f32 0.0, %v4793
        %v4795 = vpop.f32.mrf.mxu0
        %4796 = vmatprep.mubr.bf16.mxu0 0
        %4797 = vmatmul.mubr.bf16.gmra.mxu0 %v4639
        %v4798 = vpop.f32.mrf.mxu0
        %v4799 = vadd.f32 0.0, %v4798
        %v4800 = vpop.f32.mrf.mxu0
        %v4801 = vpop.f32.mrf.mxu0
        %v4802 = vadd.f32 0.0, %v4801
        %v4803 = vpop.f32.mrf.mxu0
        %4804 = vdwg.mxu0
        %v4805 = vadd.f32 %v3374, %v4679
        %v4806 = vadd.f32 %v3377, %v4682
        %v4807 = vadd.f32 %v3382, %v4687
        %v4808 = vadd.f32 %v3385, %v4690
        %v4809 = vadd.f32 %v3390, %v4695
        %v4810 = vadd.f32 %v3393, %v4698
        %v4811 = vadd.f32 %v3398, %v4703
        %v4812 = vadd.f32 %v3401, %v4706
        %v4813 = vadd.f32 %v3406, %v4711
        %v4814 = vadd.f32 %v3409, %v4714
        %v4815 = vadd.f32 %v3414, %v4719
        %v4816 = vadd.f32 %v3417, %v4722
        %v4817 = vadd.f32 %v3422, %v4727
        %v4818 = vadd.f32 %v3425, %v4730
        %v4819 = vadd.f32 %v3430, %v4735
        %v4820 = vadd.f32 %v3433, %v4738
        %v4821 = vadd.f32 %v3438, %v4743
        %v4822 = vadd.f32 %v3441, %v4746
        %v4823 = vadd.f32 %v3446, %v4751
        %v4824 = vadd.f32 %v3449, %v4754
        %v4825 = vadd.f32 %v3454, %v4759
        %v4826 = vadd.f32 %v3457, %v4762
        %v4827 = vadd.f32 %v3462, %v4767
        %v4828 = vadd.f32 %v3465, %v4770
        %v4829 = vadd.f32 %v3470, %v4775
        %v4830 = vadd.f32 %v3473, %v4778
        %v4831 = vadd.f32 %v3478, %v4783
        %v4832 = vadd.f32 %v3481, %v4786
        %v4833 = vadd.f32 %v3486, %v4791
        %v4834 = vadd.f32 %v3489, %v4794
        %v4835 = vadd.f32 %v3494, %v4799
        %v4836 = vadd.f32 %v3497, %v4802
        %4837 = vrot.lane.b32.xlu0 %v597, 104
        %v4838 = vpop.permute.xlu0 %4837
        %4839 = vrot.lane.b32.xlu0 %v598, 104
        %v4840 = vpop.permute.xlu0 %4839
        %4841 = vrot.lane.b32.xlu0 %v599, 104
        %v4842 = vpop.permute.xlu0 %4841
        %4843 = vrot.lane.b32.xlu0 %v600, 104
        %v4844 = vpop.permute.xlu0 %4843
        %v4846 = vrot.slane %v886, 4
        %v4848 = vsel %vm928, %v4838, 0
        %v4851 = vsel %vm928, %v4840, 0
        %v4854 = vsel %vm928, %v4842, 0
        %v4857 = vsel %vm928, %v4844, 0
        %v4860 = vsel %vm941, %v4846, 0
        %4862 = vmatprep.subr.bf16.mxu0 0
        %4863 = vmatpush1.bf16.msra.mxu0 0
        %4864 = vmatprep.subr.bf16.mxu0 0
        %4865 = vmatpush1.bf16.msra.mxu0 0
        %4866 = vmatprep.subr.bf16.mxu0 0
        %4867 = vmatpush1.bf16.msra.mxu0 0
        %4868 = vmatprep.subr.bf16.mxu0 0
        %4869 = vmatpush1.bf16.msra.mxu0 0
        %4870 = vmatprep.subr.bf16.mxu0 0
        %4871 = vmatpush1.bf16.msra.mxu0 0
        %4872 = vmatprep.subr.bf16.mxu0 0
        %4873 = vmatpush1.bf16.msra.mxu0 0
        %4874 = vmatprep.subr.bf16.mxu0 0
        %4875 = vmatpush1.bf16.msra.mxu0 0
        %4876 = vmatprep.subr.bf16.mxu0 0
        %4877 = vmatpush1.bf16.msra.mxu0 %v4860
        %4878 = vmatprep.subr.bf16.mxu0 0
        %4879 = vmatpush2.bf16.msra.mxu0 0
        %4880 = vmatprep.subr.bf16.mxu0 0
        %4881 = vmatpush2.bf16.msra.mxu0 0
        %4882 = vmatprep.subr.bf16.mxu0 0
        %4883 = vmatpush2.bf16.msra.mxu0 0
        %4884 = vmatprep.subr.bf16.mxu0 0
        %4885 = vmatpush2.bf16.msra.mxu0 0
        %4886 = vmatprep.subr.bf16.mxu0 0
        %4887 = vmatpush2.bf16.msra.mxu0 0
        %4888 = vmatprep.subr.bf16.mxu0 0
        %4889 = vmatpush2.bf16.msra.mxu0 0
        %4890 = vmatprep.subr.bf16.mxu0 0
        %4891 = vmatpush2.bf16.msra.mxu0 0
        %4892 = vmatprep.subr.bf16.mxu0 0
        %4893 = vmatpush2.bf16.msra.mxu0 0
        %4894 = vmatprep.mubr.bf16.mxu0 0
        %4895 = vmatmul.mubr.bf16.gmra.mxu0 %v4848
        %v4896 = vpop.f32.mrf.mxu0
        %v4897 = vadd.f32 %v920, %v4896
        %v4898 = vpop.f32.mrf.mxu0
        %v4899 = vpop.f32.mrf.mxu0
        %v4900 = vadd.f32 %v921, %v4899
        %v4901 = vpop.f32.mrf.mxu0
        %4902 = vmatprep.mubr.bf16.mxu0 0
        %4903 = vmatmul.mubr.bf16.gmra.mxu0 %v4851
        %v4904 = vpop.f32.mrf.mxu0
        %v4905 = vadd.f32 %v922, %v4904
        %v4906 = vpop.f32.mrf.mxu0
        %v4907 = vpop.f32.mrf.mxu0
        %v4908 = vadd.f32 %v923, %v4907
        %v4909 = vpop.f32.mrf.mxu0
        %4910 = vmatprep.mubr.bf16.mxu0 0
        %4911 = vmatmul.mubr.bf16.gmra.mxu0 %v4854
        %v4912 = vpop.f32.mrf.mxu0
        %v4913 = vadd.f32 %v924, %v4912
        %v4914 = vpop.f32.mrf.mxu0
        %v4915 = vpop.f32.mrf.mxu0
        %v4916 = vadd.f32 %v925, %v4915
        %v4917 = vpop.f32.mrf.mxu0
        %4918 = vmatprep.mubr.bf16.mxu0 0
        %4919 = vmatmul.mubr.bf16.gmra.mxu0 %v4857
        %v4920 = vpop.f32.mrf.mxu0
        %v4921 = vadd.f32 %v926, %v4920
        %v4922 = vpop.f32.mrf.mxu0
        %v4923 = vpop.f32.mrf.mxu0
        %v4924 = vadd.f32 %v927, %v4923
        %v4925 = vpop.f32.mrf.mxu0
        %4926 = vdwg.mxu0
        %4927 = vrot.lane.b32.xlu0 %v601, 104
        %v4928 = vpop.permute.xlu0 %4927
        %4929 = vrot.lane.b32.xlu0 %v602, 104
        %v4930 = vpop.permute.xlu0 %4929
        %4931 = vrot.lane.b32.xlu0 %v603, 104
        %v4932 = vpop.permute.xlu0 %4931
        %4933 = vrot.lane.b32.xlu0 %v604, 104
        %v4934 = vpop.permute.xlu0 %4933
        %v4936 = vrot.slane %v890, 4
        %v4938 = vsel %vm928, %v4928, 0
        %v4941 = vsel %vm928, %v4930, 0
        %v4944 = vsel %vm928, %v4932, 0
        %v4947 = vsel %vm928, %v4934, 0
        %v4950 = vsel %vm941, %v4936, 0
        %4952 = vmatprep.subr.bf16.mxu0 0
        %4953 = vmatpush1.bf16.msra.mxu0 0
        %4954 = vmatprep.subr.bf16.mxu0 0
        %4955 = vmatpush1.bf16.msra.mxu0 0
        %4956 = vmatprep.subr.bf16.mxu0 0
        %4957 = vmatpush1.bf16.msra.mxu0 0
        %4958 = vmatprep.subr.bf16.mxu0 0
        %4959 = vmatpush1.bf16.msra.mxu0 0
        %4960 = vmatprep.subr.bf16.mxu0 0
        %4961 = vmatpush1.bf16.msra.mxu0 0
        %4962 = vmatprep.subr.bf16.mxu0 0
        %4963 = vmatpush1.bf16.msra.mxu0 0
        %4964 = vmatprep.subr.bf16.mxu0 0
        %4965 = vmatpush1.bf16.msra.mxu0 0
        %4966 = vmatprep.subr.bf16.mxu0 0
        %4967 = vmatpush1.bf16.msra.mxu0 %v4950
        %4968 = vmatprep.subr.bf16.mxu0 0
        %4969 = vmatpush2.bf16.msra.mxu0 0
        %4970 = vmatprep.subr.bf16.mxu0 0
        %4971 = vmatpush2.bf16.msra.mxu0 0
        %4972 = vmatprep.subr.bf16.mxu0 0
        %4973 = vmatpush2.bf16.msra.mxu0 0
        %4974 = vmatprep.subr.bf16.mxu0 0
        %4975 = vmatpush2.bf16.msra.mxu0 0
        %4976 = vmatprep.subr.bf16.mxu0 0
        %4977 = vmatpush2.bf16.msra.mxu0 0
        %4978 = vmatprep.subr.bf16.mxu0 0
        %4979 = vmatpush2.bf16.msra.mxu0 0
        %4980 = vmatprep.subr.bf16.mxu0 0
        %4981 = vmatpush2.bf16.msra.mxu0 0
        %4982 = vmatprep.subr.bf16.mxu0 0
        %4983 = vmatpush2.bf16.msra.mxu0 0
        %4984 = vmatprep.mubr.bf16.mxu0 0
        %4985 = vmatmul.mubr.bf16.gmra.mxu0 %v4938
        %v4986 = vpop.f32.mrf.mxu0
        %v4987 = vadd.f32 %v920, %v4986
        %v4988 = vpop.f32.mrf.mxu0
        %v4989 = vpop.f32.mrf.mxu0
        %v4990 = vadd.f32 %v921, %v4989
        %v4991 = vpop.f32.mrf.mxu0
        %4992 = vmatprep.mubr.bf16.mxu0 0
        %4993 = vmatmul.mubr.bf16.gmra.mxu0 %v4941
        %v4994 = vpop.f32.mrf.mxu0
        %v4995 = vadd.f32 %v922, %v4994
        %v4996 = vpop.f32.mrf.mxu0
        %v4997 = vpop.f32.mrf.mxu0
        %v4998 = vadd.f32 %v923, %v4997
        %v4999 = vpop.f32.mrf.mxu0
        %5000 = vmatprep.mubr.bf16.mxu0 0
        %5001 = vmatmul.mubr.bf16.gmra.mxu0 %v4944
        %v5002 = vpop.f32.mrf.mxu0
        %v5003 = vadd.f32 %v924, %v5002
        %v5004 = vpop.f32.mrf.mxu0
        %v5005 = vpop.f32.mrf.mxu0
        %v5006 = vadd.f32 %v925, %v5005
        %v5007 = vpop.f32.mrf.mxu0
        %5008 = vmatprep.mubr.bf16.mxu0 0
        %5009 = vmatmul.mubr.bf16.gmra.mxu0 %v4947
        %v5010 = vpop.f32.mrf.mxu0
        %v5011 = vadd.f32 %v926, %v5010
        %v5012 = vpop.f32.mrf.mxu0
        %v5013 = vpop.f32.mrf.mxu0
        %v5014 = vadd.f32 %v927, %v5013
        %v5015 = vpop.f32.mrf.mxu0
        %5016 = vdwg.mxu0
        %5017 = vrot.lane.b32.xlu0 %v605, 104
        %v5018 = vpop.permute.xlu0 %5017
        %5019 = vrot.lane.b32.xlu0 %v606, 104
        %v5020 = vpop.permute.xlu0 %5019
        %5021 = vrot.lane.b32.xlu0 %v607, 104
        %v5022 = vpop.permute.xlu0 %5021
        %5023 = vrot.lane.b32.xlu0 %v608, 104
        %v5024 = vpop.permute.xlu0 %5023
        %v5026 = vrot.slane %v894, 4
        %v5028 = vsel %vm928, %v5018, 0
        %v5031 = vsel %vm928, %v5020, 0
        %v5034 = vsel %vm928, %v5022, 0
        %v5037 = vsel %vm928, %v5024, 0
        %v5040 = vsel %vm941, %v5026, 0
        %5042 = vmatprep.subr.bf16.mxu0 0
        %5043 = vmatpush1.bf16.msra.mxu0 0
        %5044 = vmatprep.subr.bf16.mxu0 0
        %5045 = vmatpush1.bf16.msra.mxu0 0
        %5046 = vmatprep.subr.bf16.mxu0 0
        %5047 = vmatpush1.bf16.msra.mxu0 0
        %5048 = vmatprep.subr.bf16.mxu0 0
        %5049 = vmatpush1.bf16.msra.mxu0 0
        %5050 = vmatprep.subr.bf16.mxu0 0
        %5051 = vmatpush1.bf16.msra.mxu0 0
        %5052 = vmatprep.subr.bf16.mxu0 0
        %5053 = vmatpush1.bf16.msra.mxu0 0
        %5054 = vmatprep.subr.bf16.mxu0 0
        %5055 = vmatpush1.bf16.msra.mxu0 0
        %5056 = vmatprep.subr.bf16.mxu0 0
        %5057 = vmatpush1.bf16.msra.mxu0 %v5040
        %5058 = vmatprep.subr.bf16.mxu0 0
        %5059 = vmatpush2.bf16.msra.mxu0 0
        %5060 = vmatprep.subr.bf16.mxu0 0
        %5061 = vmatpush2.bf16.msra.mxu0 0
        %5062 = vmatprep.subr.bf16.mxu0 0
        %5063 = vmatpush2.bf16.msra.mxu0 0
        %5064 = vmatprep.subr.bf16.mxu0 0
        %5065 = vmatpush2.bf16.msra.mxu0 0
        %5066 = vmatprep.subr.bf16.mxu0 0
        %5067 = vmatpush2.bf16.msra.mxu0 0
        %5068 = vmatprep.subr.bf16.mxu0 0
        %5069 = vmatpush2.bf16.msra.mxu0 0
        %5070 = vmatprep.subr.bf16.mxu0 0
        %5071 = vmatpush2.bf16.msra.mxu0 0
        %5072 = vmatprep.subr.bf16.mxu0 0
        %5073 = vmatpush2.bf16.msra.mxu0 0
        %5074 = vmatprep.mubr.bf16.mxu0 0
        %5075 = vmatmul.mubr.bf16.gmra.mxu0 %v5028
        %v5076 = vpop.f32.mrf.mxu0
        %v5077 = vadd.f32 %v920, %v5076
        %v5078 = vpop.f32.mrf.mxu0
        %v5079 = vpop.f32.mrf.mxu0
        %v5080 = vadd.f32 %v921, %v5079
        %v5081 = vpop.f32.mrf.mxu0
        %5082 = vmatprep.mubr.bf16.mxu0 0
        %5083 = vmatmul.mubr.bf16.gmra.mxu0 %v5031
        %v5084 = vpop.f32.mrf.mxu0
        %v5085 = vadd.f32 %v922, %v5084
        %v5086 = vpop.f32.mrf.mxu0
        %v5087 = vpop.f32.mrf.mxu0
        %v5088 = vadd.f32 %v923, %v5087
        %v5089 = vpop.f32.mrf.mxu0
        %5090 = vmatprep.mubr.bf16.mxu0 0
        %5091 = vmatmul.mubr.bf16.gmra.mxu0 %v5034
        %v5092 = vpop.f32.mrf.mxu0
        %v5093 = vadd.f32 %v924, %v5092
        %v5094 = vpop.f32.mrf.mxu0
        %v5095 = vpop.f32.mrf.mxu0
        %v5096 = vadd.f32 %v925, %v5095
        %v5097 = vpop.f32.mrf.mxu0
        %5098 = vmatprep.mubr.bf16.mxu0 0
        %5099 = vmatmul.mubr.bf16.gmra.mxu0 %v5037
        %v5100 = vpop.f32.mrf.mxu0
        %v5101 = vadd.f32 %v926, %v5100
        %v5102 = vpop.f32.mrf.mxu0
        %v5103 = vpop.f32.mrf.mxu0
        %v5104 = vadd.f32 %v927, %v5103
        %v5105 = vpop.f32.mrf.mxu0
        %5106 = vdwg.mxu0
        %5107 = vrot.lane.b32.xlu0 %v609, 104
        %v5108 = vpop.permute.xlu0 %5107
        %5109 = vrot.lane.b32.xlu0 %v610, 104
        %v5110 = vpop.permute.xlu0 %5109
        %5111 = vrot.lane.b32.xlu0 %v611, 104
        %v5112 = vpop.permute.xlu0 %5111
        %5113 = vrot.lane.b32.xlu0 %v612, 104
        %v5114 = vpop.permute.xlu0 %5113
        %v5116 = vrot.slane %v898, 4
        %v5118 = vsel %vm928, %v5108, 0
        %v5121 = vsel %vm928, %v5110, 0
        %v5124 = vsel %vm928, %v5112, 0
        %v5127 = vsel %vm928, %v5114, 0
        %v5130 = vsel %vm941, %v5116, 0
        %5132 = vmatprep.subr.bf16.mxu0 0
        %5133 = vmatpush1.bf16.msra.mxu0 0
        %5134 = vmatprep.subr.bf16.mxu0 0
        %5135 = vmatpush1.bf16.msra.mxu0 0
        %5136 = vmatprep.subr.bf16.mxu0 0
        %5137 = vmatpush1.bf16.msra.mxu0 0
        %5138 = vmatprep.subr.bf16.mxu0 0
        %5139 = vmatpush1.bf16.msra.mxu0 0
        %5140 = vmatprep.subr.bf16.mxu0 0
        %5141 = vmatpush1.bf16.msra.mxu0 0
        %5142 = vmatprep.subr.bf16.mxu0 0
        %5143 = vmatpush1.bf16.msra.mxu0 0
        %5144 = vmatprep.subr.bf16.mxu0 0
        %5145 = vmatpush1.bf16.msra.mxu0 0
        %5146 = vmatprep.subr.bf16.mxu0 0
        %5147 = vmatpush1.bf16.msra.mxu0 %v5130
        %5148 = vmatprep.subr.bf16.mxu0 0
        %5149 = vmatpush2.bf16.msra.mxu0 0
        %5150 = vmatprep.subr.bf16.mxu0 0
        %5151 = vmatpush2.bf16.msra.mxu0 0
        %5152 = vmatprep.subr.bf16.mxu0 0
        %5153 = vmatpush2.bf16.msra.mxu0 0
        %5154 = vmatprep.subr.bf16.mxu0 0
        %5155 = vmatpush2.bf16.msra.mxu0 0
        %5156 = vmatprep.subr.bf16.mxu0 0
        %5157 = vmatpush2.bf16.msra.mxu0 0
        %5158 = vmatprep.subr.bf16.mxu0 0
        %5159 = vmatpush2.bf16.msra.mxu0 0
        %5160 = vmatprep.subr.bf16.mxu0 0
        %5161 = vmatpush2.bf16.msra.mxu0 0
        %5162 = vmatprep.subr.bf16.mxu0 0
        %5163 = vmatpush2.bf16.msra.mxu0 0
        %5164 = vmatprep.mubr.bf16.mxu0 0
        %5165 = vmatmul.mubr.bf16.gmra.mxu0 %v5118
        %v5166 = vpop.f32.mrf.mxu0
        %v5167 = vadd.f32 %v920, %v5166
        %v5168 = vpop.f32.mrf.mxu0
        %v5169 = vpop.f32.mrf.mxu0
        %v5170 = vadd.f32 %v921, %v5169
        %v5171 = vpop.f32.mrf.mxu0
        %5172 = vmatprep.mubr.bf16.mxu0 0
        %5173 = vmatmul.mubr.bf16.gmra.mxu0 %v5121
        %v5174 = vpop.f32.mrf.mxu0
        %v5175 = vadd.f32 %v922, %v5174
        %v5176 = vpop.f32.mrf.mxu0
        %v5177 = vpop.f32.mrf.mxu0
        %v5178 = vadd.f32 %v923, %v5177
        %v5179 = vpop.f32.mrf.mxu0
        %5180 = vmatprep.mubr.bf16.mxu0 0
        %5181 = vmatmul.mubr.bf16.gmra.mxu0 %v5124
        %v5182 = vpop.f32.mrf.mxu0
        %v5183 = vadd.f32 %v924, %v5182
        %v5184 = vpop.f32.mrf.mxu0
        %v5185 = vpop.f32.mrf.mxu0
        %v5186 = vadd.f32 %v925, %v5185
        %v5187 = vpop.f32.mrf.mxu0
        %5188 = vmatprep.mubr.bf16.mxu0 0
        %5189 = vmatmul.mubr.bf16.gmra.mxu0 %v5127
        %v5190 = vpop.f32.mrf.mxu0
        %v5191 = vadd.f32 %v926, %v5190
        %v5192 = vpop.f32.mrf.mxu0
        %v5193 = vpop.f32.mrf.mxu0
        %v5194 = vadd.f32 %v927, %v5193
        %v5195 = vpop.f32.mrf.mxu0
        %5196 = vdwg.mxu0
        %v5197 = vsel %vm355, %v4897, -inf
        %5198 = vmax.xlane.f32.xlu0 %v5197
        %v5199 = vpop.xlane.xlu0 %5198
        %v5200 = vsel %vm355, %v4900, -inf
        %5201 = vmax.xlane.f32.xlu0 %v5200
        %v5202 = vpop.xlane.xlu0 %5201
        %v5203 = vsel %vm355, %v4905, -inf
        %5204 = vmax.xlane.f32.xlu0 %v5203
        %v5205 = vpop.xlane.xlu0 %5204
        %v5206 = vsel %vm355, %v4908, -inf
        %5207 = vmax.xlane.f32.xlu0 %v5206
        %v5208 = vpop.xlane.xlu0 %5207
        %v5209 = vsel %vm355, %v4913, -inf
        %5210 = vmax.xlane.f32.xlu0 %v5209
        %v5211 = vpop.xlane.xlu0 %5210
        %v5212 = vsel %vm355, %v4916, -inf
        %5213 = vmax.xlane.f32.xlu0 %v5212
        %v5214 = vpop.xlane.xlu0 %5213
        %v5215 = vsel %vm355, %v4921, -inf
        %5216 = vmax.xlane.f32.xlu0 %v5215
        %v5217 = vpop.xlane.xlu0 %5216
        %v5218 = vsel %vm355, %v4924, -inf
        %5219 = vmax.xlane.f32.xlu0 %v5218
        %v5220 = vpop.xlane.xlu0 %5219
        %v5221 = vsel %vm355, %v4987, -inf
        %5222 = vmax.xlane.f32.xlu0 %v5221
        %v5223 = vpop.xlane.xlu0 %5222
        %v5224 = vsel %vm355, %v4990, -inf
        %5225 = vmax.xlane.f32.xlu0 %v5224
        %v5226 = vpop.xlane.xlu0 %5225
        %v5227 = vsel %vm355, %v4995, -inf
        %5228 = vmax.xlane.f32.xlu0 %v5227
        %v5229 = vpop.xlane.xlu0 %5228
        %v5230 = vsel %vm355, %v4998, -inf
        %5231 = vmax.xlane.f32.xlu0 %v5230
        %v5232 = vpop.xlane.xlu0 %5231
        %v5233 = vsel %vm355, %v5003, -inf
        %5234 = vmax.xlane.f32.xlu0 %v5233
        %v5235 = vpop.xlane.xlu0 %5234
        %v5236 = vsel %vm355, %v5006, -inf
        %5237 = vmax.xlane.f32.xlu0 %v5236
        %v5238 = vpop.xlane.xlu0 %5237
        %v5239 = vsel %vm355, %v5011, -inf
        %5240 = vmax.xlane.f32.xlu0 %v5239
        %v5241 = vpop.xlane.xlu0 %5240
        %v5242 = vsel %vm355, %v5014, -inf
        %5243 = vmax.xlane.f32.xlu0 %v5242
        %v5244 = vpop.xlane.xlu0 %5243
        %v5245 = vsel %vm355, %v5077, -inf
        %5246 = vmax.xlane.f32.xlu0 %v5245
        %v5247 = vpop.xlane.xlu0 %5246
        %v5248 = vsel %vm355, %v5080, -inf
        %5249 = vmax.xlane.f32.xlu0 %v5248
        %v5250 = vpop.xlane.xlu0 %5249
        %v5251 = vsel %vm355, %v5085, -inf
        %5252 = vmax.xlane.f32.xlu0 %v5251
        %v5253 = vpop.xlane.xlu0 %5252
        %v5254 = vsel %vm355, %v5088, -inf
        %5255 = vmax.xlane.f32.xlu0 %v5254
        %v5256 = vpop.xlane.xlu0 %5255
        %v5257 = vsel %vm355, %v5093, -inf
        %5258 = vmax.xlane.f32.xlu0 %v5257
        %v5259 = vpop.xlane.xlu0 %5258
        %v5260 = vsel %vm355, %v5096, -inf
        %5261 = vmax.xlane.f32.xlu0 %v5260
        %v5262 = vpop.xlane.xlu0 %5261
        %v5263 = vsel %vm355, %v5101, -inf
        %5264 = vmax.xlane.f32.xlu0 %v5263
        %v5265 = vpop.xlane.xlu0 %5264
        %v5266 = vsel %vm355, %v5104, -inf
        %5267 = vmax.xlane.f32.xlu0 %v5266
        %v5268 = vpop.xlane.xlu0 %5267
        %v5269 = vsel %vm355, %v5167, -inf
        %5270 = vmax.xlane.f32.xlu0 %v5269
        %v5271 = vpop.xlane.xlu0 %5270
        %v5272 = vsel %vm355, %v5170, -inf
        %5273 = vmax.xlane.f32.xlu0 %v5272
        %v5274 = vpop.xlane.xlu0 %5273
        %v5275 = vsel %vm355, %v5175, -inf
        %5276 = vmax.xlane.f32.xlu0 %v5275
        %v5277 = vpop.xlane.xlu0 %5276
        %v5278 = vsel %vm355, %v5178, -inf
        %5279 = vmax.xlane.f32.xlu0 %v5278
        %v5280 = vpop.xlane.xlu0 %5279
        %v5281 = vsel %vm355, %v5183, -inf
        %5282 = vmax.xlane.f32.xlu0 %v5281
        %v5283 = vpop.xlane.xlu0 %5282
        %v5284 = vsel %vm355, %v5186, -inf
        %5285 = vmax.xlane.f32.xlu0 %v5284
        %v5286 = vpop.xlane.xlu0 %5285
        %v5287 = vsel %vm355, %v5191, -inf
        %5288 = vmax.xlane.f32.xlu0 %v5287
        %v5289 = vpop.xlane.xlu0 %5288
        %v5290 = vsel %vm355, %v5194, -inf
        %5291 = vmax.xlane.f32.xlu0 %v5290
        %v5292 = vpop.xlane.xlu0 %5291
        %v5293 = vsub.f32 %v4897, %v5199
        %v5294 = vsub.f32 %v4900, %v5202
        %v5295 = vsub.f32 %v4905, %v5205
        %v5296 = vsub.f32 %v4908, %v5208
        %v5297 = vsub.f32 %v4913, %v5211
        %v5298 = vsub.f32 %v4916, %v5214
        %v5299 = vsub.f32 %v4921, %v5217
        %v5300 = vsub.f32 %v4924, %v5220
        %v5301 = vsub.f32 %v4987, %v5223
        %v5302 = vsub.f32 %v4990, %v5226
        %v5303 = vsub.f32 %v4995, %v5229
        %v5304 = vsub.f32 %v4998, %v5232
        %v5305 = vsub.f32 %v5003, %v5235
        %v5306 = vsub.f32 %v5006, %v5238
        %v5307 = vsub.f32 %v5011, %v5241
        %v5308 = vsub.f32 %v5014, %v5244
        %v5309 = vsub.f32 %v5077, %v5247
        %v5310 = vsub.f32 %v5080, %v5250
        %v5311 = vsub.f32 %v5085, %v5253
        %v5312 = vsub.f32 %v5088, %v5256
        %v5313 = vsub.f32 %v5093, %v5259
        %v5314 = vsub.f32 %v5096, %v5262
        %v5315 = vsub.f32 %v5101, %v5265
        %v5316 = vsub.f32 %v5104, %v5268
        %v5317 = vsub.f32 %v5167, %v5271
        %v5318 = vsub.f32 %v5170, %v5274
        %v5319 = vsub.f32 %v5175, %v5277
        %v5320 = vsub.f32 %v5178, %v5280
        %v5321 = vsub.f32 %v5183, %v5283
        %v5322 = vsub.f32 %v5186, %v5286
        %v5323 = vsub.f32 %v5191, %v5289
        %v5324 = vsub.f32 %v5194, %v5292
        %v5325 = vmul.f32 %v5293, 1.442695
        %v5326 = vpow.pop %v5325
        %v5327 = vmul.f32 %v5294, 1.442695
        %v5328 = vpow.pop %v5327
        %v5329 = vmul.f32 %v5295, 1.442695
        %v5330 = vpow.pop %v5329
        %v5331 = vmul.f32 %v5296, 1.442695
        %v5332 = vpow.pop %v5331
        %v5333 = vmul.f32 %v5297, 1.442695
        %v5334 = vpow.pop %v5333
        %v5335 = vmul.f32 %v5298, 1.442695
        %v5336 = vpow.pop %v5335
        %v5337 = vmul.f32 %v5299, 1.442695
        %v5338 = vpow.pop %v5337
        %v5339 = vmul.f32 %v5300, 1.442695
        %v5340 = vpow.pop %v5339
        %v5341 = vmul.f32 %v5301, 1.442695
        %v5342 = vpow.pop %v5341
        %v5343 = vmul.f32 %v5302, 1.442695
        %v5344 = vpow.pop %v5343
        %v5345 = vmul.f32 %v5303, 1.442695
        %v5346 = vpow.pop %v5345
        %v5347 = vmul.f32 %v5304, 1.442695
        %v5348 = vpow.pop %v5347
        %v5349 = vmul.f32 %v5305, 1.442695
        %v5350 = vpow.pop %v5349
        %v5351 = vmul.f32 %v5306, 1.442695
        %v5352 = vpow.pop %v5351
        %v5353 = vmul.f32 %v5307, 1.442695
        %v5354 = vpow.pop %v5353
        %v5355 = vmul.f32 %v5308, 1.442695
        %v5356 = vpow.pop %v5355
        %v5357 = vmul.f32 %v5309, 1.442695
        %v5358 = vpow.pop %v5357
        %v5359 = vmul.f32 %v5310, 1.442695
        %v5360 = vpow.pop %v5359
        %v5361 = vmul.f32 %v5311, 1.442695
        %v5362 = vpow.pop %v5361
        %v5363 = vmul.f32 %v5312, 1.442695
        %v5364 = vpow.pop %v5363
        %v5365 = vmul.f32 %v5313, 1.442695
        %v5366 = vpow.pop %v5365
        %v5367 = vmul.f32 %v5314, 1.442695
        %v5368 = vpow.pop %v5367
        %v5369 = vmul.f32 %v5315, 1.442695
        %v5370 = vpow.pop %v5369
        %v5371 = vmul.f32 %v5316, 1.442695
        %v5372 = vpow.pop %v5371
        %v5373 = vmul.f32 %v5317, 1.442695
        %v5374 = vpow.pop %v5373
        %v5375 = vmul.f32 %v5318, 1.442695
        %v5376 = vpow.pop %v5375
        %v5377 = vmul.f32 %v5319, 1.442695
        %v5378 = vpow.pop %v5377
        %v5379 = vmul.f32 %v5320, 1.442695
        %v5380 = vpow.pop %v5379
        %v5381 = vmul.f32 %v5321, 1.442695
        %v5382 = vpow.pop %v5381
        %v5383 = vmul.f32 %v5322, 1.442695
        %v5384 = vpow.pop %v5383
        %v5385 = vmul.f32 %v5323, 1.442695
        %v5386 = vpow.pop %v5385
        %v5387 = vmul.f32 %v5324, 1.442695
        %v5388 = vpow.pop %v5387
        %v5389 = vsel %vm355, %v5326, 0.0
        %5390 = vadd.xlane.f32.xlu0 %v5389
        %v5391 = vpop.xlane.xlu0 %5390
        %v5392 = vsel %vm355, %v5328, 0.0
        %5393 = vadd.xlane.f32.xlu0 %v5392
        %v5394 = vpop.xlane.xlu0 %5393
        %v5395 = vsel %vm355, %v5330, 0.0
        %5396 = vadd.xlane.f32.xlu0 %v5395
        %v5397 = vpop.xlane.xlu0 %5396
        %v5398 = vsel %vm355, %v5332, 0.0
        %5399 = vadd.xlane.f32.xlu0 %v5398
        %v5400 = vpop.xlane.xlu0 %5399
        %v5401 = vsel %vm355, %v5334, 0.0
        %5402 = vadd.xlane.f32.xlu0 %v5401
        %v5403 = vpop.xlane.xlu0 %5402
        %v5404 = vsel %vm355, %v5336, 0.0
        %5405 = vadd.xlane.f32.xlu0 %v5404
        %v5406 = vpop.xlane.xlu0 %5405
        %v5407 = vsel %vm355, %v5338, 0.0
        %5408 = vadd.xlane.f32.xlu0 %v5407
        %v5409 = vpop.xlane.xlu0 %5408
        %v5410 = vsel %vm355, %v5340, 0.0
        %5411 = vadd.xlane.f32.xlu0 %v5410
        %v5412 = vpop.xlane.xlu0 %5411
        %v5413 = vsel %vm355, %v5342, 0.0
        %5414 = vadd.xlane.f32.xlu0 %v5413
        %v5415 = vpop.xlane.xlu0 %5414
        %v5416 = vsel %vm355, %v5344, 0.0
        %5417 = vadd.xlane.f32.xlu0 %v5416
        %v5418 = vpop.xlane.xlu0 %5417
        %v5419 = vsel %vm355, %v5346, 0.0
        %5420 = vadd.xlane.f32.xlu0 %v5419
        %v5421 = vpop.xlane.xlu0 %5420
        %v5422 = vsel %vm355, %v5348, 0.0
        %5423 = vadd.xlane.f32.xlu0 %v5422
        %v5424 = vpop.xlane.xlu0 %5423
        %v5425 = vsel %vm355, %v5350, 0.0
        %5426 = vadd.xlane.f32.xlu0 %v5425
        %v5427 = vpop.xlane.xlu0 %5426
        %v5428 = vsel %vm355, %v5352, 0.0
        %5429 = vadd.xlane.f32.xlu0 %v5428
        %v5430 = vpop.xlane.xlu0 %5429
        %v5431 = vsel %vm355, %v5354, 0.0
        %5432 = vadd.xlane.f32.xlu0 %v5431
        %v5433 = vpop.xlane.xlu0 %5432
        %v5434 = vsel %vm355, %v5356, 0.0
        %5435 = vadd.xlane.f32.xlu0 %v5434
        %v5436 = vpop.xlane.xlu0 %5435
        %v5437 = vsel %vm355, %v5358, 0.0
        %5438 = vadd.xlane.f32.xlu0 %v5437
        %v5439 = vpop.xlane.xlu0 %5438
        %v5440 = vsel %vm355, %v5360, 0.0
        %5441 = vadd.xlane.f32.xlu0 %v5440
        %v5442 = vpop.xlane.xlu0 %5441
        %v5443 = vsel %vm355, %v5362, 0.0
        %5444 = vadd.xlane.f32.xlu0 %v5443
        %v5445 = vpop.xlane.xlu0 %5444
        %v5446 = vsel %vm355, %v5364, 0.0
        %5447 = vadd.xlane.f32.xlu0 %v5446
        %v5448 = vpop.xlane.xlu0 %5447
        %v5449 = vsel %vm355, %v5366, 0.0
        %5450 = vadd.xlane.f32.xlu0 %v5449
        %v5451 = vpop.xlane.xlu0 %5450
        %v5452 = vsel %vm355, %v5368, 0.0
        %5453 = vadd.xlane.f32.xlu0 %v5452
        %v5454 = vpop.xlane.xlu0 %5453
        %v5455 = vsel %vm355, %v5370, 0.0
        %5456 = vadd.xlane.f32.xlu0 %v5455
        %v5457 = vpop.xlane.xlu0 %5456
        %v5458 = vsel %vm355, %v5372, 0.0
        %5459 = vadd.xlane.f32.xlu0 %v5458
        %v5460 = vpop.xlane.xlu0 %5459
        %v5461 = vsel %vm355, %v5374, 0.0
        %5462 = vadd.xlane.f32.xlu0 %v5461
        %v5463 = vpop.xlane.xlu0 %5462
        %v5464 = vsel %vm355, %v5376, 0.0
        %5465 = vadd.xlane.f32.xlu0 %v5464
        %v5466 = vpop.xlane.xlu0 %5465
        %v5467 = vsel %vm355, %v5378, 0.0
        %5468 = vadd.xlane.f32.xlu0 %v5467
        %v5469 = vpop.xlane.xlu0 %5468
        %v5470 = vsel %vm355, %v5380, 0.0
        %5471 = vadd.xlane.f32.xlu0 %v5470
        %v5472 = vpop.xlane.xlu0 %5471
        %v5473 = vsel %vm355, %v5382, 0.0
        %5474 = vadd.xlane.f32.xlu0 %v5473
        %v5475 = vpop.xlane.xlu0 %5474
        %v5476 = vsel %vm355, %v5384, 0.0
        %5477 = vadd.xlane.f32.xlu0 %v5476
        %v5478 = vpop.xlane.xlu0 %5477
        %v5479 = vsel %vm355, %v5386, 0.0
        %5480 = vadd.xlane.f32.xlu0 %v5479
        %v5481 = vpop.xlane.xlu0 %5480
        %v5482 = vsel %vm355, %v5388, 0.0
        %5483 = vadd.xlane.f32.xlu0 %v5482
        %v5484 = vpop.xlane.xlu0 %5483
        %v5485 = vrcp.pop %v5391
        %v5486 = vrcp.pop %v5394
        %v5487 = vrcp.pop %v5397
        %v5488 = vrcp.pop %v5400
        %v5489 = vrcp.pop %v5403
        %v5490 = vrcp.pop %v5406
        %v5491 = vrcp.pop %v5409
        %v5492 = vrcp.pop %v5412
        %v5493 = vrcp.pop %v5415
        %v5494 = vrcp.pop %v5418
        %v5495 = vrcp.pop %v5421
        %v5496 = vrcp.pop %v5424
        %v5497 = vrcp.pop %v5427
        %v5498 = vrcp.pop %v5430
        %v5499 = vrcp.pop %v5433
        %v5500 = vrcp.pop %v5436
        %v5501 = vrcp.pop %v5439
        %v5502 = vrcp.pop %v5442
        %v5503 = vrcp.pop %v5445
        %v5504 = vrcp.pop %v5448
        %v5505 = vrcp.pop %v5451
        %v5506 = vrcp.pop %v5454
        %v5507 = vrcp.pop %v5457
        %v5508 = vrcp.pop %v5460
        %v5509 = vrcp.pop %v5463
        %v5510 = vrcp.pop %v5466
        %v5511 = vrcp.pop %v5469
        %v5512 = vrcp.pop %v5472
        %v5513 = vrcp.pop %v5475
        %v5514 = vrcp.pop %v5478
        %v5515 = vrcp.pop %v5481
        %v5516 = vrcp.pop %v5484
        %v5517 = vmul.f32 %v5326, %v5485
        %v5518 = vmul.f32 %v5328, %v5486
        %v5519 = vmul.f32 %v5330, %v5487
        %v5520 = vmul.f32 %v5332, %v5488
        %v5521 = vmul.f32 %v5334, %v5489
        %v5522 = vmul.f32 %v5336, %v5490
        %v5523 = vmul.f32 %v5338, %v5491
        %v5524 = vmul.f32 %v5340, %v5492
        %v5525 = vmul.f32 %v5342, %v5493
        %v5526 = vmul.f32 %v5344, %v5494
        %v5527 = vmul.f32 %v5346, %v5495
        %v5528 = vmul.f32 %v5348, %v5496
        %v5529 = vmul.f32 %v5350, %v5497
        %v5530 = vmul.f32 %v5352, %v5498
        %v5531 = vmul.f32 %v5354, %v5499
        %v5532 = vmul.f32 %v5356, %v5500
        %v5533 = vmul.f32 %v5358, %v5501
        %v5534 = vmul.f32 %v5360, %v5502
        %v5535 = vmul.f32 %v5362, %v5503
        %v5536 = vmul.f32 %v5364, %v5504
        %v5537 = vmul.f32 %v5366, %v5505
        %v5538 = vmul.f32 %v5368, %v5506
        %v5539 = vmul.f32 %v5370, %v5507
        %v5540 = vmul.f32 %v5372, %v5508
        %v5541 = vmul.f32 %v5374, %v5509
        %v5542 = vmul.f32 %v5376, %v5510
        %v5543 = vmul.f32 %v5378, %v5511
        %v5544 = vmul.f32 %v5380, %v5512
        %v5545 = vmul.f32 %v5382, %v5513
        %v5546 = vmul.f32 %v5384, %v5514
        %v5547 = vmul.f32 %v5386, %v5515
        %v5548 = vmul.f32 %v5388, %v5516
        %v5549 = vpack.c.bf16 %v5518, %v5517
        %v5550 = vpack.c.bf16 %v5520, %v5519
        %v5551 = vpack.c.bf16 %v5522, %v5521
        %v5552 = vpack.c.bf16 %v5524, %v5523
        %v5553 = vpack.c.bf16 %v5526, %v5525
        %v5554 = vpack.c.bf16 %v5528, %v5527
        %v5555 = vpack.c.bf16 %v5530, %v5529
        %v5556 = vpack.c.bf16 %v5532, %v5531
        %v5557 = vpack.c.bf16 %v5534, %v5533
        %v5558 = vpack.c.bf16 %v5536, %v5535
        %v5559 = vpack.c.bf16 %v5538, %v5537
        %v5560 = vpack.c.bf16 %v5540, %v5539
        %v5561 = vpack.c.bf16 %v5542, %v5541
        %v5562 = vpack.c.bf16 %v5544, %v5543
        %v5563 = vpack.c.bf16 %v5546, %v5545
        %v5564 = vpack.c.bf16 %v5548, %v5547
        %5565 = vrot.lane.b32.xlu0 %v613, 104
        %v5566 = vpop.permute.xlu0 %5565
        %5567 = vrot.lane.b32.xlu0 %v614, 104
        %v5568 = vpop.permute.xlu0 %5567
        %5569 = vrot.lane.b32.xlu0 %v615, 104
        %v5570 = vpop.permute.xlu0 %5569
        %5571 = vrot.lane.b32.xlu0 %v616, 104
        %v5572 = vpop.permute.xlu0 %5571
        %v5578 = vsel %vm355, %v5549, 0
        %v5581 = vsel %vm355, %v5550, 0
        %v5584 = vsel %vm355, %v5551, 0
        %v5587 = vsel %vm355, %v5552, 0
        %5589 = vmatprep.subr.bf16.mxu0 0
        %5590 = vmatpush1.bf16.msra.mxu0 0
        %5591 = vmatprep.subr.bf16.mxu0 0
        %5592 = vmatpush1.bf16.msra.mxu0 0
        %5593 = vmatprep.subr.bf16.mxu0 0
        %5594 = vmatpush1.bf16.msra.mxu0 0
        %5595 = vmatprep.subr.bf16.mxu0 0
        %5596 = vmatpush1.bf16.msra.mxu0 0
        %5597 = vmatprep.subr.bf16.mxu0 0
        %5598 = vmatpush1.bf16.msra.mxu0 %v5572
        %5599 = vmatprep.subr.bf16.mxu0 0
        %5600 = vmatpush1.bf16.msra.mxu0 %v5570
        %5601 = vmatprep.subr.bf16.mxu0 0
        %5602 = vmatpush1.bf16.msra.mxu0 %v5568
        %5603 = vmatprep.subr.bf16.mxu0 0
        %5604 = vmatpush1.bf16.msra.mxu0 %v5566
        %5605 = vmatprep.subr.bf16.mxu0 0
        %5606 = vmatpush2.bf16.msra.mxu0 0
        %5607 = vmatprep.subr.bf16.mxu0 0
        %5608 = vmatpush2.bf16.msra.mxu0 0
        %5609 = vmatprep.subr.bf16.mxu0 0
        %5610 = vmatpush2.bf16.msra.mxu0 0
        %5611 = vmatprep.subr.bf16.mxu0 0
        %5612 = vmatpush2.bf16.msra.mxu0 0
        %5613 = vmatprep.subr.bf16.mxu0 0
        %5614 = vmatpush2.bf16.msra.mxu0 0
        %5615 = vmatprep.subr.bf16.mxu0 0
        %5616 = vmatpush2.bf16.msra.mxu0 0
        %5617 = vmatprep.subr.bf16.mxu0 0
        %5618 = vmatpush2.bf16.msra.mxu0 0
        %5619 = vmatprep.subr.bf16.mxu0 0
        %5620 = vmatpush2.bf16.msra.mxu0 0
        %5621 = vmatprep.mubr.bf16.mxu0 0
        %5622 = vmatmul.mubr.bf16.gmra.mxu0 %v5578
        %v5623 = vpop.f32.mrf.mxu0
        %v5624 = vadd.f32 0.0, %v5623
        %v5625 = vpop.f32.mrf.mxu0
        %v5626 = vpop.f32.mrf.mxu0
        %v5627 = vadd.f32 0.0, %v5626
        %v5628 = vpop.f32.mrf.mxu0
        %5629 = vmatprep.mubr.bf16.mxu0 0
        %5630 = vmatmul.mubr.bf16.gmra.mxu0 %v5581
        %v5631 = vpop.f32.mrf.mxu0
        %v5632 = vadd.f32 0.0, %v5631
        %v5633 = vpop.f32.mrf.mxu0
        %v5634 = vpop.f32.mrf.mxu0
        %v5635 = vadd.f32 0.0, %v5634
        %v5636 = vpop.f32.mrf.mxu0
        %5637 = vmatprep.mubr.bf16.mxu0 0
        %5638 = vmatmul.mubr.bf16.gmra.mxu0 %v5584
        %v5639 = vpop.f32.mrf.mxu0
        %v5640 = vadd.f32 0.0, %v5639
        %v5641 = vpop.f32.mrf.mxu0
        %v5642 = vpop.f32.mrf.mxu0
        %v5643 = vadd.f32 0.0, %v5642
        %v5644 = vpop.f32.mrf.mxu0
        %5645 = vmatprep.mubr.bf16.mxu0 0
        %5646 = vmatmul.mubr.bf16.gmra.mxu0 %v5587
        %v5647 = vpop.f32.mrf.mxu0
        %v5648 = vadd.f32 0.0, %v5647
        %v5649 = vpop.f32.mrf.mxu0
        %v5650 = vpop.f32.mrf.mxu0
        %v5651 = vadd.f32 0.0, %v5650
        %v5652 = vpop.f32.mrf.mxu0
        %5653 = vdwg.mxu0
        %5654 = vrot.lane.b32.xlu0 %v617, 104
        %v5655 = vpop.permute.xlu0 %5654
        %5656 = vrot.lane.b32.xlu0 %v618, 104
        %v5657 = vpop.permute.xlu0 %5656
        %5658 = vrot.lane.b32.xlu0 %v619, 104
        %v5659 = vpop.permute.xlu0 %5658
        %5660 = vrot.lane.b32.xlu0 %v620, 104
        %v5661 = vpop.permute.xlu0 %5660
        %v5667 = vsel %vm355, %v5553, 0
        %v5670 = vsel %vm355, %v5554, 0
        %v5673 = vsel %vm355, %v5555, 0
        %v5676 = vsel %vm355, %v5556, 0
        %5678 = vmatprep.subr.bf16.mxu0 0
        %5679 = vmatpush1.bf16.msra.mxu0 0
        %5680 = vmatprep.subr.bf16.mxu0 0
        %5681 = vmatpush1.bf16.msra.mxu0 0
        %5682 = vmatprep.subr.bf16.mxu0 0
        %5683 = vmatpush1.bf16.msra.mxu0 0
        %5684 = vmatprep.subr.bf16.mxu0 0
        %5685 = vmatpush1.bf16.msra.mxu0 0
        %5686 = vmatprep.subr.bf16.mxu0 0
        %5687 = vmatpush1.bf16.msra.mxu0 %v5661
        %5688 = vmatprep.subr.bf16.mxu0 0
        %5689 = vmatpush1.bf16.msra.mxu0 %v5659
        %5690 = vmatprep.subr.bf16.mxu0 0
        %5691 = vmatpush1.bf16.msra.mxu0 %v5657
        %5692 = vmatprep.subr.bf16.mxu0 0
        %5693 = vmatpush1.bf16.msra.mxu0 %v5655
        %5694 = vmatprep.subr.bf16.mxu0 0
        %5695 = vmatpush2.bf16.msra.mxu0 0
        %5696 = vmatprep.subr.bf16.mxu0 0
        %5697 = vmatpush2.bf16.msra.mxu0 0
        %5698 = vmatprep.subr.bf16.mxu0 0
        %5699 = vmatpush2.bf16.msra.mxu0 0
        %5700 = vmatprep.subr.bf16.mxu0 0
        %5701 = vmatpush2.bf16.msra.mxu0 0
        %5702 = vmatprep.subr.bf16.mxu0 0
        %5703 = vmatpush2.bf16.msra.mxu0 0
        %5704 = vmatprep.subr.bf16.mxu0 0
        %5705 = vmatpush2.bf16.msra.mxu0 0
        %5706 = vmatprep.subr.bf16.mxu0 0
        %5707 = vmatpush2.bf16.msra.mxu0 0
        %5708 = vmatprep.subr.bf16.mxu0 0
        %5709 = vmatpush2.bf16.msra.mxu0 0
        %5710 = vmatprep.mubr.bf16.mxu0 0
        %5711 = vmatmul.mubr.bf16.gmra.mxu0 %v5667
        %v5712 = vpop.f32.mrf.mxu0
        %v5713 = vadd.f32 0.0, %v5712
        %v5714 = vpop.f32.mrf.mxu0
        %v5715 = vpop.f32.mrf.mxu0
        %v5716 = vadd.f32 0.0, %v5715
        %v5717 = vpop.f32.mrf.mxu0
        %5718 = vmatprep.mubr.bf16.mxu0 0
        %5719 = vmatmul.mubr.bf16.gmra.mxu0 %v5670
        %v5720 = vpop.f32.mrf.mxu0
        %v5721 = vadd.f32 0.0, %v5720
        %v5722 = vpop.f32.mrf.mxu0
        %v5723 = vpop.f32.mrf.mxu0
        %v5724 = vadd.f32 0.0, %v5723
        %v5725 = vpop.f32.mrf.mxu0
        %5726 = vmatprep.mubr.bf16.mxu0 0
        %5727 = vmatmul.mubr.bf16.gmra.mxu0 %v5673
        %v5728 = vpop.f32.mrf.mxu0
        %v5729 = vadd.f32 0.0, %v5728
        %v5730 = vpop.f32.mrf.mxu0
        %v5731 = vpop.f32.mrf.mxu0
        %v5732 = vadd.f32 0.0, %v5731
        %v5733 = vpop.f32.mrf.mxu0
        %5734 = vmatprep.mubr.bf16.mxu0 0
        %5735 = vmatmul.mubr.bf16.gmra.mxu0 %v5676
        %v5736 = vpop.f32.mrf.mxu0
        %v5737 = vadd.f32 0.0, %v5736
        %v5738 = vpop.f32.mrf.mxu0
        %v5739 = vpop.f32.mrf.mxu0
        %v5740 = vadd.f32 0.0, %v5739
        %v5741 = vpop.f32.mrf.mxu0
        %5742 = vdwg.mxu0
        %5743 = vrot.lane.b32.xlu0 %v621, 104
        %v5744 = vpop.permute.xlu0 %5743
        %5745 = vrot.lane.b32.xlu0 %v622, 104
        %v5746 = vpop.permute.xlu0 %5745
        %5747 = vrot.lane.b32.xlu0 %v623, 104
        %v5748 = vpop.permute.xlu0 %5747
        %5749 = vrot.lane.b32.xlu0 %v624, 104
        %v5750 = vpop.permute.xlu0 %5749
        %v5756 = vsel %vm355, %v5557, 0
        %v5759 = vsel %vm355, %v5558, 0
        %v5762 = vsel %vm355, %v5559, 0
        %v5765 = vsel %vm355, %v5560, 0
        %5767 = vmatprep.subr.bf16.mxu0 0
        %5768 = vmatpush1.bf16.msra.mxu0 0
        %5769 = vmatprep.subr.bf16.mxu0 0
        %5770 = vmatpush1.bf16.msra.mxu0 0
        %5771 = vmatprep.subr.bf16.mxu0 0
        %5772 = vmatpush1.bf16.msra.mxu0 0
        %5773 = vmatprep.subr.bf16.mxu0 0
        %5774 = vmatpush1.bf16.msra.mxu0 0
        %5775 = vmatprep.subr.bf16.mxu0 0
        %5776 = vmatpush1.bf16.msra.mxu0 %v5750
        %5777 = vmatprep.subr.bf16.mxu0 0
        %5778 = vmatpush1.bf16.msra.mxu0 %v5748
        %5779 = vmatprep.subr.bf16.mxu0 0
        %5780 = vmatpush1.bf16.msra.mxu0 %v5746
        %5781 = vmatprep.subr.bf16.mxu0 0
        %5782 = vmatpush1.bf16.msra.mxu0 %v5744
        %5783 = vmatprep.subr.bf16.mxu0 0
        %5784 = vmatpush2.bf16.msra.mxu0 0
        %5785 = vmatprep.subr.bf16.mxu0 0
        %5786 = vmatpush2.bf16.msra.mxu0 0
        %5787 = vmatprep.subr.bf16.mxu0 0
        %5788 = vmatpush2.bf16.msra.mxu0 0
        %5789 = vmatprep.subr.bf16.mxu0 0
        %5790 = vmatpush2.bf16.msra.mxu0 0
        %5791 = vmatprep.subr.bf16.mxu0 0
        %5792 = vmatpush2.bf16.msra.mxu0 0
        %5793 = vmatprep.subr.bf16.mxu0 0
        %5794 = vmatpush2.bf16.msra.mxu0 0
        %5795 = vmatprep.subr.bf16.mxu0 0
        %5796 = vmatpush2.bf16.msra.mxu0 0
        %5797 = vmatprep.subr.bf16.mxu0 0
        %5798 = vmatpush2.bf16.msra.mxu0 0
        %5799 = vmatprep.mubr.bf16.mxu0 0
        %5800 = vmatmul.mubr.bf16.gmra.mxu0 %v5756
        %v5801 = vpop.f32.mrf.mxu0
        %v5802 = vadd.f32 0.0, %v5801
        %v5803 = vpop.f32.mrf.mxu0
        %v5804 = vpop.f32.mrf.mxu0
        %v5805 = vadd.f32 0.0, %v5804
        %v5806 = vpop.f32.mrf.mxu0
        %5807 = vmatprep.mubr.bf16.mxu0 0
        %5808 = vmatmul.mubr.bf16.gmra.mxu0 %v5759
        %v5809 = vpop.f32.mrf.mxu0
        %v5810 = vadd.f32 0.0, %v5809
        %v5811 = vpop.f32.mrf.mxu0
        %v5812 = vpop.f32.mrf.mxu0
        %v5813 = vadd.f32 0.0, %v5812
        %v5814 = vpop.f32.mrf.mxu0
        %5815 = vmatprep.mubr.bf16.mxu0 0
        %5816 = vmatmul.mubr.bf16.gmra.mxu0 %v5762
        %v5817 = vpop.f32.mrf.mxu0
        %v5818 = vadd.f32 0.0, %v5817
        %v5819 = vpop.f32.mrf.mxu0
        %v5820 = vpop.f32.mrf.mxu0
        %v5821 = vadd.f32 0.0, %v5820
        %v5822 = vpop.f32.mrf.mxu0
        %5823 = vmatprep.mubr.bf16.mxu0 0
        %5824 = vmatmul.mubr.bf16.gmra.mxu0 %v5765
        %v5825 = vpop.f32.mrf.mxu0
        %v5826 = vadd.f32 0.0, %v5825
        %v5827 = vpop.f32.mrf.mxu0
        %v5828 = vpop.f32.mrf.mxu0
        %v5829 = vadd.f32 0.0, %v5828
        %v5830 = vpop.f32.mrf.mxu0
        %5831 = vdwg.mxu0
        %5832 = vrot.lane.b32.xlu0 %v625, 104
        %v5833 = vpop.permute.xlu0 %5832
        %5834 = vrot.lane.b32.xlu0 %v626, 104
        %v5835 = vpop.permute.xlu0 %5834
        %5836 = vrot.lane.b32.xlu0 %v627, 104
        %v5837 = vpop.permute.xlu0 %5836
        %5838 = vrot.lane.b32.xlu0 %v628, 104
        %v5839 = vpop.permute.xlu0 %5838
        %v5845 = vsel %vm355, %v5561, 0
        %v5848 = vsel %vm355, %v5562, 0
        %v5851 = vsel %vm355, %v5563, 0
        %v5854 = vsel %vm355, %v5564, 0
        %5856 = vmatprep.subr.bf16.mxu0 0
        %5857 = vmatpush1.bf16.msra.mxu0 0
        %5858 = vmatprep.subr.bf16.mxu0 0
        %5859 = vmatpush1.bf16.msra.mxu0 0
        %5860 = vmatprep.subr.bf16.mxu0 0
        %5861 = vmatpush1.bf16.msra.mxu0 0
        %5862 = vmatprep.subr.bf16.mxu0 0
        %5863 = vmatpush1.bf16.msra.mxu0 0
        %5864 = vmatprep.subr.bf16.mxu0 0
        %5865 = vmatpush1.bf16.msra.mxu0 %v5839
        %5866 = vmatprep.subr.bf16.mxu0 0
        %5867 = vmatpush1.bf16.msra.mxu0 %v5837
        %5868 = vmatprep.subr.bf16.mxu0 0
        %5869 = vmatpush1.bf16.msra.mxu0 %v5835
        %5870 = vmatprep.subr.bf16.mxu0 0
        %5871 = vmatpush1.bf16.msra.mxu0 %v5833
        %5872 = vmatprep.subr.bf16.mxu0 0
        %5873 = vmatpush2.bf16.msra.mxu0 0
        %5874 = vmatprep.subr.bf16.mxu0 0
        %5875 = vmatpush2.bf16.msra.mxu0 0
        %5876 = vmatprep.subr.bf16.mxu0 0
        %5877 = vmatpush2.bf16.msra.mxu0 0
        %5878 = vmatprep.subr.bf16.mxu0 0
        %5879 = vmatpush2.bf16.msra.mxu0 0
        %5880 = vmatprep.subr.bf16.mxu0 0
        %5881 = vmatpush2.bf16.msra.mxu0 0
        %5882 = vmatprep.subr.bf16.mxu0 0
        %5883 = vmatpush2.bf16.msra.mxu0 0
        %5884 = vmatprep.subr.bf16.mxu0 0
        %5885 = vmatpush2.bf16.msra.mxu0 0
        %5886 = vmatprep.subr.bf16.mxu0 0
        %5887 = vmatpush2.bf16.msra.mxu0 0
        %5888 = vmatprep.mubr.bf16.mxu0 0
        %5889 = vmatmul.mubr.bf16.gmra.mxu0 %v5845
        %v5890 = vpop.f32.mrf.mxu0
        %v5891 = vadd.f32 0.0, %v5890
        %v5892 = vpop.f32.mrf.mxu0
        %v5893 = vpop.f32.mrf.mxu0
        %v5894 = vadd.f32 0.0, %v5893
        %v5895 = vpop.f32.mrf.mxu0
        %5896 = vmatprep.mubr.bf16.mxu0 0
        %5897 = vmatmul.mubr.bf16.gmra.mxu0 %v5848
        %v5898 = vpop.f32.mrf.mxu0
        %v5899 = vadd.f32 0.0, %v5898
        %v5900 = vpop.f32.mrf.mxu0
        %v5901 = vpop.f32.mrf.mxu0
        %v5902 = vadd.f32 0.0, %v5901
        %v5903 = vpop.f32.mrf.mxu0
        %5904 = vmatprep.mubr.bf16.mxu0 0
        %5905 = vmatmul.mubr.bf16.gmra.mxu0 %v5851
        %v5906 = vpop.f32.mrf.mxu0
        %v5907 = vadd.f32 0.0, %v5906
        %v5908 = vpop.f32.mrf.mxu0
        %v5909 = vpop.f32.mrf.mxu0
        %v5910 = vadd.f32 0.0, %v5909
        %v5911 = vpop.f32.mrf.mxu0
        %5912 = vmatprep.mubr.bf16.mxu0 0
        %5913 = vmatmul.mubr.bf16.gmra.mxu0 %v5854
        %v5914 = vpop.f32.mrf.mxu0
        %v5915 = vadd.f32 0.0, %v5914
        %v5916 = vpop.f32.mrf.mxu0
        %v5917 = vpop.f32.mrf.mxu0
        %v5918 = vadd.f32 0.0, %v5917
        %v5919 = vpop.f32.mrf.mxu0
        %5920 = vdwg.mxu0
        %v5921 = vpack.c.bf16 %v5627, %v5624
        %v5922 = vpack.c.bf16 %v5635, %v5632
        %v5923 = vpack.c.bf16 %v5643, %v5640
        %v5924 = vpack.c.bf16 %v5651, %v5648
        %v5925 = vpack.c.bf16 %v5716, %v5713
        %v5926 = vpack.c.bf16 %v5724, %v5721
        %v5927 = vpack.c.bf16 %v5732, %v5729
        %v5928 = vpack.c.bf16 %v5740, %v5737
        %v5929 = vpack.c.bf16 %v5805, %v5802
        %v5930 = vpack.c.bf16 %v5813, %v5810
        %v5931 = vpack.c.bf16 %v5821, %v5818
        %v5932 = vpack.c.bf16 %v5829, %v5826
        %v5933 = vpack.c.bf16 %v5894, %v5891
        %v5934 = vpack.c.bf16 %v5902, %v5899
        %v5935 = vpack.c.bf16 %v5910, %v5907
        %v5936 = vpack.c.bf16 %v5918, %v5915
        %v5937 = vld [vmem:[%s3 + $0xc] sm:$0xf]
        %v5939 = vsel %vm928, %v5921, 0
        %v5942 = vsel %vm928, %v5922, 0
        %v5945 = vsel %vm928, %v5923, 0
        %v5948 = vsel %vm928, %v5924, 0
        %v5951 = vsel %vm928, %v5925, 0
        %v5954 = vsel %vm928, %v5926, 0
        %v5957 = vsel %vm928, %v5927, 0
        %v5960 = vsel %vm928, %v5928, 0
        %v5963 = vsel %vm928, %v5929, 0
        %v5966 = vsel %vm928, %v5930, 0
        %v5969 = vsel %vm928, %v5931, 0
        %v5972 = vsel %vm928, %v5932, 0
        %v5975 = vsel %vm928, %v5933, 0
        %v5978 = vsel %vm928, %v5934, 0
        %v5981 = vsel %vm928, %v5935, 0
        %v5984 = vsel %vm928, %v5936, 0
        %v5987 = vsel %vm941, %v5937, 0
        %5989 = vmatprep.subr.bf16.mxu0 0
        %5990 = vmatpush1.bf16.msra.mxu0 0
        %5991 = vmatprep.subr.bf16.mxu0 0
        %5992 = vmatpush1.bf16.msra.mxu0 0
        %5993 = vmatprep.subr.bf16.mxu0 0
        %5994 = vmatpush1.bf16.msra.mxu0 0
        %5995 = vmatprep.subr.bf16.mxu0 0
        %5996 = vmatpush1.bf16.msra.mxu0 0
        %5997 = vmatprep.subr.bf16.mxu0 0
        %5998 = vmatpush1.bf16.msra.mxu0 0
        %5999 = vmatprep.subr.bf16.mxu0 0
        %6000 = vmatpush1.bf16.msra.mxu0 0
        %6001 = vmatprep.subr.bf16.mxu0 0
        %6002 = vmatpush1.bf16.msra.mxu0 0
        %6003 = vmatprep.subr.bf16.mxu0 0
        %6004 = vmatpush1.bf16.msra.mxu0 %v5987
        %6005 = vmatprep.subr.bf16.mxu0 0
        %6006 = vmatpush2.bf16.msra.mxu0 0
        %6007 = vmatprep.subr.bf16.mxu0 0
        %6008 = vmatpush2.bf16.msra.mxu0 0
        %6009 = vmatprep.subr.bf16.mxu0 0
        %6010 = vmatpush2.bf16.msra.mxu0 0
        %6011 = vmatprep.subr.bf16.mxu0 0
        %6012 = vmatpush2.bf16.msra.mxu0 0
        %6013 = vmatprep.subr.bf16.mxu0 0
        %6014 = vmatpush2.bf16.msra.mxu0 0
        %6015 = vmatprep.subr.bf16.mxu0 0
        %6016 = vmatpush2.bf16.msra.mxu0 0
        %6017 = vmatprep.subr.bf16.mxu0 0
        %6018 = vmatpush2.bf16.msra.mxu0 0
        %6019 = vmatprep.subr.bf16.mxu0 0
        %6020 = vmatpush2.bf16.msra.mxu0 0
        %6021 = vmatprep.mubr.bf16.mxu0 0
        %6022 = vmatmul.mubr.bf16.gmra.mxu0 %v5939
        %v6023 = vpop.f32.mrf.mxu0
        %v6024 = vadd.f32 0.0, %v6023
        %v6025 = vpop.f32.mrf.mxu0
        %v6026 = vpop.f32.mrf.mxu0
        %v6027 = vadd.f32 0.0, %v6026
        %v6028 = vpop.f32.mrf.mxu0
        %6029 = vmatprep.mubr.bf16.mxu0 0
        %6030 = vmatmul.mubr.bf16.gmra.mxu0 %v5942
        %v6031 = vpop.f32.mrf.mxu0
        %v6032 = vadd.f32 0.0, %v6031
        %v6033 = vpop.f32.mrf.mxu0
        %v6034 = vpop.f32.mrf.mxu0
        %v6035 = vadd.f32 0.0, %v6034
        %v6036 = vpop.f32.mrf.mxu0
        %6037 = vmatprep.mubr.bf16.mxu0 0
        %6038 = vmatmul.mubr.bf16.gmra.mxu0 %v5945
        %v6039 = vpop.f32.mrf.mxu0
        %v6040 = vadd.f32 0.0, %v6039
        %v6041 = vpop.f32.mrf.mxu0
        %v6042 = vpop.f32.mrf.mxu0
        %v6043 = vadd.f32 0.0, %v6042
        %v6044 = vpop.f32.mrf.mxu0
        %6045 = vmatprep.mubr.bf16.mxu0 0
        %6046 = vmatmul.mubr.bf16.gmra.mxu0 %v5948
        %v6047 = vpop.f32.mrf.mxu0
        %v6048 = vadd.f32 0.0, %v6047
        %v6049 = vpop.f32.mrf.mxu0
        %v6050 = vpop.f32.mrf.mxu0
        %v6051 = vadd.f32 0.0, %v6050
        %v6052 = vpop.f32.mrf.mxu0
        %6053 = vmatprep.mubr.bf16.mxu0 0
        %6054 = vmatmul.mubr.bf16.gmra.mxu0 %v5951
        %v6055 = vpop.f32.mrf.mxu0
        %v6056 = vadd.f32 0.0, %v6055
        %v6057 = vpop.f32.mrf.mxu0
        %v6058 = vpop.f32.mrf.mxu0
        %v6059 = vadd.f32 0.0, %v6058
        %v6060 = vpop.f32.mrf.mxu0
        %6061 = vmatprep.mubr.bf16.mxu0 0
        %6062 = vmatmul.mubr.bf16.gmra.mxu0 %v5954
        %v6063 = vpop.f32.mrf.mxu0
        %v6064 = vadd.f32 0.0, %v6063
        %v6065 = vpop.f32.mrf.mxu0
        %v6066 = vpop.f32.mrf.mxu0
        %v6067 = vadd.f32 0.0, %v6066
        %v6068 = vpop.f32.mrf.mxu0
        %6069 = vmatprep.mubr.bf16.mxu0 0
        %6070 = vmatmul.mubr.bf16.gmra.mxu0 %v5957
        %v6071 = vpop.f32.mrf.mxu0
        %v6072 = vadd.f32 0.0, %v6071
        %v6073 = vpop.f32.mrf.mxu0
        %v6074 = vpop.f32.mrf.mxu0
        %v6075 = vadd.f32 0.0, %v6074
        %v6076 = vpop.f32.mrf.mxu0
        %6077 = vmatprep.mubr.bf16.mxu0 0
        %6078 = vmatmul.mubr.bf16.gmra.mxu0 %v5960
        %v6079 = vpop.f32.mrf.mxu0
        %v6080 = vadd.f32 0.0, %v6079
        %v6081 = vpop.f32.mrf.mxu0
        %v6082 = vpop.f32.mrf.mxu0
        %v6083 = vadd.f32 0.0, %v6082
        %v6084 = vpop.f32.mrf.mxu0
        %6085 = vmatprep.mubr.bf16.mxu0 0
        %6086 = vmatmul.mubr.bf16.gmra.mxu0 %v5963
        %v6087 = vpop.f32.mrf.mxu0
        %v6088 = vadd.f32 0.0, %v6087
        %v6089 = vpop.f32.mrf.mxu0
        %v6090 = vpop.f32.mrf.mxu0
        %v6091 = vadd.f32 0.0, %v6090
        %v6092 = vpop.f32.mrf.mxu0
        %6093 = vmatprep.mubr.bf16.mxu0 0
        %6094 = vmatmul.mubr.bf16.gmra.mxu0 %v5966
        %v6095 = vpop.f32.mrf.mxu0
        %v6096 = vadd.f32 0.0, %v6095
        %v6097 = vpop.f32.mrf.mxu0
        %v6098 = vpop.f32.mrf.mxu0
        %v6099 = vadd.f32 0.0, %v6098
        %v6100 = vpop.f32.mrf.mxu0
        %6101 = vmatprep.mubr.bf16.mxu0 0
        %6102 = vmatmul.mubr.bf16.gmra.mxu0 %v5969
        %v6103 = vpop.f32.mrf.mxu0
        %v6104 = vadd.f32 0.0, %v6103
        %v6105 = vpop.f32.mrf.mxu0
        %v6106 = vpop.f32.mrf.mxu0
        %v6107 = vadd.f32 0.0, %v6106
        %v6108 = vpop.f32.mrf.mxu0
        %6109 = vmatprep.mubr.bf16.mxu0 0
        %6110 = vmatmul.mubr.bf16.gmra.mxu0 %v5972
        %v6111 = vpop.f32.mrf.mxu0
        %v6112 = vadd.f32 0.0, %v6111
        %v6113 = vpop.f32.mrf.mxu0
        %v6114 = vpop.f32.mrf.mxu0
        %v6115 = vadd.f32 0.0, %v6114
        %v6116 = vpop.f32.mrf.mxu0
        %6117 = vmatprep.mubr.bf16.mxu0 0
        %6118 = vmatmul.mubr.bf16.gmra.mxu0 %v5975
        %v6119 = vpop.f32.mrf.mxu0
        %v6120 = vadd.f32 0.0, %v6119
        %v6121 = vpop.f32.mrf.mxu0
        %v6122 = vpop.f32.mrf.mxu0
        %v6123 = vadd.f32 0.0, %v6122
        %v6124 = vpop.f32.mrf.mxu0
        %6125 = vmatprep.mubr.bf16.mxu0 0
        %6126 = vmatmul.mubr.bf16.gmra.mxu0 %v5978
        %v6127 = vpop.f32.mrf.mxu0
        %v6128 = vadd.f32 0.0, %v6127
        %v6129 = vpop.f32.mrf.mxu0
        %v6130 = vpop.f32.mrf.mxu0
        %v6131 = vadd.f32 0.0, %v6130
        %v6132 = vpop.f32.mrf.mxu0
        %6133 = vmatprep.mubr.bf16.mxu0 0
        %6134 = vmatmul.mubr.bf16.gmra.mxu0 %v5981
        %v6135 = vpop.f32.mrf.mxu0
        %v6136 = vadd.f32 0.0, %v6135
        %v6137 = vpop.f32.mrf.mxu0
        %v6138 = vpop.f32.mrf.mxu0
        %v6139 = vadd.f32 0.0, %v6138
        %v6140 = vpop.f32.mrf.mxu0
        %6141 = vmatprep.mubr.bf16.mxu0 0
        %6142 = vmatmul.mubr.bf16.gmra.mxu0 %v5984
        %v6143 = vpop.f32.mrf.mxu0
        %v6144 = vadd.f32 0.0, %v6143
        %v6145 = vpop.f32.mrf.mxu0
        %v6146 = vpop.f32.mrf.mxu0
        %v6147 = vadd.f32 0.0, %v6146
        %v6148 = vpop.f32.mrf.mxu0
        %6149 = vdwg.mxu0
        %v6150 = vadd.f32 %v4805, %v6024
        %v6151 = vadd.f32 %v4806, %v6027
        %v6152 = vadd.f32 %v4807, %v6032
        %v6153 = vadd.f32 %v4808, %v6035
        %v6154 = vadd.f32 %v4809, %v6040
        %v6155 = vadd.f32 %v4810, %v6043
        %v6156 = vadd.f32 %v4811, %v6048
        %v6157 = vadd.f32 %v4812, %v6051
        %v6158 = vadd.f32 %v4813, %v6056
        %v6159 = vadd.f32 %v4814, %v6059
        %v6160 = vadd.f32 %v4815, %v6064
        %v6161 = vadd.f32 %v4816, %v6067
        %v6162 = vadd.f32 %v4817, %v6072
        %v6163 = vadd.f32 %v4818, %v6075
        %v6164 = vadd.f32 %v4819, %v6080
        %v6165 = vadd.f32 %v4820, %v6083
        %v6166 = vadd.f32 %v4821, %v6088
        %v6167 = vadd.f32 %v4822, %v6091
        %v6168 = vadd.f32 %v4823, %v6096
        %v6169 = vadd.f32 %v4824, %v6099
        %v6170 = vadd.f32 %v4825, %v6104
        %v6171 = vadd.f32 %v4826, %v6107
        %v6172 = vadd.f32 %v4827, %v6112
        %v6173 = vadd.f32 %v4828, %v6115
        %v6174 = vadd.f32 %v4829, %v6120
        %v6175 = vadd.f32 %v4830, %v6123
        %v6176 = vadd.f32 %v4831, %v6128
        %v6177 = vadd.f32 %v4832, %v6131
        %v6178 = vadd.f32 %v4833, %v6136
        %v6179 = vadd.f32 %v4834, %v6139
        %v6180 = vadd.f32 %v4835, %v6144
        %v6181 = vadd.f32 %v4836, %v6147
        %6182 = vrot.lane.b32.xlu0 %v597, 96
        %v6183 = vpop.permute.xlu0 %6182
        %6184 = vrot.lane.b32.xlu0 %v598, 96
        %v6185 = vpop.permute.xlu0 %6184
        %6186 = vrot.lane.b32.xlu0 %v599, 96
        %v6187 = vpop.permute.xlu0 %6186
        %6188 = vrot.lane.b32.xlu0 %v600, 96
        %v6189 = vpop.permute.xlu0 %6188
        %v6191 = vsel %vm928, %v6183, 0
        %v6194 = vsel %vm928, %v6185, 0
        %v6197 = vsel %vm928, %v6187, 0
        %v6200 = vsel %vm928, %v6189, 0
        %v6203 = vsel %vm941, %v887, 0
        %6205 = vmatprep.subr.bf16.mxu0 0
        %6206 = vmatpush1.bf16.msra.mxu0 0
        %6207 = vmatprep.subr.bf16.mxu0 0
        %6208 = vmatpush1.bf16.msra.mxu0 0
        %6209 = vmatprep.subr.bf16.mxu0 0
        %6210 = vmatpush1.bf16.msra.mxu0 0
        %6211 = vmatprep.subr.bf16.mxu0 0
        %6212 = vmatpush1.bf16.msra.mxu0 0
        %6213 = vmatprep.subr.bf16.mxu0 0
        %6214 = vmatpush1.bf16.msra.mxu0 0
        %6215 = vmatprep.subr.bf16.mxu0 0
        %6216 = vmatpush1.bf16.msra.mxu0 0
        %6217 = vmatprep.subr.bf16.mxu0 0
        %6218 = vmatpush1.bf16.msra.mxu0 0
        %6219 = vmatprep.subr.bf16.mxu0 0
        %6220 = vmatpush1.bf16.msra.mxu0 %v6203
        %6221 = vmatprep.subr.bf16.mxu0 0
        %6222 = vmatpush2.bf16.msra.mxu0 0
        %6223 = vmatprep.subr.bf16.mxu0 0
        %6224 = vmatpush2.bf16.msra.mxu0 0
        %6225 = vmatprep.subr.bf16.mxu0 0
        %6226 = vmatpush2.bf16.msra.mxu0 0
        %6227 = vmatprep.subr.bf16.mxu0 0
        %6228 = vmatpush2.bf16.msra.mxu0 0
        %6229 = vmatprep.subr.bf16.mxu0 0
        %6230 = vmatpush2.bf16.msra.mxu0 0
        %6231 = vmatprep.subr.bf16.mxu0 0
        %6232 = vmatpush2.bf16.msra.mxu0 0
        %6233 = vmatprep.subr.bf16.mxu0 0
        %6234 = vmatpush2.bf16.msra.mxu0 0
        %6235 = vmatprep.subr.bf16.mxu0 0
        %6236 = vmatpush2.bf16.msra.mxu0 0
        %6237 = vmatprep.mubr.bf16.mxu0 0
        %6238 = vmatmul.mubr.bf16.gmra.mxu0 %v6191
        %v6239 = vpop.f32.mrf.mxu0
        %v6240 = vadd.f32 %v920, %v6239
        %v6241 = vpop.f32.mrf.mxu0
        %v6242 = vpop.f32.mrf.mxu0
        %v6243 = vadd.f32 %v921, %v6242
        %v6244 = vpop.f32.mrf.mxu0
        %6245 = vmatprep.mubr.bf16.mxu0 0
        %6246 = vmatmul.mubr.bf16.gmra.mxu0 %v6194
        %v6247 = vpop.f32.mrf.mxu0
        %v6248 = vadd.f32 %v922, %v6247
        %v6249 = vpop.f32.mrf.mxu0
        %v6250 = vpop.f32.mrf.mxu0
        %v6251 = vadd.f32 %v923, %v6250
        %v6252 = vpop.f32.mrf.mxu0
        %6253 = vmatprep.mubr.bf16.mxu0 0
        %6254 = vmatmul.mubr.bf16.gmra.mxu0 %v6197
        %v6255 = vpop.f32.mrf.mxu0
        %v6256 = vadd.f32 %v924, %v6255
        %v6257 = vpop.f32.mrf.mxu0
        %v6258 = vpop.f32.mrf.mxu0
        %v6259 = vadd.f32 %v925, %v6258
        %v6260 = vpop.f32.mrf.mxu0
        %6261 = vmatprep.mubr.bf16.mxu0 0
        %6262 = vmatmul.mubr.bf16.gmra.mxu0 %v6200
        %v6263 = vpop.f32.mrf.mxu0
        %v6264 = vadd.f32 %v926, %v6263
        %v6265 = vpop.f32.mrf.mxu0
        %v6266 = vpop.f32.mrf.mxu0
        %v6267 = vadd.f32 %v927, %v6266
        %v6268 = vpop.f32.mrf.mxu0
        %6269 = vdwg.mxu0
        %6270 = vrot.lane.b32.xlu0 %v601, 96
        %v6271 = vpop.permute.xlu0 %6270
        %6272 = vrot.lane.b32.xlu0 %v602, 96
        %v6273 = vpop.permute.xlu0 %6272
        %6274 = vrot.lane.b32.xlu0 %v603, 96
        %v6275 = vpop.permute.xlu0 %6274
        %6276 = vrot.lane.b32.xlu0 %v604, 96
        %v6277 = vpop.permute.xlu0 %6276
        %v6279 = vsel %vm928, %v6271, 0
        %v6282 = vsel %vm928, %v6273, 0
        %v6285 = vsel %vm928, %v6275, 0
        %v6288 = vsel %vm928, %v6277, 0
        %v6291 = vsel %vm941, %v891, 0
        %6293 = vmatprep.subr.bf16.mxu0 0
        %6294 = vmatpush1.bf16.msra.mxu0 0
        %6295 = vmatprep.subr.bf16.mxu0 0
        %6296 = vmatpush1.bf16.msra.mxu0 0
        %6297 = vmatprep.subr.bf16.mxu0 0
        %6298 = vmatpush1.bf16.msra.mxu0 0
        %6299 = vmatprep.subr.bf16.mxu0 0
        %6300 = vmatpush1.bf16.msra.mxu0 0
        %6301 = vmatprep.subr.bf16.mxu0 0
        %6302 = vmatpush1.bf16.msra.mxu0 0
        %6303 = vmatprep.subr.bf16.mxu0 0
        %6304 = vmatpush1.bf16.msra.mxu0 0
        %6305 = vmatprep.subr.bf16.mxu0 0
        %6306 = vmatpush1.bf16.msra.mxu0 0
        %6307 = vmatprep.subr.bf16.mxu0 0
        %6308 = vmatpush1.bf16.msra.mxu0 %v6291
        %6309 = vmatprep.subr.bf16.mxu0 0
        %6310 = vmatpush2.bf16.msra.mxu0 0
        %6311 = vmatprep.subr.bf16.mxu0 0
        %6312 = vmatpush2.bf16.msra.mxu0 0
        %6313 = vmatprep.subr.bf16.mxu0 0
        %6314 = vmatpush2.bf16.msra.mxu0 0
        %6315 = vmatprep.subr.bf16.mxu0 0
        %6316 = vmatpush2.bf16.msra.mxu0 0
        %6317 = vmatprep.subr.bf16.mxu0 0
        %6318 = vmatpush2.bf16.msra.mxu0 0
        %6319 = vmatprep.subr.bf16.mxu0 0
        %6320 = vmatpush2.bf16.msra.mxu0 0
        %6321 = vmatprep.subr.bf16.mxu0 0
        %6322 = vmatpush2.bf16.msra.mxu0 0
        %6323 = vmatprep.subr.bf16.mxu0 0
        %6324 = vmatpush2.bf16.msra.mxu0 0
        %6325 = vmatprep.mubr.bf16.mxu0 0
        %6326 = vmatmul.mubr.bf16.gmra.mxu0 %v6279
        %v6327 = vpop.f32.mrf.mxu0
        %v6328 = vadd.f32 %v920, %v6327
        %v6329 = vpop.f32.mrf.mxu0
        %v6330 = vpop.f32.mrf.mxu0
        %v6331 = vadd.f32 %v921, %v6330
        %v6332 = vpop.f32.mrf.mxu0
        %6333 = vmatprep.mubr.bf16.mxu0 0
        %6334 = vmatmul.mubr.bf16.gmra.mxu0 %v6282
        %v6335 = vpop.f32.mrf.mxu0
        %v6336 = vadd.f32 %v922, %v6335
        %v6337 = vpop.f32.mrf.mxu0
        %v6338 = vpop.f32.mrf.mxu0
        %v6339 = vadd.f32 %v923, %v6338
        %v6340 = vpop.f32.mrf.mxu0
        %6341 = vmatprep.mubr.bf16.mxu0 0
        %6342 = vmatmul.mubr.bf16.gmra.mxu0 %v6285
        %v6343 = vpop.f32.mrf.mxu0
        %v6344 = vadd.f32 %v924, %v6343
        %v6345 = vpop.f32.mrf.mxu0
        %v6346 = vpop.f32.mrf.mxu0
        %v6347 = vadd.f32 %v925, %v6346
        %v6348 = vpop.f32.mrf.mxu0
        %6349 = vmatprep.mubr.bf16.mxu0 0
        %6350 = vmatmul.mubr.bf16.gmra.mxu0 %v6288
        %v6351 = vpop.f32.mrf.mxu0
        %v6352 = vadd.f32 %v926, %v6351
        %v6353 = vpop.f32.mrf.mxu0
        %v6354 = vpop.f32.mrf.mxu0
        %v6355 = vadd.f32 %v927, %v6354
        %v6356 = vpop.f32.mrf.mxu0
        %6357 = vdwg.mxu0
        %6358 = vrot.lane.b32.xlu0 %v605, 96
        %v6359 = vpop.permute.xlu0 %6358
        %6360 = vrot.lane.b32.xlu0 %v606, 96
        %v6361 = vpop.permute.xlu0 %6360
        %6362 = vrot.lane.b32.xlu0 %v607, 96
        %v6363 = vpop.permute.xlu0 %6362
        %6364 = vrot.lane.b32.xlu0 %v608, 96
        %v6365 = vpop.permute.xlu0 %6364
        %v6367 = vsel %vm928, %v6359, 0
        %v6370 = vsel %vm928, %v6361, 0
        %v6373 = vsel %vm928, %v6363, 0
        %v6376 = vsel %vm928, %v6365, 0
        %v6379 = vsel %vm941, %v895, 0
        %6381 = vmatprep.subr.bf16.mxu0 0
        %6382 = vmatpush1.bf16.msra.mxu0 0
        %6383 = vmatprep.subr.bf16.mxu0 0
        %6384 = vmatpush1.bf16.msra.mxu0 0
        %6385 = vmatprep.subr.bf16.mxu0 0
        %6386 = vmatpush1.bf16.msra.mxu0 0
        %6387 = vmatprep.subr.bf16.mxu0 0
        %6388 = vmatpush1.bf16.msra.mxu0 0
        %6389 = vmatprep.subr.bf16.mxu0 0
        %6390 = vmatpush1.bf16.msra.mxu0 0
        %6391 = vmatprep.subr.bf16.mxu0 0
        %6392 = vmatpush1.bf16.msra.mxu0 0
        %6393 = vmatprep.subr.bf16.mxu0 0
        %6394 = vmatpush1.bf16.msra.mxu0 0
        %6395 = vmatprep.subr.bf16.mxu0 0
        %6396 = vmatpush1.bf16.msra.mxu0 %v6379
        %6397 = vmatprep.subr.bf16.mxu0 0
        %6398 = vmatpush2.bf16.msra.mxu0 0
        %6399 = vmatprep.subr.bf16.mxu0 0
        %6400 = vmatpush2.bf16.msra.mxu0 0
        %6401 = vmatprep.subr.bf16.mxu0 0
        %6402 = vmatpush2.bf16.msra.mxu0 0
        %6403 = vmatprep.subr.bf16.mxu0 0
        %6404 = vmatpush2.bf16.msra.mxu0 0
        %6405 = vmatprep.subr.bf16.mxu0 0
        %6406 = vmatpush2.bf16.msra.mxu0 0
        %6407 = vmatprep.subr.bf16.mxu0 0
        %6408 = vmatpush2.bf16.msra.mxu0 0
        %6409 = vmatprep.subr.bf16.mxu0 0
        %6410 = vmatpush2.bf16.msra.mxu0 0
        %6411 = vmatprep.subr.bf16.mxu0 0
        %6412 = vmatpush2.bf16.msra.mxu0 0
        %6413 = vmatprep.mubr.bf16.mxu0 0
        %6414 = vmatmul.mubr.bf16.gmra.mxu0 %v6367
        %v6415 = vpop.f32.mrf.mxu0
        %v6416 = vadd.f32 %v920, %v6415
        %v6417 = vpop.f32.mrf.mxu0
        %v6418 = vpop.f32.mrf.mxu0
        %v6419 = vadd.f32 %v921, %v6418
        %v6420 = vpop.f32.mrf.mxu0
        %6421 = vmatprep.mubr.bf16.mxu0 0
        %6422 = vmatmul.mubr.bf16.gmra.mxu0 %v6370
        %v6423 = vpop.f32.mrf.mxu0
        %v6424 = vadd.f32 %v922, %v6423
        %v6425 = vpop.f32.mrf.mxu0
        %v6426 = vpop.f32.mrf.mxu0
        %v6427 = vadd.f32 %v923, %v6426
        %v6428 = vpop.f32.mrf.mxu0
        %6429 = vmatprep.mubr.bf16.mxu0 0
        %6430 = vmatmul.mubr.bf16.gmra.mxu0 %v6373
        %v6431 = vpop.f32.mrf.mxu0
        %v6432 = vadd.f32 %v924, %v6431
        %v6433 = vpop.f32.mrf.mxu0
        %v6434 = vpop.f32.mrf.mxu0
        %v6435 = vadd.f32 %v925, %v6434
        %v6436 = vpop.f32.mrf.mxu0
        %6437 = vmatprep.mubr.bf16.mxu0 0
        %6438 = vmatmul.mubr.bf16.gmra.mxu0 %v6376
        %v6439 = vpop.f32.mrf.mxu0
        %v6440 = vadd.f32 %v926, %v6439
        %v6441 = vpop.f32.mrf.mxu0
        %v6442 = vpop.f32.mrf.mxu0
        %v6443 = vadd.f32 %v927, %v6442
        %v6444 = vpop.f32.mrf.mxu0
        %6445 = vdwg.mxu0
        %6446 = vrot.lane.b32.xlu0 %v609, 96
        %v6447 = vpop.permute.xlu0 %6446
        %6448 = vrot.lane.b32.xlu0 %v610, 96
        %v6449 = vpop.permute.xlu0 %6448
        %6450 = vrot.lane.b32.xlu0 %v611, 96
        %v6451 = vpop.permute.xlu0 %6450
        %6452 = vrot.lane.b32.xlu0 %v612, 96
        %v6453 = vpop.permute.xlu0 %6452
        %v6455 = vsel %vm928, %v6447, 0
        %v6458 = vsel %vm928, %v6449, 0
        %v6461 = vsel %vm928, %v6451, 0
        %v6464 = vsel %vm928, %v6453, 0
        %v6467 = vsel %vm941, %v899, 0
        %6469 = vmatprep.subr.bf16.mxu0 0
        %6470 = vmatpush1.bf16.msra.mxu0 0
        %6471 = vmatprep.subr.bf16.mxu0 0
        %6472 = vmatpush1.bf16.msra.mxu0 0
        %6473 = vmatprep.subr.bf16.mxu0 0
        %6474 = vmatpush1.bf16.msra.mxu0 0
        %6475 = vmatprep.subr.bf16.mxu0 0
        %6476 = vmatpush1.bf16.msra.mxu0 0
        %6477 = vmatprep.subr.bf16.mxu0 0
        %6478 = vmatpush1.bf16.msra.mxu0 0
        %6479 = vmatprep.subr.bf16.mxu0 0
        %6480 = vmatpush1.bf16.msra.mxu0 0
        %6481 = vmatprep.subr.bf16.mxu0 0
        %6482 = vmatpush1.bf16.msra.mxu0 0
        %6483 = vmatprep.subr.bf16.mxu0 0
        %6484 = vmatpush1.bf16.msra.mxu0 %v6467
        %6485 = vmatprep.subr.bf16.mxu0 0
        %6486 = vmatpush2.bf16.msra.mxu0 0
        %6487 = vmatprep.subr.bf16.mxu0 0
        %6488 = vmatpush2.bf16.msra.mxu0 0
        %6489 = vmatprep.subr.bf16.mxu0 0
        %6490 = vmatpush2.bf16.msra.mxu0 0
        %6491 = vmatprep.subr.bf16.mxu0 0
        %6492 = vmatpush2.bf16.msra.mxu0 0
        %6493 = vmatprep.subr.bf16.mxu0 0
        %6494 = vmatpush2.bf16.msra.mxu0 0
        %6495 = vmatprep.subr.bf16.mxu0 0
        %6496 = vmatpush2.bf16.msra.mxu0 0
        %6497 = vmatprep.subr.bf16.mxu0 0
        %6498 = vmatpush2.bf16.msra.mxu0 0
        %6499 = vmatprep.subr.bf16.mxu0 0
        %6500 = vmatpush2.bf16.msra.mxu0 0
        %6501 = vmatprep.mubr.bf16.mxu0 0
        %6502 = vmatmul.mubr.bf16.gmra.mxu0 %v6455
        %v6503 = vpop.f32.mrf.mxu0
        %v6504 = vadd.f32 %v920, %v6503
        %v6505 = vpop.f32.mrf.mxu0
        %v6506 = vpop.f32.mrf.mxu0
        %v6507 = vadd.f32 %v921, %v6506
        %v6508 = vpop.f32.mrf.mxu0
        %6509 = vmatprep.mubr.bf16.mxu0 0
        %6510 = vmatmul.mubr.bf16.gmra.mxu0 %v6458
        %v6511 = vpop.f32.mrf.mxu0
        %v6512 = vadd.f32 %v922, %v6511
        %v6513 = vpop.f32.mrf.mxu0
        %v6514 = vpop.f32.mrf.mxu0
        %v6515 = vadd.f32 %v923, %v6514
        %v6516 = vpop.f32.mrf.mxu0
        %6517 = vmatprep.mubr.bf16.mxu0 0
        %6518 = vmatmul.mubr.bf16.gmra.mxu0 %v6461
        %v6519 = vpop.f32.mrf.mxu0
        %v6520 = vadd.f32 %v924, %v6519
        %v6521 = vpop.f32.mrf.mxu0
        %v6522 = vpop.f32.mrf.mxu0
        %v6523 = vadd.f32 %v925, %v6522
        %v6524 = vpop.f32.mrf.mxu0
        %6525 = vmatprep.mubr.bf16.mxu0 0
        %6526 = vmatmul.mubr.bf16.gmra.mxu0 %v6464
        %v6527 = vpop.f32.mrf.mxu0
        %v6528 = vadd.f32 %v926, %v6527
        %v6529 = vpop.f32.mrf.mxu0
        %v6530 = vpop.f32.mrf.mxu0
        %v6531 = vadd.f32 %v927, %v6530
        %v6532 = vpop.f32.mrf.mxu0
        %6533 = vdwg.mxu0
        %v6534 = vsel %vm355, %v6240, -inf
        %6535 = vmax.xlane.f32.xlu0 %v6534
        %v6536 = vpop.xlane.xlu0 %6535
        %v6537 = vsel %vm355, %v6243, -inf
        %6538 = vmax.xlane.f32.xlu0 %v6537
        %v6539 = vpop.xlane.xlu0 %6538
        %v6540 = vsel %vm355, %v6248, -inf
        %6541 = vmax.xlane.f32.xlu0 %v6540
        %v6542 = vpop.xlane.xlu0 %6541
        %v6543 = vsel %vm355, %v6251, -inf
        %6544 = vmax.xlane.f32.xlu0 %v6543
        %v6545 = vpop.xlane.xlu0 %6544
        %v6546 = vsel %vm355, %v6256, -inf
        %6547 = vmax.xlane.f32.xlu0 %v6546
        %v6548 = vpop.xlane.xlu0 %6547
        %v6549 = vsel %vm355, %v6259, -inf
        %6550 = vmax.xlane.f32.xlu0 %v6549
        %v6551 = vpop.xlane.xlu0 %6550
        %v6552 = vsel %vm355, %v6264, -inf
        %6553 = vmax.xlane.f32.xlu0 %v6552
        %v6554 = vpop.xlane.xlu0 %6553
        %v6555 = vsel %vm355, %v6267, -inf
        %6556 = vmax.xlane.f32.xlu0 %v6555
        %v6557 = vpop.xlane.xlu0 %6556
        %v6558 = vsel %vm355, %v6328, -inf
        %6559 = vmax.xlane.f32.xlu0 %v6558
        %v6560 = vpop.xlane.xlu0 %6559
        %v6561 = vsel %vm355, %v6331, -inf
        %6562 = vmax.xlane.f32.xlu0 %v6561
        %v6563 = vpop.xlane.xlu0 %6562
        %v6564 = vsel %vm355, %v6336, -inf
        %6565 = vmax.xlane.f32.xlu0 %v6564
        %v6566 = vpop.xlane.xlu0 %6565
        %v6567 = vsel %vm355, %v6339, -inf
        %6568 = vmax.xlane.f32.xlu0 %v6567
        %v6569 = vpop.xlane.xlu0 %6568
        %v6570 = vsel %vm355, %v6344, -inf
        %6571 = vmax.xlane.f32.xlu0 %v6570
        %v6572 = vpop.xlane.xlu0 %6571
        %v6573 = vsel %vm355, %v6347, -inf
        %6574 = vmax.xlane.f32.xlu0 %v6573
        %v6575 = vpop.xlane.xlu0 %6574
        %v6576 = vsel %vm355, %v6352, -inf
        %6577 = vmax.xlane.f32.xlu0 %v6576
        %v6578 = vpop.xlane.xlu0 %6577
        %v6579 = vsel %vm355, %v6355, -inf
        %6580 = vmax.xlane.f32.xlu0 %v6579
        %v6581 = vpop.xlane.xlu0 %6580
        %v6582 = vsel %vm355, %v6416, -inf
        %6583 = vmax.xlane.f32.xlu0 %v6582
        %v6584 = vpop.xlane.xlu0 %6583
        %v6585 = vsel %vm355, %v6419, -inf
        %6586 = vmax.xlane.f32.xlu0 %v6585
        %v6587 = vpop.xlane.xlu0 %6586
        %v6588 = vsel %vm355, %v6424, -inf
        %6589 = vmax.xlane.f32.xlu0 %v6588
        %v6590 = vpop.xlane.xlu0 %6589
        %v6591 = vsel %vm355, %v6427, -inf
        %6592 = vmax.xlane.f32.xlu0 %v6591
        %v6593 = vpop.xlane.xlu0 %6592
        %v6594 = vsel %vm355, %v6432, -inf
        %6595 = vmax.xlane.f32.xlu0 %v6594
        %v6596 = vpop.xlane.xlu0 %6595
        %v6597 = vsel %vm355, %v6435, -inf
        %6598 = vmax.xlane.f32.xlu0 %v6597
        %v6599 = vpop.xlane.xlu0 %6598
        %v6600 = vsel %vm355, %v6440, -inf
        %6601 = vmax.xlane.f32.xlu0 %v6600
        %v6602 = vpop.xlane.xlu0 %6601
        %v6603 = vsel %vm355, %v6443, -inf
        %6604 = vmax.xlane.f32.xlu0 %v6603
        %v6605 = vpop.xlane.xlu0 %6604
        %v6606 = vsel %vm355, %v6504, -inf
        %6607 = vmax.xlane.f32.xlu0 %v6606
        %v6608 = vpop.xlane.xlu0 %6607
        %v6609 = vsel %vm355, %v6507, -inf
        %6610 = vmax.xlane.f32.xlu0 %v6609
        %v6611 = vpop.xlane.xlu0 %6610
        %v6612 = vsel %vm355, %v6512, -inf
        %6613 = vmax.xlane.f32.xlu0 %v6612
        %v6614 = vpop.xlane.xlu0 %6613
        %v6615 = vsel %vm355, %v6515, -inf
        %6616 = vmax.xlane.f32.xlu0 %v6615
        %v6617 = vpop.xlane.xlu0 %6616
        %v6618 = vsel %vm355, %v6520, -inf
        %6619 = vmax.xlane.f32.xlu0 %v6618
        %v6620 = vpop.xlane.xlu0 %6619
        %v6621 = vsel %vm355, %v6523, -inf
        %6622 = vmax.xlane.f32.xlu0 %v6621
        %v6623 = vpop.xlane.xlu0 %6622
        %v6624 = vsel %vm355, %v6528, -inf
        %6625 = vmax.xlane.f32.xlu0 %v6624
        %v6626 = vpop.xlane.xlu0 %6625
        %v6627 = vsel %vm355, %v6531, -inf
        %6628 = vmax.xlane.f32.xlu0 %v6627
        %v6629 = vpop.xlane.xlu0 %6628
        %v6630 = vsub.f32 %v6240, %v6536
        %v6631 = vsub.f32 %v6243, %v6539
        %v6632 = vsub.f32 %v6248, %v6542
        %v6633 = vsub.f32 %v6251, %v6545
        %v6634 = vsub.f32 %v6256, %v6548
        %v6635 = vsub.f32 %v6259, %v6551
        %v6636 = vsub.f32 %v6264, %v6554
        %v6637 = vsub.f32 %v6267, %v6557
        %v6638 = vsub.f32 %v6328, %v6560
        %v6639 = vsub.f32 %v6331, %v6563
        %v6640 = vsub.f32 %v6336, %v6566
        %v6641 = vsub.f32 %v6339, %v6569
        %v6642 = vsub.f32 %v6344, %v6572
        %v6643 = vsub.f32 %v6347, %v6575
        %v6644 = vsub.f32 %v6352, %v6578
        %v6645 = vsub.f32 %v6355, %v6581
        %v6646 = vsub.f32 %v6416, %v6584
        %v6647 = vsub.f32 %v6419, %v6587
        %v6648 = vsub.f32 %v6424, %v6590
        %v6649 = vsub.f32 %v6427, %v6593
        %v6650 = vsub.f32 %v6432, %v6596
        %v6651 = vsub.f32 %v6435, %v6599
        %v6652 = vsub.f32 %v6440, %v6602
        %v6653 = vsub.f32 %v6443, %v6605
        %v6654 = vsub.f32 %v6504, %v6608
        %v6655 = vsub.f32 %v6507, %v6611
        %v6656 = vsub.f32 %v6512, %v6614
        %v6657 = vsub.f32 %v6515, %v6617
        %v6658 = vsub.f32 %v6520, %v6620
        %v6659 = vsub.f32 %v6523, %v6623
        %v6660 = vsub.f32 %v6528, %v6626
        %v6661 = vsub.f32 %v6531, %v6629
        %v6662 = vmul.f32 %v6630, 1.442695
        %v6663 = vpow.pop %v6662
        %v6664 = vmul.f32 %v6631, 1.442695
        %v6665 = vpow.pop %v6664
        %v6666 = vmul.f32 %v6632, 1.442695
        %v6667 = vpow.pop %v6666
        %v6668 = vmul.f32 %v6633, 1.442695
        %v6669 = vpow.pop %v6668
        %v6670 = vmul.f32 %v6634, 1.442695
        %v6671 = vpow.pop %v6670
        %v6672 = vmul.f32 %v6635, 1.442695
        %v6673 = vpow.pop %v6672
        %v6674 = vmul.f32 %v6636, 1.442695
        %v6675 = vpow.pop %v6674
        %v6676 = vmul.f32 %v6637, 1.442695
        %v6677 = vpow.pop %v6676
        %v6678 = vmul.f32 %v6638, 1.442695
        %v6679 = vpow.pop %v6678
        %v6680 = vmul.f32 %v6639, 1.442695
        %v6681 = vpow.pop %v6680
        %v6682 = vmul.f32 %v6640, 1.442695
        %v6683 = vpow.pop %v6682
        %v6684 = vmul.f32 %v6641, 1.442695
        %v6685 = vpow.pop %v6684
        %v6686 = vmul.f32 %v6642, 1.442695
        %v6687 = vpow.pop %v6686
        %v6688 = vmul.f32 %v6643, 1.442695
        %v6689 = vpow.pop %v6688
        %v6690 = vmul.f32 %v6644, 1.442695
        %v6691 = vpow.pop %v6690
        %v6692 = vmul.f32 %v6645, 1.442695
        %v6693 = vpow.pop %v6692
        %v6694 = vmul.f32 %v6646, 1.442695
        %v6695 = vpow.pop %v6694
        %v6696 = vmul.f32 %v6647, 1.442695
        %v6697 = vpow.pop %v6696
        %v6698 = vmul.f32 %v6648, 1.442695
        %v6699 = vpow.pop %v6698
        %v6700 = vmul.f32 %v6649, 1.442695
        %v6701 = vpow.pop %v6700
        %v6702 = vmul.f32 %v6650, 1.442695
        %v6703 = vpow.pop %v6702
        %v6704 = vmul.f32 %v6651, 1.442695
        %v6705 = vpow.pop %v6704
        %v6706 = vmul.f32 %v6652, 1.442695
        %v6707 = vpow.pop %v6706
        %v6708 = vmul.f32 %v6653, 1.442695
        %v6709 = vpow.pop %v6708
        %v6710 = vmul.f32 %v6654, 1.442695
        %v6711 = vpow.pop %v6710
        %v6712 = vmul.f32 %v6655, 1.442695
        %v6713 = vpow.pop %v6712
        %v6714 = vmul.f32 %v6656, 1.442695
        %v6715 = vpow.pop %v6714
        %v6716 = vmul.f32 %v6657, 1.442695
        %v6717 = vpow.pop %v6716
        %v6718 = vmul.f32 %v6658, 1.442695
        %v6719 = vpow.pop %v6718
        %v6720 = vmul.f32 %v6659, 1.442695
        %v6721 = vpow.pop %v6720
        %v6722 = vmul.f32 %v6660, 1.442695
        %v6723 = vpow.pop %v6722
        %v6724 = vmul.f32 %v6661, 1.442695
        %v6725 = vpow.pop %v6724
        %v6726 = vsel %vm355, %v6663, 0.0
        %6727 = vadd.xlane.f32.xlu0 %v6726
        %v6728 = vpop.xlane.xlu0 %6727
        %v6729 = vsel %vm355, %v6665, 0.0
        %6730 = vadd.xlane.f32.xlu0 %v6729
        %v6731 = vpop.xlane.xlu0 %6730
        %v6732 = vsel %vm355, %v6667, 0.0
        %6733 = vadd.xlane.f32.xlu0 %v6732
        %v6734 = vpop.xlane.xlu0 %6733
        %v6735 = vsel %vm355, %v6669, 0.0
        %6736 = vadd.xlane.f32.xlu0 %v6735
        %v6737 = vpop.xlane.xlu0 %6736
        %v6738 = vsel %vm355, %v6671, 0.0
        %6739 = vadd.xlane.f32.xlu0 %v6738
        %v6740 = vpop.xlane.xlu0 %6739
        %v6741 = vsel %vm355, %v6673, 0.0
        %6742 = vadd.xlane.f32.xlu0 %v6741
        %v6743 = vpop.xlane.xlu0 %6742
        %v6744 = vsel %vm355, %v6675, 0.0
        %6745 = vadd.xlane.f32.xlu0 %v6744
        %v6746 = vpop.xlane.xlu0 %6745
        %v6747 = vsel %vm355, %v6677, 0.0
        %6748 = vadd.xlane.f32.xlu0 %v6747
        %v6749 = vpop.xlane.xlu0 %6748
        %v6750 = vsel %vm355, %v6679, 0.0
        %6751 = vadd.xlane.f32.xlu0 %v6750
        %v6752 = vpop.xlane.xlu0 %6751
        %v6753 = vsel %vm355, %v6681, 0.0
        %6754 = vadd.xlane.f32.xlu0 %v6753
        %v6755 = vpop.xlane.xlu0 %6754
        %v6756 = vsel %vm355, %v6683, 0.0
        %6757 = vadd.xlane.f32.xlu0 %v6756
        %v6758 = vpop.xlane.xlu0 %6757
        %v6759 = vsel %vm355, %v6685, 0.0
        %6760 = vadd.xlane.f32.xlu0 %v6759
        %v6761 = vpop.xlane.xlu0 %6760
        %v6762 = vsel %vm355, %v6687, 0.0
        %6763 = vadd.xlane.f32.xlu0 %v6762
        %v6764 = vpop.xlane.xlu0 %6763
        %v6765 = vsel %vm355, %v6689, 0.0
        %6766 = vadd.xlane.f32.xlu0 %v6765
        %v6767 = vpop.xlane.xlu0 %6766
        %v6768 = vsel %vm355, %v6691, 0.0
        %6769 = vadd.xlane.f32.xlu0 %v6768
        %v6770 = vpop.xlane.xlu0 %6769
        %v6771 = vsel %vm355, %v6693, 0.0
        %6772 = vadd.xlane.f32.xlu0 %v6771
        %v6773 = vpop.xlane.xlu0 %6772
        %v6774 = vsel %vm355, %v6695, 0.0
        %6775 = vadd.xlane.f32.xlu0 %v6774
        %v6776 = vpop.xlane.xlu0 %6775
        %v6777 = vsel %vm355, %v6697, 0.0
        %6778 = vadd.xlane.f32.xlu0 %v6777
        %v6779 = vpop.xlane.xlu0 %6778
        %v6780 = vsel %vm355, %v6699, 0.0
        %6781 = vadd.xlane.f32.xlu0 %v6780
        %v6782 = vpop.xlane.xlu0 %6781
        %v6783 = vsel %vm355, %v6701, 0.0
        %6784 = vadd.xlane.f32.xlu0 %v6783
        %v6785 = vpop.xlane.xlu0 %6784
        %v6786 = vsel %vm355, %v6703, 0.0
        %6787 = vadd.xlane.f32.xlu0 %v6786
        %v6788 = vpop.xlane.xlu0 %6787
        %v6789 = vsel %vm355, %v6705, 0.0
        %6790 = vadd.xlane.f32.xlu0 %v6789
        %v6791 = vpop.xlane.xlu0 %6790
        %v6792 = vsel %vm355, %v6707, 0.0
        %6793 = vadd.xlane.f32.xlu0 %v6792
        %v6794 = vpop.xlane.xlu0 %6793
        %v6795 = vsel %vm355, %v6709, 0.0
        %6796 = vadd.xlane.f32.xlu0 %v6795
        %v6797 = vpop.xlane.xlu0 %6796
        %v6798 = vsel %vm355, %v6711, 0.0
        %6799 = vadd.xlane.f32.xlu0 %v6798
        %v6800 = vpop.xlane.xlu0 %6799
        %v6801 = vsel %vm355, %v6713, 0.0
        %6802 = vadd.xlane.f32.xlu0 %v6801
        %v6803 = vpop.xlane.xlu0 %6802
        %v6804 = vsel %vm355, %v6715, 0.0
        %6805 = vadd.xlane.f32.xlu0 %v6804
        %v6806 = vpop.xlane.xlu0 %6805
        %v6807 = vsel %vm355, %v6717, 0.0
        %6808 = vadd.xlane.f32.xlu0 %v6807
        %v6809 = vpop.xlane.xlu0 %6808
        %v6810 = vsel %vm355, %v6719, 0.0
        %6811 = vadd.xlane.f32.xlu0 %v6810
        %v6812 = vpop.xlane.xlu0 %6811
        %v6813 = vsel %vm355, %v6721, 0.0
        %6814 = vadd.xlane.f32.xlu0 %v6813
        %v6815 = vpop.xlane.xlu0 %6814
        %v6816 = vsel %vm355, %v6723, 0.0
        %6817 = vadd.xlane.f32.xlu0 %v6816
        %v6818 = vpop.xlane.xlu0 %6817
        %v6819 = vsel %vm355, %v6725, 0.0
        %6820 = vadd.xlane.f32.xlu0 %v6819
        %v6821 = vpop.xlane.xlu0 %6820
        %v6822 = vrcp.pop %v6728
        %v6823 = vrcp.pop %v6731
        %v6824 = vrcp.pop %v6734
        %v6825 = vrcp.pop %v6737
        %v6826 = vrcp.pop %v6740
        %v6827 = vrcp.pop %v6743
        %v6828 = vrcp.pop %v6746
        %v6829 = vrcp.pop %v6749
        %v6830 = vrcp.pop %v6752
        %v6831 = vrcp.pop %v6755
        %v6832 = vrcp.pop %v6758
        %v6833 = vrcp.pop %v6761
        %v6834 = vrcp.pop %v6764
        %v6835 = vrcp.pop %v6767
        %v6836 = vrcp.pop %v6770
        %v6837 = vrcp.pop %v6773
        %v6838 = vrcp.pop %v6776
        %v6839 = vrcp.pop %v6779
        %v6840 = vrcp.pop %v6782
        %v6841 = vrcp.pop %v6785
        %v6842 = vrcp.pop %v6788
        %v6843 = vrcp.pop %v6791
        %v6844 = vrcp.pop %v6794
        %v6845 = vrcp.pop %v6797
        %v6846 = vrcp.pop %v6800
        %v6847 = vrcp.pop %v6803
        %v6848 = vrcp.pop %v6806
        %v6849 = vrcp.pop %v6809
        %v6850 = vrcp.pop %v6812
        %v6851 = vrcp.pop %v6815
        %v6852 = vrcp.pop %v6818
        %v6853 = vrcp.pop %v6821
        %v6854 = vmul.f32 %v6663, %v6822
        %v6855 = vmul.f32 %v6665, %v6823
        %v6856 = vmul.f32 %v6667, %v6824
        %v6857 = vmul.f32 %v6669, %v6825
        %v6858 = vmul.f32 %v6671, %v6826
        %v6859 = vmul.f32 %v6673, %v6827
        %v6860 = vmul.f32 %v6675, %v6828
        %v6861 = vmul.f32 %v6677, %v6829
        %v6862 = vmul.f32 %v6679, %v6830
        %v6863 = vmul.f32 %v6681, %v6831
        %v6864 = vmul.f32 %v6683, %v6832
        %v6865 = vmul.f32 %v6685, %v6833
        %v6866 = vmul.f32 %v6687, %v6834
        %v6867 = vmul.f32 %v6689, %v6835
        %v6868 = vmul.f32 %v6691, %v6836
        %v6869 = vmul.f32 %v6693, %v6837
        %v6870 = vmul.f32 %v6695, %v6838
        %v6871 = vmul.f32 %v6697, %v6839
        %v6872 = vmul.f32 %v6699, %v6840
        %v6873 = vmul.f32 %v6701, %v6841
        %v6874 = vmul.f32 %v6703, %v6842
        %v6875 = vmul.f32 %v6705, %v6843
        %v6876 = vmul.f32 %v6707, %v6844
        %v6877 = vmul.f32 %v6709, %v6845
        %v6878 = vmul.f32 %v6711, %v6846
        %v6879 = vmul.f32 %v6713, %v6847
        %v6880 = vmul.f32 %v6715, %v6848
        %v6881 = vmul.f32 %v6717, %v6849
        %v6882 = vmul.f32 %v6719, %v6850
        %v6883 = vmul.f32 %v6721, %v6851
        %v6884 = vmul.f32 %v6723, %v6852
        %v6885 = vmul.f32 %v6725, %v6853
        %v6886 = vpack.c.bf16 %v6855, %v6854
        %v6887 = vpack.c.bf16 %v6857, %v6856
        %v6888 = vpack.c.bf16 %v6859, %v6858
        %v6889 = vpack.c.bf16 %v6861, %v6860
        %v6890 = vpack.c.bf16 %v6863, %v6862
        %v6891 = vpack.c.bf16 %v6865, %v6864
        %v6892 = vpack.c.bf16 %v6867, %v6866
        %v6893 = vpack.c.bf16 %v6869, %v6868
        %v6894 = vpack.c.bf16 %v6871, %v6870
        %v6895 = vpack.c.bf16 %v6873, %v6872
        %v6896 = vpack.c.bf16 %v6875, %v6874
        %v6897 = vpack.c.bf16 %v6877, %v6876
        %v6898 = vpack.c.bf16 %v6879, %v6878
        %v6899 = vpack.c.bf16 %v6881, %v6880
        %v6900 = vpack.c.bf16 %v6883, %v6882
        %v6901 = vpack.c.bf16 %v6885, %v6884
        %6902 = vrot.lane.b32.xlu0 %v613, 96
        %v6903 = vpop.permute.xlu0 %6902
        %6904 = vrot.lane.b32.xlu0 %v614, 96
        %v6905 = vpop.permute.xlu0 %6904
        %6906 = vrot.lane.b32.xlu0 %v615, 96
        %v6907 = vpop.permute.xlu0 %6906
        %6908 = vrot.lane.b32.xlu0 %v616, 96
        %v6909 = vpop.permute.xlu0 %6908
        %v6915 = vsel %vm355, %v6886, 0
        %v6918 = vsel %vm355, %v6887, 0
        %v6921 = vsel %vm355, %v6888, 0
        %v6924 = vsel %vm355, %v6889, 0
        %6926 = vmatprep.subr.bf16.mxu0 0
        %6927 = vmatpush1.bf16.msra.mxu0 0
        %6928 = vmatprep.subr.bf16.mxu0 0
        %6929 = vmatpush1.bf16.msra.mxu0 0
        %6930 = vmatprep.subr.bf16.mxu0 0
        %6931 = vmatpush1.bf16.msra.mxu0 0
        %6932 = vmatprep.subr.bf16.mxu0 0
        %6933 = vmatpush1.bf16.msra.mxu0 0
        %6934 = vmatprep.subr.bf16.mxu0 0
        %6935 = vmatpush1.bf16.msra.mxu0 %v6909
        %6936 = vmatprep.subr.bf16.mxu0 0
        %6937 = vmatpush1.bf16.msra.mxu0 %v6907
        %6938 = vmatprep.subr.bf16.mxu0 0
        %6939 = vmatpush1.bf16.msra.mxu0 %v6905
        %6940 = vmatprep.subr.bf16.mxu0 0
        %6941 = vmatpush1.bf16.msra.mxu0 %v6903
        %6942 = vmatprep.subr.bf16.mxu0 0
        %6943 = vmatpush2.bf16.msra.mxu0 0
        %6944 = vmatprep.subr.bf16.mxu0 0
        %6945 = vmatpush2.bf16.msra.mxu0 0
        %6946 = vmatprep.subr.bf16.mxu0 0
        %6947 = vmatpush2.bf16.msra.mxu0 0
        %6948 = vmatprep.subr.bf16.mxu0 0
        %6949 = vmatpush2.bf16.msra.mxu0 0
        %6950 = vmatprep.subr.bf16.mxu0 0
        %6951 = vmatpush2.bf16.msra.mxu0 0
        %6952 = vmatprep.subr.bf16.mxu0 0
        %6953 = vmatpush2.bf16.msra.mxu0 0
        %6954 = vmatprep.subr.bf16.mxu0 0
        %6955 = vmatpush2.bf16.msra.mxu0 0
        %6956 = vmatprep.subr.bf16.mxu0 0
        %6957 = vmatpush2.bf16.msra.mxu0 0
        %6958 = vmatprep.mubr.bf16.mxu0 0
        %6959 = vmatmul.mubr.bf16.gmra.mxu0 %v6915
        %v6960 = vpop.f32.mrf.mxu0
        %v6961 = vadd.f32 0.0, %v6960
        %v6962 = vpop.f32.mrf.mxu0
        %v6963 = vpop.f32.mrf.mxu0
        %v6964 = vadd.f32 0.0, %v6963
        %v6965 = vpop.f32.mrf.mxu0
        %6966 = vmatprep.mubr.bf16.mxu0 0
        %6967 = vmatmul.mubr.bf16.gmra.mxu0 %v6918
        %v6968 = vpop.f32.mrf.mxu0
        %v6969 = vadd.f32 0.0, %v6968
        %v6970 = vpop.f32.mrf.mxu0
        %v6971 = vpop.f32.mrf.mxu0
        %v6972 = vadd.f32 0.0, %v6971
        %v6973 = vpop.f32.mrf.mxu0
        %6974 = vmatprep.mubr.bf16.mxu0 0
        %6975 = vmatmul.mubr.bf16.gmra.mxu0 %v6921
        %v6976 = vpop.f32.mrf.mxu0
        %v6977 = vadd.f32 0.0, %v6976
        %v6978 = vpop.f32.mrf.mxu0
        %v6979 = vpop.f32.mrf.mxu0
        %v6980 = vadd.f32 0.0, %v6979
        %v6981 = vpop.f32.mrf.mxu0
        %6982 = vmatprep.mubr.bf16.mxu0 0
        %6983 = vmatmul.mubr.bf16.gmra.mxu0 %v6924
        %v6984 = vpop.f32.mrf.mxu0
        %v6985 = vadd.f32 0.0, %v6984
        %v6986 = vpop.f32.mrf.mxu0
        %v6987 = vpop.f32.mrf.mxu0
        %v6988 = vadd.f32 0.0, %v6987
        %v6989 = vpop.f32.mrf.mxu0
        %6990 = vdwg.mxu0
        %6991 = vrot.lane.b32.xlu0 %v617, 96
        %v6992 = vpop.permute.xlu0 %6991
        %6993 = vrot.lane.b32.xlu0 %v618, 96
        %v6994 = vpop.permute.xlu0 %6993
        %6995 = vrot.lane.b32.xlu0 %v619, 96
        %v6996 = vpop.permute.xlu0 %6995
        %6997 = vrot.lane.b32.xlu0 %v620, 96
        %v6998 = vpop.permute.xlu0 %6997
        %v7004 = vsel %vm355, %v6890, 0
        %v7007 = vsel %vm355, %v6891, 0
        %v7010 = vsel %vm355, %v6892, 0
        %v7013 = vsel %vm355, %v6893, 0
        %7015 = vmatprep.subr.bf16.mxu0 0
        %7016 = vmatpush1.bf16.msra.mxu0 0
        %7017 = vmatprep.subr.bf16.mxu0 0
        %7018 = vmatpush1.bf16.msra.mxu0 0
        %7019 = vmatprep.subr.bf16.mxu0 0
        %7020 = vmatpush1.bf16.msra.mxu0 0
        %7021 = vmatprep.subr.bf16.mxu0 0
        %7022 = vmatpush1.bf16.msra.mxu0 0
        %7023 = vmatprep.subr.bf16.mxu0 0
        %7024 = vmatpush1.bf16.msra.mxu0 %v6998
        %7025 = vmatprep.subr.bf16.mxu0 0
        %7026 = vmatpush1.bf16.msra.mxu0 %v6996
        %7027 = vmatprep.subr.bf16.mxu0 0
        %7028 = vmatpush1.bf16.msra.mxu0 %v6994
        %7029 = vmatprep.subr.bf16.mxu0 0
        %7030 = vmatpush1.bf16.msra.mxu0 %v6992
        %7031 = vmatprep.subr.bf16.mxu0 0
        %7032 = vmatpush2.bf16.msra.mxu0 0
        %7033 = vmatprep.subr.bf16.mxu0 0
        %7034 = vmatpush2.bf16.msra.mxu0 0
        %7035 = vmatprep.subr.bf16.mxu0 0
        %7036 = vmatpush2.bf16.msra.mxu0 0
        %7037 = vmatprep.subr.bf16.mxu0 0
        %7038 = vmatpush2.bf16.msra.mxu0 0
        %7039 = vmatprep.subr.bf16.mxu0 0
        %7040 = vmatpush2.bf16.msra.mxu0 0
        %7041 = vmatprep.subr.bf16.mxu0 0
        %7042 = vmatpush2.bf16.msra.mxu0 0
        %7043 = vmatprep.subr.bf16.mxu0 0
        %7044 = vmatpush2.bf16.msra.mxu0 0
        %7045 = vmatprep.subr.bf16.mxu0 0
        %7046 = vmatpush2.bf16.msra.mxu0 0
        %7047 = vmatprep.mubr.bf16.mxu0 0
        %7048 = vmatmul.mubr.bf16.gmra.mxu0 %v7004
        %v7049 = vpop.f32.mrf.mxu0
        %v7050 = vadd.f32 0.0, %v7049
        %v7051 = vpop.f32.mrf.mxu0
        %v7052 = vpop.f32.mrf.mxu0
        %v7053 = vadd.f32 0.0, %v7052
        %v7054 = vpop.f32.mrf.mxu0
        %7055 = vmatprep.mubr.bf16.mxu0 0
        %7056 = vmatmul.mubr.bf16.gmra.mxu0 %v7007
        %v7057 = vpop.f32.mrf.mxu0
        %v7058 = vadd.f32 0.0, %v7057
        %v7059 = vpop.f32.mrf.mxu0
        %v7060 = vpop.f32.mrf.mxu0
        %v7061 = vadd.f32 0.0, %v7060
        %v7062 = vpop.f32.mrf.mxu0
        %7063 = vmatprep.mubr.bf16.mxu0 0
        %7064 = vmatmul.mubr.bf16.gmra.mxu0 %v7010
        %v7065 = vpop.f32.mrf.mxu0
        %v7066 = vadd.f32 0.0, %v7065
        %v7067 = vpop.f32.mrf.mxu0
        %v7068 = vpop.f32.mrf.mxu0
        %v7069 = vadd.f32 0.0, %v7068
        %v7070 = vpop.f32.mrf.mxu0
        %7071 = vmatprep.mubr.bf16.mxu0 0
        %7072 = vmatmul.mubr.bf16.gmra.mxu0 %v7013
        %v7073 = vpop.f32.mrf.mxu0
        %v7074 = vadd.f32 0.0, %v7073
        %v7075 = vpop.f32.mrf.mxu0
        %v7076 = vpop.f32.mrf.mxu0
        %v7077 = vadd.f32 0.0, %v7076
        %v7078 = vpop.f32.mrf.mxu0
        %7079 = vdwg.mxu0
        %7080 = vrot.lane.b32.xlu0 %v621, 96
        %v7081 = vpop.permute.xlu0 %7080
        %7082 = vrot.lane.b32.xlu0 %v622, 96
        %v7083 = vpop.permute.xlu0 %7082
        %7084 = vrot.lane.b32.xlu0 %v623, 96
        %v7085 = vpop.permute.xlu0 %7084
        %7086 = vrot.lane.b32.xlu0 %v624, 96
        %v7087 = vpop.permute.xlu0 %7086
        %v7093 = vsel %vm355, %v6894, 0
        %v7096 = vsel %vm355, %v6895, 0
        %v7099 = vsel %vm355, %v6896, 0
        %v7102 = vsel %vm355, %v6897, 0
        %7104 = vmatprep.subr.bf16.mxu0 0
        %7105 = vmatpush1.bf16.msra.mxu0 0
        %7106 = vmatprep.subr.bf16.mxu0 0
        %7107 = vmatpush1.bf16.msra.mxu0 0
        %7108 = vmatprep.subr.bf16.mxu0 0
        %7109 = vmatpush1.bf16.msra.mxu0 0
        %7110 = vmatprep.subr.bf16.mxu0 0
        %7111 = vmatpush1.bf16.msra.mxu0 0
        %7112 = vmatprep.subr.bf16.mxu0 0
        %7113 = vmatpush1.bf16.msra.mxu0 %v7087
        %7114 = vmatprep.subr.bf16.mxu0 0
        %7115 = vmatpush1.bf16.msra.mxu0 %v7085
        %7116 = vmatprep.subr.bf16.mxu0 0
        %7117 = vmatpush1.bf16.msra.mxu0 %v7083
        %7118 = vmatprep.subr.bf16.mxu0 0
        %7119 = vmatpush1.bf16.msra.mxu0 %v7081
        %7120 = vmatprep.subr.bf16.mxu0 0
        %7121 = vmatpush2.bf16.msra.mxu0 0
        %7122 = vmatprep.subr.bf16.mxu0 0
        %7123 = vmatpush2.bf16.msra.mxu0 0
        %7124 = vmatprep.subr.bf16.mxu0 0
        %7125 = vmatpush2.bf16.msra.mxu0 0
        %7126 = vmatprep.subr.bf16.mxu0 0
        %7127 = vmatpush2.bf16.msra.mxu0 0
        %7128 = vmatprep.subr.bf16.mxu0 0
        %7129 = vmatpush2.bf16.msra.mxu0 0
        %7130 = vmatprep.subr.bf16.mxu0 0
        %7131 = vmatpush2.bf16.msra.mxu0 0
        %7132 = vmatprep.subr.bf16.mxu0 0
        %7133 = vmatpush2.bf16.msra.mxu0 0
        %7134 = vmatprep.subr.bf16.mxu0 0
        %7135 = vmatpush2.bf16.msra.mxu0 0
        %7136 = vmatprep.mubr.bf16.mxu0 0
        %7137 = vmatmul.mubr.bf16.gmra.mxu0 %v7093
        %v7138 = vpop.f32.mrf.mxu0
        %v7139 = vadd.f32 0.0, %v7138
        %v7140 = vpop.f32.mrf.mxu0
        %v7141 = vpop.f32.mrf.mxu0
        %v7142 = vadd.f32 0.0, %v7141
        %v7143 = vpop.f32.mrf.mxu0
        %7144 = vmatprep.mubr.bf16.mxu0 0
        %7145 = vmatmul.mubr.bf16.gmra.mxu0 %v7096
        %v7146 = vpop.f32.mrf.mxu0
        %v7147 = vadd.f32 0.0, %v7146
        %v7148 = vpop.f32.mrf.mxu0
        %v7149 = vpop.f32.mrf.mxu0
        %v7150 = vadd.f32 0.0, %v7149
        %v7151 = vpop.f32.mrf.mxu0
        %7152 = vmatprep.mubr.bf16.mxu0 0
        %7153 = vmatmul.mubr.bf16.gmra.mxu0 %v7099
        %v7154 = vpop.f32.mrf.mxu0
        %v7155 = vadd.f32 0.0, %v7154
        %v7156 = vpop.f32.mrf.mxu0
        %v7157 = vpop.f32.mrf.mxu0
        %v7158 = vadd.f32 0.0, %v7157
        %v7159 = vpop.f32.mrf.mxu0
        %7160 = vmatprep.mubr.bf16.mxu0 0
        %7161 = vmatmul.mubr.bf16.gmra.mxu0 %v7102
        %v7162 = vpop.f32.mrf.mxu0
        %v7163 = vadd.f32 0.0, %v7162
        %v7164 = vpop.f32.mrf.mxu0
        %v7165 = vpop.f32.mrf.mxu0
        %v7166 = vadd.f32 0.0, %v7165
        %v7167 = vpop.f32.mrf.mxu0
        %7168 = vdwg.mxu0
        %7169 = vrot.lane.b32.xlu0 %v625, 96
        %v7170 = vpop.permute.xlu0 %7169
        %7171 = vrot.lane.b32.xlu0 %v626, 96
        %v7172 = vpop.permute.xlu0 %7171
        %7173 = vrot.lane.b32.xlu0 %v627, 96
        %v7174 = vpop.permute.xlu0 %7173
        %7175 = vrot.lane.b32.xlu0 %v628, 96
        %v7176 = vpop.permute.xlu0 %7175
        %v7182 = vsel %vm355, %v6898, 0
        %v7185 = vsel %vm355, %v6899, 0
        %v7188 = vsel %vm355, %v6900, 0
        %v7191 = vsel %vm355, %v6901, 0
        %7193 = vmatprep.subr.bf16.mxu0 0
        %7194 = vmatpush1.bf16.msra.mxu0 0
        %7195 = vmatprep.subr.bf16.mxu0 0
        %7196 = vmatpush1.bf16.msra.mxu0 0
        %7197 = vmatprep.subr.bf16.mxu0 0
        %7198 = vmatpush1.bf16.msra.mxu0 0
        %7199 = vmatprep.subr.bf16.mxu0 0
        %7200 = vmatpush1.bf16.msra.mxu0 0
        %7201 = vmatprep.subr.bf16.mxu0 0
        %7202 = vmatpush1.bf16.msra.mxu0 %v7176
        %7203 = vmatprep.subr.bf16.mxu0 0
        %7204 = vmatpush1.bf16.msra.mxu0 %v7174
        %7205 = vmatprep.subr.bf16.mxu0 0
        %7206 = vmatpush1.bf16.msra.mxu0 %v7172
        %7207 = vmatprep.subr.bf16.mxu0 0
        %7208 = vmatpush1.bf16.msra.mxu0 %v7170
        %7209 = vmatprep.subr.bf16.mxu0 0
        %7210 = vmatpush2.bf16.msra.mxu0 0
        %7211 = vmatprep.subr.bf16.mxu0 0
        %7212 = vmatpush2.bf16.msra.mxu0 0
        %7213 = vmatprep.subr.bf16.mxu0 0
        %7214 = vmatpush2.bf16.msra.mxu0 0
        %7215 = vmatprep.subr.bf16.mxu0 0
        %7216 = vmatpush2.bf16.msra.mxu0 0
        %7217 = vmatprep.subr.bf16.mxu0 0
        %7218 = vmatpush2.bf16.msra.mxu0 0
        %7219 = vmatprep.subr.bf16.mxu0 0
        %7220 = vmatpush2.bf16.msra.mxu0 0
        %7221 = vmatprep.subr.bf16.mxu0 0
        %7222 = vmatpush2.bf16.msra.mxu0 0
        %7223 = vmatprep.subr.bf16.mxu0 0
        %7224 = vmatpush2.bf16.msra.mxu0 0
        %7225 = vmatprep.mubr.bf16.mxu0 0
        %7226 = vmatmul.mubr.bf16.gmra.mxu0 %v7182
        %v7227 = vpop.f32.mrf.mxu0
        %v7228 = vadd.f32 0.0, %v7227
        %v7229 = vpop.f32.mrf.mxu0
        %v7230 = vpop.f32.mrf.mxu0
        %v7231 = vadd.f32 0.0, %v7230
        %v7232 = vpop.f32.mrf.mxu0
        %7233 = vmatprep.mubr.bf16.mxu0 0
        %7234 = vmatmul.mubr.bf16.gmra.mxu0 %v7185
        %v7235 = vpop.f32.mrf.mxu0
        %v7236 = vadd.f32 0.0, %v7235
        %v7237 = vpop.f32.mrf.mxu0
        %v7238 = vpop.f32.mrf.mxu0
        %v7239 = vadd.f32 0.0, %v7238
        %v7240 = vpop.f32.mrf.mxu0
        %7241 = vmatprep.mubr.bf16.mxu0 0
        %7242 = vmatmul.mubr.bf16.gmra.mxu0 %v7188
        %v7243 = vpop.f32.mrf.mxu0
        %v7244 = vadd.f32 0.0, %v7243
        %v7245 = vpop.f32.mrf.mxu0
        %v7246 = vpop.f32.mrf.mxu0
        %v7247 = vadd.f32 0.0, %v7246
        %v7248 = vpop.f32.mrf.mxu0
        %7249 = vmatprep.mubr.bf16.mxu0 0
        %7250 = vmatmul.mubr.bf16.gmra.mxu0 %v7191
        %v7251 = vpop.f32.mrf.mxu0
        %v7252 = vadd.f32 0.0, %v7251
        %v7253 = vpop.f32.mrf.mxu0
        %v7254 = vpop.f32.mrf.mxu0
        %v7255 = vadd.f32 0.0, %v7254
        %v7256 = vpop.f32.mrf.mxu0
        %7257 = vdwg.mxu0
        %v7258 = vpack.c.bf16 %v6964, %v6961
        %v7259 = vpack.c.bf16 %v6972, %v6969
        %v7260 = vpack.c.bf16 %v6980, %v6977
        %v7261 = vpack.c.bf16 %v6988, %v6985
        %v7262 = vpack.c.bf16 %v7053, %v7050
        %v7263 = vpack.c.bf16 %v7061, %v7058
        %v7264 = vpack.c.bf16 %v7069, %v7066
        %v7265 = vpack.c.bf16 %v7077, %v7074
        %v7266 = vpack.c.bf16 %v7142, %v7139
        %v7267 = vpack.c.bf16 %v7150, %v7147
        %v7268 = vpack.c.bf16 %v7158, %v7155
        %v7269 = vpack.c.bf16 %v7166, %v7163
        %v7270 = vpack.c.bf16 %v7231, %v7228
        %v7271 = vpack.c.bf16 %v7239, %v7236
        %v7272 = vpack.c.bf16 %v7247, %v7244
        %v7273 = vpack.c.bf16 %v7255, %v7252
        %v7274 = vld [vmem:[%s3 + $0x10] sm:$0xf]
        %v7276 = vsel %vm928, %v7258, 0
        %v7279 = vsel %vm928, %v7259, 0
        %v7282 = vsel %vm928, %v7260, 0
        %v7285 = vsel %vm928, %v7261, 0
        %v7288 = vsel %vm928, %v7262, 0
        %v7291 = vsel %vm928, %v7263, 0
        %v7294 = vsel %vm928, %v7264, 0
        %v7297 = vsel %vm928, %v7265, 0
        %v7300 = vsel %vm928, %v7266, 0
        %v7303 = vsel %vm928, %v7267, 0
        %v7306 = vsel %vm928, %v7268, 0
        %v7309 = vsel %vm928, %v7269, 0
        %v7312 = vsel %vm928, %v7270, 0
        %v7315 = vsel %vm928, %v7271, 0
        %v7318 = vsel %vm928, %v7272, 0
        %v7321 = vsel %vm928, %v7273, 0
        %v7324 = vsel %vm941, %v7274, 0
        %7326 = vmatprep.subr.bf16.mxu0 0
        %7327 = vmatpush1.bf16.msra.mxu0 0
        %7328 = vmatprep.subr.bf16.mxu0 0
        %7329 = vmatpush1.bf16.msra.mxu0 0
        %7330 = vmatprep.subr.bf16.mxu0 0
        %7331 = vmatpush1.bf16.msra.mxu0 0
        %7332 = vmatprep.subr.bf16.mxu0 0
        %7333 = vmatpush1.bf16.msra.mxu0 0
        %7334 = vmatprep.subr.bf16.mxu0 0
        %7335 = vmatpush1.bf16.msra.mxu0 0
        %7336 = vmatprep.subr.bf16.mxu0 0
        %7337 = vmatpush1.bf16.msra.mxu0 0
        %7338 = vmatprep.subr.bf16.mxu0 0
        %7339 = vmatpush1.bf16.msra.mxu0 0
        %7340 = vmatprep.subr.bf16.mxu0 0
        %7341 = vmatpush1.bf16.msra.mxu0 %v7324
        %7342 = vmatprep.subr.bf16.mxu0 0
        %7343 = vmatpush2.bf16.msra.mxu0 0
        %7344 = vmatprep.subr.bf16.mxu0 0
        %7345 = vmatpush2.bf16.msra.mxu0 0
        %7346 = vmatprep.subr.bf16.mxu0 0
        %7347 = vmatpush2.bf16.msra.mxu0 0
        %7348 = vmatprep.subr.bf16.mxu0 0
        %7349 = vmatpush2.bf16.msra.mxu0 0
        %7350 = vmatprep.subr.bf16.mxu0 0
        %7351 = vmatpush2.bf16.msra.mxu0 0
        %7352 = vmatprep.subr.bf16.mxu0 0
        %7353 = vmatpush2.bf16.msra.mxu0 0
        %7354 = vmatprep.subr.bf16.mxu0 0
        %7355 = vmatpush2.bf16.msra.mxu0 0
        %7356 = vmatprep.subr.bf16.mxu0 0
        %7357 = vmatpush2.bf16.msra.mxu0 0
        %7358 = vmatprep.mubr.bf16.mxu0 0
        %7359 = vmatmul.mubr.bf16.gmra.mxu0 %v7276
        %v7360 = vpop.f32.mrf.mxu0
        %v7361 = vadd.f32 0.0, %v7360
        %v7362 = vpop.f32.mrf.mxu0
        %v7363 = vpop.f32.mrf.mxu0
        %v7364 = vadd.f32 0.0, %v7363
        %v7365 = vpop.f32.mrf.mxu0
        %7366 = vmatprep.mubr.bf16.mxu0 0
        %7367 = vmatmul.mubr.bf16.gmra.mxu0 %v7279
        %v7368 = vpop.f32.mrf.mxu0
        %v7369 = vadd.f32 0.0, %v7368
        %v7370 = vpop.f32.mrf.mxu0
        %v7371 = vpop.f32.mrf.mxu0
        %v7372 = vadd.f32 0.0, %v7371
        %v7373 = vpop.f32.mrf.mxu0
        %7374 = vmatprep.mubr.bf16.mxu0 0
        %7375 = vmatmul.mubr.bf16.gmra.mxu0 %v7282
        %v7376 = vpop.f32.mrf.mxu0
        %v7377 = vadd.f32 0.0, %v7376
        %v7378 = vpop.f32.mrf.mxu0
        %v7379 = vpop.f32.mrf.mxu0
        %v7380 = vadd.f32 0.0, %v7379
        %v7381 = vpop.f32.mrf.mxu0
        %7382 = vmatprep.mubr.bf16.mxu0 0
        %7383 = vmatmul.mubr.bf16.gmra.mxu0 %v7285
        %v7384 = vpop.f32.mrf.mxu0
        %v7385 = vadd.f32 0.0, %v7384
        %v7386 = vpop.f32.mrf.mxu0
        %v7387 = vpop.f32.mrf.mxu0
        %v7388 = vadd.f32 0.0, %v7387
        %v7389 = vpop.f32.mrf.mxu0
        %7390 = vmatprep.mubr.bf16.mxu0 0
        %7391 = vmatmul.mubr.bf16.gmra.mxu0 %v7288
        %v7392 = vpop.f32.mrf.mxu0
        %v7393 = vadd.f32 0.0, %v7392
        %v7394 = vpop.f32.mrf.mxu0
        %v7395 = vpop.f32.mrf.mxu0
        %v7396 = vadd.f32 0.0, %v7395
        %v7397 = vpop.f32.mrf.mxu0
        %7398 = vmatprep.mubr.bf16.mxu0 0
        %7399 = vmatmul.mubr.bf16.gmra.mxu0 %v7291
        %v7400 = vpop.f32.mrf.mxu0
        %v7401 = vadd.f32 0.0, %v7400
        %v7402 = vpop.f32.mrf.mxu0
        %v7403 = vpop.f32.mrf.mxu0
        %v7404 = vadd.f32 0.0, %v7403
        %v7405 = vpop.f32.mrf.mxu0
        %7406 = vmatprep.mubr.bf16.mxu0 0
        %7407 = vmatmul.mubr.bf16.gmra.mxu0 %v7294
        %v7408 = vpop.f32.mrf.mxu0
        %v7409 = vadd.f32 0.0, %v7408
        %v7410 = vpop.f32.mrf.mxu0
        %v7411 = vpop.f32.mrf.mxu0
        %v7412 = vadd.f32 0.0, %v7411
        %v7413 = vpop.f32.mrf.mxu0
        %7414 = vmatprep.mubr.bf16.mxu0 0
        %7415 = vmatmul.mubr.bf16.gmra.mxu0 %v7297
        %v7416 = vpop.f32.mrf.mxu0
        %v7417 = vadd.f32 0.0, %v7416
        %v7418 = vpop.f32.mrf.mxu0
        %v7419 = vpop.f32.mrf.mxu0
        %v7420 = vadd.f32 0.0, %v7419
        %v7421 = vpop.f32.mrf.mxu0
        %7422 = vmatprep.mubr.bf16.mxu0 0
        %7423 = vmatmul.mubr.bf16.gmra.mxu0 %v7300
        %v7424 = vpop.f32.mrf.mxu0
        %v7425 = vadd.f32 0.0, %v7424
        %v7426 = vpop.f32.mrf.mxu0
        %v7427 = vpop.f32.mrf.mxu0
        %v7428 = vadd.f32 0.0, %v7427
        %v7429 = vpop.f32.mrf.mxu0
        %7430 = vmatprep.mubr.bf16.mxu0 0
        %7431 = vmatmul.mubr.bf16.gmra.mxu0 %v7303
        %v7432 = vpop.f32.mrf.mxu0
        %v7433 = vadd.f32 0.0, %v7432
        %v7434 = vpop.f32.mrf.mxu0
        %v7435 = vpop.f32.mrf.mxu0
        %v7436 = vadd.f32 0.0, %v7435
        %v7437 = vpop.f32.mrf.mxu0
        %7438 = vmatprep.mubr.bf16.mxu0 0
        %7439 = vmatmul.mubr.bf16.gmra.mxu0 %v7306
        %v7440 = vpop.f32.mrf.mxu0
        %v7441 = vadd.f32 0.0, %v7440
        %v7442 = vpop.f32.mrf.mxu0
        %v7443 = vpop.f32.mrf.mxu0
        %v7444 = vadd.f32 0.0, %v7443
        %v7445 = vpop.f32.mrf.mxu0
        %7446 = vmatprep.mubr.bf16.mxu0 0
        %7447 = vmatmul.mubr.bf16.gmra.mxu0 %v7309
        %v7448 = vpop.f32.mrf.mxu0
        %v7449 = vadd.f32 0.0, %v7448
        %v7450 = vpop.f32.mrf.mxu0
        %v7451 = vpop.f32.mrf.mxu0
        %v7452 = vadd.f32 0.0, %v7451
        %v7453 = vpop.f32.mrf.mxu0
        %7454 = vmatprep.mubr.bf16.mxu0 0
        %7455 = vmatmul.mubr.bf16.gmra.mxu0 %v7312
        %v7456 = vpop.f32.mrf.mxu0
        %v7457 = vadd.f32 0.0, %v7456
        %v7458 = vpop.f32.mrf.mxu0
        %v7459 = vpop.f32.mrf.mxu0
        %v7460 = vadd.f32 0.0, %v7459
        %v7461 = vpop.f32.mrf.mxu0
        %7462 = vmatprep.mubr.bf16.mxu0 0
        %7463 = vmatmul.mubr.bf16.gmra.mxu0 %v7315
        %v7464 = vpop.f32.mrf.mxu0
        %v7465 = vadd.f32 0.0, %v7464
        %v7466 = vpop.f32.mrf.mxu0
        %v7467 = vpop.f32.mrf.mxu0
        %v7468 = vadd.f32 0.0, %v7467
        %v7469 = vpop.f32.mrf.mxu0
        %7470 = vmatprep.mubr.bf16.mxu0 0
        %7471 = vmatmul.mubr.bf16.gmra.mxu0 %v7318
        %v7472 = vpop.f32.mrf.mxu0
        %v7473 = vadd.f32 0.0, %v7472
        %v7474 = vpop.f32.mrf.mxu0
        %v7475 = vpop.f32.mrf.mxu0
        %v7476 = vadd.f32 0.0, %v7475
        %v7477 = vpop.f32.mrf.mxu0
        %7478 = vmatprep.mubr.bf16.mxu0 0
        %7479 = vmatmul.mubr.bf16.gmra.mxu0 %v7321
        %v7480 = vpop.f32.mrf.mxu0
        %v7481 = vadd.f32 0.0, %v7480
        %v7482 = vpop.f32.mrf.mxu0
        %v7483 = vpop.f32.mrf.mxu0
        %v7484 = vadd.f32 0.0, %v7483
        %v7485 = vpop.f32.mrf.mxu0
        %7486 = vdwg.mxu0
        %v7487 = vadd.f32 %v6150, %v7361
        %v7488 = vadd.f32 %v6151, %v7364
        %v7489 = vadd.f32 %v6152, %v7369
        %v7490 = vadd.f32 %v6153, %v7372
        %v7491 = vadd.f32 %v6154, %v7377
        %v7492 = vadd.f32 %v6155, %v7380
        %v7493 = vadd.f32 %v6156, %v7385
        %v7494 = vadd.f32 %v6157, %v7388
        %v7495 = vadd.f32 %v6158, %v7393
        %v7496 = vadd.f32 %v6159, %v7396
        %v7497 = vadd.f32 %v6160, %v7401
        %v7498 = vadd.f32 %v6161, %v7404
        %v7499 = vadd.f32 %v6162, %v7409
        %v7500 = vadd.f32 %v6163, %v7412
        %v7501 = vadd.f32 %v6164, %v7417
        %v7502 = vadd.f32 %v6165, %v7420
        %v7503 = vadd.f32 %v6166, %v7425
        %v7504 = vadd.f32 %v6167, %v7428
        %v7505 = vadd.f32 %v6168, %v7433
        %v7506 = vadd.f32 %v6169, %v7436
        %v7507 = vadd.f32 %v6170, %v7441
        %v7508 = vadd.f32 %v6171, %v7444
        %v7509 = vadd.f32 %v6172, %v7449
        %v7510 = vadd.f32 %v6173, %v7452
        %v7511 = vadd.f32 %v6174, %v7457
        %v7512 = vadd.f32 %v6175, %v7460
        %v7513 = vadd.f32 %v6176, %v7465
        %v7514 = vadd.f32 %v6177, %v7468
        %v7515 = vadd.f32 %v6178, %v7473
        %v7516 = vadd.f32 %v6179, %v7476
        %v7517 = vadd.f32 %v6180, %v7481
        %v7518 = vadd.f32 %v6181, %v7484
        %7519 = vrot.lane.b32.xlu0 %v597, 88
        %v7520 = vpop.permute.xlu0 %7519
        %7521 = vrot.lane.b32.xlu0 %v598, 88
        %v7522 = vpop.permute.xlu0 %7521
        %7523 = vrot.lane.b32.xlu0 %v599, 88
        %v7524 = vpop.permute.xlu0 %7523
        %7525 = vrot.lane.b32.xlu0 %v600, 88
        %v7526 = vpop.permute.xlu0 %7525
        %v7528 = vrot.slane %v887, 4
        %v7530 = vsel %vm928, %v7520, 0
        %v7533 = vsel %vm928, %v7522, 0
        %v7536 = vsel %vm928, %v7524, 0
        %v7539 = vsel %vm928, %v7526, 0
        %v7542 = vsel %vm941, %v7528, 0
        %7544 = vmatprep.subr.bf16.mxu0 0
        %7545 = vmatpush1.bf16.msra.mxu0 0
        %7546 = vmatprep.subr.bf16.mxu0 0
        %7547 = vmatpush1.bf16.msra.mxu0 0
        %7548 = vmatprep.subr.bf16.mxu0 0
        %7549 = vmatpush1.bf16.msra.mxu0 0
        %7550 = vmatprep.subr.bf16.mxu0 0
        %7551 = vmatpush1.bf16.msra.mxu0 0
        %7552 = vmatprep.subr.bf16.mxu0 0
        %7553 = vmatpush1.bf16.msra.mxu0 0
        %7554 = vmatprep.subr.bf16.mxu0 0
        %7555 = vmatpush1.bf16.msra.mxu0 0
        %7556 = vmatprep.subr.bf16.mxu0 0
        %7557 = vmatpush1.bf16.msra.mxu0 0
        %7558 = vmatprep.subr.bf16.mxu0 0
        %7559 = vmatpush1.bf16.msra.mxu0 %v7542
        %7560 = vmatprep.subr.bf16.mxu0 0
        %7561 = vmatpush2.bf16.msra.mxu0 0
        %7562 = vmatprep.subr.bf16.mxu0 0
        %7563 = vmatpush2.bf16.msra.mxu0 0
        %7564 = vmatprep.subr.bf16.mxu0 0
        %7565 = vmatpush2.bf16.msra.mxu0 0
        %7566 = vmatprep.subr.bf16.mxu0 0
        %7567 = vmatpush2.bf16.msra.mxu0 0
        %7568 = vmatprep.subr.bf16.mxu0 0
        %7569 = vmatpush2.bf16.msra.mxu0 0
        %7570 = vmatprep.subr.bf16.mxu0 0
        %7571 = vmatpush2.bf16.msra.mxu0 0
        %7572 = vmatprep.subr.bf16.mxu0 0
        %7573 = vmatpush2.bf16.msra.mxu0 0
        %7574 = vmatprep.subr.bf16.mxu0 0
        %7575 = vmatpush2.bf16.msra.mxu0 0
        %7576 = vmatprep.mubr.bf16.mxu0 0
        %7577 = vmatmul.mubr.bf16.gmra.mxu0 %v7530
        %v7578 = vpop.f32.mrf.mxu0
        %v7579 = vadd.f32 %v920, %v7578
        %v7580 = vpop.f32.mrf.mxu0
        %v7581 = vpop.f32.mrf.mxu0
        %v7582 = vadd.f32 %v921, %v7581
        %v7583 = vpop.f32.mrf.mxu0
        %7584 = vmatprep.mubr.bf16.mxu0 0
        %7585 = vmatmul.mubr.bf16.gmra.mxu0 %v7533
        %v7586 = vpop.f32.mrf.mxu0
        %v7587 = vadd.f32 %v922, %v7586
        %v7588 = vpop.f32.mrf.mxu0
        %v7589 = vpop.f32.mrf.mxu0
        %v7590 = vadd.f32 %v923, %v7589
        %v7591 = vpop.f32.mrf.mxu0
        %7592 = vmatprep.mubr.bf16.mxu0 0
        %7593 = vmatmul.mubr.bf16.gmra.mxu0 %v7536
        %v7594 = vpop.f32.mrf.mxu0
        %v7595 = vadd.f32 %v924, %v7594
        %v7596 = vpop.f32.mrf.mxu0
        %v7597 = vpop.f32.mrf.mxu0
        %v7598 = vadd.f32 %v925, %v7597
        %v7599 = vpop.f32.mrf.mxu0
        %7600 = vmatprep.mubr.bf16.mxu0 0
        %7601 = vmatmul.mubr.bf16.gmra.mxu0 %v7539
        %v7602 = vpop.f32.mrf.mxu0
        %v7603 = vadd.f32 %v926, %v7602
        %v7604 = vpop.f32.mrf.mxu0
        %v7605 = vpop.f32.mrf.mxu0
        %v7606 = vadd.f32 %v927, %v7605
        %v7607 = vpop.f32.mrf.mxu0
        %7608 = vdwg.mxu0
        %7609 = vrot.lane.b32.xlu0 %v601, 88
        %v7610 = vpop.permute.xlu0 %7609
        %7611 = vrot.lane.b32.xlu0 %v602, 88
        %v7612 = vpop.permute.xlu0 %7611
        %7613 = vrot.lane.b32.xlu0 %v603, 88
        %v7614 = vpop.permute.xlu0 %7613
        %7615 = vrot.lane.b32.xlu0 %v604, 88
        %v7616 = vpop.permute.xlu0 %7615
        %v7618 = vrot.slane %v891, 4
        %v7620 = vsel %vm928, %v7610, 0
        %v7623 = vsel %vm928, %v7612, 0
        %v7626 = vsel %vm928, %v7614, 0
        %v7629 = vsel %vm928, %v7616, 0
        %v7632 = vsel %vm941, %v7618, 0
        %7634 = vmatprep.subr.bf16.mxu0 0
        %7635 = vmatpush1.bf16.msra.mxu0 0
        %7636 = vmatprep.subr.bf16.mxu0 0
        %7637 = vmatpush1.bf16.msra.mxu0 0
        %7638 = vmatprep.subr.bf16.mxu0 0
        %7639 = vmatpush1.bf16.msra.mxu0 0
        %7640 = vmatprep.subr.bf16.mxu0 0
        %7641 = vmatpush1.bf16.msra.mxu0 0
        %7642 = vmatprep.subr.bf16.mxu0 0
        %7643 = vmatpush1.bf16.msra.mxu0 0
        %7644 = vmatprep.subr.bf16.mxu0 0
        %7645 = vmatpush1.bf16.msra.mxu0 0
        %7646 = vmatprep.subr.bf16.mxu0 0
        %7647 = vmatpush1.bf16.msra.mxu0 0
        %7648 = vmatprep.subr.bf16.mxu0 0
        %7649 = vmatpush1.bf16.msra.mxu0 %v7632
        %7650 = vmatprep.subr.bf16.mxu0 0
        %7651 = vmatpush2.bf16.msra.mxu0 0
        %7652 = vmatprep.subr.bf16.mxu0 0
        %7653 = vmatpush2.bf16.msra.mxu0 0
        %7654 = vmatprep.subr.bf16.mxu0 0
        %7655 = vmatpush2.bf16.msra.mxu0 0
        %7656 = vmatprep.subr.bf16.mxu0 0
        %7657 = vmatpush2.bf16.msra.mxu0 0
        %7658 = vmatprep.subr.bf16.mxu0 0
        %7659 = vmatpush2.bf16.msra.mxu0 0
        %7660 = vmatprep.subr.bf16.mxu0 0
        %7661 = vmatpush2.bf16.msra.mxu0 0
        %7662 = vmatprep.subr.bf16.mxu0 0
        %7663 = vmatpush2.bf16.msra.mxu0 0
        %7664 = vmatprep.subr.bf16.mxu0 0
        %7665 = vmatpush2.bf16.msra.mxu0 0
        %7666 = vmatprep.mubr.bf16.mxu0 0
        %7667 = vmatmul.mubr.bf16.gmra.mxu0 %v7620
        %v7668 = vpop.f32.mrf.mxu0
        %v7669 = vadd.f32 %v920, %v7668
        %v7670 = vpop.f32.mrf.mxu0
        %v7671 = vpop.f32.mrf.mxu0
        %v7672 = vadd.f32 %v921, %v7671
        %v7673 = vpop.f32.mrf.mxu0
        %7674 = vmatprep.mubr.bf16.mxu0 0
        %7675 = vmatmul.mubr.bf16.gmra.mxu0 %v7623
        %v7676 = vpop.f32.mrf.mxu0
        %v7677 = vadd.f32 %v922, %v7676
        %v7678 = vpop.f32.mrf.mxu0
        %v7679 = vpop.f32.mrf.mxu0
        %v7680 = vadd.f32 %v923, %v7679
        %v7681 = vpop.f32.mrf.mxu0
        %7682 = vmatprep.mubr.bf16.mxu0 0
        %7683 = vmatmul.mubr.bf16.gmra.mxu0 %v7626
        %v7684 = vpop.f32.mrf.mxu0
        %v7685 = vadd.f32 %v924, %v7684
        %v7686 = vpop.f32.mrf.mxu0
        %v7687 = vpop.f32.mrf.mxu0
        %v7688 = vadd.f32 %v925, %v7687
        %v7689 = vpop.f32.mrf.mxu0
        %7690 = vmatprep.mubr.bf16.mxu0 0
        %7691 = vmatmul.mubr.bf16.gmra.mxu0 %v7629
        %v7692 = vpop.f32.mrf.mxu0
        %v7693 = vadd.f32 %v926, %v7692
        %v7694 = vpop.f32.mrf.mxu0
        %v7695 = vpop.f32.mrf.mxu0
        %v7696 = vadd.f32 %v927, %v7695
        %v7697 = vpop.f32.mrf.mxu0
        %7698 = vdwg.mxu0
        %7699 = vrot.lane.b32.xlu0 %v605, 88
        %v7700 = vpop.permute.xlu0 %7699
        %7701 = vrot.lane.b32.xlu0 %v606, 88
        %v7702 = vpop.permute.xlu0 %7701
        %7703 = vrot.lane.b32.xlu0 %v607, 88
        %v7704 = vpop.permute.xlu0 %7703
        %7705 = vrot.lane.b32.xlu0 %v608, 88
        %v7706 = vpop.permute.xlu0 %7705
        %v7708 = vrot.slane %v895, 4
        %v7710 = vsel %vm928, %v7700, 0
        %v7713 = vsel %vm928, %v7702, 0
        %v7716 = vsel %vm928, %v7704, 0
        %v7719 = vsel %vm928, %v7706, 0
        %v7722 = vsel %vm941, %v7708, 0
        %7724 = vmatprep.subr.bf16.mxu0 0
        %7725 = vmatpush1.bf16.msra.mxu0 0
        %7726 = vmatprep.subr.bf16.mxu0 0
        %7727 = vmatpush1.bf16.msra.mxu0 0
        %7728 = vmatprep.subr.bf16.mxu0 0
        %7729 = vmatpush1.bf16.msra.mxu0 0
        %7730 = vmatprep.subr.bf16.mxu0 0
        %7731 = vmatpush1.bf16.msra.mxu0 0
        %7732 = vmatprep.subr.bf16.mxu0 0
        %7733 = vmatpush1.bf16.msra.mxu0 0
        %7734 = vmatprep.subr.bf16.mxu0 0
        %7735 = vmatpush1.bf16.msra.mxu0 0
        %7736 = vmatprep.subr.bf16.mxu0 0
        %7737 = vmatpush1.bf16.msra.mxu0 0
        %7738 = vmatprep.subr.bf16.mxu0 0
        %7739 = vmatpush1.bf16.msra.mxu0 %v7722
        %7740 = vmatprep.subr.bf16.mxu0 0
        %7741 = vmatpush2.bf16.msra.mxu0 0
        %7742 = vmatprep.subr.bf16.mxu0 0
        %7743 = vmatpush2.bf16.msra.mxu0 0
        %7744 = vmatprep.subr.bf16.mxu0 0
        %7745 = vmatpush2.bf16.msra.mxu0 0
        %7746 = vmatprep.subr.bf16.mxu0 0
        %7747 = vmatpush2.bf16.msra.mxu0 0
        %7748 = vmatprep.subr.bf16.mxu0 0
        %7749 = vmatpush2.bf16.msra.mxu0 0
        %7750 = vmatprep.subr.bf16.mxu0 0
        %7751 = vmatpush2.bf16.msra.mxu0 0
        %7752 = vmatprep.subr.bf16.mxu0 0
        %7753 = vmatpush2.bf16.msra.mxu0 0
        %7754 = vmatprep.subr.bf16.mxu0 0
        %7755 = vmatpush2.bf16.msra.mxu0 0
        %7756 = vmatprep.mubr.bf16.mxu0 0
        %7757 = vmatmul.mubr.bf16.gmra.mxu0 %v7710
        %v7758 = vpop.f32.mrf.mxu0
        %v7759 = vadd.f32 %v920, %v7758
        %v7760 = vpop.f32.mrf.mxu0
        %v7761 = vpop.f32.mrf.mxu0
        %v7762 = vadd.f32 %v921, %v7761
        %v7763 = vpop.f32.mrf.mxu0
        %7764 = vmatprep.mubr.bf16.mxu0 0
        %7765 = vmatmul.mubr.bf16.gmra.mxu0 %v7713
        %v7766 = vpop.f32.mrf.mxu0
        %v7767 = vadd.f32 %v922, %v7766
        %v7768 = vpop.f32.mrf.mxu0
        %v7769 = vpop.f32.mrf.mxu0
        %v7770 = vadd.f32 %v923, %v7769
        %v7771 = vpop.f32.mrf.mxu0
        %7772 = vmatprep.mubr.bf16.mxu0 0
        %7773 = vmatmul.mubr.bf16.gmra.mxu0 %v7716
        %v7774 = vpop.f32.mrf.mxu0
        %v7775 = vadd.f32 %v924, %v7774
        %v7776 = vpop.f32.mrf.mxu0
        %v7777 = vpop.f32.mrf.mxu0
        %v7778 = vadd.f32 %v925, %v7777
        %v7779 = vpop.f32.mrf.mxu0
        %7780 = vmatprep.mubr.bf16.mxu0 0
        %7781 = vmatmul.mubr.bf16.gmra.mxu0 %v7719
        %v7782 = vpop.f32.mrf.mxu0
        %v7783 = vadd.f32 %v926, %v7782
        %v7784 = vpop.f32.mrf.mxu0
        %v7785 = vpop.f32.mrf.mxu0
        %v7786 = vadd.f32 %v927, %v7785
        %v7787 = vpop.f32.mrf.mxu0
        %7788 = vdwg.mxu0
        %7789 = vrot.lane.b32.xlu0 %v609, 88
        %v7790 = vpop.permute.xlu0 %7789
        %7791 = vrot.lane.b32.xlu0 %v610, 88
        %v7792 = vpop.permute.xlu0 %7791
        %7793 = vrot.lane.b32.xlu0 %v611, 88
        %v7794 = vpop.permute.xlu0 %7793
        %7795 = vrot.lane.b32.xlu0 %v612, 88
        %v7796 = vpop.permute.xlu0 %7795
        %v7798 = vrot.slane %v899, 4
        %v7800 = vsel %vm928, %v7790, 0
        %v7803 = vsel %vm928, %v7792, 0
        %v7806 = vsel %vm928, %v7794, 0
        %v7809 = vsel %vm928, %v7796, 0
        %v7812 = vsel %vm941, %v7798, 0
        %7814 = vmatprep.subr.bf16.mxu0 0
        %7815 = vmatpush1.bf16.msra.mxu0 0
        %7816 = vmatprep.subr.bf16.mxu0 0
        %7817 = vmatpush1.bf16.msra.mxu0 0
        %7818 = vmatprep.subr.bf16.mxu0 0
        %7819 = vmatpush1.bf16.msra.mxu0 0
        %7820 = vmatprep.subr.bf16.mxu0 0
        %7821 = vmatpush1.bf16.msra.mxu0 0
        %7822 = vmatprep.subr.bf16.mxu0 0
        %7823 = vmatpush1.bf16.msra.mxu0 0
        %7824 = vmatprep.subr.bf16.mxu0 0
        %7825 = vmatpush1.bf16.msra.mxu0 0
        %7826 = vmatprep.subr.bf16.mxu0 0
        %7827 = vmatpush1.bf16.msra.mxu0 0
        %7828 = vmatprep.subr.bf16.mxu0 0
        %7829 = vmatpush1.bf16.msra.mxu0 %v7812
        %7830 = vmatprep.subr.bf16.mxu0 0
        %7831 = vmatpush2.bf16.msra.mxu0 0
        %7832 = vmatprep.subr.bf16.mxu0 0
        %7833 = vmatpush2.bf16.msra.mxu0 0
        %7834 = vmatprep.subr.bf16.mxu0 0
        %7835 = vmatpush2.bf16.msra.mxu0 0
        %7836 = vmatprep.subr.bf16.mxu0 0
        %7837 = vmatpush2.bf16.msra.mxu0 0
        %7838 = vmatprep.subr.bf16.mxu0 0
        %7839 = vmatpush2.bf16.msra.mxu0 0
        %7840 = vmatprep.subr.bf16.mxu0 0
        %7841 = vmatpush2.bf16.msra.mxu0 0
        %7842 = vmatprep.subr.bf16.mxu0 0
        %7843 = vmatpush2.bf16.msra.mxu0 0
        %7844 = vmatprep.subr.bf16.mxu0 0
        %7845 = vmatpush2.bf16.msra.mxu0 0
        %7846 = vmatprep.mubr.bf16.mxu0 0
        %7847 = vmatmul.mubr.bf16.gmra.mxu0 %v7800
        %v7848 = vpop.f32.mrf.mxu0
        %v7849 = vadd.f32 %v920, %v7848
        %v7850 = vpop.f32.mrf.mxu0
        %v7851 = vpop.f32.mrf.mxu0
        %v7852 = vadd.f32 %v921, %v7851
        %v7853 = vpop.f32.mrf.mxu0
        %7854 = vmatprep.mubr.bf16.mxu0 0
        %7855 = vmatmul.mubr.bf16.gmra.mxu0 %v7803
        %v7856 = vpop.f32.mrf.mxu0
        %v7857 = vadd.f32 %v922, %v7856
        %v7858 = vpop.f32.mrf.mxu0
        %v7859 = vpop.f32.mrf.mxu0
        %v7860 = vadd.f32 %v923, %v7859
        %v7861 = vpop.f32.mrf.mxu0
        %7862 = vmatprep.mubr.bf16.mxu0 0
        %7863 = vmatmul.mubr.bf16.gmra.mxu0 %v7806
        %v7864 = vpop.f32.mrf.mxu0
        %v7865 = vadd.f32 %v924, %v7864
        %v7866 = vpop.f32.mrf.mxu0
        %v7867 = vpop.f32.mrf.mxu0
        %v7868 = vadd.f32 %v925, %v7867
        %v7869 = vpop.f32.mrf.mxu0
        %7870 = vmatprep.mubr.bf16.mxu0 0
        %7871 = vmatmul.mubr.bf16.gmra.mxu0 %v7809
        %v7872 = vpop.f32.mrf.mxu0
        %v7873 = vadd.f32 %v926, %v7872
        %v7874 = vpop.f32.mrf.mxu0
        %v7875 = vpop.f32.mrf.mxu0
        %v7876 = vadd.f32 %v927, %v7875
        %v7877 = vpop.f32.mrf.mxu0
        %7878 = vdwg.mxu0
        %v7879 = vsel %vm355, %v7579, -inf
        %7880 = vmax.xlane.f32.xlu0 %v7879
        %v7881 = vpop.xlane.xlu0 %7880
        %v7882 = vsel %vm355, %v7582, -inf
        %7883 = vmax.xlane.f32.xlu0 %v7882
        %v7884 = vpop.xlane.xlu0 %7883
        %v7885 = vsel %vm355, %v7587, -inf
        %7886 = vmax.xlane.f32.xlu0 %v7885
        %v7887 = vpop.xlane.xlu0 %7886
        %v7888 = vsel %vm355, %v7590, -inf
        %7889 = vmax.xlane.f32.xlu0 %v7888
        %v7890 = vpop.xlane.xlu0 %7889
        %v7891 = vsel %vm355, %v7595, -inf
        %7892 = vmax.xlane.f32.xlu0 %v7891
        %v7893 = vpop.xlane.xlu0 %7892
        %v7894 = vsel %vm355, %v7598, -inf
        %7895 = vmax.xlane.f32.xlu0 %v7894
        %v7896 = vpop.xlane.xlu0 %7895
        %v7897 = vsel %vm355, %v7603, -inf
        %7898 = vmax.xlane.f32.xlu0 %v7897
        %v7899 = vpop.xlane.xlu0 %7898
        %v7900 = vsel %vm355, %v7606, -inf
        %7901 = vmax.xlane.f32.xlu0 %v7900
        %v7902 = vpop.xlane.xlu0 %7901
        %v7903 = vsel %vm355, %v7669, -inf
        %7904 = vmax.xlane.f32.xlu0 %v7903
        %v7905 = vpop.xlane.xlu0 %7904
        %v7906 = vsel %vm355, %v7672, -inf
        %7907 = vmax.xlane.f32.xlu0 %v7906
        %v7908 = vpop.xlane.xlu0 %7907
        %v7909 = vsel %vm355, %v7677, -inf
        %7910 = vmax.xlane.f32.xlu0 %v7909
        %v7911 = vpop.xlane.xlu0 %7910
        %v7912 = vsel %vm355, %v7680, -inf
        %7913 = vmax.xlane.f32.xlu0 %v7912
        %v7914 = vpop.xlane.xlu0 %7913
        %v7915 = vsel %vm355, %v7685, -inf
        %7916 = vmax.xlane.f32.xlu0 %v7915
        %v7917 = vpop.xlane.xlu0 %7916
        %v7918 = vsel %vm355, %v7688, -inf
        %7919 = vmax.xlane.f32.xlu0 %v7918
        %v7920 = vpop.xlane.xlu0 %7919
        %v7921 = vsel %vm355, %v7693, -inf
        %7922 = vmax.xlane.f32.xlu0 %v7921
        %v7923 = vpop.xlane.xlu0 %7922
        %v7924 = vsel %vm355, %v7696, -inf
        %7925 = vmax.xlane.f32.xlu0 %v7924
        %v7926 = vpop.xlane.xlu0 %7925
        %v7927 = vsel %vm355, %v7759, -inf
        %7928 = vmax.xlane.f32.xlu0 %v7927
        %v7929 = vpop.xlane.xlu0 %7928
        %v7930 = vsel %vm355, %v7762, -inf
        %7931 = vmax.xlane.f32.xlu0 %v7930
        %v7932 = vpop.xlane.xlu0 %7931
        %v7933 = vsel %vm355, %v7767, -inf
        %7934 = vmax.xlane.f32.xlu0 %v7933
        %v7935 = vpop.xlane.xlu0 %7934
        %v7936 = vsel %vm355, %v7770, -inf
        %7937 = vmax.xlane.f32.xlu0 %v7936
        %v7938 = vpop.xlane.xlu0 %7937
        %v7939 = vsel %vm355, %v7775, -inf
        %7940 = vmax.xlane.f32.xlu0 %v7939
        %v7941 = vpop.xlane.xlu0 %7940
        %v7942 = vsel %vm355, %v7778, -inf
        %7943 = vmax.xlane.f32.xlu0 %v7942
        %v7944 = vpop.xlane.xlu0 %7943
        %v7945 = vsel %vm355, %v7783, -inf
        %7946 = vmax.xlane.f32.xlu0 %v7945
        %v7947 = vpop.xlane.xlu0 %7946
        %v7948 = vsel %vm355, %v7786, -inf
        %7949 = vmax.xlane.f32.xlu0 %v7948
        %v7950 = vpop.xlane.xlu0 %7949
        %v7951 = vsel %vm355, %v7849, -inf
        %7952 = vmax.xlane.f32.xlu0 %v7951
        %v7953 = vpop.xlane.xlu0 %7952
        %v7954 = vsel %vm355, %v7852, -inf
        %7955 = vmax.xlane.f32.xlu0 %v7954
        %v7956 = vpop.xlane.xlu0 %7955
        %v7957 = vsel %vm355, %v7857, -inf
        %7958 = vmax.xlane.f32.xlu0 %v7957
        %v7959 = vpop.xlane.xlu0 %7958
        %v7960 = vsel %vm355, %v7860, -inf
        %7961 = vmax.xlane.f32.xlu0 %v7960
        %v7962 = vpop.xlane.xlu0 %7961
        %v7963 = vsel %vm355, %v7865, -inf
        %7964 = vmax.xlane.f32.xlu0 %v7963
        %v7965 = vpop.xlane.xlu0 %7964
        %v7966 = vsel %vm355, %v7868, -inf
        %7967 = vmax.xlane.f32.xlu0 %v7966
        %v7968 = vpop.xlane.xlu0 %7967
        %v7969 = vsel %vm355, %v7873, -inf
        %7970 = vmax.xlane.f32.xlu0 %v7969
        %v7971 = vpop.xlane.xlu0 %7970
        %v7972 = vsel %vm355, %v7876, -inf
        %7973 = vmax.xlane.f32.xlu0 %v7972
        %v7974 = vpop.xlane.xlu0 %7973
        %v7975 = vsub.f32 %v7579, %v7881
        %v7976 = vsub.f32 %v7582, %v7884
        %v7977 = vsub.f32 %v7587, %v7887
        %v7978 = vsub.f32 %v7590, %v7890
        %v7979 = vsub.f32 %v7595, %v7893
        %v7980 = vsub.f32 %v7598, %v7896
        %v7981 = vsub.f32 %v7603, %v7899
        %v7982 = vsub.f32 %v7606, %v7902
        %v7983 = vsub.f32 %v7669, %v7905
        %v7984 = vsub.f32 %v7672, %v7908
        %v7985 = vsub.f32 %v7677, %v7911
        %v7986 = vsub.f32 %v7680, %v7914
        %v7987 = vsub.f32 %v7685, %v7917
        %v7988 = vsub.f32 %v7688, %v7920
        %v7989 = vsub.f32 %v7693, %v7923
        %v7990 = vsub.f32 %v7696, %v7926
        %v7991 = vsub.f32 %v7759, %v7929
        %v7992 = vsub.f32 %v7762, %v7932
        %v7993 = vsub.f32 %v7767, %v7935
        %v7994 = vsub.f32 %v7770, %v7938
        %v7995 = vsub.f32 %v7775, %v7941
        %v7996 = vsub.f32 %v7778, %v7944
        %v7997 = vsub.f32 %v7783, %v7947
        %v7998 = vsub.f32 %v7786, %v7950
        %v7999 = vsub.f32 %v7849, %v7953
        %v8000 = vsub.f32 %v7852, %v7956
        %v8001 = vsub.f32 %v7857, %v7959
        %v8002 = vsub.f32 %v7860, %v7962
        %v8003 = vsub.f32 %v7865, %v7965
        %v8004 = vsub.f32 %v7868, %v7968
        %v8005 = vsub.f32 %v7873, %v7971
        %v8006 = vsub.f32 %v7876, %v7974
        %v8007 = vmul.f32 %v7975, 1.442695
        %v8008 = vpow.pop %v8007
        %v8009 = vmul.f32 %v7976, 1.442695
        %v8010 = vpow.pop %v8009
        %v8011 = vmul.f32 %v7977, 1.442695
        %v8012 = vpow.pop %v8011
        %v8013 = vmul.f32 %v7978, 1.442695
        %v8014 = vpow.pop %v8013
        %v8015 = vmul.f32 %v7979, 1.442695
        %v8016 = vpow.pop %v8015
        %v8017 = vmul.f32 %v7980, 1.442695
        %v8018 = vpow.pop %v8017
        %v8019 = vmul.f32 %v7981, 1.442695
        %v8020 = vpow.pop %v8019
        %v8021 = vmul.f32 %v7982, 1.442695
        %v8022 = vpow.pop %v8021
        %v8023 = vmul.f32 %v7983, 1.442695
        %v8024 = vpow.pop %v8023
        %v8025 = vmul.f32 %v7984, 1.442695
        %v8026 = vpow.pop %v8025
        %v8027 = vmul.f32 %v7985, 1.442695
        %v8028 = vpow.pop %v8027
        %v8029 = vmul.f32 %v7986, 1.442695
        %v8030 = vpow.pop %v8029
        %v8031 = vmul.f32 %v7987, 1.442695
        %v8032 = vpow.pop %v8031
        %v8033 = vmul.f32 %v7988, 1.442695
        %v8034 = vpow.pop %v8033
        %v8035 = vmul.f32 %v7989, 1.442695
        %v8036 = vpow.pop %v8035
        %v8037 = vmul.f32 %v7990, 1.442695
        %v8038 = vpow.pop %v8037
        %v8039 = vmul.f32 %v7991, 1.442695
        %v8040 = vpow.pop %v8039
        %v8041 = vmul.f32 %v7992, 1.442695
        %v8042 = vpow.pop %v8041
        %v8043 = vmul.f32 %v7993, 1.442695
        %v8044 = vpow.pop %v8043
        %v8045 = vmul.f32 %v7994, 1.442695
        %v8046 = vpow.pop %v8045
        %v8047 = vmul.f32 %v7995, 1.442695
        %v8048 = vpow.pop %v8047
        %v8049 = vmul.f32 %v7996, 1.442695
        %v8050 = vpow.pop %v8049
        %v8051 = vmul.f32 %v7997, 1.442695
        %v8052 = vpow.pop %v8051
        %v8053 = vmul.f32 %v7998, 1.442695
        %v8054 = vpow.pop %v8053
        %v8055 = vmul.f32 %v7999, 1.442695
        %v8056 = vpow.pop %v8055
        %v8057 = vmul.f32 %v8000, 1.442695
        %v8058 = vpow.pop %v8057
        %v8059 = vmul.f32 %v8001, 1.442695
        %v8060 = vpow.pop %v8059
        %v8061 = vmul.f32 %v8002, 1.442695
        %v8062 = vpow.pop %v8061
        %v8063 = vmul.f32 %v8003, 1.442695
        %v8064 = vpow.pop %v8063
        %v8065 = vmul.f32 %v8004, 1.442695
        %v8066 = vpow.pop %v8065
        %v8067 = vmul.f32 %v8005, 1.442695
        %v8068 = vpow.pop %v8067
        %v8069 = vmul.f32 %v8006, 1.442695
        %v8070 = vpow.pop %v8069
        %v8071 = vsel %vm355, %v8008, 0.0
        %8072 = vadd.xlane.f32.xlu0 %v8071
        %v8073 = vpop.xlane.xlu0 %8072
        %v8074 = vsel %vm355, %v8010, 0.0
        %8075 = vadd.xlane.f32.xlu0 %v8074
        %v8076 = vpop.xlane.xlu0 %8075
        %v8077 = vsel %vm355, %v8012, 0.0
        %8078 = vadd.xlane.f32.xlu0 %v8077
        %v8079 = vpop.xlane.xlu0 %8078
        %v8080 = vsel %vm355, %v8014, 0.0
        %8081 = vadd.xlane.f32.xlu0 %v8080
        %v8082 = vpop.xlane.xlu0 %8081
        %v8083 = vsel %vm355, %v8016, 0.0
        %8084 = vadd.xlane.f32.xlu0 %v8083
        %v8085 = vpop.xlane.xlu0 %8084
        %v8086 = vsel %vm355, %v8018, 0.0
        %8087 = vadd.xlane.f32.xlu0 %v8086
        %v8088 = vpop.xlane.xlu0 %8087
        %v8089 = vsel %vm355, %v8020, 0.0
        %8090 = vadd.xlane.f32.xlu0 %v8089
        %v8091 = vpop.xlane.xlu0 %8090
        %v8092 = vsel %vm355, %v8022, 0.0
        %8093 = vadd.xlane.f32.xlu0 %v8092
        %v8094 = vpop.xlane.xlu0 %8093
        %v8095 = vsel %vm355, %v8024, 0.0
        %8096 = vadd.xlane.f32.xlu0 %v8095
        %v8097 = vpop.xlane.xlu0 %8096
        %v8098 = vsel %vm355, %v8026, 0.0
        %8099 = vadd.xlane.f32.xlu0 %v8098
        %v8100 = vpop.xlane.xlu0 %8099
        %v8101 = vsel %vm355, %v8028, 0.0
        %8102 = vadd.xlane.f32.xlu0 %v8101
        %v8103 = vpop.xlane.xlu0 %8102
        %v8104 = vsel %vm355, %v8030, 0.0
        %8105 = vadd.xlane.f32.xlu0 %v8104
        %v8106 = vpop.xlane.xlu0 %8105
        %v8107 = vsel %vm355, %v8032, 0.0
        %8108 = vadd.xlane.f32.xlu0 %v8107
        %v8109 = vpop.xlane.xlu0 %8108
        %v8110 = vsel %vm355, %v8034, 0.0
        %8111 = vadd.xlane.f32.xlu0 %v8110
        %v8112 = vpop.xlane.xlu0 %8111
        %v8113 = vsel %vm355, %v8036, 0.0
        %8114 = vadd.xlane.f32.xlu0 %v8113
        %v8115 = vpop.xlane.xlu0 %8114
        %v8116 = vsel %vm355, %v8038, 0.0
        %8117 = vadd.xlane.f32.xlu0 %v8116
        %v8118 = vpop.xlane.xlu0 %8117
        %v8119 = vsel %vm355, %v8040, 0.0
        %8120 = vadd.xlane.f32.xlu0 %v8119
        %v8121 = vpop.xlane.xlu0 %8120
        %v8122 = vsel %vm355, %v8042, 0.0
        %8123 = vadd.xlane.f32.xlu0 %v8122
        %v8124 = vpop.xlane.xlu0 %8123
        %v8125 = vsel %vm355, %v8044, 0.0
        %8126 = vadd.xlane.f32.xlu0 %v8125
        %v8127 = vpop.xlane.xlu0 %8126
        %v8128 = vsel %vm355, %v8046, 0.0
        %8129 = vadd.xlane.f32.xlu0 %v8128
        %v8130 = vpop.xlane.xlu0 %8129
        %v8131 = vsel %vm355, %v8048, 0.0
        %8132 = vadd.xlane.f32.xlu0 %v8131
        %v8133 = vpop.xlane.xlu0 %8132
        %v8134 = vsel %vm355, %v8050, 0.0
        %8135 = vadd.xlane.f32.xlu0 %v8134
        %v8136 = vpop.xlane.xlu0 %8135
        %v8137 = vsel %vm355, %v8052, 0.0
        %8138 = vadd.xlane.f32.xlu0 %v8137
        %v8139 = vpop.xlane.xlu0 %8138
        %v8140 = vsel %vm355, %v8054, 0.0
        %8141 = vadd.xlane.f32.xlu0 %v8140
        %v8142 = vpop.xlane.xlu0 %8141
        %v8143 = vsel %vm355, %v8056, 0.0
        %8144 = vadd.xlane.f32.xlu0 %v8143
        %v8145 = vpop.xlane.xlu0 %8144
        %v8146 = vsel %vm355, %v8058, 0.0
        %8147 = vadd.xlane.f32.xlu0 %v8146
        %v8148 = vpop.xlane.xlu0 %8147
        %v8149 = vsel %vm355, %v8060, 0.0
        %8150 = vadd.xlane.f32.xlu0 %v8149
        %v8151 = vpop.xlane.xlu0 %8150
        %v8152 = vsel %vm355, %v8062, 0.0
        %8153 = vadd.xlane.f32.xlu0 %v8152
        %v8154 = vpop.xlane.xlu0 %8153
        %v8155 = vsel %vm355, %v8064, 0.0
        %8156 = vadd.xlane.f32.xlu0 %v8155
        %v8157 = vpop.xlane.xlu0 %8156
        %v8158 = vsel %vm355, %v8066, 0.0
        %8159 = vadd.xlane.f32.xlu0 %v8158
        %v8160 = vpop.xlane.xlu0 %8159
        %v8161 = vsel %vm355, %v8068, 0.0
        %8162 = vadd.xlane.f32.xlu0 %v8161
        %v8163 = vpop.xlane.xlu0 %8162
        %v8164 = vsel %vm355, %v8070, 0.0
        %8165 = vadd.xlane.f32.xlu0 %v8164
        %v8166 = vpop.xlane.xlu0 %8165
        %v8167 = vrcp.pop %v8073
        %v8168 = vrcp.pop %v8076
        %v8169 = vrcp.pop %v8079
        %v8170 = vrcp.pop %v8082
        %v8171 = vrcp.pop %v8085
        %v8172 = vrcp.pop %v8088
        %v8173 = vrcp.pop %v8091
        %v8174 = vrcp.pop %v8094
        %v8175 = vrcp.pop %v8097
        %v8176 = vrcp.pop %v8100
        %v8177 = vrcp.pop %v8103
        %v8178 = vrcp.pop %v8106
        %v8179 = vrcp.pop %v8109
        %v8180 = vrcp.pop %v8112
        %v8181 = vrcp.pop %v8115
        %v8182 = vrcp.pop %v8118
        %v8183 = vrcp.pop %v8121
        %v8184 = vrcp.pop %v8124
        %v8185 = vrcp.pop %v8127
        %v8186 = vrcp.pop %v8130
        %v8187 = vrcp.pop %v8133
        %v8188 = vrcp.pop %v8136
        %v8189 = vrcp.pop %v8139
        %v8190 = vrcp.pop %v8142
        %v8191 = vrcp.pop %v8145
        %v8192 = vrcp.pop %v8148
        %v8193 = vrcp.pop %v8151
        %v8194 = vrcp.pop %v8154
        %v8195 = vrcp.pop %v8157
        %v8196 = vrcp.pop %v8160
        %v8197 = vrcp.pop %v8163
        %v8198 = vrcp.pop %v8166
        %v8199 = vmul.f32 %v8008, %v8167
        %v8200 = vmul.f32 %v8010, %v8168
        %v8201 = vmul.f32 %v8012, %v8169
        %v8202 = vmul.f32 %v8014, %v8170
        %v8203 = vmul.f32 %v8016, %v8171
        %v8204 = vmul.f32 %v8018, %v8172
        %v8205 = vmul.f32 %v8020, %v8173
        %v8206 = vmul.f32 %v8022, %v8174
        %v8207 = vmul.f32 %v8024, %v8175
        %v8208 = vmul.f32 %v8026, %v8176
        %v8209 = vmul.f32 %v8028, %v8177
        %v8210 = vmul.f32 %v8030, %v8178
        %v8211 = vmul.f32 %v8032, %v8179
        %v8212 = vmul.f32 %v8034, %v8180
        %v8213 = vmul.f32 %v8036, %v8181
        %v8214 = vmul.f32 %v8038, %v8182
        %v8215 = vmul.f32 %v8040, %v8183
        %v8216 = vmul.f32 %v8042, %v8184
        %v8217 = vmul.f32 %v8044, %v8185
        %v8218 = vmul.f32 %v8046, %v8186
        %v8219 = vmul.f32 %v8048, %v8187
        %v8220 = vmul.f32 %v8050, %v8188
        %v8221 = vmul.f32 %v8052, %v8189
        %v8222 = vmul.f32 %v8054, %v8190
        %v8223 = vmul.f32 %v8056, %v8191
        %v8224 = vmul.f32 %v8058, %v8192
        %v8225 = vmul.f32 %v8060, %v8193
        %v8226 = vmul.f32 %v8062, %v8194
        %v8227 = vmul.f32 %v8064, %v8195
        %v8228 = vmul.f32 %v8066, %v8196
        %v8229 = vmul.f32 %v8068, %v8197
        %v8230 = vmul.f32 %v8070, %v8198
        %v8231 = vpack.c.bf16 %v8200, %v8199
        %v8232 = vpack.c.bf16 %v8202, %v8201
        %v8233 = vpack.c.bf16 %v8204, %v8203
        %v8234 = vpack.c.bf16 %v8206, %v8205
        %v8235 = vpack.c.bf16 %v8208, %v8207
        %v8236 = vpack.c.bf16 %v8210, %v8209
        %v8237 = vpack.c.bf16 %v8212, %v8211
        %v8238 = vpack.c.bf16 %v8214, %v8213
        %v8239 = vpack.c.bf16 %v8216, %v8215
        %v8240 = vpack.c.bf16 %v8218, %v8217
        %v8241 = vpack.c.bf16 %v8220, %v8219
        %v8242 = vpack.c.bf16 %v8222, %v8221
        %v8243 = vpack.c.bf16 %v8224, %v8223
        %v8244 = vpack.c.bf16 %v8226, %v8225
        %v8245 = vpack.c.bf16 %v8228, %v8227
        %v8246 = vpack.c.bf16 %v8230, %v8229
        %8247 = vrot.lane.b32.xlu0 %v613, 88
        %v8248 = vpop.permute.xlu0 %8247
        %8249 = vrot.lane.b32.xlu0 %v614, 88
        %v8250 = vpop.permute.xlu0 %8249
        %8251 = vrot.lane.b32.xlu0 %v615, 88
        %v8252 = vpop.permute.xlu0 %8251
        %8253 = vrot.lane.b32.xlu0 %v616, 88
        %v8254 = vpop.permute.xlu0 %8253
        %v8260 = vsel %vm355, %v8231, 0
        %v8263 = vsel %vm355, %v8232, 0
        %v8266 = vsel %vm355, %v8233, 0
        %v8269 = vsel %vm355, %v8234, 0
        %8271 = vmatprep.subr.bf16.mxu0 0
        %8272 = vmatpush1.bf16.msra.mxu0 0
        %8273 = vmatprep.subr.bf16.mxu0 0
        %8274 = vmatpush1.bf16.msra.mxu0 0
        %8275 = vmatprep.subr.bf16.mxu0 0
        %8276 = vmatpush1.bf16.msra.mxu0 0
        %8277 = vmatprep.subr.bf16.mxu0 0
        %8278 = vmatpush1.bf16.msra.mxu0 0
        %8279 = vmatprep.subr.bf16.mxu0 0
        %8280 = vmatpush1.bf16.msra.mxu0 %v8254
        %8281 = vmatprep.subr.bf16.mxu0 0
        %8282 = vmatpush1.bf16.msra.mxu0 %v8252
        %8283 = vmatprep.subr.bf16.mxu0 0
        %8284 = vmatpush1.bf16.msra.mxu0 %v8250
        %8285 = vmatprep.subr.bf16.mxu0 0
        %8286 = vmatpush1.bf16.msra.mxu0 %v8248
        %8287 = vmatprep.subr.bf16.mxu0 0
        %8288 = vmatpush2.bf16.msra.mxu0 0
        %8289 = vmatprep.subr.bf16.mxu0 0
        %8290 = vmatpush2.bf16.msra.mxu0 0
        %8291 = vmatprep.subr.bf16.mxu0 0
        %8292 = vmatpush2.bf16.msra.mxu0 0
        %8293 = vmatprep.subr.bf16.mxu0 0
        %8294 = vmatpush2.bf16.msra.mxu0 0
        %8295 = vmatprep.subr.bf16.mxu0 0
        %8296 = vmatpush2.bf16.msra.mxu0 0
        %8297 = vmatprep.subr.bf16.mxu0 0
        %8298 = vmatpush2.bf16.msra.mxu0 0
        %8299 = vmatprep.subr.bf16.mxu0 0
        %8300 = vmatpush2.bf16.msra.mxu0 0
        %8301 = vmatprep.subr.bf16.mxu0 0
        %8302 = vmatpush2.bf16.msra.mxu0 0
        %8303 = vmatprep.mubr.bf16.mxu0 0
        %8304 = vmatmul.mubr.bf16.gmra.mxu0 %v8260
        %v8305 = vpop.f32.mrf.mxu0
        %v8306 = vadd.f32 0.0, %v8305
        %v8307 = vpop.f32.mrf.mxu0
        %v8308 = vpop.f32.mrf.mxu0
        %v8309 = vadd.f32 0.0, %v8308
        %v8310 = vpop.f32.mrf.mxu0
        %8311 = vmatprep.mubr.bf16.mxu0 0
        %8312 = vmatmul.mubr.bf16.gmra.mxu0 %v8263
        %v8313 = vpop.f32.mrf.mxu0
        %v8314 = vadd.f32 0.0, %v8313
        %v8315 = vpop.f32.mrf.mxu0
        %v8316 = vpop.f32.mrf.mxu0
        %v8317 = vadd.f32 0.0, %v8316
        %v8318 = vpop.f32.mrf.mxu0
        %8319 = vmatprep.mubr.bf16.mxu0 0
        %8320 = vmatmul.mubr.bf16.gmra.mxu0 %v8266
        %v8321 = vpop.f32.mrf.mxu0
        %v8322 = vadd.f32 0.0, %v8321
        %v8323 = vpop.f32.mrf.mxu0
        %v8324 = vpop.f32.mrf.mxu0
        %v8325 = vadd.f32 0.0, %v8324
        %v8326 = vpop.f32.mrf.mxu0
        %8327 = vmatprep.mubr.bf16.mxu0 0
        %8328 = vmatmul.mubr.bf16.gmra.mxu0 %v8269
        %v8329 = vpop.f32.mrf.mxu0
        %v8330 = vadd.f32 0.0, %v8329
        %v8331 = vpop.f32.mrf.mxu0
        %v8332 = vpop.f32.mrf.mxu0
        %v8333 = vadd.f32 0.0, %v8332
        %v8334 = vpop.f32.mrf.mxu0
        %8335 = vdwg.mxu0
        %8336 = vrot.lane.b32.xlu0 %v617, 88
        %v8337 = vpop.permute.xlu0 %8336
        %8338 = vrot.lane.b32.xlu0 %v618, 88
        %v8339 = vpop.permute.xlu0 %8338
        %8340 = vrot.lane.b32.xlu0 %v619, 88
        %v8341 = vpop.permute.xlu0 %8340
        %8342 = vrot.lane.b32.xlu0 %v620, 88
        %v8343 = vpop.permute.xlu0 %8342
        %v8349 = vsel %vm355, %v8235, 0
        %v8352 = vsel %vm355, %v8236, 0
        %v8355 = vsel %vm355, %v8237, 0
        %v8358 = vsel %vm355, %v8238, 0
        %8360 = vmatprep.subr.bf16.mxu0 0
        %8361 = vmatpush1.bf16.msra.mxu0 0
        %8362 = vmatprep.subr.bf16.mxu0 0
        %8363 = vmatpush1.bf16.msra.mxu0 0
        %8364 = vmatprep.subr.bf16.mxu0 0
        %8365 = vmatpush1.bf16.msra.mxu0 0
        %8366 = vmatprep.subr.bf16.mxu0 0
        %8367 = vmatpush1.bf16.msra.mxu0 0
        %8368 = vmatprep.subr.bf16.mxu0 0
        %8369 = vmatpush1.bf16.msra.mxu0 %v8343
        %8370 = vmatprep.subr.bf16.mxu0 0
        %8371 = vmatpush1.bf16.msra.mxu0 %v8341
        %8372 = vmatprep.subr.bf16.mxu0 0
        %8373 = vmatpush1.bf16.msra.mxu0 %v8339
        %8374 = vmatprep.subr.bf16.mxu0 0
        %8375 = vmatpush1.bf16.msra.mxu0 %v8337
        %8376 = vmatprep.subr.bf16.mxu0 0
        %8377 = vmatpush2.bf16.msra.mxu0 0
        %8378 = vmatprep.subr.bf16.mxu0 0
        %8379 = vmatpush2.bf16.msra.mxu0 0
        %8380 = vmatprep.subr.bf16.mxu0 0
        %8381 = vmatpush2.bf16.msra.mxu0 0
        %8382 = vmatprep.subr.bf16.mxu0 0
        %8383 = vmatpush2.bf16.msra.mxu0 0
        %8384 = vmatprep.subr.bf16.mxu0 0
        %8385 = vmatpush2.bf16.msra.mxu0 0
        %8386 = vmatprep.subr.bf16.mxu0 0
        %8387 = vmatpush2.bf16.msra.mxu0 0
        %8388 = vmatprep.subr.bf16.mxu0 0
        %8389 = vmatpush2.bf16.msra.mxu0 0
        %8390 = vmatprep.subr.bf16.mxu0 0
        %8391 = vmatpush2.bf16.msra.mxu0 0
        %8392 = vmatprep.mubr.bf16.mxu0 0
        %8393 = vmatmul.mubr.bf16.gmra.mxu0 %v8349
        %v8394 = vpop.f32.mrf.mxu0
        %v8395 = vadd.f32 0.0, %v8394
        %v8396 = vpop.f32.mrf.mxu0
        %v8397 = vpop.f32.mrf.mxu0
        %v8398 = vadd.f32 0.0, %v8397
        %v8399 = vpop.f32.mrf.mxu0
        %8400 = vmatprep.mubr.bf16.mxu0 0
        %8401 = vmatmul.mubr.bf16.gmra.mxu0 %v8352
        %v8402 = vpop.f32.mrf.mxu0
        %v8403 = vadd.f32 0.0, %v8402
        %v8404 = vpop.f32.mrf.mxu0
        %v8405 = vpop.f32.mrf.mxu0
        %v8406 = vadd.f32 0.0, %v8405
        %v8407 = vpop.f32.mrf.mxu0
        %8408 = vmatprep.mubr.bf16.mxu0 0
        %8409 = vmatmul.mubr.bf16.gmra.mxu0 %v8355
        %v8410 = vpop.f32.mrf.mxu0
        %v8411 = vadd.f32 0.0, %v8410
        %v8412 = vpop.f32.mrf.mxu0
        %v8413 = vpop.f32.mrf.mxu0
        %v8414 = vadd.f32 0.0, %v8413
        %v8415 = vpop.f32.mrf.mxu0
        %8416 = vmatprep.mubr.bf16.mxu0 0
        %8417 = vmatmul.mubr.bf16.gmra.mxu0 %v8358
        %v8418 = vpop.f32.mrf.mxu0
        %v8419 = vadd.f32 0.0, %v8418
        %v8420 = vpop.f32.mrf.mxu0
        %v8421 = vpop.f32.mrf.mxu0
        %v8422 = vadd.f32 0.0, %v8421
        %v8423 = vpop.f32.mrf.mxu0
        %8424 = vdwg.mxu0
        %8425 = vrot.lane.b32.xlu0 %v621, 88
        %v8426 = vpop.permute.xlu0 %8425
        %8427 = vrot.lane.b32.xlu0 %v622, 88
        %v8428 = vpop.permute.xlu0 %8427
        %8429 = vrot.lane.b32.xlu0 %v623, 88
        %v8430 = vpop.permute.xlu0 %8429
        %8431 = vrot.lane.b32.xlu0 %v624, 88
        %v8432 = vpop.permute.xlu0 %8431
        %v8438 = vsel %vm355, %v8239, 0
        %v8441 = vsel %vm355, %v8240, 0
        %v8444 = vsel %vm355, %v8241, 0
        %v8447 = vsel %vm355, %v8242, 0
        %8449 = vmatprep.subr.bf16.mxu0 0
        %8450 = vmatpush1.bf16.msra.mxu0 0
        %8451 = vmatprep.subr.bf16.mxu0 0
        %8452 = vmatpush1.bf16.msra.mxu0 0
        %8453 = vmatprep.subr.bf16.mxu0 0
        %8454 = vmatpush1.bf16.msra.mxu0 0
        %8455 = vmatprep.subr.bf16.mxu0 0
        %8456 = vmatpush1.bf16.msra.mxu0 0
        %8457 = vmatprep.subr.bf16.mxu0 0
        %8458 = vmatpush1.bf16.msra.mxu0 %v8432
        %8459 = vmatprep.subr.bf16.mxu0 0
        %8460 = vmatpush1.bf16.msra.mxu0 %v8430
        %8461 = vmatprep.subr.bf16.mxu0 0
        %8462 = vmatpush1.bf16.msra.mxu0 %v8428
        %8463 = vmatprep.subr.bf16.mxu0 0
        %8464 = vmatpush1.bf16.msra.mxu0 %v8426
        %8465 = vmatprep.subr.bf16.mxu0 0
        %8466 = vmatpush2.bf16.msra.mxu0 0
        %8467 = vmatprep.subr.bf16.mxu0 0
        %8468 = vmatpush2.bf16.msra.mxu0 0
        %8469 = vmatprep.subr.bf16.mxu0 0
        %8470 = vmatpush2.bf16.msra.mxu0 0
        %8471 = vmatprep.subr.bf16.mxu0 0
        %8472 = vmatpush2.bf16.msra.mxu0 0
        %8473 = vmatprep.subr.bf16.mxu0 0
        %8474 = vmatpush2.bf16.msra.mxu0 0
        %8475 = vmatprep.subr.bf16.mxu0 0
        %8476 = vmatpush2.bf16.msra.mxu0 0
        %8477 = vmatprep.subr.bf16.mxu0 0
        %8478 = vmatpush2.bf16.msra.mxu0 0
        %8479 = vmatprep.subr.bf16.mxu0 0
        %8480 = vmatpush2.bf16.msra.mxu0 0
        %8481 = vmatprep.mubr.bf16.mxu0 0
        %8482 = vmatmul.mubr.bf16.gmra.mxu0 %v8438
        %v8483 = vpop.f32.mrf.mxu0
        %v8484 = vadd.f32 0.0, %v8483
        %v8485 = vpop.f32.mrf.mxu0
        %v8486 = vpop.f32.mrf.mxu0
        %v8487 = vadd.f32 0.0, %v8486
        %v8488 = vpop.f32.mrf.mxu0
        %8489 = vmatprep.mubr.bf16.mxu0 0
        %8490 = vmatmul.mubr.bf16.gmra.mxu0 %v8441
        %v8491 = vpop.f32.mrf.mxu0
        %v8492 = vadd.f32 0.0, %v8491
        %v8493 = vpop.f32.mrf.mxu0
        %v8494 = vpop.f32.mrf.mxu0
        %v8495 = vadd.f32 0.0, %v8494
        %v8496 = vpop.f32.mrf.mxu0
        %8497 = vmatprep.mubr.bf16.mxu0 0
        %8498 = vmatmul.mubr.bf16.gmra.mxu0 %v8444
        %v8499 = vpop.f32.mrf.mxu0
        %v8500 = vadd.f32 0.0, %v8499
        %v8501 = vpop.f32.mrf.mxu0
        %v8502 = vpop.f32.mrf.mxu0
        %v8503 = vadd.f32 0.0, %v8502
        %v8504 = vpop.f32.mrf.mxu0
        %8505 = vmatprep.mubr.bf16.mxu0 0
        %8506 = vmatmul.mubr.bf16.gmra.mxu0 %v8447
        %v8507 = vpop.f32.mrf.mxu0
        %v8508 = vadd.f32 0.0, %v8507
        %v8509 = vpop.f32.mrf.mxu0
        %v8510 = vpop.f32.mrf.mxu0
        %v8511 = vadd.f32 0.0, %v8510
        %v8512 = vpop.f32.mrf.mxu0
        %8513 = vdwg.mxu0
        %8514 = vrot.lane.b32.xlu0 %v625, 88
        %v8515 = vpop.permute.xlu0 %8514
        %8516 = vrot.lane.b32.xlu0 %v626, 88
        %v8517 = vpop.permute.xlu0 %8516
        %8518 = vrot.lane.b32.xlu0 %v627, 88
        %v8519 = vpop.permute.xlu0 %8518
        %8520 = vrot.lane.b32.xlu0 %v628, 88
        %v8521 = vpop.permute.xlu0 %8520
        %v8527 = vsel %vm355, %v8243, 0
        %v8530 = vsel %vm355, %v8244, 0
        %v8533 = vsel %vm355, %v8245, 0
        %v8536 = vsel %vm355, %v8246, 0
        %8538 = vmatprep.subr.bf16.mxu0 0
        %8539 = vmatpush1.bf16.msra.mxu0 0
        %8540 = vmatprep.subr.bf16.mxu0 0
        %8541 = vmatpush1.bf16.msra.mxu0 0
        %8542 = vmatprep.subr.bf16.mxu0 0
        %8543 = vmatpush1.bf16.msra.mxu0 0
        %8544 = vmatprep.subr.bf16.mxu0 0
        %8545 = vmatpush1.bf16.msra.mxu0 0
        %8546 = vmatprep.subr.bf16.mxu0 0
        %8547 = vmatpush1.bf16.msra.mxu0 %v8521
        %8548 = vmatprep.subr.bf16.mxu0 0
        %8549 = vmatpush1.bf16.msra.mxu0 %v8519
        %8550 = vmatprep.subr.bf16.mxu0 0
        %8551 = vmatpush1.bf16.msra.mxu0 %v8517
        %8552 = vmatprep.subr.bf16.mxu0 0
        %8553 = vmatpush1.bf16.msra.mxu0 %v8515
        %8554 = vmatprep.subr.bf16.mxu0 0
        %8555 = vmatpush2.bf16.msra.mxu0 0
        %8556 = vmatprep.subr.bf16.mxu0 0
        %8557 = vmatpush2.bf16.msra.mxu0 0
        %8558 = vmatprep.subr.bf16.mxu0 0
        %8559 = vmatpush2.bf16.msra.mxu0 0
        %8560 = vmatprep.subr.bf16.mxu0 0
        %8561 = vmatpush2.bf16.msra.mxu0 0
        %8562 = vmatprep.subr.bf16.mxu0 0
        %8563 = vmatpush2.bf16.msra.mxu0 0
        %8564 = vmatprep.subr.bf16.mxu0 0
        %8565 = vmatpush2.bf16.msra.mxu0 0
        %8566 = vmatprep.subr.bf16.mxu0 0
        %8567 = vmatpush2.bf16.msra.mxu0 0
        %8568 = vmatprep.subr.bf16.mxu0 0
        %8569 = vmatpush2.bf16.msra.mxu0 0
        %8570 = vmatprep.mubr.bf16.mxu0 0
        %8571 = vmatmul.mubr.bf16.gmra.mxu0 %v8527
        %v8572 = vpop.f32.mrf.mxu0
        %v8573 = vadd.f32 0.0, %v8572
        %v8574 = vpop.f32.mrf.mxu0
        %v8575 = vpop.f32.mrf.mxu0
        %v8576 = vadd.f32 0.0, %v8575
        %v8577 = vpop.f32.mrf.mxu0
        %8578 = vmatprep.mubr.bf16.mxu0 0
        %8579 = vmatmul.mubr.bf16.gmra.mxu0 %v8530
        %v8580 = vpop.f32.mrf.mxu0
        %v8581 = vadd.f32 0.0, %v8580
        %v8582 = vpop.f32.mrf.mxu0
        %v8583 = vpop.f32.mrf.mxu0
        %v8584 = vadd.f32 0.0, %v8583
        %v8585 = vpop.f32.mrf.mxu0
        %8586 = vmatprep.mubr.bf16.mxu0 0
        %8587 = vmatmul.mubr.bf16.gmra.mxu0 %v8533
        %v8588 = vpop.f32.mrf.mxu0
        %v8589 = vadd.f32 0.0, %v8588
        %v8590 = vpop.f32.mrf.mxu0
        %v8591 = vpop.f32.mrf.mxu0
        %v8592 = vadd.f32 0.0, %v8591
        %v8593 = vpop.f32.mrf.mxu0
        %8594 = vmatprep.mubr.bf16.mxu0 0
        %8595 = vmatmul.mubr.bf16.gmra.mxu0 %v8536
        %v8596 = vpop.f32.mrf.mxu0
        %v8597 = vadd.f32 0.0, %v8596
        %v8598 = vpop.f32.mrf.mxu0
        %v8599 = vpop.f32.mrf.mxu0
        %v8600 = vadd.f32 0.0, %v8599
        %v8601 = vpop.f32.mrf.mxu0
        %8602 = vdwg.mxu0
        %v8603 = vpack.c.bf16 %v8309, %v8306
        %v8604 = vpack.c.bf16 %v8317, %v8314
        %v8605 = vpack.c.bf16 %v8325, %v8322
        %v8606 = vpack.c.bf16 %v8333, %v8330
        %v8607 = vpack.c.bf16 %v8398, %v8395
        %v8608 = vpack.c.bf16 %v8406, %v8403
        %v8609 = vpack.c.bf16 %v8414, %v8411
        %v8610 = vpack.c.bf16 %v8422, %v8419
        %v8611 = vpack.c.bf16 %v8487, %v8484
        %v8612 = vpack.c.bf16 %v8495, %v8492
        %v8613 = vpack.c.bf16 %v8503, %v8500
        %v8614 = vpack.c.bf16 %v8511, %v8508
        %v8615 = vpack.c.bf16 %v8576, %v8573
        %v8616 = vpack.c.bf16 %v8584, %v8581
        %v8617 = vpack.c.bf16 %v8592, %v8589
        %v8618 = vpack.c.bf16 %v8600, %v8597
        %v8619 = vld [vmem:[%s3 + $0x14] sm:$0xf]
        %v8621 = vsel %vm928, %v8603, 0
        %v8624 = vsel %vm928, %v8604, 0
        %v8627 = vsel %vm928, %v8605, 0
        %v8630 = vsel %vm928, %v8606, 0
        %v8633 = vsel %vm928, %v8607, 0
        %v8636 = vsel %vm928, %v8608, 0
        %v8639 = vsel %vm928, %v8609, 0
        %v8642 = vsel %vm928, %v8610, 0
        %v8645 = vsel %vm928, %v8611, 0
        %v8648 = vsel %vm928, %v8612, 0
        %v8651 = vsel %vm928, %v8613, 0
        %v8654 = vsel %vm928, %v8614, 0
        %v8657 = vsel %vm928, %v8615, 0
        %v8660 = vsel %vm928, %v8616, 0
        %v8663 = vsel %vm928, %v8617, 0
        %v8666 = vsel %vm928, %v8618, 0
        %v8669 = vsel %vm941, %v8619, 0
        %8671 = vmatprep.subr.bf16.mxu0 0
        %8672 = vmatpush1.bf16.msra.mxu0 0
        %8673 = vmatprep.subr.bf16.mxu0 0
        %8674 = vmatpush1.bf16.msra.mxu0 0
        %8675 = vmatprep.subr.bf16.mxu0 0
        %8676 = vmatpush1.bf16.msra.mxu0 0
        %8677 = vmatprep.subr.bf16.mxu0 0
        %8678 = vmatpush1.bf16.msra.mxu0 0
        %8679 = vmatprep.subr.bf16.mxu0 0
        %8680 = vmatpush1.bf16.msra.mxu0 0
        %8681 = vmatprep.subr.bf16.mxu0 0
        %8682 = vmatpush1.bf16.msra.mxu0 0
        %8683 = vmatprep.subr.bf16.mxu0 0
        %8684 = vmatpush1.bf16.msra.mxu0 0
        %8685 = vmatprep.subr.bf16.mxu0 0
        %8686 = vmatpush1.bf16.msra.mxu0 %v8669
        %8687 = vmatprep.subr.bf16.mxu0 0
        %8688 = vmatpush2.bf16.msra.mxu0 0
        %8689 = vmatprep.subr.bf16.mxu0 0
        %8690 = vmatpush2.bf16.msra.mxu0 0
        %8691 = vmatprep.subr.bf16.mxu0 0
        %8692 = vmatpush2.bf16.msra.mxu0 0
        %8693 = vmatprep.subr.bf16.mxu0 0
        %8694 = vmatpush2.bf16.msra.mxu0 0
        %8695 = vmatprep.subr.bf16.mxu0 0
        %8696 = vmatpush2.bf16.msra.mxu0 0
        %8697 = vmatprep.subr.bf16.mxu0 0
        %8698 = vmatpush2.bf16.msra.mxu0 0
        %8699 = vmatprep.subr.bf16.mxu0 0
        %8700 = vmatpush2.bf16.msra.mxu0 0
        %8701 = vmatprep.subr.bf16.mxu0 0
        %8702 = vmatpush2.bf16.msra.mxu0 0
        %8703 = vmatprep.mubr.bf16.mxu0 0
        %8704 = vmatmul.mubr.bf16.gmra.mxu0 %v8621
        %v8705 = vpop.f32.mrf.mxu0
        %v8706 = vadd.f32 0.0, %v8705
        %v8707 = vpop.f32.mrf.mxu0
        %v8708 = vpop.f32.mrf.mxu0
        %v8709 = vadd.f32 0.0, %v8708
        %v8710 = vpop.f32.mrf.mxu0
        %8711 = vmatprep.mubr.bf16.mxu0 0
        %8712 = vmatmul.mubr.bf16.gmra.mxu0 %v8624
        %v8713 = vpop.f32.mrf.mxu0
        %v8714 = vadd.f32 0.0, %v8713
        %v8715 = vpop.f32.mrf.mxu0
        %v8716 = vpop.f32.mrf.mxu0
        %v8717 = vadd.f32 0.0, %v8716
        %v8718 = vpop.f32.mrf.mxu0
        %8719 = vmatprep.mubr.bf16.mxu0 0
        %8720 = vmatmul.mubr.bf16.gmra.mxu0 %v8627
        %v8721 = vpop.f32.mrf.mxu0
        %v8722 = vadd.f32 0.0, %v8721
        %v8723 = vpop.f32.mrf.mxu0
        %v8724 = vpop.f32.mrf.mxu0
        %v8725 = vadd.f32 0.0, %v8724
        %v8726 = vpop.f32.mrf.mxu0
        %8727 = vmatprep.mubr.bf16.mxu0 0
        %8728 = vmatmul.mubr.bf16.gmra.mxu0 %v8630
        %v8729 = vpop.f32.mrf.mxu0
        %v8730 = vadd.f32 0.0, %v8729
        %v8731 = vpop.f32.mrf.mxu0
        %v8732 = vpop.f32.mrf.mxu0
        %v8733 = vadd.f32 0.0, %v8732
        %v8734 = vpop.f32.mrf.mxu0
        %8735 = vmatprep.mubr.bf16.mxu0 0
        %8736 = vmatmul.mubr.bf16.gmra.mxu0 %v8633
        %v8737 = vpop.f32.mrf.mxu0
        %v8738 = vadd.f32 0.0, %v8737
        %v8739 = vpop.f32.mrf.mxu0
        %v8740 = vpop.f32.mrf.mxu0
        %v8741 = vadd.f32 0.0, %v8740
        %v8742 = vpop.f32.mrf.mxu0
        %8743 = vmatprep.mubr.bf16.mxu0 0
        %8744 = vmatmul.mubr.bf16.gmra.mxu0 %v8636
        %v8745 = vpop.f32.mrf.mxu0
        %v8746 = vadd.f32 0.0, %v8745
        %v8747 = vpop.f32.mrf.mxu0
        %v8748 = vpop.f32.mrf.mxu0
        %v8749 = vadd.f32 0.0, %v8748
        %v8750 = vpop.f32.mrf.mxu0
        %8751 = vmatprep.mubr.bf16.mxu0 0
        %8752 = vmatmul.mubr.bf16.gmra.mxu0 %v8639
        %v8753 = vpop.f32.mrf.mxu0
        %v8754 = vadd.f32 0.0, %v8753
        %v8755 = vpop.f32.mrf.mxu0
        %v8756 = vpop.f32.mrf.mxu0
        %v8757 = vadd.f32 0.0, %v8756
        %v8758 = vpop.f32.mrf.mxu0
        %8759 = vmatprep.mubr.bf16.mxu0 0
        %8760 = vmatmul.mubr.bf16.gmra.mxu0 %v8642
        %v8761 = vpop.f32.mrf.mxu0
        %v8762 = vadd.f32 0.0, %v8761
        %v8763 = vpop.f32.mrf.mxu0
        %v8764 = vpop.f32.mrf.mxu0
        %v8765 = vadd.f32 0.0, %v8764
        %v8766 = vpop.f32.mrf.mxu0
        %8767 = vmatprep.mubr.bf16.mxu0 0
        %8768 = vmatmul.mubr.bf16.gmra.mxu0 %v8645
        %v8769 = vpop.f32.mrf.mxu0
        %v8770 = vadd.f32 0.0, %v8769
        %v8771 = vpop.f32.mrf.mxu0
        %v8772 = vpop.f32.mrf.mxu0
        %v8773 = vadd.f32 0.0, %v8772
        %v8774 = vpop.f32.mrf.mxu0
        %8775 = vmatprep.mubr.bf16.mxu0 0
        %8776 = vmatmul.mubr.bf16.gmra.mxu0 %v8648
        %v8777 = vpop.f32.mrf.mxu0
        %v8778 = vadd.f32 0.0, %v8777
        %v8779 = vpop.f32.mrf.mxu0
        %v8780 = vpop.f32.mrf.mxu0
        %v8781 = vadd.f32 0.0, %v8780
        %v8782 = vpop.f32.mrf.mxu0
        %8783 = vmatprep.mubr.bf16.mxu0 0
        %8784 = vmatmul.mubr.bf16.gmra.mxu0 %v8651
        %v8785 = vpop.f32.mrf.mxu0
        %v8786 = vadd.f32 0.0, %v8785
        %v8787 = vpop.f32.mrf.mxu0
        %v8788 = vpop.f32.mrf.mxu0
        %v8789 = vadd.f32 0.0, %v8788
        %v8790 = vpop.f32.mrf.mxu0
        %8791 = vmatprep.mubr.bf16.mxu0 0
        %8792 = vmatmul.mubr.bf16.gmra.mxu0 %v8654
        %v8793 = vpop.f32.mrf.mxu0
        %v8794 = vadd.f32 0.0, %v8793
        %v8795 = vpop.f32.mrf.mxu0
        %v8796 = vpop.f32.mrf.mxu0
        %v8797 = vadd.f32 0.0, %v8796
        %v8798 = vpop.f32.mrf.mxu0
        %8799 = vmatprep.mubr.bf16.mxu0 0
        %8800 = vmatmul.mubr.bf16.gmra.mxu0 %v8657
        %v8801 = vpop.f32.mrf.mxu0
        %v8802 = vadd.f32 0.0, %v8801
        %v8803 = vpop.f32.mrf.mxu0
        %v8804 = vpop.f32.mrf.mxu0
        %v8805 = vadd.f32 0.0, %v8804
        %v8806 = vpop.f32.mrf.mxu0
        %8807 = vmatprep.mubr.bf16.mxu0 0
        %8808 = vmatmul.mubr.bf16.gmra.mxu0 %v8660
        %v8809 = vpop.f32.mrf.mxu0
        %v8810 = vadd.f32 0.0, %v8809
        %v8811 = vpop.f32.mrf.mxu0
        %v8812 = vpop.f32.mrf.mxu0
        %v8813 = vadd.f32 0.0, %v8812
        %v8814 = vpop.f32.mrf.mxu0
        %8815 = vmatprep.mubr.bf16.mxu0 0
        %8816 = vmatmul.mubr.bf16.gmra.mxu0 %v8663
        %v8817 = vpop.f32.mrf.mxu0
        %v8818 = vadd.f32 0.0, %v8817
        %v8819 = vpop.f32.mrf.mxu0
        %v8820 = vpop.f32.mrf.mxu0
        %v8821 = vadd.f32 0.0, %v8820
        %v8822 = vpop.f32.mrf.mxu0
        %8823 = vmatprep.mubr.bf16.mxu0 0
        %8824 = vmatmul.mubr.bf16.gmra.mxu0 %v8666
        %v8825 = vpop.f32.mrf.mxu0
        %v8826 = vadd.f32 0.0, %v8825
        %v8827 = vpop.f32.mrf.mxu0
        %v8828 = vpop.f32.mrf.mxu0
        %v8829 = vadd.f32 0.0, %v8828
        %v8830 = vpop.f32.mrf.mxu0
        %8831 = vdwg.mxu0
        %v8832 = vadd.f32 %v7487, %v8706
        %v8833 = vadd.f32 %v7488, %v8709
        %v8834 = vadd.f32 %v7489, %v8714
        %v8835 = vadd.f32 %v7490, %v8717
        %v8836 = vadd.f32 %v7491, %v8722
        %v8837 = vadd.f32 %v7492, %v8725
        %v8838 = vadd.f32 %v7493, %v8730
        %v8839 = vadd.f32 %v7494, %v8733
        %v8840 = vadd.f32 %v7495, %v8738
        %v8841 = vadd.f32 %v7496, %v8741
        %v8842 = vadd.f32 %v7497, %v8746
        %v8843 = vadd.f32 %v7498, %v8749
        %v8844 = vadd.f32 %v7499, %v8754
        %v8845 = vadd.f32 %v7500, %v8757
        %v8846 = vadd.f32 %v7501, %v8762
        %v8847 = vadd.f32 %v7502, %v8765
        %v8848 = vadd.f32 %v7503, %v8770
        %v8849 = vadd.f32 %v7504, %v8773
        %v8850 = vadd.f32 %v7505, %v8778
        %v8851 = vadd.f32 %v7506, %v8781
        %v8852 = vadd.f32 %v7507, %v8786
        %v8853 = vadd.f32 %v7508, %v8789
        %v8854 = vadd.f32 %v7509, %v8794
        %v8855 = vadd.f32 %v7510, %v8797
        %v8856 = vadd.f32 %v7511, %v8802
        %v8857 = vadd.f32 %v7512, %v8805
        %v8858 = vadd.f32 %v7513, %v8810
        %v8859 = vadd.f32 %v7514, %v8813
        %v8860 = vadd.f32 %v7515, %v8818
        %v8861 = vadd.f32 %v7516, %v8821
        %v8862 = vadd.f32 %v7517, %v8826
        %v8863 = vadd.f32 %v7518, %v8829
        %8864 = vrot.lane.b32.xlu0 %v597, 80
        %v8865 = vpop.permute.xlu0 %8864
        %8866 = vrot.lane.b32.xlu0 %v598, 80
        %v8867 = vpop.permute.xlu0 %8866
        %8868 = vrot.lane.b32.xlu0 %v599, 80
        %v8869 = vpop.permute.xlu0 %8868
        %8870 = vrot.lane.b32.xlu0 %v600, 80
        %v8871 = vpop.permute.xlu0 %8870
        %v8873 = vsel %vm928, %v8865, 0
        %v8876 = vsel %vm928, %v8867, 0
        %v8879 = vsel %vm928, %v8869, 0
        %v8882 = vsel %vm928, %v8871, 0
        %v8885 = vsel %vm941, %v888, 0
        %8887 = vmatprep.subr.bf16.mxu0 0
        %8888 = vmatpush1.bf16.msra.mxu0 0
        %8889 = vmatprep.subr.bf16.mxu0 0
        %8890 = vmatpush1.bf16.msra.mxu0 0
        %8891 = vmatprep.subr.bf16.mxu0 0
        %8892 = vmatpush1.bf16.msra.mxu0 0
        %8893 = vmatprep.subr.bf16.mxu0 0
        %8894 = vmatpush1.bf16.msra.mxu0 0
        %8895 = vmatprep.subr.bf16.mxu0 0
        %8896 = vmatpush1.bf16.msra.mxu0 0
        %8897 = vmatprep.subr.bf16.mxu0 0
        %8898 = vmatpush1.bf16.msra.mxu0 0
        %8899 = vmatprep.subr.bf16.mxu0 0
        %8900 = vmatpush1.bf16.msra.mxu0 0
        %8901 = vmatprep.subr.bf16.mxu0 0
        %8902 = vmatpush1.bf16.msra.mxu0 %v8885
        %8903 = vmatprep.subr.bf16.mxu0 0
        %8904 = vmatpush2.bf16.msra.mxu0 0
        %8905 = vmatprep.subr.bf16.mxu0 0
        %8906 = vmatpush2.bf16.msra.mxu0 0
        %8907 = vmatprep.subr.bf16.mxu0 0
        %8908 = vmatpush2.bf16.msra.mxu0 0
        %8909 = vmatprep.subr.bf16.mxu0 0
        %8910 = vmatpush2.bf16.msra.mxu0 0
        %8911 = vmatprep.subr.bf16.mxu0 0
        %8912 = vmatpush2.bf16.msra.mxu0 0
        %8913 = vmatprep.subr.bf16.mxu0 0
        %8914 = vmatpush2.bf16.msra.mxu0 0
        %8915 = vmatprep.subr.bf16.mxu0 0
        %8916 = vmatpush2.bf16.msra.mxu0 0
        %8917 = vmatprep.subr.bf16.mxu0 0
        %8918 = vmatpush2.bf16.msra.mxu0 0
        %8919 = vmatprep.mubr.bf16.mxu0 0
        %8920 = vmatmul.mubr.bf16.gmra.mxu0 %v8873
        %v8921 = vpop.f32.mrf.mxu0
        %v8922 = vadd.f32 %v920, %v8921
        %v8923 = vpop.f32.mrf.mxu0
        %v8924 = vpop.f32.mrf.mxu0
        %v8925 = vadd.f32 %v921, %v8924
        %v8926 = vpop.f32.mrf.mxu0
        %8927 = vmatprep.mubr.bf16.mxu0 0
        %8928 = vmatmul.mubr.bf16.gmra.mxu0 %v8876
        %v8929 = vpop.f32.mrf.mxu0
        %v8930 = vadd.f32 %v922, %v8929
        %v8931 = vpop.f32.mrf.mxu0
        %v8932 = vpop.f32.mrf.mxu0
        %v8933 = vadd.f32 %v923, %v8932
        %v8934 = vpop.f32.mrf.mxu0
        %8935 = vmatprep.mubr.bf16.mxu0 0
        %8936 = vmatmul.mubr.bf16.gmra.mxu0 %v8879
        %v8937 = vpop.f32.mrf.mxu0
        %v8938 = vadd.f32 %v924, %v8937
        %v8939 = vpop.f32.mrf.mxu0
        %v8940 = vpop.f32.mrf.mxu0
        %v8941 = vadd.f32 %v925, %v8940
        %v8942 = vpop.f32.mrf.mxu0
        %8943 = vmatprep.mubr.bf16.mxu0 0
        %8944 = vmatmul.mubr.bf16.gmra.mxu0 %v8882
        %v8945 = vpop.f32.mrf.mxu0
        %v8946 = vadd.f32 %v926, %v8945
        %v8947 = vpop.f32.mrf.mxu0
        %v8948 = vpop.f32.mrf.mxu0
        %v8949 = vadd.f32 %v927, %v8948
        %v8950 = vpop.f32.mrf.mxu0
        %8951 = vdwg.mxu0
        %8952 = vrot.lane.b32.xlu0 %v601, 80
        %v8953 = vpop.permute.xlu0 %8952
        %8954 = vrot.lane.b32.xlu0 %v602, 80
        %v8955 = vpop.permute.xlu0 %8954
        %8956 = vrot.lane.b32.xlu0 %v603, 80
        %v8957 = vpop.permute.xlu0 %8956
        %8958 = vrot.lane.b32.xlu0 %v604, 80
        %v8959 = vpop.permute.xlu0 %8958
        %v8961 = vsel %vm928, %v8953, 0
        %v8964 = vsel %vm928, %v8955, 0
        %v8967 = vsel %vm928, %v8957, 0
        %v8970 = vsel %vm928, %v8959, 0
        %v8973 = vsel %vm941, %v892, 0
        %8975 = vmatprep.subr.bf16.mxu0 0
        %8976 = vmatpush1.bf16.msra.mxu0 0
        %8977 = vmatprep.subr.bf16.mxu0 0
        %8978 = vmatpush1.bf16.msra.mxu0 0
        %8979 = vmatprep.subr.bf16.mxu0 0
        %8980 = vmatpush1.bf16.msra.mxu0 0
        %8981 = vmatprep.subr.bf16.mxu0 0
        %8982 = vmatpush1.bf16.msra.mxu0 0
        %8983 = vmatprep.subr.bf16.mxu0 0
        %8984 = vmatpush1.bf16.msra.mxu0 0
        %8985 = vmatprep.subr.bf16.mxu0 0
        %8986 = vmatpush1.bf16.msra.mxu0 0
        %8987 = vmatprep.subr.bf16.mxu0 0
        %8988 = vmatpush1.bf16.msra.mxu0 0
        %8989 = vmatprep.subr.bf16.mxu0 0
        %8990 = vmatpush1.bf16.msra.mxu0 %v8973
        %8991 = vmatprep.subr.bf16.mxu0 0
        %8992 = vmatpush2.bf16.msra.mxu0 0
        %8993 = vmatprep.subr.bf16.mxu0 0
        %8994 = vmatpush2.bf16.msra.mxu0 0
        %8995 = vmatprep.subr.bf16.mxu0 0
        %8996 = vmatpush2.bf16.msra.mxu0 0
        %8997 = vmatprep.subr.bf16.mxu0 0
        %8998 = vmatpush2.bf16.msra.mxu0 0
        %8999 = vmatprep.subr.bf16.mxu0 0
        %9000 = vmatpush2.bf16.msra.mxu0 0
        %9001 = vmatprep.subr.bf16.mxu0 0
        %9002 = vmatpush2.bf16.msra.mxu0 0
        %9003 = vmatprep.subr.bf16.mxu0 0
        %9004 = vmatpush2.bf16.msra.mxu0 0
        %9005 = vmatprep.subr.bf16.mxu0 0
        %9006 = vmatpush2.bf16.msra.mxu0 0
        %9007 = vmatprep.mubr.bf16.mxu0 0
        %9008 = vmatmul.mubr.bf16.gmra.mxu0 %v8961
        %v9009 = vpop.f32.mrf.mxu0
        %v9010 = vadd.f32 %v920, %v9009
        %v9011 = vpop.f32.mrf.mxu0
        %v9012 = vpop.f32.mrf.mxu0
        %v9013 = vadd.f32 %v921, %v9012
        %v9014 = vpop.f32.mrf.mxu0
        %9015 = vmatprep.mubr.bf16.mxu0 0
        %9016 = vmatmul.mubr.bf16.gmra.mxu0 %v8964
        %v9017 = vpop.f32.mrf.mxu0
        %v9018 = vadd.f32 %v922, %v9017
        %v9019 = vpop.f32.mrf.mxu0
        %v9020 = vpop.f32.mrf.mxu0
        %v9021 = vadd.f32 %v923, %v9020
        %v9022 = vpop.f32.mrf.mxu0
        %9023 = vmatprep.mubr.bf16.mxu0 0
        %9024 = vmatmul.mubr.bf16.gmra.mxu0 %v8967
        %v9025 = vpop.f32.mrf.mxu0
        %v9026 = vadd.f32 %v924, %v9025
        %v9027 = vpop.f32.mrf.mxu0
        %v9028 = vpop.f32.mrf.mxu0
        %v9029 = vadd.f32 %v925, %v9028
        %v9030 = vpop.f32.mrf.mxu0
        %9031 = vmatprep.mubr.bf16.mxu0 0
        %9032 = vmatmul.mubr.bf16.gmra.mxu0 %v8970
        %v9033 = vpop.f32.mrf.mxu0
        %v9034 = vadd.f32 %v926, %v9033
        %v9035 = vpop.f32.mrf.mxu0
        %v9036 = vpop.f32.mrf.mxu0
        %v9037 = vadd.f32 %v927, %v9036
        %v9038 = vpop.f32.mrf.mxu0
        %9039 = vdwg.mxu0
        %9040 = vrot.lane.b32.xlu0 %v605, 80
        %v9041 = vpop.permute.xlu0 %9040
        %9042 = vrot.lane.b32.xlu0 %v606, 80
        %v9043 = vpop.permute.xlu0 %9042
        %9044 = vrot.lane.b32.xlu0 %v607, 80
        %v9045 = vpop.permute.xlu0 %9044
        %9046 = vrot.lane.b32.xlu0 %v608, 80
        %v9047 = vpop.permute.xlu0 %9046
        %v9049 = vsel %vm928, %v9041, 0
        %v9052 = vsel %vm928, %v9043, 0
        %v9055 = vsel %vm928, %v9045, 0
        %v9058 = vsel %vm928, %v9047, 0
        %v9061 = vsel %vm941, %v896, 0
        %9063 = vmatprep.subr.bf16.mxu0 0
        %9064 = vmatpush1.bf16.msra.mxu0 0
        %9065 = vmatprep.subr.bf16.mxu0 0
        %9066 = vmatpush1.bf16.msra.mxu0 0
        %9067 = vmatprep.subr.bf16.mxu0 0
        %9068 = vmatpush1.bf16.msra.mxu0 0
        %9069 = vmatprep.subr.bf16.mxu0 0
        %9070 = vmatpush1.bf16.msra.mxu0 0
        %9071 = vmatprep.subr.bf16.mxu0 0
        %9072 = vmatpush1.bf16.msra.mxu0 0
        %9073 = vmatprep.subr.bf16.mxu0 0
        %9074 = vmatpush1.bf16.msra.mxu0 0
        %9075 = vmatprep.subr.bf16.mxu0 0
        %9076 = vmatpush1.bf16.msra.mxu0 0
        %9077 = vmatprep.subr.bf16.mxu0 0
        %9078 = vmatpush1.bf16.msra.mxu0 %v9061
        %9079 = vmatprep.subr.bf16.mxu0 0
        %9080 = vmatpush2.bf16.msra.mxu0 0
        %9081 = vmatprep.subr.bf16.mxu0 0
        %9082 = vmatpush2.bf16.msra.mxu0 0
        %9083 = vmatprep.subr.bf16.mxu0 0
        %9084 = vmatpush2.bf16.msra.mxu0 0
        %9085 = vmatprep.subr.bf16.mxu0 0
        %9086 = vmatpush2.bf16.msra.mxu0 0
        %9087 = vmatprep.subr.bf16.mxu0 0
        %9088 = vmatpush2.bf16.msra.mxu0 0
        %9089 = vmatprep.subr.bf16.mxu0 0
        %9090 = vmatpush2.bf16.msra.mxu0 0
        %9091 = vmatprep.subr.bf16.mxu0 0
        %9092 = vmatpush2.bf16.msra.mxu0 0
        %9093 = vmatprep.subr.bf16.mxu0 0
        %9094 = vmatpush2.bf16.msra.mxu0 0
        %9095 = vmatprep.mubr.bf16.mxu0 0
        %9096 = vmatmul.mubr.bf16.gmra.mxu0 %v9049
        %v9097 = vpop.f32.mrf.mxu0
        %v9098 = vadd.f32 %v920, %v9097
        %v9099 = vpop.f32.mrf.mxu0
        %v9100 = vpop.f32.mrf.mxu0
        %v9101 = vadd.f32 %v921, %v9100
        %v9102 = vpop.f32.mrf.mxu0
        %9103 = vmatprep.mubr.bf16.mxu0 0
        %9104 = vmatmul.mubr.bf16.gmra.mxu0 %v9052
        %v9105 = vpop.f32.mrf.mxu0
        %v9106 = vadd.f32 %v922, %v9105
        %v9107 = vpop.f32.mrf.mxu0
        %v9108 = vpop.f32.mrf.mxu0
        %v9109 = vadd.f32 %v923, %v9108
        %v9110 = vpop.f32.mrf.mxu0
        %9111 = vmatprep.mubr.bf16.mxu0 0
        %9112 = vmatmul.mubr.bf16.gmra.mxu0 %v9055
        %v9113 = vpop.f32.mrf.mxu0
        %v9114 = vadd.f32 %v924, %v9113
        %v9115 = vpop.f32.mrf.mxu0
        %v9116 = vpop.f32.mrf.mxu0
        %v9117 = vadd.f32 %v925, %v9116
        %v9118 = vpop.f32.mrf.mxu0
        %9119 = vmatprep.mubr.bf16.mxu0 0
        %9120 = vmatmul.mubr.bf16.gmra.mxu0 %v9058
        %v9121 = vpop.f32.mrf.mxu0
        %v9122 = vadd.f32 %v926, %v9121
        %v9123 = vpop.f32.mrf.mxu0
        %v9124 = vpop.f32.mrf.mxu0
        %v9125 = vadd.f32 %v927, %v9124
        %v9126 = vpop.f32.mrf.mxu0
        %9127 = vdwg.mxu0
        %9128 = vrot.lane.b32.xlu0 %v609, 80
        %v9129 = vpop.permute.xlu0 %9128
        %9130 = vrot.lane.b32.xlu0 %v610, 80
        %v9131 = vpop.permute.xlu0 %9130
        %9132 = vrot.lane.b32.xlu0 %v611, 80
        %v9133 = vpop.permute.xlu0 %9132
        %9134 = vrot.lane.b32.xlu0 %v612, 80
        %v9135 = vpop.permute.xlu0 %9134
        %v9137 = vsel %vm928, %v9129, 0
        %v9140 = vsel %vm928, %v9131, 0
        %v9143 = vsel %vm928, %v9133, 0
        %v9146 = vsel %vm928, %v9135, 0
        %v9149 = vsel %vm941, %v900, 0
        %9151 = vmatprep.subr.bf16.mxu0 0
        %9152 = vmatpush1.bf16.msra.mxu0 0
        %9153 = vmatprep.subr.bf16.mxu0 0
        %9154 = vmatpush1.bf16.msra.mxu0 0
        %9155 = vmatprep.subr.bf16.mxu0 0
        %9156 = vmatpush1.bf16.msra.mxu0 0
        %9157 = vmatprep.subr.bf16.mxu0 0
        %9158 = vmatpush1.bf16.msra.mxu0 0
        %9159 = vmatprep.subr.bf16.mxu0 0
        %9160 = vmatpush1.bf16.msra.mxu0 0
        %9161 = vmatprep.subr.bf16.mxu0 0
        %9162 = vmatpush1.bf16.msra.mxu0 0
        %9163 = vmatprep.subr.bf16.mxu0 0
        %9164 = vmatpush1.bf16.msra.mxu0 0
        %9165 = vmatprep.subr.bf16.mxu0 0
        %9166 = vmatpush1.bf16.msra.mxu0 %v9149
        %9167 = vmatprep.subr.bf16.mxu0 0
        %9168 = vmatpush2.bf16.msra.mxu0 0
        %9169 = vmatprep.subr.bf16.mxu0 0
        %9170 = vmatpush2.bf16.msra.mxu0 0
        %9171 = vmatprep.subr.bf16.mxu0 0
        %9172 = vmatpush2.bf16.msra.mxu0 0
        %9173 = vmatprep.subr.bf16.mxu0 0
        %9174 = vmatpush2.bf16.msra.mxu0 0
        %9175 = vmatprep.subr.bf16.mxu0 0
        %9176 = vmatpush2.bf16.msra.mxu0 0
        %9177 = vmatprep.subr.bf16.mxu0 0
        %9178 = vmatpush2.bf16.msra.mxu0 0
        %9179 = vmatprep.subr.bf16.mxu0 0
        %9180 = vmatpush2.bf16.msra.mxu0 0
        %9181 = vmatprep.subr.bf16.mxu0 0
        %9182 = vmatpush2.bf16.msra.mxu0 0
        %9183 = vmatprep.mubr.bf16.mxu0 0
        %9184 = vmatmul.mubr.bf16.gmra.mxu0 %v9137
        %v9185 = vpop.f32.mrf.mxu0
        %v9186 = vadd.f32 %v920, %v9185
        %v9187 = vpop.f32.mrf.mxu0
        %v9188 = vpop.f32.mrf.mxu0
        %v9189 = vadd.f32 %v921, %v9188
        %v9190 = vpop.f32.mrf.mxu0
        %9191 = vmatprep.mubr.bf16.mxu0 0
        %9192 = vmatmul.mubr.bf16.gmra.mxu0 %v9140
        %v9193 = vpop.f32.mrf.mxu0
        %v9194 = vadd.f32 %v922, %v9193
        %v9195 = vpop.f32.mrf.mxu0
        %v9196 = vpop.f32.mrf.mxu0
        %v9197 = vadd.f32 %v923, %v9196
        %v9198 = vpop.f32.mrf.mxu0
        %9199 = vmatprep.mubr.bf16.mxu0 0
        %9200 = vmatmul.mubr.bf16.gmra.mxu0 %v9143
        %v9201 = vpop.f32.mrf.mxu0
        %v9202 = vadd.f32 %v924, %v9201
        %v9203 = vpop.f32.mrf.mxu0
        %v9204 = vpop.f32.mrf.mxu0
        %v9205 = vadd.f32 %v925, %v9204
        %v9206 = vpop.f32.mrf.mxu0
        %9207 = vmatprep.mubr.bf16.mxu0 0
        %9208 = vmatmul.mubr.bf16.gmra.mxu0 %v9146
        %v9209 = vpop.f32.mrf.mxu0
        %v9210 = vadd.f32 %v926, %v9209
        %v9211 = vpop.f32.mrf.mxu0
        %v9212 = vpop.f32.mrf.mxu0
        %v9213 = vadd.f32 %v927, %v9212
        %v9214 = vpop.f32.mrf.mxu0
        %9215 = vdwg.mxu0
        %v9216 = vsel %vm355, %v8922, -inf
        %9217 = vmax.xlane.f32.xlu0 %v9216
        %v9218 = vpop.xlane.xlu0 %9217
        %v9219 = vsel %vm355, %v8925, -inf
        %9220 = vmax.xlane.f32.xlu0 %v9219
        %v9221 = vpop.xlane.xlu0 %9220
        %v9222 = vsel %vm355, %v8930, -inf
        %9223 = vmax.xlane.f32.xlu0 %v9222
        %v9224 = vpop.xlane.xlu0 %9223
        %v9225 = vsel %vm355, %v8933, -inf
        %9226 = vmax.xlane.f32.xlu0 %v9225
        %v9227 = vpop.xlane.xlu0 %9226
        %v9228 = vsel %vm355, %v8938, -inf
        %9229 = vmax.xlane.f32.xlu0 %v9228
        %v9230 = vpop.xlane.xlu0 %9229
        %v9231 = vsel %vm355, %v8941, -inf
        %9232 = vmax.xlane.f32.xlu0 %v9231
        %v9233 = vpop.xlane.xlu0 %9232
        %v9234 = vsel %vm355, %v8946, -inf
        %9235 = vmax.xlane.f32.xlu0 %v9234
        %v9236 = vpop.xlane.xlu0 %9235
        %v9237 = vsel %vm355, %v8949, -inf
        %9238 = vmax.xlane.f32.xlu0 %v9237
        %v9239 = vpop.xlane.xlu0 %9238
        %v9240 = vsel %vm355, %v9010, -inf
        %9241 = vmax.xlane.f32.xlu0 %v9240
        %v9242 = vpop.xlane.xlu0 %9241
        %v9243 = vsel %vm355, %v9013, -inf
        %9244 = vmax.xlane.f32.xlu0 %v9243
        %v9245 = vpop.xlane.xlu0 %9244
        %v9246 = vsel %vm355, %v9018, -inf
        %9247 = vmax.xlane.f32.xlu0 %v9246
        %v9248 = vpop.xlane.xlu0 %9247
        %v9249 = vsel %vm355, %v9021, -inf
        %9250 = vmax.xlane.f32.xlu0 %v9249
        %v9251 = vpop.xlane.xlu0 %9250
        %v9252 = vsel %vm355, %v9026, -inf
        %9253 = vmax.xlane.f32.xlu0 %v9252
        %v9254 = vpop.xlane.xlu0 %9253
        %v9255 = vsel %vm355, %v9029, -inf
        %9256 = vmax.xlane.f32.xlu0 %v9255
        %v9257 = vpop.xlane.xlu0 %9256
        %v9258 = vsel %vm355, %v9034, -inf
        %9259 = vmax.xlane.f32.xlu0 %v9258
        %v9260 = vpop.xlane.xlu0 %9259
        %v9261 = vsel %vm355, %v9037, -inf
        %9262 = vmax.xlane.f32.xlu0 %v9261
        %v9263 = vpop.xlane.xlu0 %9262
        %v9264 = vsel %vm355, %v9098, -inf
        %9265 = vmax.xlane.f32.xlu0 %v9264
        %v9266 = vpop.xlane.xlu0 %9265
        %v9267 = vsel %vm355, %v9101, -inf
        %9268 = vmax.xlane.f32.xlu0 %v9267
        %v9269 = vpop.xlane.xlu0 %9268
        %v9270 = vsel %vm355, %v9106, -inf
        %9271 = vmax.xlane.f32.xlu0 %v9270
        %v9272 = vpop.xlane.xlu0 %9271
        %v9273 = vsel %vm355, %v9109, -inf
        %9274 = vmax.xlane.f32.xlu0 %v9273
        %v9275 = vpop.xlane.xlu0 %9274
        %v9276 = vsel %vm355, %v9114, -inf
        %9277 = vmax.xlane.f32.xlu0 %v9276
        %v9278 = vpop.xlane.xlu0 %9277
        %v9279 = vsel %vm355, %v9117, -inf
        %9280 = vmax.xlane.f32.xlu0 %v9279
        %v9281 = vpop.xlane.xlu0 %9280
        %v9282 = vsel %vm355, %v9122, -inf
        %9283 = vmax.xlane.f32.xlu0 %v9282
        %v9284 = vpop.xlane.xlu0 %9283
        %v9285 = vsel %vm355, %v9125, -inf
        %9286 = vmax.xlane.f32.xlu0 %v9285
        %v9287 = vpop.xlane.xlu0 %9286
        %v9288 = vsel %vm355, %v9186, -inf
        %9289 = vmax.xlane.f32.xlu0 %v9288
        %v9290 = vpop.xlane.xlu0 %9289
        %v9291 = vsel %vm355, %v9189, -inf
        %9292 = vmax.xlane.f32.xlu0 %v9291
        %v9293 = vpop.xlane.xlu0 %9292
        %v9294 = vsel %vm355, %v9194, -inf
        %9295 = vmax.xlane.f32.xlu0 %v9294
        %v9296 = vpop.xlane.xlu0 %9295
        %v9297 = vsel %vm355, %v9197, -inf
        %9298 = vmax.xlane.f32.xlu0 %v9297
        %v9299 = vpop.xlane.xlu0 %9298
        %v9300 = vsel %vm355, %v9202, -inf
        %9301 = vmax.xlane.f32.xlu0 %v9300
        %v9302 = vpop.xlane.xlu0 %9301
        %v9303 = vsel %vm355, %v9205, -inf
        %9304 = vmax.xlane.f32.xlu0 %v9303
        %v9305 = vpop.xlane.xlu0 %9304
        %v9306 = vsel %vm355, %v9210, -inf
        %9307 = vmax.xlane.f32.xlu0 %v9306
        %v9308 = vpop.xlane.xlu0 %9307
        %v9309 = vsel %vm355, %v9213, -inf
        %9310 = vmax.xlane.f32.xlu0 %v9309
        %v9311 = vpop.xlane.xlu0 %9310
        %v9312 = vsub.f32 %v8922, %v9218
        %v9313 = vsub.f32 %v8925, %v9221
        %v9314 = vsub.f32 %v8930, %v9224
        %v9315 = vsub.f32 %v8933, %v9227
        %v9316 = vsub.f32 %v8938, %v9230
        %v9317 = vsub.f32 %v8941, %v9233
        %v9318 = vsub.f32 %v8946, %v9236
        %v9319 = vsub.f32 %v8949, %v9239
        %v9320 = vsub.f32 %v9010, %v9242
        %v9321 = vsub.f32 %v9013, %v9245
        %v9322 = vsub.f32 %v9018, %v9248
        %v9323 = vsub.f32 %v9021, %v9251
        %v9324 = vsub.f32 %v9026, %v9254
        %v9325 = vsub.f32 %v9029, %v9257
        %v9326 = vsub.f32 %v9034, %v9260
        %v9327 = vsub.f32 %v9037, %v9263
        %v9328 = vsub.f32 %v9098, %v9266
        %v9329 = vsub.f32 %v9101, %v9269
        %v9330 = vsub.f32 %v9106, %v9272
        %v9331 = vsub.f32 %v9109, %v9275
        %v9332 = vsub.f32 %v9114, %v9278
        %v9333 = vsub.f32 %v9117, %v9281
        %v9334 = vsub.f32 %v9122, %v9284
        %v9335 = vsub.f32 %v9125, %v9287
        %v9336 = vsub.f32 %v9186, %v9290
        %v9337 = vsub.f32 %v9189, %v9293
        %v9338 = vsub.f32 %v9194, %v9296
        %v9339 = vsub.f32 %v9197, %v9299
        %v9340 = vsub.f32 %v9202, %v9302
        %v9341 = vsub.f32 %v9205, %v9305
        %v9342 = vsub.f32 %v9210, %v9308
        %v9343 = vsub.f32 %v9213, %v9311
        %v9344 = vmul.f32 %v9312, 1.442695
        %v9345 = vpow.pop %v9344
        %v9346 = vmul.f32 %v9313, 1.442695
        %v9347 = vpow.pop %v9346
        %v9348 = vmul.f32 %v9314, 1.442695
        %v9349 = vpow.pop %v9348
        %v9350 = vmul.f32 %v9315, 1.442695
        %v9351 = vpow.pop %v9350
        %v9352 = vmul.f32 %v9316, 1.442695
        %v9353 = vpow.pop %v9352
        %v9354 = vmul.f32 %v9317, 1.442695
        %v9355 = vpow.pop %v9354
        %v9356 = vmul.f32 %v9318, 1.442695
        %v9357 = vpow.pop %v9356
        %v9358 = vmul.f32 %v9319, 1.442695
        %v9359 = vpow.pop %v9358
        %v9360 = vmul.f32 %v9320, 1.442695
        %v9361 = vpow.pop %v9360
        %v9362 = vmul.f32 %v9321, 1.442695
        %v9363 = vpow.pop %v9362
        %v9364 = vmul.f32 %v9322, 1.442695
        %v9365 = vpow.pop %v9364
        %v9366 = vmul.f32 %v9323, 1.442695
        %v9367 = vpow.pop %v9366
        %v9368 = vmul.f32 %v9324, 1.442695
        %v9369 = vpow.pop %v9368
        %v9370 = vmul.f32 %v9325, 1.442695
        %v9371 = vpow.pop %v9370
        %v9372 = vmul.f32 %v9326, 1.442695
        %v9373 = vpow.pop %v9372
        %v9374 = vmul.f32 %v9327, 1.442695
        %v9375 = vpow.pop %v9374
        %v9376 = vmul.f32 %v9328, 1.442695
        %v9377 = vpow.pop %v9376
        %v9378 = vmul.f32 %v9329, 1.442695
        %v9379 = vpow.pop %v9378
        %v9380 = vmul.f32 %v9330, 1.442695
        %v9381 = vpow.pop %v9380
        %v9382 = vmul.f32 %v9331, 1.442695
        %v9383 = vpow.pop %v9382
        %v9384 = vmul.f32 %v9332, 1.442695
        %v9385 = vpow.pop %v9384
        %v9386 = vmul.f32 %v9333, 1.442695
        %v9387 = vpow.pop %v9386
        %v9388 = vmul.f32 %v9334, 1.442695
        %v9389 = vpow.pop %v9388
        %v9390 = vmul.f32 %v9335, 1.442695
        %v9391 = vpow.pop %v9390
        %v9392 = vmul.f32 %v9336, 1.442695
        %v9393 = vpow.pop %v9392
        %v9394 = vmul.f32 %v9337, 1.442695
        %v9395 = vpow.pop %v9394
        %v9396 = vmul.f32 %v9338, 1.442695
        %v9397 = vpow.pop %v9396
        %v9398 = vmul.f32 %v9339, 1.442695
        %v9399 = vpow.pop %v9398
        %v9400 = vmul.f32 %v9340, 1.442695
        %v9401 = vpow.pop %v9400
        %v9402 = vmul.f32 %v9341, 1.442695
        %v9403 = vpow.pop %v9402
        %v9404 = vmul.f32 %v9342, 1.442695
        %v9405 = vpow.pop %v9404
        %v9406 = vmul.f32 %v9343, 1.442695
        %v9407 = vpow.pop %v9406
        %v9408 = vsel %vm355, %v9345, 0.0
        %9409 = vadd.xlane.f32.xlu0 %v9408
        %v9410 = vpop.xlane.xlu0 %9409
        %v9411 = vsel %vm355, %v9347, 0.0
        %9412 = vadd.xlane.f32.xlu0 %v9411
        %v9413 = vpop.xlane.xlu0 %9412
        %v9414 = vsel %vm355, %v9349, 0.0
        %9415 = vadd.xlane.f32.xlu0 %v9414
        %v9416 = vpop.xlane.xlu0 %9415
        %v9417 = vsel %vm355, %v9351, 0.0
        %9418 = vadd.xlane.f32.xlu0 %v9417
        %v9419 = vpop.xlane.xlu0 %9418
        %v9420 = vsel %vm355, %v9353, 0.0
        %9421 = vadd.xlane.f32.xlu0 %v9420
        %v9422 = vpop.xlane.xlu0 %9421
        %v9423 = vsel %vm355, %v9355, 0.0
        %9424 = vadd.xlane.f32.xlu0 %v9423
        %v9425 = vpop.xlane.xlu0 %9424
        %v9426 = vsel %vm355, %v9357, 0.0
        %9427 = vadd.xlane.f32.xlu0 %v9426
        %v9428 = vpop.xlane.xlu0 %9427
        %v9429 = vsel %vm355, %v9359, 0.0
        %9430 = vadd.xlane.f32.xlu0 %v9429
        %v9431 = vpop.xlane.xlu0 %9430
        %v9432 = vsel %vm355, %v9361, 0.0
        %9433 = vadd.xlane.f32.xlu0 %v9432
        %v9434 = vpop.xlane.xlu0 %9433
        %v9435 = vsel %vm355, %v9363, 0.0
        %9436 = vadd.xlane.f32.xlu0 %v9435
        %v9437 = vpop.xlane.xlu0 %9436
        %v9438 = vsel %vm355, %v9365, 0.0
        %9439 = vadd.xlane.f32.xlu0 %v9438
        %v9440 = vpop.xlane.xlu0 %9439
        %v9441 = vsel %vm355, %v9367, 0.0
        %9442 = vadd.xlane.f32.xlu0 %v9441
        %v9443 = vpop.xlane.xlu0 %9442
        %v9444 = vsel %vm355, %v9369, 0.0
        %9445 = vadd.xlane.f32.xlu0 %v9444
        %v9446 = vpop.xlane.xlu0 %9445
        %v9447 = vsel %vm355, %v9371, 0.0
        %9448 = vadd.xlane.f32.xlu0 %v9447
        %v9449 = vpop.xlane.xlu0 %9448
        %v9450 = vsel %vm355, %v9373, 0.0
        %9451 = vadd.xlane.f32.xlu0 %v9450
        %v9452 = vpop.xlane.xlu0 %9451
        %v9453 = vsel %vm355, %v9375, 0.0
        %9454 = vadd.xlane.f32.xlu0 %v9453
        %v9455 = vpop.xlane.xlu0 %9454
        %v9456 = vsel %vm355, %v9377, 0.0
        %9457 = vadd.xlane.f32.xlu0 %v9456
        %v9458 = vpop.xlane.xlu0 %9457
        %v9459 = vsel %vm355, %v9379, 0.0
        %9460 = vadd.xlane.f32.xlu0 %v9459
        %v9461 = vpop.xlane.xlu0 %9460
        %v9462 = vsel %vm355, %v9381, 0.0
        %9463 = vadd.xlane.f32.xlu0 %v9462
        %v9464 = vpop.xlane.xlu0 %9463
        %v9465 = vsel %vm355, %v9383, 0.0
        %9466 = vadd.xlane.f32.xlu0 %v9465
        %v9467 = vpop.xlane.xlu0 %9466
        %v9468 = vsel %vm355, %v9385, 0.0
        %9469 = vadd.xlane.f32.xlu0 %v9468
        %v9470 = vpop.xlane.xlu0 %9469
        %v9471 = vsel %vm355, %v9387, 0.0
        %9472 = vadd.xlane.f32.xlu0 %v9471
        %v9473 = vpop.xlane.xlu0 %9472
        %v9474 = vsel %vm355, %v9389, 0.0
        %9475 = vadd.xlane.f32.xlu0 %v9474
        %v9476 = vpop.xlane.xlu0 %9475
        %v9477 = vsel %vm355, %v9391, 0.0
        %9478 = vadd.xlane.f32.xlu0 %v9477
        %v9479 = vpop.xlane.xlu0 %9478
        %v9480 = vsel %vm355, %v9393, 0.0
        %9481 = vadd.xlane.f32.xlu0 %v9480
        %v9482 = vpop.xlane.xlu0 %9481
        %v9483 = vsel %vm355, %v9395, 0.0
        %9484 = vadd.xlane.f32.xlu0 %v9483
        %v9485 = vpop.xlane.xlu0 %9484
        %v9486 = vsel %vm355, %v9397, 0.0
        %9487 = vadd.xlane.f32.xlu0 %v9486
        %v9488 = vpop.xlane.xlu0 %9487
        %v9489 = vsel %vm355, %v9399, 0.0
        %9490 = vadd.xlane.f32.xlu0 %v9489
        %v9491 = vpop.xlane.xlu0 %9490
        %v9492 = vsel %vm355, %v9401, 0.0
        %9493 = vadd.xlane.f32.xlu0 %v9492
        %v9494 = vpop.xlane.xlu0 %9493
        %v9495 = vsel %vm355, %v9403, 0.0
        %9496 = vadd.xlane.f32.xlu0 %v9495
        %v9497 = vpop.xlane.xlu0 %9496
        %v9498 = vsel %vm355, %v9405, 0.0
        %9499 = vadd.xlane.f32.xlu0 %v9498
        %v9500 = vpop.xlane.xlu0 %9499
        %v9501 = vsel %vm355, %v9407, 0.0
        %9502 = vadd.xlane.f32.xlu0 %v9501
        %v9503 = vpop.xlane.xlu0 %9502
        %v9504 = vrcp.pop %v9410
        %v9505 = vrcp.pop %v9413
        %v9506 = vrcp.pop %v9416
        %v9507 = vrcp.pop %v9419
        %v9508 = vrcp.pop %v9422
        %v9509 = vrcp.pop %v9425
        %v9510 = vrcp.pop %v9428
        %v9511 = vrcp.pop %v9431
        %v9512 = vrcp.pop %v9434
        %v9513 = vrcp.pop %v9437
        %v9514 = vrcp.pop %v9440
        %v9515 = vrcp.pop %v9443
        %v9516 = vrcp.pop %v9446
        %v9517 = vrcp.pop %v9449
        %v9518 = vrcp.pop %v9452
        %v9519 = vrcp.pop %v9455
        %v9520 = vrcp.pop %v9458
        %v9521 = vrcp.pop %v9461
        %v9522 = vrcp.pop %v9464
        %v9523 = vrcp.pop %v9467
        %v9524 = vrcp.pop %v9470
        %v9525 = vrcp.pop %v9473
        %v9526 = vrcp.pop %v9476
        %v9527 = vrcp.pop %v9479
        %v9528 = vrcp.pop %v9482
        %v9529 = vrcp.pop %v9485
        %v9530 = vrcp.pop %v9488
        %v9531 = vrcp.pop %v9491
        %v9532 = vrcp.pop %v9494
        %v9533 = vrcp.pop %v9497
        %v9534 = vrcp.pop %v9500
        %v9535 = vrcp.pop %v9503
        %v9536 = vmul.f32 %v9345, %v9504
        %v9537 = vmul.f32 %v9347, %v9505
        %v9538 = vmul.f32 %v9349, %v9506
        %v9539 = vmul.f32 %v9351, %v9507
        %v9540 = vmul.f32 %v9353, %v9508
        %v9541 = vmul.f32 %v9355, %v9509
        %v9542 = vmul.f32 %v9357, %v9510
        %v9543 = vmul.f32 %v9359, %v9511
        %v9544 = vmul.f32 %v9361, %v9512
        %v9545 = vmul.f32 %v9363, %v9513
        %v9546 = vmul.f32 %v9365, %v9514
        %v9547 = vmul.f32 %v9367, %v9515
        %v9548 = vmul.f32 %v9369, %v9516
        %v9549 = vmul.f32 %v9371, %v9517
        %v9550 = vmul.f32 %v9373, %v9518
        %v9551 = vmul.f32 %v9375, %v9519
        %v9552 = vmul.f32 %v9377, %v9520
        %v9553 = vmul.f32 %v9379, %v9521
        %v9554 = vmul.f32 %v9381, %v9522
        %v9555 = vmul.f32 %v9383, %v9523
        %v9556 = vmul.f32 %v9385, %v9524
        %v9557 = vmul.f32 %v9387, %v9525
        %v9558 = vmul.f32 %v9389, %v9526
        %v9559 = vmul.f32 %v9391, %v9527
        %v9560 = vmul.f32 %v9393, %v9528
        %v9561 = vmul.f32 %v9395, %v9529
        %v9562 = vmul.f32 %v9397, %v9530
        %v9563 = vmul.f32 %v9399, %v9531
        %v9564 = vmul.f32 %v9401, %v9532
        %v9565 = vmul.f32 %v9403, %v9533
        %v9566 = vmul.f32 %v9405, %v9534
        %v9567 = vmul.f32 %v9407, %v9535
        %v9568 = vpack.c.bf16 %v9537, %v9536
        %v9569 = vpack.c.bf16 %v9539, %v9538
        %v9570 = vpack.c.bf16 %v9541, %v9540
        %v9571 = vpack.c.bf16 %v9543, %v9542
        %v9572 = vpack.c.bf16 %v9545, %v9544
        %v9573 = vpack.c.bf16 %v9547, %v9546
        %v9574 = vpack.c.bf16 %v9549, %v9548
        %v9575 = vpack.c.bf16 %v9551, %v9550
        %v9576 = vpack.c.bf16 %v9553, %v9552
        %v9577 = vpack.c.bf16 %v9555, %v9554
        %v9578 = vpack.c.bf16 %v9557, %v9556
        %v9579 = vpack.c.bf16 %v9559, %v9558
        %v9580 = vpack.c.bf16 %v9561, %v9560
        %v9581 = vpack.c.bf16 %v9563, %v9562
        %v9582 = vpack.c.bf16 %v9565, %v9564
        %v9583 = vpack.c.bf16 %v9567, %v9566
        %9584 = vrot.lane.b32.xlu0 %v613, 80
        %v9585 = vpop.permute.xlu0 %9584
        %9586 = vrot.lane.b32.xlu0 %v614, 80
        %v9587 = vpop.permute.xlu0 %9586
        %9588 = vrot.lane.b32.xlu0 %v615, 80
        %v9589 = vpop.permute.xlu0 %9588
        %9590 = vrot.lane.b32.xlu0 %v616, 80
        %v9591 = vpop.permute.xlu0 %9590
        %v9597 = vsel %vm355, %v9568, 0
        %v9600 = vsel %vm355, %v9569, 0
        %v9603 = vsel %vm355, %v9570, 0
        %v9606 = vsel %vm355, %v9571, 0
        %9608 = vmatprep.subr.bf16.mxu0 0
        %9609 = vmatpush1.bf16.msra.mxu0 0
        %9610 = vmatprep.subr.bf16.mxu0 0
        %9611 = vmatpush1.bf16.msra.mxu0 0
        %9612 = vmatprep.subr.bf16.mxu0 0
        %9613 = vmatpush1.bf16.msra.mxu0 0
        %9614 = vmatprep.subr.bf16.mxu0 0
        %9615 = vmatpush1.bf16.msra.mxu0 0
        %9616 = vmatprep.subr.bf16.mxu0 0
        %9617 = vmatpush1.bf16.msra.mxu0 %v9591
        %9618 = vmatprep.subr.bf16.mxu0 0
        %9619 = vmatpush1.bf16.msra.mxu0 %v9589
        %9620 = vmatprep.subr.bf16.mxu0 0
        %9621 = vmatpush1.bf16.msra.mxu0 %v9587
        %9622 = vmatprep.subr.bf16.mxu0 0
        %9623 = vmatpush1.bf16.msra.mxu0 %v9585
        %9624 = vmatprep.subr.bf16.mxu0 0
        %9625 = vmatpush2.bf16.msra.mxu0 0
        %9626 = vmatprep.subr.bf16.mxu0 0
        %9627 = vmatpush2.bf16.msra.mxu0 0
        %9628 = vmatprep.subr.bf16.mxu0 0
        %9629 = vmatpush2.bf16.msra.mxu0 0
        %9630 = vmatprep.subr.bf16.mxu0 0
        %9631 = vmatpush2.bf16.msra.mxu0 0
        %9632 = vmatprep.subr.bf16.mxu0 0
        %9633 = vmatpush2.bf16.msra.mxu0 0
        %9634 = vmatprep.subr.bf16.mxu0 0
        %9635 = vmatpush2.bf16.msra.mxu0 0
        %9636 = vmatprep.subr.bf16.mxu0 0
        %9637 = vmatpush2.bf16.msra.mxu0 0
        %9638 = vmatprep.subr.bf16.mxu0 0
        %9639 = vmatpush2.bf16.msra.mxu0 0
        %9640 = vmatprep.mubr.bf16.mxu0 0
        %9641 = vmatmul.mubr.bf16.gmra.mxu0 %v9597
        %v9642 = vpop.f32.mrf.mxu0
        %v9643 = vadd.f32 0.0, %v9642
        %v9644 = vpop.f32.mrf.mxu0
        %v9645 = vpop.f32.mrf.mxu0
        %v9646 = vadd.f32 0.0, %v9645
        %v9647 = vpop.f32.mrf.mxu0
        %9648 = vmatprep.mubr.bf16.mxu0 0
        %9649 = vmatmul.mubr.bf16.gmra.mxu0 %v9600
        %v9650 = vpop.f32.mrf.mxu0
        %v9651 = vadd.f32 0.0, %v9650
        %v9652 = vpop.f32.mrf.mxu0
        %v9653 = vpop.f32.mrf.mxu0
        %v9654 = vadd.f32 0.0, %v9653
        %v9655 = vpop.f32.mrf.mxu0
        %9656 = vmatprep.mubr.bf16.mxu0 0
        %9657 = vmatmul.mubr.bf16.gmra.mxu0 %v9603
        %v9658 = vpop.f32.mrf.mxu0
        %v9659 = vadd.f32 0.0, %v9658
        %v9660 = vpop.f32.mrf.mxu0
        %v9661 = vpop.f32.mrf.mxu0
        %v9662 = vadd.f32 0.0, %v9661
        %v9663 = vpop.f32.mrf.mxu0
        %9664 = vmatprep.mubr.bf16.mxu0 0
        %9665 = vmatmul.mubr.bf16.gmra.mxu0 %v9606
        %v9666 = vpop.f32.mrf.mxu0
        %v9667 = vadd.f32 0.0, %v9666
        %v9668 = vpop.f32.mrf.mxu0
        %v9669 = vpop.f32.mrf.mxu0
        %v9670 = vadd.f32 0.0, %v9669
        %v9671 = vpop.f32.mrf.mxu0
        %9672 = vdwg.mxu0
        %9673 = vrot.lane.b32.xlu0 %v617, 80
        %v9674 = vpop.permute.xlu0 %9673
        %9675 = vrot.lane.b32.xlu0 %v618, 80
        %v9676 = vpop.permute.xlu0 %9675
        %9677 = vrot.lane.b32.xlu0 %v619, 80
        %v9678 = vpop.permute.xlu0 %9677
        %9679 = vrot.lane.b32.xlu0 %v620, 80
        %v9680 = vpop.permute.xlu0 %9679
        %v9686 = vsel %vm355, %v9572, 0
        %v9689 = vsel %vm355, %v9573, 0
        %v9692 = vsel %vm355, %v9574, 0
        %v9695 = vsel %vm355, %v9575, 0
        %9697 = vmatprep.subr.bf16.mxu0 0
        %9698 = vmatpush1.bf16.msra.mxu0 0
        %9699 = vmatprep.subr.bf16.mxu0 0
        %9700 = vmatpush1.bf16.msra.mxu0 0
        %9701 = vmatprep.subr.bf16.mxu0 0
        %9702 = vmatpush1.bf16.msra.mxu0 0
        %9703 = vmatprep.subr.bf16.mxu0 0
        %9704 = vmatpush1.bf16.msra.mxu0 0
        %9705 = vmatprep.subr.bf16.mxu0 0
        %9706 = vmatpush1.bf16.msra.mxu0 %v9680
        %9707 = vmatprep.subr.bf16.mxu0 0
        %9708 = vmatpush1.bf16.msra.mxu0 %v9678
        %9709 = vmatprep.subr.bf16.mxu0 0
        %9710 = vmatpush1.bf16.msra.mxu0 %v9676
        %9711 = vmatprep.subr.bf16.mxu0 0
        %9712 = vmatpush1.bf16.msra.mxu0 %v9674
        %9713 = vmatprep.subr.bf16.mxu0 0
        %9714 = vmatpush2.bf16.msra.mxu0 0
        %9715 = vmatprep.subr.bf16.mxu0 0
        %9716 = vmatpush2.bf16.msra.mxu0 0
        %9717 = vmatprep.subr.bf16.mxu0 0
        %9718 = vmatpush2.bf16.msra.mxu0 0
        %9719 = vmatprep.subr.bf16.mxu0 0
        %9720 = vmatpush2.bf16.msra.mxu0 0
        %9721 = vmatprep.subr.bf16.mxu0 0
        %9722 = vmatpush2.bf16.msra.mxu0 0
        %9723 = vmatprep.subr.bf16.mxu0 0
        %9724 = vmatpush2.bf16.msra.mxu0 0
        %9725 = vmatprep.subr.bf16.mxu0 0
        %9726 = vmatpush2.bf16.msra.mxu0 0
        %9727 = vmatprep.subr.bf16.mxu0 0
        %9728 = vmatpush2.bf16.msra.mxu0 0
        %9729 = vmatprep.mubr.bf16.mxu0 0
        %9730 = vmatmul.mubr.bf16.gmra.mxu0 %v9686
        %v9731 = vpop.f32.mrf.mxu0
        %v9732 = vadd.f32 0.0, %v9731
        %v9733 = vpop.f32.mrf.mxu0
        %v9734 = vpop.f32.mrf.mxu0
        %v9735 = vadd.f32 0.0, %v9734
        %v9736 = vpop.f32.mrf.mxu0
        %9737 = vmatprep.mubr.bf16.mxu0 0
        %9738 = vmatmul.mubr.bf16.gmra.mxu0 %v9689
        %v9739 = vpop.f32.mrf.mxu0
        %v9740 = vadd.f32 0.0, %v9739
        %v9741 = vpop.f32.mrf.mxu0
        %v9742 = vpop.f32.mrf.mxu0
        %v9743 = vadd.f32 0.0, %v9742
        %v9744 = vpop.f32.mrf.mxu0
        %9745 = vmatprep.mubr.bf16.mxu0 0
        %9746 = vmatmul.mubr.bf16.gmra.mxu0 %v9692
        %v9747 = vpop.f32.mrf.mxu0
        %v9748 = vadd.f32 0.0, %v9747
        %v9749 = vpop.f32.mrf.mxu0
        %v9750 = vpop.f32.mrf.mxu0
        %v9751 = vadd.f32 0.0, %v9750
        %v9752 = vpop.f32.mrf.mxu0
        %9753 = vmatprep.mubr.bf16.mxu0 0
        %9754 = vmatmul.mubr.bf16.gmra.mxu0 %v9695
        %v9755 = vpop.f32.mrf.mxu0
        %v9756 = vadd.f32 0.0, %v9755
        %v9757 = vpop.f32.mrf.mxu0
        %v9758 = vpop.f32.mrf.mxu0
        %v9759 = vadd.f32 0.0, %v9758
        %v9760 = vpop.f32.mrf.mxu0
        %9761 = vdwg.mxu0
        %9762 = vrot.lane.b32.xlu0 %v621, 80
        %v9763 = vpop.permute.xlu0 %9762
        %9764 = vrot.lane.b32.xlu0 %v622, 80
        %v9765 = vpop.permute.xlu0 %9764
        %9766 = vrot.lane.b32.xlu0 %v623, 80
        %v9767 = vpop.permute.xlu0 %9766
        %9768 = vrot.lane.b32.xlu0 %v624, 80
        %v9769 = vpop.permute.xlu0 %9768
        %v9775 = vsel %vm355, %v9576, 0
        %v9778 = vsel %vm355, %v9577, 0
        %v9781 = vsel %vm355, %v9578, 0
        %v9784 = vsel %vm355, %v9579, 0
        %9786 = vmatprep.subr.bf16.mxu0 0
        %9787 = vmatpush1.bf16.msra.mxu0 0
        %9788 = vmatprep.subr.bf16.mxu0 0
        %9789 = vmatpush1.bf16.msra.mxu0 0
        %9790 = vmatprep.subr.bf16.mxu0 0
        %9791 = vmatpush1.bf16.msra.mxu0 0
        %9792 = vmatprep.subr.bf16.mxu0 0
        %9793 = vmatpush1.bf16.msra.mxu0 0
        %9794 = vmatprep.subr.bf16.mxu0 0
        %9795 = vmatpush1.bf16.msra.mxu0 %v9769
        %9796 = vmatprep.subr.bf16.mxu0 0
        %9797 = vmatpush1.bf16.msra.mxu0 %v9767
        %9798 = vmatprep.subr.bf16.mxu0 0
        %9799 = vmatpush1.bf16.msra.mxu0 %v9765
        %9800 = vmatprep.subr.bf16.mxu0 0
        %9801 = vmatpush1.bf16.msra.mxu0 %v9763
        %9802 = vmatprep.subr.bf16.mxu0 0
        %9803 = vmatpush2.bf16.msra.mxu0 0
        %9804 = vmatprep.subr.bf16.mxu0 0
        %9805 = vmatpush2.bf16.msra.mxu0 0
        %9806 = vmatprep.subr.bf16.mxu0 0
        %9807 = vmatpush2.bf16.msra.mxu0 0
        %9808 = vmatprep.subr.bf16.mxu0 0
        %9809 = vmatpush2.bf16.msra.mxu0 0
        %9810 = vmatprep.subr.bf16.mxu0 0
        %9811 = vmatpush2.bf16.msra.mxu0 0
        %9812 = vmatprep.subr.bf16.mxu0 0
        %9813 = vmatpush2.bf16.msra.mxu0 0
        %9814 = vmatprep.subr.bf16.mxu0 0
        %9815 = vmatpush2.bf16.msra.mxu0 0
        %9816 = vmatprep.subr.bf16.mxu0 0
        %9817 = vmatpush2.bf16.msra.mxu0 0
        %9818 = vmatprep.mubr.bf16.mxu0 0
        %9819 = vmatmul.mubr.bf16.gmra.mxu0 %v9775
        %v9820 = vpop.f32.mrf.mxu0
        %v9821 = vadd.f32 0.0, %v9820
        %v9822 = vpop.f32.mrf.mxu0
        %v9823 = vpop.f32.mrf.mxu0
        %v9824 = vadd.f32 0.0, %v9823
        %v9825 = vpop.f32.mrf.mxu0
        %9826 = vmatprep.mubr.bf16.mxu0 0
        %9827 = vmatmul.mubr.bf16.gmra.mxu0 %v9778
        %v9828 = vpop.f32.mrf.mxu0
        %v9829 = vadd.f32 0.0, %v9828
        %v9830 = vpop.f32.mrf.mxu0
        %v9831 = vpop.f32.mrf.mxu0
        %v9832 = vadd.f32 0.0, %v9831
        %v9833 = vpop.f32.mrf.mxu0
        %9834 = vmatprep.mubr.bf16.mxu0 0
        %9835 = vmatmul.mubr.bf16.gmra.mxu0 %v9781
        %v9836 = vpop.f32.mrf.mxu0
        %v9837 = vadd.f32 0.0, %v9836
        %v9838 = vpop.f32.mrf.mxu0
        %v9839 = vpop.f32.mrf.mxu0
        %v9840 = vadd.f32 0.0, %v9839
        %v9841 = vpop.f32.mrf.mxu0
        %9842 = vmatprep.mubr.bf16.mxu0 0
        %9843 = vmatmul.mubr.bf16.gmra.mxu0 %v9784
        %v9844 = vpop.f32.mrf.mxu0
        %v9845 = vadd.f32 0.0, %v9844
        %v9846 = vpop.f32.mrf.mxu0
        %v9847 = vpop.f32.mrf.mxu0
        %v9848 = vadd.f32 0.0, %v9847
        %v9849 = vpop.f32.mrf.mxu0
        %9850 = vdwg.mxu0
        %9851 = vrot.lane.b32.xlu0 %v625, 80
        %v9852 = vpop.permute.xlu0 %9851
        %9853 = vrot.lane.b32.xlu0 %v626, 80
        %v9854 = vpop.permute.xlu0 %9853
        %9855 = vrot.lane.b32.xlu0 %v627, 80
        %v9856 = vpop.permute.xlu0 %9855
        %9857 = vrot.lane.b32.xlu0 %v628, 80
        %v9858 = vpop.permute.xlu0 %9857
        %v9864 = vsel %vm355, %v9580, 0
        %v9867 = vsel %vm355, %v9581, 0
        %v9870 = vsel %vm355, %v9582, 0
        %v9873 = vsel %vm355, %v9583, 0
        %9875 = vmatprep.subr.bf16.mxu0 0
        %9876 = vmatpush1.bf16.msra.mxu0 0
        %9877 = vmatprep.subr.bf16.mxu0 0
        %9878 = vmatpush1.bf16.msra.mxu0 0
        %9879 = vmatprep.subr.bf16.mxu0 0
        %9880 = vmatpush1.bf16.msra.mxu0 0
        %9881 = vmatprep.subr.bf16.mxu0 0
        %9882 = vmatpush1.bf16.msra.mxu0 0
        %9883 = vmatprep.subr.bf16.mxu0 0
        %9884 = vmatpush1.bf16.msra.mxu0 %v9858
        %9885 = vmatprep.subr.bf16.mxu0 0
        %9886 = vmatpush1.bf16.msra.mxu0 %v9856
        %9887 = vmatprep.subr.bf16.mxu0 0
        %9888 = vmatpush1.bf16.msra.mxu0 %v9854
        %9889 = vmatprep.subr.bf16.mxu0 0
        %9890 = vmatpush1.bf16.msra.mxu0 %v9852
        %9891 = vmatprep.subr.bf16.mxu0 0
        %9892 = vmatpush2.bf16.msra.mxu0 0
        %9893 = vmatprep.subr.bf16.mxu0 0
        %9894 = vmatpush2.bf16.msra.mxu0 0
        %9895 = vmatprep.subr.bf16.mxu0 0
        %9896 = vmatpush2.bf16.msra.mxu0 0
        %9897 = vmatprep.subr.bf16.mxu0 0
        %9898 = vmatpush2.bf16.msra.mxu0 0
        %9899 = vmatprep.subr.bf16.mxu0 0
        %9900 = vmatpush2.bf16.msra.mxu0 0
        %9901 = vmatprep.subr.bf16.mxu0 0
        %9902 = vmatpush2.bf16.msra.mxu0 0
        %9903 = vmatprep.subr.bf16.mxu0 0
        %9904 = vmatpush2.bf16.msra.mxu0 0
        %9905 = vmatprep.subr.bf16.mxu0 0
        %9906 = vmatpush2.bf16.msra.mxu0 0
        %9907 = vmatprep.mubr.bf16.mxu0 0
        %9908 = vmatmul.mubr.bf16.gmra.mxu0 %v9864
        %v9909 = vpop.f32.mrf.mxu0
        %v9910 = vadd.f32 0.0, %v9909
        %v9911 = vpop.f32.mrf.mxu0
        %v9912 = vpop.f32.mrf.mxu0
        %v9913 = vadd.f32 0.0, %v9912
        %v9914 = vpop.f32.mrf.mxu0
        %9915 = vmatprep.mubr.bf16.mxu0 0
        %9916 = vmatmul.mubr.bf16.gmra.mxu0 %v9867
        %v9917 = vpop.f32.mrf.mxu0
        %v9918 = vadd.f32 0.0, %v9917
        %v9919 = vpop.f32.mrf.mxu0
        %v9920 = vpop.f32.mrf.mxu0
        %v9921 = vadd.f32 0.0, %v9920
        %v9922 = vpop.f32.mrf.mxu0
        %9923 = vmatprep.mubr.bf16.mxu0 0
        %9924 = vmatmul.mubr.bf16.gmra.mxu0 %v9870
        %v9925 = vpop.f32.mrf.mxu0
        %v9926 = vadd.f32 0.0, %v9925
        %v9927 = vpop.f32.mrf.mxu0
        %v9928 = vpop.f32.mrf.mxu0
        %v9929 = vadd.f32 0.0, %v9928
        %v9930 = vpop.f32.mrf.mxu0
        %9931 = vmatprep.mubr.bf16.mxu0 0
        %9932 = vmatmul.mubr.bf16.gmra.mxu0 %v9873
        %v9933 = vpop.f32.mrf.mxu0
        %v9934 = vadd.f32 0.0, %v9933
        %v9935 = vpop.f32.mrf.mxu0
        %v9936 = vpop.f32.mrf.mxu0
        %v9937 = vadd.f32 0.0, %v9936
        %v9938 = vpop.f32.mrf.mxu0
        %9939 = vdwg.mxu0
        %v9940 = vpack.c.bf16 %v9646, %v9643
        %v9941 = vpack.c.bf16 %v9654, %v9651
        %v9942 = vpack.c.bf16 %v9662, %v9659
        %v9943 = vpack.c.bf16 %v9670, %v9667
        %v9944 = vpack.c.bf16 %v9735, %v9732
        %v9945 = vpack.c.bf16 %v9743, %v9740
        %v9946 = vpack.c.bf16 %v9751, %v9748
        %v9947 = vpack.c.bf16 %v9759, %v9756
        %v9948 = vpack.c.bf16 %v9824, %v9821
        %v9949 = vpack.c.bf16 %v9832, %v9829
        %v9950 = vpack.c.bf16 %v9840, %v9837
        %v9951 = vpack.c.bf16 %v9848, %v9845
        %v9952 = vpack.c.bf16 %v9913, %v9910
        %v9953 = vpack.c.bf16 %v9921, %v9918
        %v9954 = vpack.c.bf16 %v9929, %v9926
        %v9955 = vpack.c.bf16 %v9937, %v9934
        %v9956 = vld [vmem:[%s3 + $0x18] sm:$0xf]
        %v9958 = vsel %vm928, %v9940, 0
        %v9961 = vsel %vm928, %v9941, 0
        %v9964 = vsel %vm928, %v9942, 0
        %v9967 = vsel %vm928, %v9943, 0
        %v9970 = vsel %vm928, %v9944, 0
        %v9973 = vsel %vm928, %v9945, 0
        %v9976 = vsel %vm928, %v9946, 0
        %v9979 = vsel %vm928, %v9947, 0
        %v9982 = vsel %vm928, %v9948, 0
        %v9985 = vsel %vm928, %v9949, 0
        %v9988 = vsel %vm928, %v9950, 0
        %v9991 = vsel %vm928, %v9951, 0
        %v9994 = vsel %vm928, %v9952, 0
        %v9997 = vsel %vm928, %v9953, 0
        %v10000 = vsel %vm928, %v9954, 0
        %v10003 = vsel %vm928, %v9955, 0
        %v10006 = vsel %vm941, %v9956, 0
        %10008 = vmatprep.subr.bf16.mxu0 0
        %10009 = vmatpush1.bf16.msra.mxu0 0
        %10010 = vmatprep.subr.bf16.mxu0 0
        %10011 = vmatpush1.bf16.msra.mxu0 0
        %10012 = vmatprep.subr.bf16.mxu0 0
        %10013 = vmatpush1.bf16.msra.mxu0 0
        %10014 = vmatprep.subr.bf16.mxu0 0
        %10015 = vmatpush1.bf16.msra.mxu0 0
        %10016 = vmatprep.subr.bf16.mxu0 0
        %10017 = vmatpush1.bf16.msra.mxu0 0
        %10018 = vmatprep.subr.bf16.mxu0 0
        %10019 = vmatpush1.bf16.msra.mxu0 0
        %10020 = vmatprep.subr.bf16.mxu0 0
        %10021 = vmatpush1.bf16.msra.mxu0 0
        %10022 = vmatprep.subr.bf16.mxu0 0
        %10023 = vmatpush1.bf16.msra.mxu0 %v10006
        %10024 = vmatprep.subr.bf16.mxu0 0
        %10025 = vmatpush2.bf16.msra.mxu0 0
        %10026 = vmatprep.subr.bf16.mxu0 0
        %10027 = vmatpush2.bf16.msra.mxu0 0
        %10028 = vmatprep.subr.bf16.mxu0 0
        %10029 = vmatpush2.bf16.msra.mxu0 0
        %10030 = vmatprep.subr.bf16.mxu0 0
        %10031 = vmatpush2.bf16.msra.mxu0 0
        %10032 = vmatprep.subr.bf16.mxu0 0
        %10033 = vmatpush2.bf16.msra.mxu0 0
        %10034 = vmatprep.subr.bf16.mxu0 0
        %10035 = vmatpush2.bf16.msra.mxu0 0
        %10036 = vmatprep.subr.bf16.mxu0 0
        %10037 = vmatpush2.bf16.msra.mxu0 0
        %10038 = vmatprep.subr.bf16.mxu0 0
        %10039 = vmatpush2.bf16.msra.mxu0 0
        %10040 = vmatprep.mubr.bf16.mxu0 0
        %10041 = vmatmul.mubr.bf16.gmra.mxu0 %v9958
        %v10042 = vpop.f32.mrf.mxu0
        %v10043 = vadd.f32 0.0, %v10042
        %v10044 = vpop.f32.mrf.mxu0
        %v10045 = vpop.f32.mrf.mxu0
        %v10046 = vadd.f32 0.0, %v10045
        %v10047 = vpop.f32.mrf.mxu0
        %10048 = vmatprep.mubr.bf16.mxu0 0
        %10049 = vmatmul.mubr.bf16.gmra.mxu0 %v9961
        %v10050 = vpop.f32.mrf.mxu0
        %v10051 = vadd.f32 0.0, %v10050
        %v10052 = vpop.f32.mrf.mxu0
        %v10053 = vpop.f32.mrf.mxu0
        %v10054 = vadd.f32 0.0, %v10053
        %v10055 = vpop.f32.mrf.mxu0
        %10056 = vmatprep.mubr.bf16.mxu0 0
        %10057 = vmatmul.mubr.bf16.gmra.mxu0 %v9964
        %v10058 = vpop.f32.mrf.mxu0
        %v10059 = vadd.f32 0.0, %v10058
        %v10060 = vpop.f32.mrf.mxu0
        %v10061 = vpop.f32.mrf.mxu0
        %v10062 = vadd.f32 0.0, %v10061
        %v10063 = vpop.f32.mrf.mxu0
        %10064 = vmatprep.mubr.bf16.mxu0 0
        %10065 = vmatmul.mubr.bf16.gmra.mxu0 %v9967
        %v10066 = vpop.f32.mrf.mxu0
        %v10067 = vadd.f32 0.0, %v10066
        %v10068 = vpop.f32.mrf.mxu0
        %v10069 = vpop.f32.mrf.mxu0
        %v10070 = vadd.f32 0.0, %v10069
        %v10071 = vpop.f32.mrf.mxu0
        %10072 = vmatprep.mubr.bf16.mxu0 0
        %10073 = vmatmul.mubr.bf16.gmra.mxu0 %v9970
        %v10074 = vpop.f32.mrf.mxu0
        %v10075 = vadd.f32 0.0, %v10074
        %v10076 = vpop.f32.mrf.mxu0
        %v10077 = vpop.f32.mrf.mxu0
        %v10078 = vadd.f32 0.0, %v10077
        %v10079 = vpop.f32.mrf.mxu0
        %10080 = vmatprep.mubr.bf16.mxu0 0
        %10081 = vmatmul.mubr.bf16.gmra.mxu0 %v9973
        %v10082 = vpop.f32.mrf.mxu0
        %v10083 = vadd.f32 0.0, %v10082
        %v10084 = vpop.f32.mrf.mxu0
        %v10085 = vpop.f32.mrf.mxu0
        %v10086 = vadd.f32 0.0, %v10085
        %v10087 = vpop.f32.mrf.mxu0
        %10088 = vmatprep.mubr.bf16.mxu0 0
        %10089 = vmatmul.mubr.bf16.gmra.mxu0 %v9976
        %v10090 = vpop.f32.mrf.mxu0
        %v10091 = vadd.f32 0.0, %v10090
        %v10092 = vpop.f32.mrf.mxu0
        %v10093 = vpop.f32.mrf.mxu0
        %v10094 = vadd.f32 0.0, %v10093
        %v10095 = vpop.f32.mrf.mxu0
        %10096 = vmatprep.mubr.bf16.mxu0 0
        %10097 = vmatmul.mubr.bf16.gmra.mxu0 %v9979
        %v10098 = vpop.f32.mrf.mxu0
        %v10099 = vadd.f32 0.0, %v10098
        %v10100 = vpop.f32.mrf.mxu0
        %v10101 = vpop.f32.mrf.mxu0
        %v10102 = vadd.f32 0.0, %v10101
        %v10103 = vpop.f32.mrf.mxu0
        %10104 = vmatprep.mubr.bf16.mxu0 0
        %10105 = vmatmul.mubr.bf16.gmra.mxu0 %v9982
        %v10106 = vpop.f32.mrf.mxu0
        %v10107 = vadd.f32 0.0, %v10106
        %v10108 = vpop.f32.mrf.mxu0
        %v10109 = vpop.f32.mrf.mxu0
        %v10110 = vadd.f32 0.0, %v10109
        %v10111 = vpop.f32.mrf.mxu0
        %10112 = vmatprep.mubr.bf16.mxu0 0
        %10113 = vmatmul.mubr.bf16.gmra.mxu0 %v9985
        %v10114 = vpop.f32.mrf.mxu0
        %v10115 = vadd.f32 0.0, %v10114
        %v10116 = vpop.f32.mrf.mxu0
        %v10117 = vpop.f32.mrf.mxu0
        %v10118 = vadd.f32 0.0, %v10117
        %v10119 = vpop.f32.mrf.mxu0
        %10120 = vmatprep.mubr.bf16.mxu0 0
        %10121 = vmatmul.mubr.bf16.gmra.mxu0 %v9988
        %v10122 = vpop.f32.mrf.mxu0
        %v10123 = vadd.f32 0.0, %v10122
        %v10124 = vpop.f32.mrf.mxu0
        %v10125 = vpop.f32.mrf.mxu0
        %v10126 = vadd.f32 0.0, %v10125
        %v10127 = vpop.f32.mrf.mxu0
        %10128 = vmatprep.mubr.bf16.mxu0 0
        %10129 = vmatmul.mubr.bf16.gmra.mxu0 %v9991
        %v10130 = vpop.f32.mrf.mxu0
        %v10131 = vadd.f32 0.0, %v10130
        %v10132 = vpop.f32.mrf.mxu0
        %v10133 = vpop.f32.mrf.mxu0
        %v10134 = vadd.f32 0.0, %v10133
        %v10135 = vpop.f32.mrf.mxu0
        %10136 = vmatprep.mubr.bf16.mxu0 0
        %10137 = vmatmul.mubr.bf16.gmra.mxu0 %v9994
        %v10138 = vpop.f32.mrf.mxu0
        %v10139 = vadd.f32 0.0, %v10138
        %v10140 = vpop.f32.mrf.mxu0
        %v10141 = vpop.f32.mrf.mxu0
        %v10142 = vadd.f32 0.0, %v10141
        %v10143 = vpop.f32.mrf.mxu0
        %10144 = vmatprep.mubr.bf16.mxu0 0
        %10145 = vmatmul.mubr.bf16.gmra.mxu0 %v9997
        %v10146 = vpop.f32.mrf.mxu0
        %v10147 = vadd.f32 0.0, %v10146
        %v10148 = vpop.f32.mrf.mxu0
        %v10149 = vpop.f32.mrf.mxu0
        %v10150 = vadd.f32 0.0, %v10149
        %v10151 = vpop.f32.mrf.mxu0
        %10152 = vmatprep.mubr.bf16.mxu0 0
        %10153 = vmatmul.mubr.bf16.gmra.mxu0 %v10000
        %v10154 = vpop.f32.mrf.mxu0
        %v10155 = vadd.f32 0.0, %v10154
        %v10156 = vpop.f32.mrf.mxu0
        %v10157 = vpop.f32.mrf.mxu0
        %v10158 = vadd.f32 0.0, %v10157
        %v10159 = vpop.f32.mrf.mxu0
        %10160 = vmatprep.mubr.bf16.mxu0 0
        %10161 = vmatmul.mubr.bf16.gmra.mxu0 %v10003
        %v10162 = vpop.f32.mrf.mxu0
        %v10163 = vadd.f32 0.0, %v10162
        %v10164 = vpop.f32.mrf.mxu0
        %v10165 = vpop.f32.mrf.mxu0
        %v10166 = vadd.f32 0.0, %v10165
        %v10167 = vpop.f32.mrf.mxu0
        %10168 = vdwg.mxu0
        %v10169 = vadd.f32 %v8832, %v10043
        %v10170 = vadd.f32 %v8833, %v10046
        %v10171 = vadd.f32 %v8834, %v10051
        %v10172 = vadd.f32 %v8835, %v10054
        %v10173 = vadd.f32 %v8836, %v10059
        %v10174 = vadd.f32 %v8837, %v10062
        %v10175 = vadd.f32 %v8838, %v10067
        %v10176 = vadd.f32 %v8839, %v10070
        %v10177 = vadd.f32 %v8840, %v10075
        %v10178 = vadd.f32 %v8841, %v10078
        %v10179 = vadd.f32 %v8842, %v10083
        %v10180 = vadd.f32 %v8843, %v10086
        %v10181 = vadd.f32 %v8844, %v10091
        %v10182 = vadd.f32 %v8845, %v10094
        %v10183 = vadd.f32 %v8846, %v10099
        %v10184 = vadd.f32 %v8847, %v10102
        %v10185 = vadd.f32 %v8848, %v10107
        %v10186 = vadd.f32 %v8849, %v10110
        %v10187 = vadd.f32 %v8850, %v10115
        %v10188 = vadd.f32 %v8851, %v10118
        %v10189 = vadd.f32 %v8852, %v10123
        %v10190 = vadd.f32 %v8853, %v10126
        %v10191 = vadd.f32 %v8854, %v10131
        %v10192 = vadd.f32 %v8855, %v10134
        %v10193 = vadd.f32 %v8856, %v10139
        %v10194 = vadd.f32 %v8857, %v10142
        %v10195 = vadd.f32 %v8858, %v10147
        %v10196 = vadd.f32 %v8859, %v10150
        %v10197 = vadd.f32 %v8860, %v10155
        %v10198 = vadd.f32 %v8861, %v10158
        %v10199 = vadd.f32 %v8862, %v10163
        %v10200 = vadd.f32 %v8863, %v10166
        %10201 = vrot.lane.b32.xlu0 %v597, 72
        %v10202 = vpop.permute.xlu0 %10201
        %10203 = vrot.lane.b32.xlu0 %v598, 72
        %v10204 = vpop.permute.xlu0 %10203
        %10205 = vrot.lane.b32.xlu0 %v599, 72
        %v10206 = vpop.permute.xlu0 %10205
        %10207 = vrot.lane.b32.xlu0 %v600, 72
        %v10208 = vpop.permute.xlu0 %10207
        %v10210 = vrot.slane %v888, 4
        %v10212 = vsel %vm928, %v10202, 0
        %v10215 = vsel %vm928, %v10204, 0
        %v10218 = vsel %vm928, %v10206, 0
        %v10221 = vsel %vm928, %v10208, 0
        %v10224 = vsel %vm941, %v10210, 0
        %10226 = vmatprep.subr.bf16.mxu0 0
        %10227 = vmatpush1.bf16.msra.mxu0 0
        %10228 = vmatprep.subr.bf16.mxu0 0
        %10229 = vmatpush1.bf16.msra.mxu0 0
        %10230 = vmatprep.subr.bf16.mxu0 0
        %10231 = vmatpush1.bf16.msra.mxu0 0
        %10232 = vmatprep.subr.bf16.mxu0 0
        %10233 = vmatpush1.bf16.msra.mxu0 0
        %10234 = vmatprep.subr.bf16.mxu0 0
        %10235 = vmatpush1.bf16.msra.mxu0 0
        %10236 = vmatprep.subr.bf16.mxu0 0
        %10237 = vmatpush1.bf16.msra.mxu0 0
        %10238 = vmatprep.subr.bf16.mxu0 0
        %10239 = vmatpush1.bf16.msra.mxu0 0
        %10240 = vmatprep.subr.bf16.mxu0 0
        %10241 = vmatpush1.bf16.msra.mxu0 %v10224
        %10242 = vmatprep.subr.bf16.mxu0 0
        %10243 = vmatpush2.bf16.msra.mxu0 0
        %10244 = vmatprep.subr.bf16.mxu0 0
        %10245 = vmatpush2.bf16.msra.mxu0 0
        %10246 = vmatprep.subr.bf16.mxu0 0
        %10247 = vmatpush2.bf16.msra.mxu0 0
        %10248 = vmatprep.subr.bf16.mxu0 0
        %10249 = vmatpush2.bf16.msra.mxu0 0
        %10250 = vmatprep.subr.bf16.mxu0 0
        %10251 = vmatpush2.bf16.msra.mxu0 0
        %10252 = vmatprep.subr.bf16.mxu0 0
        %10253 = vmatpush2.bf16.msra.mxu0 0
        %10254 = vmatprep.subr.bf16.mxu0 0
        %10255 = vmatpush2.bf16.msra.mxu0 0
        %10256 = vmatprep.subr.bf16.mxu0 0
        %10257 = vmatpush2.bf16.msra.mxu0 0
        %10258 = vmatprep.mubr.bf16.mxu0 0
        %10259 = vmatmul.mubr.bf16.gmra.mxu0 %v10212
        %v10260 = vpop.f32.mrf.mxu0
        %v10261 = vadd.f32 %v920, %v10260
        %v10262 = vpop.f32.mrf.mxu0
        %v10263 = vpop.f32.mrf.mxu0
        %v10264 = vadd.f32 %v921, %v10263
        %v10265 = vpop.f32.mrf.mxu0
        %10266 = vmatprep.mubr.bf16.mxu0 0
        %10267 = vmatmul.mubr.bf16.gmra.mxu0 %v10215
        %v10268 = vpop.f32.mrf.mxu0
        %v10269 = vadd.f32 %v922, %v10268
        %v10270 = vpop.f32.mrf.mxu0
        %v10271 = vpop.f32.mrf.mxu0
        %v10272 = vadd.f32 %v923, %v10271
        %v10273 = vpop.f32.mrf.mxu0
        %10274 = vmatprep.mubr.bf16.mxu0 0
        %10275 = vmatmul.mubr.bf16.gmra.mxu0 %v10218
        %v10276 = vpop.f32.mrf.mxu0
        %v10277 = vadd.f32 %v924, %v10276
        %v10278 = vpop.f32.mrf.mxu0
        %v10279 = vpop.f32.mrf.mxu0
        %v10280 = vadd.f32 %v925, %v10279
        %v10281 = vpop.f32.mrf.mxu0
        %10282 = vmatprep.mubr.bf16.mxu0 0
        %10283 = vmatmul.mubr.bf16.gmra.mxu0 %v10221
        %v10284 = vpop.f32.mrf.mxu0
        %v10285 = vadd.f32 %v926, %v10284
        %v10286 = vpop.f32.mrf.mxu0
        %v10287 = vpop.f32.mrf.mxu0
        %v10288 = vadd.f32 %v927, %v10287
        %v10289 = vpop.f32.mrf.mxu0
        %10290 = vdwg.mxu0
        %10291 = vrot.lane.b32.xlu0 %v601, 72
        %v10292 = vpop.permute.xlu0 %10291
        %10293 = vrot.lane.b32.xlu0 %v602, 72
        %v10294 = vpop.permute.xlu0 %10293
        %10295 = vrot.lane.b32.xlu0 %v603, 72
        %v10296 = vpop.permute.xlu0 %10295
        %10297 = vrot.lane.b32.xlu0 %v604, 72
        %v10298 = vpop.permute.xlu0 %10297
        %v10300 = vrot.slane %v892, 4
        %v10302 = vsel %vm928, %v10292, 0
        %v10305 = vsel %vm928, %v10294, 0
        %v10308 = vsel %vm928, %v10296, 0
        %v10311 = vsel %vm928, %v10298, 0
        %v10314 = vsel %vm941, %v10300, 0
        %10316 = vmatprep.subr.bf16.mxu0 0
        %10317 = vmatpush1.bf16.msra.mxu0 0
        %10318 = vmatprep.subr.bf16.mxu0 0
        %10319 = vmatpush1.bf16.msra.mxu0 0
        %10320 = vmatprep.subr.bf16.mxu0 0
        %10321 = vmatpush1.bf16.msra.mxu0 0
        %10322 = vmatprep.subr.bf16.mxu0 0
        %10323 = vmatpush1.bf16.msra.mxu0 0
        %10324 = vmatprep.subr.bf16.mxu0 0
        %10325 = vmatpush1.bf16.msra.mxu0 0
        %10326 = vmatprep.subr.bf16.mxu0 0
        %10327 = vmatpush1.bf16.msra.mxu0 0
        %10328 = vmatprep.subr.bf16.mxu0 0
        %10329 = vmatpush1.bf16.msra.mxu0 0
        %10330 = vmatprep.subr.bf16.mxu0 0
        %10331 = vmatpush1.bf16.msra.mxu0 %v10314
        %10332 = vmatprep.subr.bf16.mxu0 0
        %10333 = vmatpush2.bf16.msra.mxu0 0
        %10334 = vmatprep.subr.bf16.mxu0 0
        %10335 = vmatpush2.bf16.msra.mxu0 0
        %10336 = vmatprep.subr.bf16.mxu0 0
        %10337 = vmatpush2.bf16.msra.mxu0 0
        %10338 = vmatprep.subr.bf16.mxu0 0
        %10339 = vmatpush2.bf16.msra.mxu0 0
        %10340 = vmatprep.subr.bf16.mxu0 0
        %10341 = vmatpush2.bf16.msra.mxu0 0
        %10342 = vmatprep.subr.bf16.mxu0 0
        %10343 = vmatpush2.bf16.msra.mxu0 0
        %10344 = vmatprep.subr.bf16.mxu0 0
        %10345 = vmatpush2.bf16.msra.mxu0 0
        %10346 = vmatprep.subr.bf16.mxu0 0
        %10347 = vmatpush2.bf16.msra.mxu0 0
        %10348 = vmatprep.mubr.bf16.mxu0 0
        %10349 = vmatmul.mubr.bf16.gmra.mxu0 %v10302
        %v10350 = vpop.f32.mrf.mxu0
        %v10351 = vadd.f32 %v920, %v10350
        %v10352 = vpop.f32.mrf.mxu0
        %v10353 = vpop.f32.mrf.mxu0
        %v10354 = vadd.f32 %v921, %v10353
        %v10355 = vpop.f32.mrf.mxu0
        %10356 = vmatprep.mubr.bf16.mxu0 0
        %10357 = vmatmul.mubr.bf16.gmra.mxu0 %v10305
        %v10358 = vpop.f32.mrf.mxu0
        %v10359 = vadd.f32 %v922, %v10358
        %v10360 = vpop.f32.mrf.mxu0
        %v10361 = vpop.f32.mrf.mxu0
        %v10362 = vadd.f32 %v923, %v10361
        %v10363 = vpop.f32.mrf.mxu0
        %10364 = vmatprep.mubr.bf16.mxu0 0
        %10365 = vmatmul.mubr.bf16.gmra.mxu0 %v10308
        %v10366 = vpop.f32.mrf.mxu0
        %v10367 = vadd.f32 %v924, %v10366
        %v10368 = vpop.f32.mrf.mxu0
        %v10369 = vpop.f32.mrf.mxu0
        %v10370 = vadd.f32 %v925, %v10369
        %v10371 = vpop.f32.mrf.mxu0
        %10372 = vmatprep.mubr.bf16.mxu0 0
        %10373 = vmatmul.mubr.bf16.gmra.mxu0 %v10311
        %v10374 = vpop.f32.mrf.mxu0
        %v10375 = vadd.f32 %v926, %v10374
        %v10376 = vpop.f32.mrf.mxu0
        %v10377 = vpop.f32.mrf.mxu0
        %v10378 = vadd.f32 %v927, %v10377
        %v10379 = vpop.f32.mrf.mxu0
        %10380 = vdwg.mxu0
        %10381 = vrot.lane.b32.xlu0 %v605, 72
        %v10382 = vpop.permute.xlu0 %10381
        %10383 = vrot.lane.b32.xlu0 %v606, 72
        %v10384 = vpop.permute.xlu0 %10383
        %10385 = vrot.lane.b32.xlu0 %v607, 72
        %v10386 = vpop.permute.xlu0 %10385
        %10387 = vrot.lane.b32.xlu0 %v608, 72
        %v10388 = vpop.permute.xlu0 %10387
        %v10390 = vrot.slane %v896, 4
        %v10392 = vsel %vm928, %v10382, 0
        %v10395 = vsel %vm928, %v10384, 0
        %v10398 = vsel %vm928, %v10386, 0
        %v10401 = vsel %vm928, %v10388, 0
        %v10404 = vsel %vm941, %v10390, 0
        %10406 = vmatprep.subr.bf16.mxu0 0
        %10407 = vmatpush1.bf16.msra.mxu0 0
        %10408 = vmatprep.subr.bf16.mxu0 0
        %10409 = vmatpush1.bf16.msra.mxu0 0
        %10410 = vmatprep.subr.bf16.mxu0 0
        %10411 = vmatpush1.bf16.msra.mxu0 0
        %10412 = vmatprep.subr.bf16.mxu0 0
        %10413 = vmatpush1.bf16.msra.mxu0 0
        %10414 = vmatprep.subr.bf16.mxu0 0
        %10415 = vmatpush1.bf16.msra.mxu0 0
        %10416 = vmatprep.subr.bf16.mxu0 0
        %10417 = vmatpush1.bf16.msra.mxu0 0
        %10418 = vmatprep.subr.bf16.mxu0 0
        %10419 = vmatpush1.bf16.msra.mxu0 0
        %10420 = vmatprep.subr.bf16.mxu0 0
        %10421 = vmatpush1.bf16.msra.mxu0 %v10404
        %10422 = vmatprep.subr.bf16.mxu0 0
        %10423 = vmatpush2.bf16.msra.mxu0 0
        %10424 = vmatprep.subr.bf16.mxu0 0
        %10425 = vmatpush2.bf16.msra.mxu0 0
        %10426 = vmatprep.subr.bf16.mxu0 0
        %10427 = vmatpush2.bf16.msra.mxu0 0
        %10428 = vmatprep.subr.bf16.mxu0 0
        %10429 = vmatpush2.bf16.msra.mxu0 0
        %10430 = vmatprep.subr.bf16.mxu0 0
        %10431 = vmatpush2.bf16.msra.mxu0 0
        %10432 = vmatprep.subr.bf16.mxu0 0
        %10433 = vmatpush2.bf16.msra.mxu0 0
        %10434 = vmatprep.subr.bf16.mxu0 0
        %10435 = vmatpush2.bf16.msra.mxu0 0
        %10436 = vmatprep.subr.bf16.mxu0 0
        %10437 = vmatpush2.bf16.msra.mxu0 0
        %10438 = vmatprep.mubr.bf16.mxu0 0
        %10439 = vmatmul.mubr.bf16.gmra.mxu0 %v10392
        %v10440 = vpop.f32.mrf.mxu0
        %v10441 = vadd.f32 %v920, %v10440
        %v10442 = vpop.f32.mrf.mxu0
        %v10443 = vpop.f32.mrf.mxu0
        %v10444 = vadd.f32 %v921, %v10443
        %v10445 = vpop.f32.mrf.mxu0
        %10446 = vmatprep.mubr.bf16.mxu0 0
        %10447 = vmatmul.mubr.bf16.gmra.mxu0 %v10395
        %v10448 = vpop.f32.mrf.mxu0
        %v10449 = vadd.f32 %v922, %v10448
        %v10450 = vpop.f32.mrf.mxu0
        %v10451 = vpop.f32.mrf.mxu0
        %v10452 = vadd.f32 %v923, %v10451
        %v10453 = vpop.f32.mrf.mxu0
        %10454 = vmatprep.mubr.bf16.mxu0 0
        %10455 = vmatmul.mubr.bf16.gmra.mxu0 %v10398
        %v10456 = vpop.f32.mrf.mxu0
        %v10457 = vadd.f32 %v924, %v10456
        %v10458 = vpop.f32.mrf.mxu0
        %v10459 = vpop.f32.mrf.mxu0
        %v10460 = vadd.f32 %v925, %v10459
        %v10461 = vpop.f32.mrf.mxu0
        %10462 = vmatprep.mubr.bf16.mxu0 0
        %10463 = vmatmul.mubr.bf16.gmra.mxu0 %v10401
        %v10464 = vpop.f32.mrf.mxu0
        %v10465 = vadd.f32 %v926, %v10464
        %v10466 = vpop.f32.mrf.mxu0
        %v10467 = vpop.f32.mrf.mxu0
        %v10468 = vadd.f32 %v927, %v10467
        %v10469 = vpop.f32.mrf.mxu0
        %10470 = vdwg.mxu0
        %10471 = vrot.lane.b32.xlu0 %v609, 72
        %v10472 = vpop.permute.xlu0 %10471
        %10473 = vrot.lane.b32.xlu0 %v610, 72
        %v10474 = vpop.permute.xlu0 %10473
        %10475 = vrot.lane.b32.xlu0 %v611, 72
        %v10476 = vpop.permute.xlu0 %10475
        %10477 = vrot.lane.b32.xlu0 %v612, 72
        %v10478 = vpop.permute.xlu0 %10477
        %v10480 = vrot.slane %v900, 4
        %v10482 = vsel %vm928, %v10472, 0
        %v10485 = vsel %vm928, %v10474, 0
        %v10488 = vsel %vm928, %v10476, 0
        %v10491 = vsel %vm928, %v10478, 0
        %v10494 = vsel %vm941, %v10480, 0
        %10496 = vmatprep.subr.bf16.mxu0 0
        %10497 = vmatpush1.bf16.msra.mxu0 0
        %10498 = vmatprep.subr.bf16.mxu0 0
        %10499 = vmatpush1.bf16.msra.mxu0 0
        %10500 = vmatprep.subr.bf16.mxu0 0
        %10501 = vmatpush1.bf16.msra.mxu0 0
        %10502 = vmatprep.subr.bf16.mxu0 0
        %10503 = vmatpush1.bf16.msra.mxu0 0
        %10504 = vmatprep.subr.bf16.mxu0 0
        %10505 = vmatpush1.bf16.msra.mxu0 0
        %10506 = vmatprep.subr.bf16.mxu0 0
        %10507 = vmatpush1.bf16.msra.mxu0 0
        %10508 = vmatprep.subr.bf16.mxu0 0
        %10509 = vmatpush1.bf16.msra.mxu0 0
        %10510 = vmatprep.subr.bf16.mxu0 0
        %10511 = vmatpush1.bf16.msra.mxu0 %v10494
        %10512 = vmatprep.subr.bf16.mxu0 0
        %10513 = vmatpush2.bf16.msra.mxu0 0
        %10514 = vmatprep.subr.bf16.mxu0 0
        %10515 = vmatpush2.bf16.msra.mxu0 0
        %10516 = vmatprep.subr.bf16.mxu0 0
        %10517 = vmatpush2.bf16.msra.mxu0 0
        %10518 = vmatprep.subr.bf16.mxu0 0
        %10519 = vmatpush2.bf16.msra.mxu0 0
        %10520 = vmatprep.subr.bf16.mxu0 0
        %10521 = vmatpush2.bf16.msra.mxu0 0
        %10522 = vmatprep.subr.bf16.mxu0 0
        %10523 = vmatpush2.bf16.msra.mxu0 0
        %10524 = vmatprep.subr.bf16.mxu0 0
        %10525 = vmatpush2.bf16.msra.mxu0 0
        %10526 = vmatprep.subr.bf16.mxu0 0
        %10527 = vmatpush2.bf16.msra.mxu0 0
        %10528 = vmatprep.mubr.bf16.mxu0 0
        %10529 = vmatmul.mubr.bf16.gmra.mxu0 %v10482
        %v10530 = vpop.f32.mrf.mxu0
        %v10531 = vadd.f32 %v920, %v10530
        %v10532 = vpop.f32.mrf.mxu0
        %v10533 = vpop.f32.mrf.mxu0
        %v10534 = vadd.f32 %v921, %v10533
        %v10535 = vpop.f32.mrf.mxu0
        %10536 = vmatprep.mubr.bf16.mxu0 0
        %10537 = vmatmul.mubr.bf16.gmra.mxu0 %v10485
        %v10538 = vpop.f32.mrf.mxu0
        %v10539 = vadd.f32 %v922, %v10538
        %v10540 = vpop.f32.mrf.mxu0
        %v10541 = vpop.f32.mrf.mxu0
        %v10542 = vadd.f32 %v923, %v10541
        %v10543 = vpop.f32.mrf.mxu0
        %10544 = vmatprep.mubr.bf16.mxu0 0
        %10545 = vmatmul.mubr.bf16.gmra.mxu0 %v10488
        %v10546 = vpop.f32.mrf.mxu0
        %v10547 = vadd.f32 %v924, %v10546
        %v10548 = vpop.f32.mrf.mxu0
        %v10549 = vpop.f32.mrf.mxu0
        %v10550 = vadd.f32 %v925, %v10549
        %v10551 = vpop.f32.mrf.mxu0
        %10552 = vmatprep.mubr.bf16.mxu0 0
        %10553 = vmatmul.mubr.bf16.gmra.mxu0 %v10491
        %v10554 = vpop.f32.mrf.mxu0
        %v10555 = vadd.f32 %v926, %v10554
        %v10556 = vpop.f32.mrf.mxu0
        %v10557 = vpop.f32.mrf.mxu0
        %v10558 = vadd.f32 %v927, %v10557
        %v10559 = vpop.f32.mrf.mxu0
        %10560 = vdwg.mxu0
        %v10561 = vsel %vm355, %v10261, -inf
        %10562 = vmax.xlane.f32.xlu0 %v10561
        %v10563 = vpop.xlane.xlu0 %10562
        %v10564 = vsel %vm355, %v10264, -inf
        %10565 = vmax.xlane.f32.xlu0 %v10564
        %v10566 = vpop.xlane.xlu0 %10565
        %v10567 = vsel %vm355, %v10269, -inf
        %10568 = vmax.xlane.f32.xlu0 %v10567
        %v10569 = vpop.xlane.xlu0 %10568
        %v10570 = vsel %vm355, %v10272, -inf
        %10571 = vmax.xlane.f32.xlu0 %v10570
        %v10572 = vpop.xlane.xlu0 %10571
        %v10573 = vsel %vm355, %v10277, -inf
        %10574 = vmax.xlane.f32.xlu0 %v10573
        %v10575 = vpop.xlane.xlu0 %10574
        %v10576 = vsel %vm355, %v10280, -inf
        %10577 = vmax.xlane.f32.xlu0 %v10576
        %v10578 = vpop.xlane.xlu0 %10577
        %v10579 = vsel %vm355, %v10285, -inf
        %10580 = vmax.xlane.f32.xlu0 %v10579
        %v10581 = vpop.xlane.xlu0 %10580
        %v10582 = vsel %vm355, %v10288, -inf
        %10583 = vmax.xlane.f32.xlu0 %v10582
        %v10584 = vpop.xlane.xlu0 %10583
        %v10585 = vsel %vm355, %v10351, -inf
        %10586 = vmax.xlane.f32.xlu0 %v10585
        %v10587 = vpop.xlane.xlu0 %10586
        %v10588 = vsel %vm355, %v10354, -inf
        %10589 = vmax.xlane.f32.xlu0 %v10588
        %v10590 = vpop.xlane.xlu0 %10589
        %v10591 = vsel %vm355, %v10359, -inf
        %10592 = vmax.xlane.f32.xlu0 %v10591
        %v10593 = vpop.xlane.xlu0 %10592
        %v10594 = vsel %vm355, %v10362, -inf
        %10595 = vmax.xlane.f32.xlu0 %v10594
        %v10596 = vpop.xlane.xlu0 %10595
        %v10597 = vsel %vm355, %v10367, -inf
        %10598 = vmax.xlane.f32.xlu0 %v10597
        %v10599 = vpop.xlane.xlu0 %10598
        %v10600 = vsel %vm355, %v10370, -inf
        %10601 = vmax.xlane.f32.xlu0 %v10600
        %v10602 = vpop.xlane.xlu0 %10601
        %v10603 = vsel %vm355, %v10375, -inf
        %10604 = vmax.xlane.f32.xlu0 %v10603
        %v10605 = vpop.xlane.xlu0 %10604
        %v10606 = vsel %vm355, %v10378, -inf
        %10607 = vmax.xlane.f32.xlu0 %v10606
        %v10608 = vpop.xlane.xlu0 %10607
        %v10609 = vsel %vm355, %v10441, -inf
        %10610 = vmax.xlane.f32.xlu0 %v10609
        %v10611 = vpop.xlane.xlu0 %10610
        %v10612 = vsel %vm355, %v10444, -inf
        %10613 = vmax.xlane.f32.xlu0 %v10612
        %v10614 = vpop.xlane.xlu0 %10613
        %v10615 = vsel %vm355, %v10449, -inf
        %10616 = vmax.xlane.f32.xlu0 %v10615
        %v10617 = vpop.xlane.xlu0 %10616
        %v10618 = vsel %vm355, %v10452, -inf
        %10619 = vmax.xlane.f32.xlu0 %v10618
        %v10620 = vpop.xlane.xlu0 %10619
        %v10621 = vsel %vm355, %v10457, -inf
        %10622 = vmax.xlane.f32.xlu0 %v10621
        %v10623 = vpop.xlane.xlu0 %10622
        %v10624 = vsel %vm355, %v10460, -inf
        %10625 = vmax.xlane.f32.xlu0 %v10624
        %v10626 = vpop.xlane.xlu0 %10625
        %v10627 = vsel %vm355, %v10465, -inf
        %10628 = vmax.xlane.f32.xlu0 %v10627
        %v10629 = vpop.xlane.xlu0 %10628
        %v10630 = vsel %vm355, %v10468, -inf
        %10631 = vmax.xlane.f32.xlu0 %v10630
        %v10632 = vpop.xlane.xlu0 %10631
        %v10633 = vsel %vm355, %v10531, -inf
        %10634 = vmax.xlane.f32.xlu0 %v10633
        %v10635 = vpop.xlane.xlu0 %10634
        %v10636 = vsel %vm355, %v10534, -inf
        %10637 = vmax.xlane.f32.xlu0 %v10636
        %v10638 = vpop.xlane.xlu0 %10637
        %v10639 = vsel %vm355, %v10539, -inf
        %10640 = vmax.xlane.f32.xlu0 %v10639
        %v10641 = vpop.xlane.xlu0 %10640
        %v10642 = vsel %vm355, %v10542, -inf
        %10643 = vmax.xlane.f32.xlu0 %v10642
        %v10644 = vpop.xlane.xlu0 %10643
        %v10645 = vsel %vm355, %v10547, -inf
        %10646 = vmax.xlane.f32.xlu0 %v10645
        %v10647 = vpop.xlane.xlu0 %10646
        %v10648 = vsel %vm355, %v10550, -inf
        %10649 = vmax.xlane.f32.xlu0 %v10648
        %v10650 = vpop.xlane.xlu0 %10649
        %v10651 = vsel %vm355, %v10555, -inf
        %10652 = vmax.xlane.f32.xlu0 %v10651
        %v10653 = vpop.xlane.xlu0 %10652
        %v10654 = vsel %vm355, %v10558, -inf
        %10655 = vmax.xlane.f32.xlu0 %v10654
        %v10656 = vpop.xlane.xlu0 %10655
        %v10657 = vsub.f32 %v10261, %v10563
        %v10658 = vsub.f32 %v10264, %v10566
        %v10659 = vsub.f32 %v10269, %v10569
        %v10660 = vsub.f32 %v10272, %v10572
        %v10661 = vsub.f32 %v10277, %v10575
        %v10662 = vsub.f32 %v10280, %v10578
        %v10663 = vsub.f32 %v10285, %v10581
        %v10664 = vsub.f32 %v10288, %v10584
        %v10665 = vsub.f32 %v10351, %v10587
        %v10666 = vsub.f32 %v10354, %v10590
        %v10667 = vsub.f32 %v10359, %v10593
        %v10668 = vsub.f32 %v10362, %v10596
        %v10669 = vsub.f32 %v10367, %v10599
        %v10670 = vsub.f32 %v10370, %v10602
        %v10671 = vsub.f32 %v10375, %v10605
        %v10672 = vsub.f32 %v10378, %v10608
        %v10673 = vsub.f32 %v10441, %v10611
        %v10674 = vsub.f32 %v10444, %v10614
        %v10675 = vsub.f32 %v10449, %v10617
        %v10676 = vsub.f32 %v10452, %v10620
        %v10677 = vsub.f32 %v10457, %v10623
        %v10678 = vsub.f32 %v10460, %v10626
        %v10679 = vsub.f32 %v10465, %v10629
        %v10680 = vsub.f32 %v10468, %v10632
        %v10681 = vsub.f32 %v10531, %v10635
        %v10682 = vsub.f32 %v10534, %v10638
        %v10683 = vsub.f32 %v10539, %v10641
        %v10684 = vsub.f32 %v10542, %v10644
        %v10685 = vsub.f32 %v10547, %v10647
        %v10686 = vsub.f32 %v10550, %v10650
        %v10687 = vsub.f32 %v10555, %v10653
        %v10688 = vsub.f32 %v10558, %v10656
        %v10689 = vmul.f32 %v10657, 1.442695
        %v10690 = vpow.pop %v10689
        %v10691 = vmul.f32 %v10658, 1.442695
        %v10692 = vpow.pop %v10691
        %v10693 = vmul.f32 %v10659, 1.442695
        %v10694 = vpow.pop %v10693
        %v10695 = vmul.f32 %v10660, 1.442695
        %v10696 = vpow.pop %v10695
        %v10697 = vmul.f32 %v10661, 1.442695
        %v10698 = vpow.pop %v10697
        %v10699 = vmul.f32 %v10662, 1.442695
        %v10700 = vpow.pop %v10699
        %v10701 = vmul.f32 %v10663, 1.442695
        %v10702 = vpow.pop %v10701
        %v10703 = vmul.f32 %v10664, 1.442695
        %v10704 = vpow.pop %v10703
        %v10705 = vmul.f32 %v10665, 1.442695
        %v10706 = vpow.pop %v10705
        %v10707 = vmul.f32 %v10666, 1.442695
        %v10708 = vpow.pop %v10707
        %v10709 = vmul.f32 %v10667, 1.442695
        %v10710 = vpow.pop %v10709
        %v10711 = vmul.f32 %v10668, 1.442695
        %v10712 = vpow.pop %v10711
        %v10713 = vmul.f32 %v10669, 1.442695
        %v10714 = vpow.pop %v10713
        %v10715 = vmul.f32 %v10670, 1.442695
        %v10716 = vpow.pop %v10715
        %v10717 = vmul.f32 %v10671, 1.442695
        %v10718 = vpow.pop %v10717
        %v10719 = vmul.f32 %v10672, 1.442695
        %v10720 = vpow.pop %v10719
        %v10721 = vmul.f32 %v10673, 1.442695
        %v10722 = vpow.pop %v10721
        %v10723 = vmul.f32 %v10674, 1.442695
        %v10724 = vpow.pop %v10723
        %v10725 = vmul.f32 %v10675, 1.442695
        %v10726 = vpow.pop %v10725
        %v10727 = vmul.f32 %v10676, 1.442695
        %v10728 = vpow.pop %v10727
        %v10729 = vmul.f32 %v10677, 1.442695
        %v10730 = vpow.pop %v10729
        %v10731 = vmul.f32 %v10678, 1.442695
        %v10732 = vpow.pop %v10731
        %v10733 = vmul.f32 %v10679, 1.442695
        %v10734 = vpow.pop %v10733
        %v10735 = vmul.f32 %v10680, 1.442695
        %v10736 = vpow.pop %v10735
        %v10737 = vmul.f32 %v10681, 1.442695
        %v10738 = vpow.pop %v10737
        %v10739 = vmul.f32 %v10682, 1.442695
        %v10740 = vpow.pop %v10739
        %v10741 = vmul.f32 %v10683, 1.442695
        %v10742 = vpow.pop %v10741
        %v10743 = vmul.f32 %v10684, 1.442695
        %v10744 = vpow.pop %v10743
        %v10745 = vmul.f32 %v10685, 1.442695
        %v10746 = vpow.pop %v10745
        %v10747 = vmul.f32 %v10686, 1.442695
        %v10748 = vpow.pop %v10747
        %v10749 = vmul.f32 %v10687, 1.442695
        %v10750 = vpow.pop %v10749
        %v10751 = vmul.f32 %v10688, 1.442695
        %v10752 = vpow.pop %v10751
        %v10753 = vsel %vm355, %v10690, 0.0
        %10754 = vadd.xlane.f32.xlu0 %v10753
        %v10755 = vpop.xlane.xlu0 %10754
        %v10756 = vsel %vm355, %v10692, 0.0
        %10757 = vadd.xlane.f32.xlu0 %v10756
        %v10758 = vpop.xlane.xlu0 %10757
        %v10759 = vsel %vm355, %v10694, 0.0
        %10760 = vadd.xlane.f32.xlu0 %v10759
        %v10761 = vpop.xlane.xlu0 %10760
        %v10762 = vsel %vm355, %v10696, 0.0
        %10763 = vadd.xlane.f32.xlu0 %v10762
        %v10764 = vpop.xlane.xlu0 %10763
        %v10765 = vsel %vm355, %v10698, 0.0
        %10766 = vadd.xlane.f32.xlu0 %v10765
        %v10767 = vpop.xlane.xlu0 %10766
        %v10768 = vsel %vm355, %v10700, 0.0
        %10769 = vadd.xlane.f32.xlu0 %v10768
        %v10770 = vpop.xlane.xlu0 %10769
        %v10771 = vsel %vm355, %v10702, 0.0
        %10772 = vadd.xlane.f32.xlu0 %v10771
        %v10773 = vpop.xlane.xlu0 %10772
        %v10774 = vsel %vm355, %v10704, 0.0
        %10775 = vadd.xlane.f32.xlu0 %v10774
        %v10776 = vpop.xlane.xlu0 %10775
        %v10777 = vsel %vm355, %v10706, 0.0
        %10778 = vadd.xlane.f32.xlu0 %v10777
        %v10779 = vpop.xlane.xlu0 %10778
        %v10780 = vsel %vm355, %v10708, 0.0
        %10781 = vadd.xlane.f32.xlu0 %v10780
        %v10782 = vpop.xlane.xlu0 %10781
        %v10783 = vsel %vm355, %v10710, 0.0
        %10784 = vadd.xlane.f32.xlu0 %v10783
        %v10785 = vpop.xlane.xlu0 %10784
        %v10786 = vsel %vm355, %v10712, 0.0
        %10787 = vadd.xlane.f32.xlu0 %v10786
        %v10788 = vpop.xlane.xlu0 %10787
        %v10789 = vsel %vm355, %v10714, 0.0
        %10790 = vadd.xlane.f32.xlu0 %v10789
        %v10791 = vpop.xlane.xlu0 %10790
        %v10792 = vsel %vm355, %v10716, 0.0
        %10793 = vadd.xlane.f32.xlu0 %v10792
        %v10794 = vpop.xlane.xlu0 %10793
        %v10795 = vsel %vm355, %v10718, 0.0
        %10796 = vadd.xlane.f32.xlu0 %v10795
        %v10797 = vpop.xlane.xlu0 %10796
        %v10798 = vsel %vm355, %v10720, 0.0
        %10799 = vadd.xlane.f32.xlu0 %v10798
        %v10800 = vpop.xlane.xlu0 %10799
        %v10801 = vsel %vm355, %v10722, 0.0
        %10802 = vadd.xlane.f32.xlu0 %v10801
        %v10803 = vpop.xlane.xlu0 %10802
        %v10804 = vsel %vm355, %v10724, 0.0
        %10805 = vadd.xlane.f32.xlu0 %v10804
        %v10806 = vpop.xlane.xlu0 %10805
        %v10807 = vsel %vm355, %v10726, 0.0
        %10808 = vadd.xlane.f32.xlu0 %v10807
        %v10809 = vpop.xlane.xlu0 %10808
        %v10810 = vsel %vm355, %v10728, 0.0
        %10811 = vadd.xlane.f32.xlu0 %v10810
        %v10812 = vpop.xlane.xlu0 %10811
        %v10813 = vsel %vm355, %v10730, 0.0
        %10814 = vadd.xlane.f32.xlu0 %v10813
        %v10815 = vpop.xlane.xlu0 %10814
        %v10816 = vsel %vm355, %v10732, 0.0
        %10817 = vadd.xlane.f32.xlu0 %v10816
        %v10818 = vpop.xlane.xlu0 %10817
        %v10819 = vsel %vm355, %v10734, 0.0
        %10820 = vadd.xlane.f32.xlu0 %v10819
        %v10821 = vpop.xlane.xlu0 %10820
        %v10822 = vsel %vm355, %v10736, 0.0
        %10823 = vadd.xlane.f32.xlu0 %v10822
        %v10824 = vpop.xlane.xlu0 %10823
        %v10825 = vsel %vm355, %v10738, 0.0
        %10826 = vadd.xlane.f32.xlu0 %v10825
        %v10827 = vpop.xlane.xlu0 %10826
        %v10828 = vsel %vm355, %v10740, 0.0
        %10829 = vadd.xlane.f32.xlu0 %v10828
        %v10830 = vpop.xlane.xlu0 %10829
        %v10831 = vsel %vm355, %v10742, 0.0
        %10832 = vadd.xlane.f32.xlu0 %v10831
        %v10833 = vpop.xlane.xlu0 %10832
        %v10834 = vsel %vm355, %v10744, 0.0
        %10835 = vadd.xlane.f32.xlu0 %v10834
        %v10836 = vpop.xlane.xlu0 %10835
        %v10837 = vsel %vm355, %v10746, 0.0
        %10838 = vadd.xlane.f32.xlu0 %v10837
        %v10839 = vpop.xlane.xlu0 %10838
        %v10840 = vsel %vm355, %v10748, 0.0
        %10841 = vadd.xlane.f32.xlu0 %v10840
        %v10842 = vpop.xlane.xlu0 %10841
        %v10843 = vsel %vm355, %v10750, 0.0
        %10844 = vadd.xlane.f32.xlu0 %v10843
        %v10845 = vpop.xlane.xlu0 %10844
        %v10846 = vsel %vm355, %v10752, 0.0
        %10847 = vadd.xlane.f32.xlu0 %v10846
        %v10848 = vpop.xlane.xlu0 %10847
        %v10849 = vrcp.pop %v10755
        %v10850 = vrcp.pop %v10758
        %v10851 = vrcp.pop %v10761
        %v10852 = vrcp.pop %v10764
        %v10853 = vrcp.pop %v10767
        %v10854 = vrcp.pop %v10770
        %v10855 = vrcp.pop %v10773
        %v10856 = vrcp.pop %v10776
        %v10857 = vrcp.pop %v10779
        %v10858 = vrcp.pop %v10782
        %v10859 = vrcp.pop %v10785
        %v10860 = vrcp.pop %v10788
        %v10861 = vrcp.pop %v10791
        %v10862 = vrcp.pop %v10794
        %v10863 = vrcp.pop %v10797
        %v10864 = vrcp.pop %v10800
        %v10865 = vrcp.pop %v10803
        %v10866 = vrcp.pop %v10806
        %v10867 = vrcp.pop %v10809
        %v10868 = vrcp.pop %v10812
        %v10869 = vrcp.pop %v10815
        %v10870 = vrcp.pop %v10818
        %v10871 = vrcp.pop %v10821
        %v10872 = vrcp.pop %v10824
        %v10873 = vrcp.pop %v10827
        %v10874 = vrcp.pop %v10830
        %v10875 = vrcp.pop %v10833
        %v10876 = vrcp.pop %v10836
        %v10877 = vrcp.pop %v10839
        %v10878 = vrcp.pop %v10842
        %v10879 = vrcp.pop %v10845
        %v10880 = vrcp.pop %v10848
        %v10881 = vmul.f32 %v10690, %v10849
        %v10882 = vmul.f32 %v10692, %v10850
        %v10883 = vmul.f32 %v10694, %v10851
        %v10884 = vmul.f32 %v10696, %v10852
        %v10885 = vmul.f32 %v10698, %v10853
        %v10886 = vmul.f32 %v10700, %v10854
        %v10887 = vmul.f32 %v10702, %v10855
        %v10888 = vmul.f32 %v10704, %v10856
        %v10889 = vmul.f32 %v10706, %v10857
        %v10890 = vmul.f32 %v10708, %v10858
        %v10891 = vmul.f32 %v10710, %v10859
        %v10892 = vmul.f32 %v10712, %v10860
        %v10893 = vmul.f32 %v10714, %v10861
        %v10894 = vmul.f32 %v10716, %v10862
        %v10895 = vmul.f32 %v10718, %v10863
        %v10896 = vmul.f32 %v10720, %v10864
        %v10897 = vmul.f32 %v10722, %v10865
        %v10898 = vmul.f32 %v10724, %v10866
        %v10899 = vmul.f32 %v10726, %v10867
        %v10900 = vmul.f32 %v10728, %v10868
        %v10901 = vmul.f32 %v10730, %v10869
        %v10902 = vmul.f32 %v10732, %v10870
        %v10903 = vmul.f32 %v10734, %v10871
        %v10904 = vmul.f32 %v10736, %v10872
        %v10905 = vmul.f32 %v10738, %v10873
        %v10906 = vmul.f32 %v10740, %v10874
        %v10907 = vmul.f32 %v10742, %v10875
        %v10908 = vmul.f32 %v10744, %v10876
        %v10909 = vmul.f32 %v10746, %v10877
        %v10910 = vmul.f32 %v10748, %v10878
        %v10911 = vmul.f32 %v10750, %v10879
        %v10912 = vmul.f32 %v10752, %v10880
        %v10913 = vpack.c.bf16 %v10882, %v10881
        %v10914 = vpack.c.bf16 %v10884, %v10883
        %v10915 = vpack.c.bf16 %v10886, %v10885
        %v10916 = vpack.c.bf16 %v10888, %v10887
        %v10917 = vpack.c.bf16 %v10890, %v10889
        %v10918 = vpack.c.bf16 %v10892, %v10891
        %v10919 = vpack.c.bf16 %v10894, %v10893
        %v10920 = vpack.c.bf16 %v10896, %v10895
        %v10921 = vpack.c.bf16 %v10898, %v10897
        %v10922 = vpack.c.bf16 %v10900, %v10899
        %v10923 = vpack.c.bf16 %v10902, %v10901
        %v10924 = vpack.c.bf16 %v10904, %v10903
        %v10925 = vpack.c.bf16 %v10906, %v10905
        %v10926 = vpack.c.bf16 %v10908, %v10907
        %v10927 = vpack.c.bf16 %v10910, %v10909
        %v10928 = vpack.c.bf16 %v10912, %v10911
        %10929 = vrot.lane.b32.xlu0 %v613, 72
        %v10930 = vpop.permute.xlu0 %10929
        %10931 = vrot.lane.b32.xlu0 %v614, 72
        %v10932 = vpop.permute.xlu0 %10931
        %10933 = vrot.lane.b32.xlu0 %v615, 72
        %v10934 = vpop.permute.xlu0 %10933
        %10935 = vrot.lane.b32.xlu0 %v616, 72
        %v10936 = vpop.permute.xlu0 %10935
        %v10942 = vsel %vm355, %v10913, 0
        %v10945 = vsel %vm355, %v10914, 0
        %v10948 = vsel %vm355, %v10915, 0
        %v10951 = vsel %vm355, %v10916, 0
        %10953 = vmatprep.subr.bf16.mxu0 0
        %10954 = vmatpush1.bf16.msra.mxu0 0
        %10955 = vmatprep.subr.bf16.mxu0 0
        %10956 = vmatpush1.bf16.msra.mxu0 0
        %10957 = vmatprep.subr.bf16.mxu0 0
        %10958 = vmatpush1.bf16.msra.mxu0 0
        %10959 = vmatprep.subr.bf16.mxu0 0
        %10960 = vmatpush1.bf16.msra.mxu0 0
        %10961 = vmatprep.subr.bf16.mxu0 0
        %10962 = vmatpush1.bf16.msra.mxu0 %v10936
        %10963 = vmatprep.subr.bf16.mxu0 0
        %10964 = vmatpush1.bf16.msra.mxu0 %v10934
        %10965 = vmatprep.subr.bf16.mxu0 0
        %10966 = vmatpush1.bf16.msra.mxu0 %v10932
        %10967 = vmatprep.subr.bf16.mxu0 0
        %10968 = vmatpush1.bf16.msra.mxu0 %v10930
        %10969 = vmatprep.subr.bf16.mxu0 0
        %10970 = vmatpush2.bf16.msra.mxu0 0
        %10971 = vmatprep.subr.bf16.mxu0 0
        %10972 = vmatpush2.bf16.msra.mxu0 0
        %10973 = vmatprep.subr.bf16.mxu0 0
        %10974 = vmatpush2.bf16.msra.mxu0 0
        %10975 = vmatprep.subr.bf16.mxu0 0
        %10976 = vmatpush2.bf16.msra.mxu0 0
        %10977 = vmatprep.subr.bf16.mxu0 0
        %10978 = vmatpush2.bf16.msra.mxu0 0
        %10979 = vmatprep.subr.bf16.mxu0 0
        %10980 = vmatpush2.bf16.msra.mxu0 0
        %10981 = vmatprep.subr.bf16.mxu0 0
        %10982 = vmatpush2.bf16.msra.mxu0 0
        %10983 = vmatprep.subr.bf16.mxu0 0
        %10984 = vmatpush2.bf16.msra.mxu0 0
        %10985 = vmatprep.mubr.bf16.mxu0 0
        %10986 = vmatmul.mubr.bf16.gmra.mxu0 %v10942
        %v10987 = vpop.f32.mrf.mxu0
        %v10988 = vadd.f32 0.0, %v10987
        %v10989 = vpop.f32.mrf.mxu0
        %v10990 = vpop.f32.mrf.mxu0
        %v10991 = vadd.f32 0.0, %v10990
        %v10992 = vpop.f32.mrf.mxu0
        %10993 = vmatprep.mubr.bf16.mxu0 0
        %10994 = vmatmul.mubr.bf16.gmra.mxu0 %v10945
        %v10995 = vpop.f32.mrf.mxu0
        %v10996 = vadd.f32 0.0, %v10995
        %v10997 = vpop.f32.mrf.mxu0
        %v10998 = vpop.f32.mrf.mxu0
        %v10999 = vadd.f32 0.0, %v10998
        %v11000 = vpop.f32.mrf.mxu0
        %11001 = vmatprep.mubr.bf16.mxu0 0
        %11002 = vmatmul.mubr.bf16.gmra.mxu0 %v10948
        %v11003 = vpop.f32.mrf.mxu0
        %v11004 = vadd.f32 0.0, %v11003
        %v11005 = vpop.f32.mrf.mxu0
        %v11006 = vpop.f32.mrf.mxu0
        %v11007 = vadd.f32 0.0, %v11006
        %v11008 = vpop.f32.mrf.mxu0
        %11009 = vmatprep.mubr.bf16.mxu0 0
        %11010 = vmatmul.mubr.bf16.gmra.mxu0 %v10951
        %v11011 = vpop.f32.mrf.mxu0
        %v11012 = vadd.f32 0.0, %v11011
        %v11013 = vpop.f32.mrf.mxu0
        %v11014 = vpop.f32.mrf.mxu0
        %v11015 = vadd.f32 0.0, %v11014
        %v11016 = vpop.f32.mrf.mxu0
        %11017 = vdwg.mxu0
        %11018 = vrot.lane.b32.xlu0 %v617, 72
        %v11019 = vpop.permute.xlu0 %11018
        %11020 = vrot.lane.b32.xlu0 %v618, 72
        %v11021 = vpop.permute.xlu0 %11020
        %11022 = vrot.lane.b32.xlu0 %v619, 72
        %v11023 = vpop.permute.xlu0 %11022
        %11024 = vrot.lane.b32.xlu0 %v620, 72
        %v11025 = vpop.permute.xlu0 %11024
        %v11031 = vsel %vm355, %v10917, 0
        %v11034 = vsel %vm355, %v10918, 0
        %v11037 = vsel %vm355, %v10919, 0
        %v11040 = vsel %vm355, %v10920, 0
        %11042 = vmatprep.subr.bf16.mxu0 0
        %11043 = vmatpush1.bf16.msra.mxu0 0
        %11044 = vmatprep.subr.bf16.mxu0 0
        %11045 = vmatpush1.bf16.msra.mxu0 0
        %11046 = vmatprep.subr.bf16.mxu0 0
        %11047 = vmatpush1.bf16.msra.mxu0 0
        %11048 = vmatprep.subr.bf16.mxu0 0
        %11049 = vmatpush1.bf16.msra.mxu0 0
        %11050 = vmatprep.subr.bf16.mxu0 0
        %11051 = vmatpush1.bf16.msra.mxu0 %v11025
        %11052 = vmatprep.subr.bf16.mxu0 0
        %11053 = vmatpush1.bf16.msra.mxu0 %v11023
        %11054 = vmatprep.subr.bf16.mxu0 0
        %11055 = vmatpush1.bf16.msra.mxu0 %v11021
        %11056 = vmatprep.subr.bf16.mxu0 0
        %11057 = vmatpush1.bf16.msra.mxu0 %v11019
        %11058 = vmatprep.subr.bf16.mxu0 0
        %11059 = vmatpush2.bf16.msra.mxu0 0
        %11060 = vmatprep.subr.bf16.mxu0 0
        %11061 = vmatpush2.bf16.msra.mxu0 0
        %11062 = vmatprep.subr.bf16.mxu0 0
        %11063 = vmatpush2.bf16.msra.mxu0 0
        %11064 = vmatprep.subr.bf16.mxu0 0
        %11065 = vmatpush2.bf16.msra.mxu0 0
        %11066 = vmatprep.subr.bf16.mxu0 0
        %11067 = vmatpush2.bf16.msra.mxu0 0
        %11068 = vmatprep.subr.bf16.mxu0 0
        %11069 = vmatpush2.bf16.msra.mxu0 0
        %11070 = vmatprep.subr.bf16.mxu0 0
        %11071 = vmatpush2.bf16.msra.mxu0 0
        %11072 = vmatprep.subr.bf16.mxu0 0
        %11073 = vmatpush2.bf16.msra.mxu0 0
        %11074 = vmatprep.mubr.bf16.mxu0 0
        %11075 = vmatmul.mubr.bf16.gmra.mxu0 %v11031
        %v11076 = vpop.f32.mrf.mxu0
        %v11077 = vadd.f32 0.0, %v11076
        %v11078 = vpop.f32.mrf.mxu0
        %v11079 = vpop.f32.mrf.mxu0
        %v11080 = vadd.f32 0.0, %v11079
        %v11081 = vpop.f32.mrf.mxu0
        %11082 = vmatprep.mubr.bf16.mxu0 0
        %11083 = vmatmul.mubr.bf16.gmra.mxu0 %v11034
        %v11084 = vpop.f32.mrf.mxu0
        %v11085 = vadd.f32 0.0, %v11084
        %v11086 = vpop.f32.mrf.mxu0
        %v11087 = vpop.f32.mrf.mxu0
        %v11088 = vadd.f32 0.0, %v11087
        %v11089 = vpop.f32.mrf.mxu0
        %11090 = vmatprep.mubr.bf16.mxu0 0
        %11091 = vmatmul.mubr.bf16.gmra.mxu0 %v11037
        %v11092 = vpop.f32.mrf.mxu0
        %v11093 = vadd.f32 0.0, %v11092
        %v11094 = vpop.f32.mrf.mxu0
        %v11095 = vpop.f32.mrf.mxu0
        %v11096 = vadd.f32 0.0, %v11095
        %v11097 = vpop.f32.mrf.mxu0
        %11098 = vmatprep.mubr.bf16.mxu0 0
        %11099 = vmatmul.mubr.bf16.gmra.mxu0 %v11040
        %v11100 = vpop.f32.mrf.mxu0
        %v11101 = vadd.f32 0.0, %v11100
        %v11102 = vpop.f32.mrf.mxu0
        %v11103 = vpop.f32.mrf.mxu0
        %v11104 = vadd.f32 0.0, %v11103
        %v11105 = vpop.f32.mrf.mxu0
        %11106 = vdwg.mxu0
        %11107 = vrot.lane.b32.xlu0 %v621, 72
        %v11108 = vpop.permute.xlu0 %11107
        %11109 = vrot.lane.b32.xlu0 %v622, 72
        %v11110 = vpop.permute.xlu0 %11109
        %11111 = vrot.lane.b32.xlu0 %v623, 72
        %v11112 = vpop.permute.xlu0 %11111
        %11113 = vrot.lane.b32.xlu0 %v624, 72
        %v11114 = vpop.permute.xlu0 %11113
        %v11120 = vsel %vm355, %v10921, 0
        %v11123 = vsel %vm355, %v10922, 0
        %v11126 = vsel %vm355, %v10923, 0
        %v11129 = vsel %vm355, %v10924, 0
        %11131 = vmatprep.subr.bf16.mxu0 0
        %11132 = vmatpush1.bf16.msra.mxu0 0
        %11133 = vmatprep.subr.bf16.mxu0 0
        %11134 = vmatpush1.bf16.msra.mxu0 0
        %11135 = vmatprep.subr.bf16.mxu0 0
        %11136 = vmatpush1.bf16.msra.mxu0 0
        %11137 = vmatprep.subr.bf16.mxu0 0
        %11138 = vmatpush1.bf16.msra.mxu0 0
        %11139 = vmatprep.subr.bf16.mxu0 0
        %11140 = vmatpush1.bf16.msra.mxu0 %v11114
        %11141 = vmatprep.subr.bf16.mxu0 0
        %11142 = vmatpush1.bf16.msra.mxu0 %v11112
        %11143 = vmatprep.subr.bf16.mxu0 0
        %11144 = vmatpush1.bf16.msra.mxu0 %v11110
        %11145 = vmatprep.subr.bf16.mxu0 0
        %11146 = vmatpush1.bf16.msra.mxu0 %v11108
        %11147 = vmatprep.subr.bf16.mxu0 0
        %11148 = vmatpush2.bf16.msra.mxu0 0
        %11149 = vmatprep.subr.bf16.mxu0 0
        %11150 = vmatpush2.bf16.msra.mxu0 0
        %11151 = vmatprep.subr.bf16.mxu0 0
        %11152 = vmatpush2.bf16.msra.mxu0 0
        %11153 = vmatprep.subr.bf16.mxu0 0
        %11154 = vmatpush2.bf16.msra.mxu0 0
        %11155 = vmatprep.subr.bf16.mxu0 0
        %11156 = vmatpush2.bf16.msra.mxu0 0
        %11157 = vmatprep.subr.bf16.mxu0 0
        %11158 = vmatpush2.bf16.msra.mxu0 0
        %11159 = vmatprep.subr.bf16.mxu0 0
        %11160 = vmatpush2.bf16.msra.mxu0 0
        %11161 = vmatprep.subr.bf16.mxu0 0
        %11162 = vmatpush2.bf16.msra.mxu0 0
        %11163 = vmatprep.mubr.bf16.mxu0 0
        %11164 = vmatmul.mubr.bf16.gmra.mxu0 %v11120
        %v11165 = vpop.f32.mrf.mxu0
        %v11166 = vadd.f32 0.0, %v11165
        %v11167 = vpop.f32.mrf.mxu0
        %v11168 = vpop.f32.mrf.mxu0
        %v11169 = vadd.f32 0.0, %v11168
        %v11170 = vpop.f32.mrf.mxu0
        %11171 = vmatprep.mubr.bf16.mxu0 0
        %11172 = vmatmul.mubr.bf16.gmra.mxu0 %v11123
        %v11173 = vpop.f32.mrf.mxu0
        %v11174 = vadd.f32 0.0, %v11173
        %v11175 = vpop.f32.mrf.mxu0
        %v11176 = vpop.f32.mrf.mxu0
        %v11177 = vadd.f32 0.0, %v11176
        %v11178 = vpop.f32.mrf.mxu0
        %11179 = vmatprep.mubr.bf16.mxu0 0
        %11180 = vmatmul.mubr.bf16.gmra.mxu0 %v11126
        %v11181 = vpop.f32.mrf.mxu0
        %v11182 = vadd.f32 0.0, %v11181
        %v11183 = vpop.f32.mrf.mxu0
        %v11184 = vpop.f32.mrf.mxu0
        %v11185 = vadd.f32 0.0, %v11184
        %v11186 = vpop.f32.mrf.mxu0
        %11187 = vmatprep.mubr.bf16.mxu0 0
        %11188 = vmatmul.mubr.bf16.gmra.mxu0 %v11129
        %v11189 = vpop.f32.mrf.mxu0
        %v11190 = vadd.f32 0.0, %v11189
        %v11191 = vpop.f32.mrf.mxu0
        %v11192 = vpop.f32.mrf.mxu0
        %v11193 = vadd.f32 0.0, %v11192
        %v11194 = vpop.f32.mrf.mxu0
        %11195 = vdwg.mxu0
        %11196 = vrot.lane.b32.xlu0 %v625, 72
        %v11197 = vpop.permute.xlu0 %11196
        %11198 = vrot.lane.b32.xlu0 %v626, 72
        %v11199 = vpop.permute.xlu0 %11198
        %11200 = vrot.lane.b32.xlu0 %v627, 72
        %v11201 = vpop.permute.xlu0 %11200
        %11202 = vrot.lane.b32.xlu0 %v628, 72
        %v11203 = vpop.permute.xlu0 %11202
        %v11209 = vsel %vm355, %v10925, 0
        %v11212 = vsel %vm355, %v10926, 0
        %v11215 = vsel %vm355, %v10927, 0
        %v11218 = vsel %vm355, %v10928, 0
        %11220 = vmatprep.subr.bf16.mxu0 0
        %11221 = vmatpush1.bf16.msra.mxu0 0
        %11222 = vmatprep.subr.bf16.mxu0 0
        %11223 = vmatpush1.bf16.msra.mxu0 0
        %11224 = vmatprep.subr.bf16.mxu0 0
        %11225 = vmatpush1.bf16.msra.mxu0 0
        %11226 = vmatprep.subr.bf16.mxu0 0
        %11227 = vmatpush1.bf16.msra.mxu0 0
        %11228 = vmatprep.subr.bf16.mxu0 0
        %11229 = vmatpush1.bf16.msra.mxu0 %v11203
        %11230 = vmatprep.subr.bf16.mxu0 0
        %11231 = vmatpush1.bf16.msra.mxu0 %v11201
        %11232 = vmatprep.subr.bf16.mxu0 0
        %11233 = vmatpush1.bf16.msra.mxu0 %v11199
        %11234 = vmatprep.subr.bf16.mxu0 0
        %11235 = vmatpush1.bf16.msra.mxu0 %v11197
        %11236 = vmatprep.subr.bf16.mxu0 0
        %11237 = vmatpush2.bf16.msra.mxu0 0
        %11238 = vmatprep.subr.bf16.mxu0 0
        %11239 = vmatpush2.bf16.msra.mxu0 0
        %11240 = vmatprep.subr.bf16.mxu0 0
        %11241 = vmatpush2.bf16.msra.mxu0 0
        %11242 = vmatprep.subr.bf16.mxu0 0
        %11243 = vmatpush2.bf16.msra.mxu0 0
        %11244 = vmatprep.subr.bf16.mxu0 0
        %11245 = vmatpush2.bf16.msra.mxu0 0
        %11246 = vmatprep.subr.bf16.mxu0 0
        %11247 = vmatpush2.bf16.msra.mxu0 0
        %11248 = vmatprep.subr.bf16.mxu0 0
        %11249 = vmatpush2.bf16.msra.mxu0 0
        %11250 = vmatprep.subr.bf16.mxu0 0
        %11251 = vmatpush2.bf16.msra.mxu0 0
        %11252 = vmatprep.mubr.bf16.mxu0 0
        %11253 = vmatmul.mubr.bf16.gmra.mxu0 %v11209
        %v11254 = vpop.f32.mrf.mxu0
        %v11255 = vadd.f32 0.0, %v11254
        %v11256 = vpop.f32.mrf.mxu0
        %v11257 = vpop.f32.mrf.mxu0
        %v11258 = vadd.f32 0.0, %v11257
        %v11259 = vpop.f32.mrf.mxu0
        %11260 = vmatprep.mubr.bf16.mxu0 0
        %11261 = vmatmul.mubr.bf16.gmra.mxu0 %v11212
        %v11262 = vpop.f32.mrf.mxu0
        %v11263 = vadd.f32 0.0, %v11262
        %v11264 = vpop.f32.mrf.mxu0
        %v11265 = vpop.f32.mrf.mxu0
        %v11266 = vadd.f32 0.0, %v11265
        %v11267 = vpop.f32.mrf.mxu0
        %11268 = vmatprep.mubr.bf16.mxu0 0
        %11269 = vmatmul.mubr.bf16.gmra.mxu0 %v11215
        %v11270 = vpop.f32.mrf.mxu0
        %v11271 = vadd.f32 0.0, %v11270
        %v11272 = vpop.f32.mrf.mxu0
        %v11273 = vpop.f32.mrf.mxu0
        %v11274 = vadd.f32 0.0, %v11273
        %v11275 = vpop.f32.mrf.mxu0
        %11276 = vmatprep.mubr.bf16.mxu0 0
        %11277 = vmatmul.mubr.bf16.gmra.mxu0 %v11218
        %v11278 = vpop.f32.mrf.mxu0
        %v11279 = vadd.f32 0.0, %v11278
        %v11280 = vpop.f32.mrf.mxu0
        %v11281 = vpop.f32.mrf.mxu0
        %v11282 = vadd.f32 0.0, %v11281
        %v11283 = vpop.f32.mrf.mxu0
        %11284 = vdwg.mxu0
        %v11285 = vpack.c.bf16 %v10991, %v10988
        %v11286 = vpack.c.bf16 %v10999, %v10996
        %v11287 = vpack.c.bf16 %v11007, %v11004
        %v11288 = vpack.c.bf16 %v11015, %v11012
        %v11289 = vpack.c.bf16 %v11080, %v11077
        %v11290 = vpack.c.bf16 %v11088, %v11085
        %v11291 = vpack.c.bf16 %v11096, %v11093
        %v11292 = vpack.c.bf16 %v11104, %v11101
        %v11293 = vpack.c.bf16 %v11169, %v11166
        %v11294 = vpack.c.bf16 %v11177, %v11174
        %v11295 = vpack.c.bf16 %v11185, %v11182
        %v11296 = vpack.c.bf16 %v11193, %v11190
        %v11297 = vpack.c.bf16 %v11258, %v11255
        %v11298 = vpack.c.bf16 %v11266, %v11263
        %v11299 = vpack.c.bf16 %v11274, %v11271
        %v11300 = vpack.c.bf16 %v11282, %v11279
        %v11301 = vld [vmem:[%s3 + $0x1c] sm:$0xf]
        %v11303 = vsel %vm928, %v11285, 0
        %v11306 = vsel %vm928, %v11286, 0
        %v11309 = vsel %vm928, %v11287, 0
        %v11312 = vsel %vm928, %v11288, 0
        %v11315 = vsel %vm928, %v11289, 0
        %v11318 = vsel %vm928, %v11290, 0
        %v11321 = vsel %vm928, %v11291, 0
        %v11324 = vsel %vm928, %v11292, 0
        %v11327 = vsel %vm928, %v11293, 0
        %v11330 = vsel %vm928, %v11294, 0
        %v11333 = vsel %vm928, %v11295, 0
        %v11336 = vsel %vm928, %v11296, 0
        %v11339 = vsel %vm928, %v11297, 0
        %v11342 = vsel %vm928, %v11298, 0
        %v11345 = vsel %vm928, %v11299, 0
        %v11348 = vsel %vm928, %v11300, 0
        %v11351 = vsel %vm941, %v11301, 0
        %11353 = vmatprep.subr.bf16.mxu0 0
        %11354 = vmatpush1.bf16.msra.mxu0 0
        %11355 = vmatprep.subr.bf16.mxu0 0
        %11356 = vmatpush1.bf16.msra.mxu0 0
        %11357 = vmatprep.subr.bf16.mxu0 0
        %11358 = vmatpush1.bf16.msra.mxu0 0
        %11359 = vmatprep.subr.bf16.mxu0 0
        %11360 = vmatpush1.bf16.msra.mxu0 0
        %11361 = vmatprep.subr.bf16.mxu0 0
        %11362 = vmatpush1.bf16.msra.mxu0 0
        %11363 = vmatprep.subr.bf16.mxu0 0
        %11364 = vmatpush1.bf16.msra.mxu0 0
        %11365 = vmatprep.subr.bf16.mxu0 0
        %11366 = vmatpush1.bf16.msra.mxu0 0
        %11367 = vmatprep.subr.bf16.mxu0 0
        %11368 = vmatpush1.bf16.msra.mxu0 %v11351
        %11369 = vmatprep.subr.bf16.mxu0 0
        %11370 = vmatpush2.bf16.msra.mxu0 0
        %11371 = vmatprep.subr.bf16.mxu0 0
        %11372 = vmatpush2.bf16.msra.mxu0 0
        %11373 = vmatprep.subr.bf16.mxu0 0
        %11374 = vmatpush2.bf16.msra.mxu0 0
        %11375 = vmatprep.subr.bf16.mxu0 0
        %11376 = vmatpush2.bf16.msra.mxu0 0
        %11377 = vmatprep.subr.bf16.mxu0 0
        %11378 = vmatpush2.bf16.msra.mxu0 0
        %11379 = vmatprep.subr.bf16.mxu0 0
        %11380 = vmatpush2.bf16.msra.mxu0 0
        %11381 = vmatprep.subr.bf16.mxu0 0
        %11382 = vmatpush2.bf16.msra.mxu0 0
        %11383 = vmatprep.subr.bf16.mxu0 0
        %11384 = vmatpush2.bf16.msra.mxu0 0
        %11385 = vmatprep.mubr.bf16.mxu0 0
        %11386 = vmatmul.mubr.bf16.gmra.mxu0 %v11303
        %v11387 = vpop.f32.mrf.mxu0
        %v11388 = vadd.f32 0.0, %v11387
        %v11389 = vpop.f32.mrf.mxu0
        %v11390 = vpop.f32.mrf.mxu0
        %v11391 = vadd.f32 0.0, %v11390
        %v11392 = vpop.f32.mrf.mxu0
        %11393 = vmatprep.mubr.bf16.mxu0 0
        %11394 = vmatmul.mubr.bf16.gmra.mxu0 %v11306
        %v11395 = vpop.f32.mrf.mxu0
        %v11396 = vadd.f32 0.0, %v11395
        %v11397 = vpop.f32.mrf.mxu0
        %v11398 = vpop.f32.mrf.mxu0
        %v11399 = vadd.f32 0.0, %v11398
        %v11400 = vpop.f32.mrf.mxu0
        %11401 = vmatprep.mubr.bf16.mxu0 0
        %11402 = vmatmul.mubr.bf16.gmra.mxu0 %v11309
        %v11403 = vpop.f32.mrf.mxu0
        %v11404 = vadd.f32 0.0, %v11403
        %v11405 = vpop.f32.mrf.mxu0
        %v11406 = vpop.f32.mrf.mxu0
        %v11407 = vadd.f32 0.0, %v11406
        %v11408 = vpop.f32.mrf.mxu0
        %11409 = vmatprep.mubr.bf16.mxu0 0
        %11410 = vmatmul.mubr.bf16.gmra.mxu0 %v11312
        %v11411 = vpop.f32.mrf.mxu0
        %v11412 = vadd.f32 0.0, %v11411
        %v11413 = vpop.f32.mrf.mxu0
        %v11414 = vpop.f32.mrf.mxu0
        %v11415 = vadd.f32 0.0, %v11414
        %v11416 = vpop.f32.mrf.mxu0
        %11417 = vmatprep.mubr.bf16.mxu0 0
        %11418 = vmatmul.mubr.bf16.gmra.mxu0 %v11315
        %v11419 = vpop.f32.mrf.mxu0
        %v11420 = vadd.f32 0.0, %v11419
        %v11421 = vpop.f32.mrf.mxu0
        %v11422 = vpop.f32.mrf.mxu0
        %v11423 = vadd.f32 0.0, %v11422
        %v11424 = vpop.f32.mrf.mxu0
        %11425 = vmatprep.mubr.bf16.mxu0 0
        %11426 = vmatmul.mubr.bf16.gmra.mxu0 %v11318
        %v11427 = vpop.f32.mrf.mxu0
        %v11428 = vadd.f32 0.0, %v11427
        %v11429 = vpop.f32.mrf.mxu0
        %v11430 = vpop.f32.mrf.mxu0
        %v11431 = vadd.f32 0.0, %v11430
        %v11432 = vpop.f32.mrf.mxu0
        %11433 = vmatprep.mubr.bf16.mxu0 0
        %11434 = vmatmul.mubr.bf16.gmra.mxu0 %v11321
        %v11435 = vpop.f32.mrf.mxu0
        %v11436 = vadd.f32 0.0, %v11435
        %v11437 = vpop.f32.mrf.mxu0
        %v11438 = vpop.f32.mrf.mxu0
        %v11439 = vadd.f32 0.0, %v11438
        %v11440 = vpop.f32.mrf.mxu0
        %11441 = vmatprep.mubr.bf16.mxu0 0
        %11442 = vmatmul.mubr.bf16.gmra.mxu0 %v11324
        %v11443 = vpop.f32.mrf.mxu0
        %v11444 = vadd.f32 0.0, %v11443
        %v11445 = vpop.f32.mrf.mxu0
        %v11446 = vpop.f32.mrf.mxu0
        %v11447 = vadd.f32 0.0, %v11446
        %v11448 = vpop.f32.mrf.mxu0
        %11449 = vmatprep.mubr.bf16.mxu0 0
        %11450 = vmatmul.mubr.bf16.gmra.mxu0 %v11327
        %v11451 = vpop.f32.mrf.mxu0
        %v11452 = vadd.f32 0.0, %v11451
        %v11453 = vpop.f32.mrf.mxu0
        %v11454 = vpop.f32.mrf.mxu0
        %v11455 = vadd.f32 0.0, %v11454
        %v11456 = vpop.f32.mrf.mxu0
        %11457 = vmatprep.mubr.bf16.mxu0 0
        %11458 = vmatmul.mubr.bf16.gmra.mxu0 %v11330
        %v11459 = vpop.f32.mrf.mxu0
        %v11460 = vadd.f32 0.0, %v11459
        %v11461 = vpop.f32.mrf.mxu0
        %v11462 = vpop.f32.mrf.mxu0
        %v11463 = vadd.f32 0.0, %v11462
        %v11464 = vpop.f32.mrf.mxu0
        %11465 = vmatprep.mubr.bf16.mxu0 0
        %11466 = vmatmul.mubr.bf16.gmra.mxu0 %v11333
        %v11467 = vpop.f32.mrf.mxu0
        %v11468 = vadd.f32 0.0, %v11467
        %v11469 = vpop.f32.mrf.mxu0
        %v11470 = vpop.f32.mrf.mxu0
        %v11471 = vadd.f32 0.0, %v11470
        %v11472 = vpop.f32.mrf.mxu0
        %11473 = vmatprep.mubr.bf16.mxu0 0
        %11474 = vmatmul.mubr.bf16.gmra.mxu0 %v11336
        %v11475 = vpop.f32.mrf.mxu0
        %v11476 = vadd.f32 0.0, %v11475
        %v11477 = vpop.f32.mrf.mxu0
        %v11478 = vpop.f32.mrf.mxu0
        %v11479 = vadd.f32 0.0, %v11478
        %v11480 = vpop.f32.mrf.mxu0
        %11481 = vmatprep.mubr.bf16.mxu0 0
        %11482 = vmatmul.mubr.bf16.gmra.mxu0 %v11339
        %v11483 = vpop.f32.mrf.mxu0
        %v11484 = vadd.f32 0.0, %v11483
        %v11485 = vpop.f32.mrf.mxu0
        %v11486 = vpop.f32.mrf.mxu0
        %v11487 = vadd.f32 0.0, %v11486
        %v11488 = vpop.f32.mrf.mxu0
        %11489 = vmatprep.mubr.bf16.mxu0 0
        %11490 = vmatmul.mubr.bf16.gmra.mxu0 %v11342
        %v11491 = vpop.f32.mrf.mxu0
        %v11492 = vadd.f32 0.0, %v11491
        %v11493 = vpop.f32.mrf.mxu0
        %v11494 = vpop.f32.mrf.mxu0
        %v11495 = vadd.f32 0.0, %v11494
        %v11496 = vpop.f32.mrf.mxu0
        %11497 = vmatprep.mubr.bf16.mxu0 0
        %11498 = vmatmul.mubr.bf16.gmra.mxu0 %v11345
        %v11499 = vpop.f32.mrf.mxu0
        %v11500 = vadd.f32 0.0, %v11499
        %v11501 = vpop.f32.mrf.mxu0
        %v11502 = vpop.f32.mrf.mxu0
        %v11503 = vadd.f32 0.0, %v11502
        %v11504 = vpop.f32.mrf.mxu0
        %11505 = vmatprep.mubr.bf16.mxu0 0
        %11506 = vmatmul.mubr.bf16.gmra.mxu0 %v11348
        %v11507 = vpop.f32.mrf.mxu0
        %v11508 = vadd.f32 0.0, %v11507
        %v11509 = vpop.f32.mrf.mxu0
        %v11510 = vpop.f32.mrf.mxu0
        %v11511 = vadd.f32 0.0, %v11510
        %v11512 = vpop.f32.mrf.mxu0
        %11513 = vdwg.mxu0
        %v11514 = vadd.f32 %v10169, %v11388
        %v11515 = vadd.f32 %v10170, %v11391
        %v11516 = vadd.f32 %v10171, %v11396
        %v11517 = vadd.f32 %v10172, %v11399
        %v11518 = vadd.f32 %v10173, %v11404
        %v11519 = vadd.f32 %v10174, %v11407
        %v11520 = vadd.f32 %v10175, %v11412
        %v11521 = vadd.f32 %v10176, %v11415
        %v11522 = vadd.f32 %v10177, %v11420
        %v11523 = vadd.f32 %v10178, %v11423
        %v11524 = vadd.f32 %v10179, %v11428
        %v11525 = vadd.f32 %v10180, %v11431
        %v11526 = vadd.f32 %v10181, %v11436
        %v11527 = vadd.f32 %v10182, %v11439
        %v11528 = vadd.f32 %v10183, %v11444
        %v11529 = vadd.f32 %v10184, %v11447
        %v11530 = vadd.f32 %v10185, %v11452
        %v11531 = vadd.f32 %v10186, %v11455
        %v11532 = vadd.f32 %v10187, %v11460
        %v11533 = vadd.f32 %v10188, %v11463
        %v11534 = vadd.f32 %v10189, %v11468
        %v11535 = vadd.f32 %v10190, %v11471
        %v11536 = vadd.f32 %v10191, %v11476
        %v11537 = vadd.f32 %v10192, %v11479
        %v11538 = vadd.f32 %v10193, %v11484
        %v11539 = vadd.f32 %v10194, %v11487
        %v11540 = vadd.f32 %v10195, %v11492
        %v11541 = vadd.f32 %v10196, %v11495
        %v11542 = vadd.f32 %v10197, %v11500
        %v11543 = vadd.f32 %v10198, %v11503
        %v11544 = vadd.f32 %v10199, %v11508
        %v11545 = vadd.f32 %v10200, %v11511
        %v11546 = vld [vmem:[%s4] sm:$0x1]
        %v11548 = vlaneseq
        %v11549 = vshrl.u32 %v11548, 7
        %v11550 = vsub.s32 0, %v11549
        %v11551 = vrot.slane %v11546, %v11550
        %v11553 = vadd.f32 %v11514, %v11551
        %v11554 = vadd.f32 %v11515, %v11551
        %v11555 = vadd.f32 %v11516, %v11551
        %v11556 = vadd.f32 %v11517, %v11551
        %v11557 = vadd.f32 %v11518, %v11551
        %v11558 = vadd.f32 %v11519, %v11551
        %v11559 = vadd.f32 %v11520, %v11551
        %v11560 = vadd.f32 %v11521, %v11551
        %v11561 = vadd.f32 %v11522, %v11551
        %v11562 = vadd.f32 %v11523, %v11551
        %v11563 = vadd.f32 %v11524, %v11551
        %v11564 = vadd.f32 %v11525, %v11551
        %v11565 = vadd.f32 %v11526, %v11551
        %v11566 = vadd.f32 %v11527, %v11551
        %v11567 = vadd.f32 %v11528, %v11551
        %v11568 = vadd.f32 %v11529, %v11551
        %v11569 = vadd.f32 %v11530, %v11551
        %v11570 = vadd.f32 %v11531, %v11551
        %v11571 = vadd.f32 %v11532, %v11551
        %v11572 = vadd.f32 %v11533, %v11551
        %v11573 = vadd.f32 %v11534, %v11551
        %v11574 = vadd.f32 %v11535, %v11551
        %v11575 = vadd.f32 %v11536, %v11551
        %v11576 = vadd.f32 %v11537, %v11551
        %v11577 = vadd.f32 %v11538, %v11551
        %v11578 = vadd.f32 %v11539, %v11551
        %v11579 = vadd.f32 %v11540, %v11551
        %v11580 = vadd.f32 %v11541, %v11551
        %v11581 = vadd.f32 %v11542, %v11551
        %v11582 = vadd.f32 %v11543, %v11551
        %v11583 = vadd.f32 %v11544, %v11551
        %v11584 = vadd.f32 %v11545, %v11551
        %11585 = vst.msk [vmem:[%s243] sm:$0xff] %vm355, %v11553
        %11586 = vst.msk [vmem:[%s243 + $0x8] sm:$0xff] %vm355, %v11554
        %11587 = vst.msk [vmem:[%s243 + $0x10] sm:$0xff] %vm355, %v11555
        %11588 = vst.msk [vmem:[%s243 + $0x18] sm:$0xff] %vm355, %v11556
        %11589 = vst.msk [vmem:[%s243 + $0x20] sm:$0xff] %vm355, %v11557
        %11590 = vst.msk [vmem:[%s243 + $0x28] sm:$0xff] %vm355, %v11558
        %11591 = vst.msk [vmem:[%s243 + $0x30] sm:$0xff] %vm355, %v11559
        %11592 = vst.msk [vmem:[%s243 + $0x38] sm:$0xff] %vm355, %v11560
        %11593 = vst.msk [vmem:[%s243 + $0x40] sm:$0xff] %vm355, %v11561
        %11594 = vst.msk [vmem:[%s243 + $0x48] sm:$0xff] %vm355, %v11562
        %11595 = vst.msk [vmem:[%s243 + $0x50] sm:$0xff] %vm355, %v11563
        %11596 = vst.msk [vmem:[%s243 + $0x58] sm:$0xff] %vm355, %v11564
        %11597 = vst.msk [vmem:[%s243 + $0x60] sm:$0xff] %vm355, %v11565
        %11598 = vst.msk [vmem:[%s243 + $0x68] sm:$0xff] %vm355, %v11566
        %11599 = vst.msk [vmem:[%s243 + $0x70] sm:$0xff] %vm355, %v11567
        %11600 = vst.msk [vmem:[%s243 + $0x78] sm:$0xff] %vm355, %v11568
        %11601 = vst.msk [vmem:[%s243 + $0x80] sm:$0xff] %vm355, %v11569
        %11602 = vst.msk [vmem:[%s243 + $0x88] sm:$0xff] %vm355, %v11570
        %11603 = vst.msk [vmem:[%s243 + $0x90] sm:$0xff] %vm355, %v11571
        %11604 = vst.msk [vmem:[%s243 + $0x98] sm:$0xff] %vm355, %v11572
        %11605 = vst.msk [vmem:[%s243 + $0xa0] sm:$0xff] %vm355, %v11573
        %11606 = vst.msk [vmem:[%s243 + $0xa8] sm:$0xff] %vm355, %v11574
        %11607 = vst.msk [vmem:[%s243 + $0xb0] sm:$0xff] %vm355, %v11575
        %11608 = vst.msk [vmem:[%s243 + $0xb8] sm:$0xff] %vm355, %v11576
        %11609 = vst.msk [vmem:[%s243 + $0xc0] sm:$0xff] %vm355, %v11577
        %11610 = vst.msk [vmem:[%s243 + $0xc8] sm:$0xff] %vm355, %v11578
        %11611 = vst.msk [vmem:[%s243 + $0xd0] sm:$0xff] %vm355, %v11579
        %11612 = vst.msk [vmem:[%s243 + $0xd8] sm:$0xff] %vm355, %v11580
        %11613 = vst.msk [vmem:[%s243 + $0xe0] sm:$0xff] %vm355, %v11581
        %11614 = vst.msk [vmem:[%s243 + $0xe8] sm:$0xff] %vm355, %v11582
        %11615 = vst.msk [vmem:[%s243 + $0xf0] sm:$0xff] %vm355, %v11583
        %11616 = vst.msk [vmem:[%s243 + $0xf8] sm:$0xff] %vm355, %v11584
        %s11617 = sand.u32 %s140, 1
        %s11618 = scalar_lea.sflag [#allocation4], %s11617
        %s11619 = sand.u32 %s140, 1
        %s11620 = smul.addr %s11619, 256
        %s11621 = scalar_lea.vmem [#allocation5], %s11620
        // Predicated region
        $region45: #{attention_forward.1} parent=39 // pred_check
          %p11622 = pneg %p150
        $region46: #{attention_forward.1} parent=39 // pred_check_branch
          %11624 = sbr.rel (%p11622) target = $region48
        $region47: #{attention_forward.1} parent=39 // pred_region
          %s11625 = smul.u32 4, %s22
          %s11627 = ssub.s32 4096, 4096
          %11628 = vsyncadd %s11618, %s11627
          %s11629 = smul.addr %s11625, 8
          %s11630 = smul.addr %s11629, 128
          %s11631 = scalar_lea.hbm %s5, %s11630
          %s11632 = sshll.u32 %s11621, 4
          %s11633 = int_to_ptr.vmem [resolvable:$true] %s11632
          %11638 = dma.vmem_to_hbm [thread:$0]  %s11633, 4096, %s11631, %s11618, 128, 128, 8
        $region48: #{attention_forward.1} parent=39 // pred_fallthru
          _
      $region40: #{attention_forward.1} parent=5 // pred_fallthru
        _
      %p11639 = scmp.le.s32.totalorder 2, %s17
      // Predicated region
      $region49: #{attention_forward.1} parent=5 // pred_check
        %p11640 = pneg %p11639
      $region50: #{attention_forward.1} parent=5 // pred_check_branch
        %11642 = sbr.rel (%p11640) target = $region52
      $region51: #{attention_forward.1} parent=5 // pred_region
        %s11643 = ssub.s32 %s17, 2
        // Predicated region
        $region53: #{attention_forward.1} parent=51 // pred_check
          %p11644 = pneg %p156
        $region54: #{attention_forward.1} parent=51 // pred_check_branch
          %11646 = sbr.rel (%p11644) target = $region56
        $region55: #{attention_forward.1} parent=51 // pred_region
          %s11647 = sand.u32 %s141, 1
          %s11648 = scalar_lea.sflag [#allocation4], %s11647
          %s11649 = sand.u32 %s141, 1
          %s11650 = smul.addr %s11649, 256
          %s11651 = scalar_lea.vmem [#allocation5], %s11650
          %11652 = dma.done %s11648, 4096
        $region56: #{attention_forward.1} parent=51 // pred_fallthru
          _
      $region52: #{attention_forward.1} parent=5 // pred_fallthru
        _
    $region6: #{attention_forward.1} parent=1 // loop_footer
      %s21 = sadd.s32 1, %s17
    $region7: #{attention_forward.1} parent=1 // loop_footer_branch
      %16 = sbr.rel target = $region3
    $region8: #{attention_forward.1} parent=1 // loop_exit
      _
    %11653 = vsyncpa [#allocation3], 1
    %s11654 = scalar_lea.sflag [#allocation3], 1
    %11655 = vsyncpa %s11654, 1
    %11656 = vsyncpa [#allocation4], 1
    %s11657 = scalar_lea.sflag [#allocation4], 1
    %11658 = vsyncpa %s11657, 1

</llo_original>
